<compile_context>
chip_gen: v6e
topology: v6e:2x2x1
jax: 0.10.0
libtpu: 0.0.40
codegen_flags: <defaults>
</compile_context>

<pallas_src>
import numpy as np
import jax
import jax.numpy as jnp
from jax.experimental import pallas as pl
from jax.experimental.pallas import tpu as pltpu

# ---- constants implied by the module ----
CIN, COUT, K, PAD = 3, 16, 5, 3
HIN = WIN = 32
WPAD = WIN + 2 * PAD                   # 38  padded width
HC = HIN + 2 * PAD - K + 1             # 34  conv output spatial size
HP = WP = HC // 2                      # 17  after 2x2/2 max-pool
FEAT = COUT * HP * WP                  # 4624
HID = 32
BN_EPS = 1e-5
LEAKY_SLOPE = 0.01

NQ = 3                                 # row-shift slabs (q = 0,1,2), d = 2q + parity
DTAP = 6                               # y2 + ky ranges over [0, 6)
HPP = 26                               # rows kept per sample in merged layout (>=19, keeps 4*HPP%8==0)
HROWS = 2 * HPP                        # 52 padded image rows (3 top + 32 image + 17 zero bottom)
LANES_IN = 2 * CIN * WPAD              # 228 input lanes per row: (parity, ci, w)
KCOL = NQ * LANES_IN                   # 684 contraction dim, order (d, ci, w)
PCOL = COUT * WP                       # 272 output cols (co, x1)
PPAD = 384                             # per-phase cols padded to 3*128 (lane-aligned phase slices)
NPHASE = 4
FEATP = HPP * PCOL                     # 7072 stored features / sample (junk rows get zero W1 rows)


def _conv_tiling(n):
    """Batch tile (multiple of 4 so nb*26 is sublane aligned) and padded batch."""
    nb = max(4, min(32, 4 * ((n + 7) // 8)))   # ~n/2, capped at 32 -> >=2 grid steps for n>=5 (v7x)
    n_pad = ((n + nb - 1) // nb) * nb
    return nb, n_pad


def _fc_tile(n_pad):
    if n_pad <= 128:
        return n_pad
    for cand in (128, 64, 32, 16, 8):
        if n_pad % cand == 0:
            return cand
    return n_pad


def _cparams(sem):
    return pltpu.CompilerParams(dimension_semantics=sem,
                                vmem_limit_bytes=48 * 1024 * 1024)


# ------------ kernel 1: conv + bias + ReLU + 2x2 max-pool + BN partials -----
def _make_conv_kernel(nb):
    m = nb * HPP

    def kernel(x_ref, bmat_ref, bias_ref, sel_ref, feat_ref, ps_ref, pq_ref):
        # merged (sample*row, parity*ci*w) slab; f32 for cheap, well-supported
        # sublane-offset slicing, bf16 only for the MXU operands.
        x2d = x_ref[...].astype(jnp.float32)                    # (nb*26, 228)
        zpad = jnp.zeros((NQ - 1, LANES_IN), jnp.float32)
        xext = jnp.concatenate([x2d, zpad], axis=0)             # (nb*26+2, 228)
        # in-kernel im2col: 3 row-shifted slabs lane-concatenated -> (M, 684)
        lall = jnp.concatenate([xext[q:q + m, :] for q in range(NQ)], axis=-1)
        # one fused bf16 matmul for all 4 pool phases (lane groups of 384)
        r = jnp.dot(lall.astype(jnp.bfloat16), bmat_ref[...],
                    preferred_element_type=jnp.float32)          # (M, 1536)
        pooled = jnp.maximum(
            jnp.maximum(r[:, 0:PPAD], r[:, PPAD:2 * PPAD]),
            jnp.maximum(r[:, 2 * PPAD:3 * PPAD], r[:, 3 * PPAD:4 * PPAD]))
        # conv bias + ReLU hoisted after the phase max (bias is phase-invariant)
        feat = jnp.maximum(pooled[:, :PCOL] + bias_ref[...], 0.0)   # (M, 272) f32
        feat_ref[...] = feat.astype(feat_ref.dtype)                 # one contiguous bf16 store
        # masked per-block BatchNorm partial sums via a tiny selection matmul
        sel = sel_ref[...]                                          # (17, nb*26) f32
        ps_ref[...] = jnp.dot(sel, feat, preferred_element_type=jnp.float32)
        pq_ref[...] = jnp.dot(sel, feat * feat, preferred_element_type=jnp.float32)

    return kernel


def _conv_pool(xprep2d, bmat, bias, sel, nb, n_pad):
    nblk = n_pad // nb
    return pl.pallas_call(
        _make_conv_kernel(nb),
        out_shape=(jax.ShapeDtypeStruct((n_pad * HPP, PCOL), jnp.bfloat16),
                   jax.ShapeDtypeStruct((nblk, HP, PCOL), jnp.float32),
                   jax.ShapeDtypeStruct((nblk, HP, PCOL), jnp.float32)),
        grid=(nblk,),
        in_specs=[
            pl.BlockSpec((nb * HPP, LANES_IN), lambda i: (i, 0)),
            pl.BlockSpec((KCOL, NPHASE * PPAD), lambda i: (0, 0)),
            pl.BlockSpec((1, PCOL), lambda i: (0, 0)),
            pl.BlockSpec((None, HP, nb * HPP), lambda i: (i, 0, 0)),
        ],
        out_specs=(pl.BlockSpec((nb * HPP, PCOL), lambda i: (i, 0)),
                   pl.BlockSpec((None, HP, PCOL), lambda i: (i, 0, 0)),
                   pl.BlockSpec((None, HP, PCOL), lambda i: (i, 0, 0))),
        compiler_params=_cparams(("parallel",)),
    )(xprep2d, bmat, bias, sel)


# ------------ kernel 2: (BN-folded) Linear + LeakyReLU + Linear --------------
def _fc_forward(feat, w1, b1, w2, b2, nb_fc, n_pad):
    out_size = w2.shape[1]

    def kernel(f_ref, w1_ref, b1_ref, w2_ref, b2_ref, o_ref):
        h = jnp.dot(f_ref[...], w1_ref[...],
                    preferred_element_type=jnp.float32) + b1_ref[...]
        h = jnp.where(h >= 0.0, h, LEAKY_SLOPE * h)              # LeakyReLU(0.01)
        o_ref[...] = jnp.dot(h, w2_ref[...],
                             preferred_element_type=jnp.float32) + b2_ref[...]

    return pl.pallas_call(
        kernel,
        out_shape=jax.ShapeDtypeStruct((n_pad, out_size), jnp.float32),
        grid=(n_pad // nb_fc,),
        in_specs=[
            pl.BlockSpec((nb_fc, FEATP), lambda i: (i, 0)),
            pl.BlockSpec((FEATP, HID), lambda i: (0, 0)),
            pl.BlockSpec((1, HID), lambda i: (0, 0)),
            pl.BlockSpec((HID, out_size), lambda i: (0, 0)),
            pl.BlockSpec((1, out_size), lambda i: (0, 0)),
        ],
        out_specs=pl.BlockSpec((nb_fc, out_size), lambda i: (i, 0)),
        compiler_params=_cparams(("parallel",)),
    )(feat, w1, b1, w2, b2)


# ------------ parameter / layout prep (XLA glue, O(params) work) -------------
def _build_banded_weights(conv_w):
    """Fused banded matrix B[(d,ci,wv), phase*(co,x1 padded to 384)], (684, 1536) bf16."""
    d = jnp.arange(DTAP)
    wv = jnp.arange(WPAD)
    x1 = jnp.arange(WP)
    w_kyci = jnp.transpose(conv_w.astype(jnp.float32), (2, 1, 3, 0))  # (ky, ci, kx, co)
    mats = []
    for y2 in (0, 1):
        for x2 in (0, 1):
            ky = d - y2
            vy = (ky >= 0) & (ky < K)
            kyc = jnp.clip(ky, 0, K - 1)
            kx = wv[:, None] - (2 * x1[None, :] + x2)      # (38, 17)
            vx = (kx >= 0) & (kx < K)
            kxc = jnp.clip(kx, 0, K - 1)
            t = w_kyci[kyc]                                # (d, ci, kx, co)
            t = t[:, :, kxc, :]                            # (d, ci, wv, x1, co)
            msk = vy[:, None, None, None, None] & vx[None, None, :, :, None]
            t = jnp.where(msk, t, 0.0)
            t = jnp.transpose(t, (0, 1, 2, 4, 3))          # (d, ci, wv, co, x1)
            t = t.reshape(KCOL, PCOL)
            mats.append(jnp.pad(t, ((0, 0), (0, PPAD - PCOL))))
    return jnp.concatenate(mats, axis=1).astype(jnp.bfloat16)   # (684, 1536)


def _feature_perm():
    """old (co, y1, x1) flat index for each new (y1, co, x1) feature position."""
    y1 = np.arange(HP)[:, None, None]
    co = np.arange(COUT)[None, :, None]
    x1 = np.arange(WP)[None, None, :]
    return jnp.asarray((co * (HP * WP) + y1 * WP + x1).reshape(-1))


def neural_net_forward(x, params):
    conv_w, conv_b, gamma, beta, w1, b1, w2, b2 = params
    n = x.shape[0]
    nb, n_pad = _conv_tiling(n)
    nblk = n_pad // nb
    x = x.astype(jnp.float32)

    # ---- global standardization (torch: mean over all elems, unbiased std) ----
    mean = jnp.mean(x)
    std = jnp.std(x, ddof=1)
    xs = (x - mean) / std

    # ---- build merged (sample*row, parity*ci*w) slab layout for in-kernel im2col ----
    img = xs.reshape(n, CIN, HIN, WIN)
    xpad = jnp.pad(img, ((0, 0), (0, 0), (PAD, HROWS - HIN - PAD), (PAD, PAD)))  # (n,3,52,38)
    v = xpad.reshape(n, CIN, HPP, 2, WPAD)                      # row = 2*rr + parity
    xprep = jnp.transpose(v, (0, 2, 3, 1, 4)).reshape(n, HPP, LANES_IN)          # (n,26,228)
    xprep = jnp.pad(xprep, ((0, n_pad - n), (0, 0), (0, 0)))    # zero-pad batch
    xprep2d = xprep.reshape(n_pad * HPP, LANES_IN).astype(jnp.bfloat16)

    bmat = _build_banded_weights(conv_w)                        # (684, 1536) bf16
    bias = jnp.repeat(conv_b.astype(jnp.float32), WP)[None, :]  # (1, 272) in (co, x1) order

    # masked per-block row-selection matrices for in-kernel BN partial sums
    row = jnp.arange(nb * HPP)
    sel0 = (row[None, :] % HPP == jnp.arange(HP)[:, None]).astype(jnp.float32)   # (17, nb*26)
    valid = (jnp.arange(n_pad) < n).astype(jnp.float32).reshape(nblk, nb)
    sel = sel0[None] * jnp.repeat(valid, HPP, axis=1)[:, None, :]                # (nblk,17,nb*26)

    # ---- kernel 1: conv + bias + ReLU + max-pool, feat (bf16) + BN partials ----
    feat2d, psum, psumsq = _conv_pool(xprep2d, bmat, bias, sel, nb, n_pad)
    feat = feat2d.reshape(n_pad, FEATP)                         # (n_pad, 7072) bf16

    # TODO(synk): nn.Dropout() is stochastic in train mode; applied here as the
    # identity (eval-mode semantics).

    # ---- BatchNorm1d batch statistics (train mode, biased variance), in XLA ----
    sums = jnp.sum(psum, axis=0).reshape(FEAT)                  # feature order (y1, co, x1)
    sqs = jnp.sum(psumsq, axis=0).reshape(FEAT)
    mu_f = sums / n
    var_f = sqs / n - mu_f * mu_f
    istd_f = jax.lax.rsqrt(var_f + BN_EPS)

    # ---- fold BN affine + BN normalization + feature permutation into Linear1 ----
    w1g = w1 * gamma[:, None]                                   # (4624, 32)
    b1g = b1 + beta @ w1                                        # (32,)
    w1p = w1g[_feature_perm(), :]                               # rows -> (y1, co, x1) order
    w1n = w1p * istd_f[:, None]
    b1n = (b1g - (mu_f * istd_f) @ w1p)[None, :].astype(jnp.float32)
    w1full = jnp.concatenate(                                   # zero rows for junk features
        [w1n, jnp.zeros((FEATP - FEAT, HID), w1n.dtype)], axis=0).astype(jnp.bfloat16)

    # ---- kernel 2: Linear + LeakyReLU + Linear ----
    nb_fc = _fc_tile(n_pad)
    out = _fc_forward(feat, w1full, b1n, w2.astype(jnp.float32),
                      b2.reshape(1, -1).astype(jnp.float32), nb_fc, n_pad)
    return out[:n]


def init_params(key, out_size):
    ks = jax.random.split(key, 6)
    conv_w = jax.random.normal(ks[0], (COUT, CIN, K, K), jnp.float32) * 0.05
    conv_b = jax.random.normal(ks[1], (COUT,), jnp.float32) * 0.05
    gamma = jnp.ones((FEAT,), jnp.float32)                      # BatchNorm1d weight init
    beta = jnp.zeros((FEAT,), jnp.float32)                      # BatchNorm1d bias init
    w1 = jax.random.normal(ks[2], (FEAT, HID), jnp.float32) * 0.01    # Linear(4624,32).T
    b1 = jax.random.normal(ks[3], (HID,), jnp.float32) * 0.01
    w2 = jax.random.normal(ks[4], (HID, out_size), jnp.float32) * 0.1  # Linear(32,out).T
    b2 = jax.random.normal(ks[5], (out_size,), jnp.float32) * 0.1
    return (conv_w, conv_b, gamma, beta, w1, b1, w2, b2)


if __name__ == "__main__":
    N, OUT = 2, 8                                               # in_size = 3072 fixed by module
    key = jax.random.PRNGKey(0)
    kx_, kp_ = jax.random.split(key)
    x = jax.random.normal(kx_, (N, CIN * HIN * WIN), jnp.float32)   # (2, 3072)
    params = init_params(kp_, OUT)
    fwd = jax.jit(neural_net_forward)
    y = fwd(x, params)
    jax.block_until_ready(y)
    assert y.shape == (N, OUT) and y.dtype == jnp.float32
    print("KERNEL_OK")
</pallas_src>

<mosaic_0001>
module attributes {stable_mosaic.version = 11 : i64} {
  func.func @kernel(%arg0: i32, %arg1: memref<104x228xbf16, #tpu.memory_space<vmem>>, %arg2: memref<684x1536xbf16, #tpu.memory_space<vmem>>, %arg3: memref<1x272xf32, #tpu.memory_space<vmem>>, %arg4: memref<1x17x104xf32, #tpu.memory_space<vmem>>, %arg5: memref<104x272xbf16, #tpu.memory_space<vmem>>, %arg6: memref<1x17x272xf32, #tpu.memory_space<vmem>>, %arg7: memref<1x17x272xf32, #tpu.memory_space<vmem>>) attributes {dimension_semantics = [#tpu.dimension_semantics<parallel>], iteration_bounds = array<i64: 1>, scalar_prefetch = 0 : i64, scratch_operands = 0 : i64, tpu.core_type = #tpu.core_type<tc>, window_params = [{transform_indices = @transform_0, window_bounds = array<i64: 104, 228>}, {pipeline_mode = #tpu.pipeline_mode<synchronous>, transform_indices = @transform_1, window_bounds = array<i64: 684, 1536>}, {pipeline_mode = #tpu.pipeline_mode<synchronous>, transform_indices = @transform_2, window_bounds = array<i64: 1, 272>}, {transform_indices = @transform_3, window_bounds = array<i64: 1, 17, 104>}, {transform_indices = @transform_4, window_bounds = array<i64: 104, 272>}, {transform_indices = @transform_5, window_bounds = array<i64: 1, 17, 272>}, {transform_indices = @transform_6, window_bounds = array<i64: 1, 17, 272>}]} {
    %c0 = arith.constant 0 : index
    %c0_0 = arith.constant 0 : index
    %0 = vector.load %arg1[%c0, %c0_0] : memref<104x228xbf16, #tpu.memory_space<vmem>>, vector<104x228xbf16>
    %1 = arith.extf %0 : vector<104x228xbf16> to vector<104x228xf32>
    %cst = arith.constant 0.000000e+00 : f32
    %2 = vector.broadcast %cst : f32 to vector<2x228xf32>
    %3 = tpu.concatenate %1, %2 in 0 : vector<104x228xf32>, vector<2x228xf32> -> vector<106x228xf32>
    %4 = vector.extract_strided_slice %3 {offsets = [0, 0], sizes = [104, 228], strides = [1, 1]} : vector<106x228xf32> to vector<104x228xf32>
    %5 = vector.extract_strided_slice %3 {offsets = [1, 0], sizes = [104, 228], strides = [1, 1]} : vector<106x228xf32> to vector<104x228xf32>
    %6 = vector.extract_strided_slice %3 {offsets = [2, 0], sizes = [104, 228], strides = [1, 1]} : vector<106x228xf32> to vector<104x228xf32>
    %7 = tpu.concatenate %4, %5, %6 in 1 : vector<104x228xf32>, vector<104x228xf32>, vector<104x228xf32> -> vector<104x684xf32>
    %8 = arith.truncf %7 : vector<104x684xf32> to vector<104x684xbf16>
    %c0_1 = arith.constant 0 : index
    %c0_2 = arith.constant 0 : index
    %9 = vector.load %arg2[%c0_1, %c0_2] : memref<684x1536xbf16, #tpu.memory_space<vmem>>, vector<684x1536xbf16>
    %cst_3 = arith.constant dense<0.000000e+00> : vector<104x1536xf32>
    %10 = tpu.matmul %8, %9, %cst_3 {dimension_numbers = #tpu.dot_dimension_numbers<[1], [0], [0], [1], [0, 0, 1, 1], [], []>} : vector<104x684xbf16>, vector<684x1536xbf16>, vector<104x1536xf32> -> vector<104x1536xf32>
    %11 = vector.extract_strided_slice %10 {offsets = [0, 0], sizes = [104, 384], strides = [1, 1]} : vector<104x1536xf32> to vector<104x384xf32>
    %12 = vector.extract_strided_slice %10 {offsets = [0, 384], sizes = [104, 384], strides = [1, 1]} : vector<104x1536xf32> to vector<104x384xf32>
    %13 = arith.maximumf %11, %12 : vector<104x384xf32>
    %14 = vector.extract_strided_slice %10 {offsets = [0, 768], sizes = [104, 384], strides = [1, 1]} : vector<104x1536xf32> to vector<104x384xf32>
    %15 = vector.extract_strided_slice %10 {offsets = [0, 1152], sizes = [104, 384], strides = [1, 1]} : vector<104x1536xf32> to vector<104x384xf32>
    %16 = arith.maximumf %14, %15 : vector<104x384xf32>
    %17 = arith.maximumf %13, %16 : vector<104x384xf32>
    %18 = vector.extract_strided_slice %17 {offsets = [0, 0], sizes = [104, 272], strides = [1, 1]} : vector<104x384xf32> to vector<104x272xf32>
    %c0_4 = arith.constant 0 : index
    %c0_5 = arith.constant 0 : index
    %19 = vector.load %arg3[%c0_4, %c0_5] : memref<1x272xf32, #tpu.memory_space<vmem>>, vector<1x272xf32>
    %20 = vector.broadcast %19 : vector<1x272xf32> to vector<104x272xf32>
    %21 = arith.addf %18, %20 : vector<104x272xf32>
    %cst_6 = arith.constant 0.000000e+00 : f32
    %22 = vector.broadcast %cst_6 : f32 to vector<104x272xf32>
    %23 = arith.maximumf %21, %22 : vector<104x272xf32>
    %24 = arith.truncf %23 : vector<104x272xf32> to vector<104x272xbf16>
    %c0_7 = arith.constant 0 : index
    %c0_8 = arith.constant 0 : index
    %25 = vector.load %arg5[%c0_7, %c0_8] : memref<104x272xbf16, #tpu.memory_space<vmem>>, vector<104x272xbf16>
    tpu.vector_store %arg5[%c0_7, %c0_8], %24 {strides = array<i32>} : memref<104x272xbf16, #tpu.memory_space<vmem>>, vector<104x272xbf16>,
    %c0_9 = arith.constant 0 : index
    %c0_10 = arith.constant 0 : index
    %c0_11 = arith.constant 0 : index
    %26 = vector.load %arg4[%c0_9, %c0_10, %c0_11] : memref<1x17x104xf32, #tpu.memory_space<vmem>>, vector<1x17x104xf32>
    %27 = vector.shape_cast %26 : vector<1x17x104xf32> to vector<17x104xf32>
    %cst_12 = arith.constant dense<0.000000e+00> : vector<17x272xf32>
    %28 = tpu.matmul %27, %23, %cst_12 {dimension_numbers = #tpu.dot_dimension_numbers<[1], [0], [0], [1], [0, 0, 1, 1], [], []>} : vector<17x104xf32>, vector<104x272xf32>, vector<17x272xf32> -> vector<17x272xf32>
    %c0_13 = arith.constant 0 : index
    %c0_14 = arith.constant 0 : index
    %c0_15 = arith.constant 0 : index
    %29 = vector.load %arg6[%c0_13, %c0_14, %c0_15] : memref<1x17x272xf32, #tpu.memory_space<vmem>>, vector<1x17x272xf32>
    %30 = vector.shape_cast %29 : vector<1x17x272xf32> to vector<17x272xf32>
    %31 = vector.shape_cast %28 : vector<17x272xf32> to vector<1x17x272xf32>
    tpu.vector_store %arg6[%c0_13, %c0_14, %c0_15], %31 {strides = array<i32>} : memref<1x17x272xf32, #tpu.memory_space<vmem>>, vector<1x17x272xf32>,
    %32 = arith.mulf %23, %23 : vector<104x272xf32>
    %cst_16 = arith.constant dense<0.000000e+00> : vector<17x272xf32>
    %33 = tpu.matmul %27, %32, %cst_16 {dimension_numbers = #tpu.dot_dimension_numbers<[1], [0], [0], [1], [0, 0, 1, 1], [], []>} : vector<17x104xf32>, vector<104x272xf32>, vector<17x272xf32> -> vector<17x272xf32>
    %c0_17 = arith.constant 0 : index
    %c0_18 = arith.constant 0 : index
    %c0_19 = arith.constant 0 : index
    %34 = vector.load %arg7[%c0_17, %c0_18, %c0_19] : memref<1x17x272xf32, #tpu.memory_space<vmem>>, vector<1x17x272xf32>
    %35 = vector.shape_cast %34 : vector<1x17x272xf32> to vector<17x272xf32>
    %36 = vector.shape_cast %33 : vector<17x272xf32> to vector<1x17x272xf32>
    tpu.vector_store %arg7[%c0_17, %c0_18, %c0_19], %36 {strides = array<i32>} : memref<1x17x272xf32, #tpu.memory_space<vmem>>, vector<1x17x272xf32>,
    return
  }
  func.func @transform_0(%arg0: i32) -> (i32, i32) {
    %c0_i32 = arith.constant 0 : i32
    %c0_i32_0 = arith.constant 0 : i32
    return %arg0, %c0_i32 : i32, i32
  }
  func.func @transform_1(%arg0: i32) -> (i32, i32) {
    %c0_i32 = arith.constant 0 : i32
    %c0_i32_0 = arith.constant 0 : i32
    %c0_i32_1 = arith.constant 0 : i32
    return %c0_i32, %c0_i32_0 : i32, i32
  }
  func.func @transform_2(%arg0: i32) -> (i32, i32) {
    %c0_i32 = arith.constant 0 : i32
    %c0_i32_0 = arith.constant 0 : i32
    %c0_i32_1 = arith.constant 0 : i32
    return %c0_i32, %c0_i32_0 : i32, i32
  }
  func.func @transform_3(%arg0: i32) -> (i32, i32, i32) {
    %c0_i32 = arith.constant 0 : i32
    %c0_i32_0 = arith.constant 0 : i32
    %c0_i32_1 = arith.constant 0 : i32
    return %arg0, %c0_i32, %c0_i32_0 : i32, i32, i32
  }
  func.func @transform_4(%arg0: i32) -> (i32, i32) {
    %c0_i32 = arith.constant 0 : i32
    %c0_i32_0 = arith.constant 0 : i32
    return %arg0, %c0_i32 : i32, i32
  }
  func.func @transform_5(%arg0: i32) -> (i32, i32, i32) {
    %c0_i32 = arith.constant 0 : i32
    %c0_i32_0 = arith.constant 0 : i32
    %c0_i32_1 = arith.constant 0 : i32
    return %arg0, %c0_i32, %c0_i32_0 : i32, i32, i32
  }
  func.func @transform_6(%arg0: i32) -> (i32, i32, i32) {
    %c0_i32 = arith.constant 0 : i32
    %c0_i32_0 = arith.constant 0 : i32
    %c0_i32_1 = arith.constant 0 : i32
    return %arg0, %c0_i32, %c0_i32_0 : i32, i32, i32
  }
}

module attributes {stable_mosaic.version = 11 : i64} {
  func.func @kernel(%arg0: i32, %arg1: memref<4x7072xbf16, #tpu.memory_space<vmem>>, %arg2: memref<7072x32xbf16, #tpu.memory_space<vmem>>, %arg3: memref<1x32xf32, #tpu.memory_space<vmem>>, %arg4: memref<32x8xf32, #tpu.memory_space<vmem>>, %arg5: memref<1x8xf32, #tpu.memory_space<vmem>>, %arg6: memref<4x8xf32, #tpu.memory_space<vmem>>) attributes {dimension_semantics = [#tpu.dimension_semantics<parallel>], iteration_bounds = array<i64: 1>, scalar_prefetch = 0 : i64, scratch_operands = 0 : i64, tpu.core_type = #tpu.core_type<tc>, window_params = [{transform_indices = @transform_0, window_bounds = array<i64: 4, 7072>}, {pipeline_mode = #tpu.pipeline_mode<synchronous>, transform_indices = @transform_1, window_bounds = array<i64: 7072, 32>}, {pipeline_mode = #tpu.pipeline_mode<synchronous>, transform_indices = @transform_2, window_bounds = array<i64: 1, 32>}, {pipeline_mode = #tpu.pipeline_mode<synchronous>, transform_indices = @transform_3, window_bounds = array<i64: 32, 8>}, {pipeline_mode = #tpu.pipeline_mode<synchronous>, transform_indices = @transform_4, window_bounds = array<i64: 1, 8>}, {transform_indices = @transform_5, window_bounds = array<i64: 4, 8>}]} {
    %c0 = arith.constant 0 : index
    %c0_0 = arith.constant 0 : index
    %0 = vector.load %arg1[%c0, %c0_0] : memref<4x7072xbf16, #tpu.memory_space<vmem>>, vector<4x7072xbf16>
    %c0_1 = arith.constant 0 : index
    %c0_2 = arith.constant 0 : index
    %1 = vector.load %arg2[%c0_1, %c0_2] : memref<7072x32xbf16, #tpu.memory_space<vmem>>, vector<7072x32xbf16>
    %cst = arith.constant dense<0.000000e+00> : vector<4x32xf32>
    %2 = tpu.matmul %0, %1, %cst {dimension_numbers = #tpu.dot_dimension_numbers<[1], [0], [0], [1], [0, 0, 1, 1], [], []>} : vector<4x7072xbf16>, vector<7072x32xbf16>, vector<4x32xf32> -> vector<4x32xf32>
    %c0_3 = arith.constant 0 : index
    %c0_4 = arith.constant 0 : index
    %3 = vector.load %arg3[%c0_3, %c0_4] : memref<1x32xf32, #tpu.memory_space<vmem>>, vector<1x32xf32>
    %4 = vector.broadcast %3 : vector<1x32xf32> to vector<4x32xf32>
    %5 = arith.addf %2, %4 : vector<4x32xf32>
    %cst_5 = arith.constant 0.000000e+00 : f32
    %6 = vector.broadcast %cst_5 : f32 to vector<4x32xf32>
    %7 = arith.cmpf oge, %5, %6 : vector<4x32xf32>
    %cst_6 = arith.constant 0.00999999977 : f32
    %8 = vector.broadcast %cst_6 : f32 to vector<4x32xf32>
    %9 = arith.mulf %8, %5 : vector<4x32xf32>
    %10 = arith.select %7, %5, %9 : vector<4x32xi1>, vector<4x32xf32>
    %c0_7 = arith.constant 0 : index
    %c0_8 = arith.constant 0 : index
    %11 = vector.load %arg4[%c0_7, %c0_8] : memref<32x8xf32, #tpu.memory_space<vmem>>, vector<32x8xf32>
    %cst_9 = arith.constant dense<0.000000e+00> : vector<4x8xf32>
    %12 = tpu.matmul %10, %11, %cst_9 {dimension_numbers = #tpu.dot_dimension_numbers<[1], [0], [0], [1], [0, 0, 1, 1], [], []>} : vector<4x32xf32>, vector<32x8xf32>, vector<4x8xf32> -> vector<4x8xf32>
    %c0_10 = arith.constant 0 : index
    %c0_11 = arith.constant 0 : index
    %13 = vector.load %arg5[%c0_10, %c0_11] : memref<1x8xf32, #tpu.memory_space<vmem>>, vector<1x8xf32>
    %14 = vector.broadcast %13 : vector<1x8xf32> to vector<4x8xf32>
    %15 = arith.addf %12, %14 : vector<4x8xf32>
    %c0_12 = arith.constant 0 : index
    %c0_13 = arith.constant 0 : index
    %16 = vector.load %arg6[%c0_12, %c0_13] : memref<4x8xf32, #tpu.memory_space<vmem>>, vector<4x8xf32>
    tpu.vector_store %arg6[%c0_12, %c0_13], %15 {strides = array<i32>} : memref<4x8xf32, #tpu.memory_space<vmem>>, vector<4x8xf32>,
    return
  }
  func.func @transform_0(%arg0: i32) -> (i32, i32) {
    %c0_i32 = arith.constant 0 : i32
    %c0_i32_0 = arith.constant 0 : i32
    return %arg0, %c0_i32 : i32, i32
  }
  func.func @transform_1(%arg0: i32) -> (i32, i32) {
    %c0_i32 = arith.constant 0 : i32
    %c0_i32_0 = arith.constant 0 : i32
    %c0_i32_1 = arith.constant 0 : i32
    return %c0_i32, %c0_i32_0 : i32, i32
  }
  func.func @transform_2(%arg0: i32) -> (i32, i32) {
    %c0_i32 = arith.constant 0 : i32
    %c0_i32_0 = arith.constant 0 : i32
    %c0_i32_1 = arith.constant 0 : i32
    return %c0_i32, %c0_i32_0 : i32, i32
  }
  func.func @transform_3(%arg0: i32) -> (i32, i32) {
    %c0_i32 = arith.constant 0 : i32
    %c0_i32_0 = arith.constant 0 : i32
    %c0_i32_1 = arith.constant 0 : i32
    return %c0_i32, %c0_i32_0 : i32, i32
  }
  func.func @transform_4(%arg0: i32) -> (i32, i32) {
    %c0_i32 = arith.constant 0 : i32
    %c0_i32_0 = arith.constant 0 : i32
    %c0_i32_1 = arith.constant 0 : i32
    return %c0_i32, %c0_i32_0 : i32, i32
  }
  func.func @transform_5(%arg0: i32) -> (i32, i32) {
    %c0_i32 = arith.constant 0 : i32
    %c0_i32_0 = arith.constant 0 : i32
    return %arg0, %c0_i32 : i32, i32
  }
}

</mosaic_0001>

<llo_original>
// kernel: neural_net_forward.2
$region0: #{neural_net_forward.2}
  #allocation0 [shape = 'u32[]', space=smem, size = 0x4, offset = 0x4, fixed_abs, tag = 'smem constant byte address 0x4 - core index']
  #allocation1 [shape = 'u32[144,128]{1,0:T(1,128)}', space=vmem, size = 0x12000, scoped, tag = 'internal scratch']
  %s0 = inlined_call_operand.vmem [shape: bf16[104,228], index: 0, kind: input, shape index: {}]
  %s1 = inlined_call_operand.vmem [shape: bf16[684,1536], index: 1, kind: input, shape index: {}]
  %s2 = inlined_call_operand.vmem [shape: f32[1,272], index: 2, kind: input, shape index: {}]
  %s3 = inlined_call_operand.vmem [shape: f32[1,17,104], index: 3, kind: input, shape index: {}]
  %s4 = inlined_call_operand.vmem [shape: bf16[104,272], index: 4, kind: output, shape index: {0}]
  %s5 = inlined_call_operand.vmem [shape: f32[1,17,272], index: 5, kind: output, shape index: {1}]
  %s6 = inlined_call_operand.vmem [shape: f32[1,17,272], index: 6, kind: output, shape index: {2}]
  %7 = xla_tuple %s4, %s5, %s6
  %s8 = sld [smem:[#allocation0]]
  $region42: #{neural_net_forward.2} parent=0
    _
  %s10 = ssub.s32 1, %s8
  %s11 = scalar_select 0, %s10, %s8
  // Predicated region
  $region2: #{neural_net_forward.2} parent=0 // pred_check
    _
  $region3: #{neural_net_forward.2} parent=0 // pred_check_branch
    %13 = sbr.rel (0) target = $region5
  $region4: #{neural_net_forward.2} parent=0 // pred_region
    _
  $region5: #{neural_net_forward.2} parent=0 // pred_fallthru
    _
  // Predicated region
  $region6: #{neural_net_forward.2} parent=0 // pred_check
    _
  $region7: #{neural_net_forward.2} parent=0 // pred_check_branch
    %15 = sbr.rel (0) target = $region9
  $region8: #{neural_net_forward.2} parent=0 // pred_region
    _
  $region9: #{neural_net_forward.2} parent=0 // pred_fallthru
    _
  // Predicated region
  $region10: #{neural_net_forward.2} parent=0 // pred_check
    _
  $region11: #{neural_net_forward.2} parent=0 // pred_check_branch
    %17 = sbr.rel (0) target = $region13
  $region12: #{neural_net_forward.2} parent=0 // pred_region
    _
  $region13: #{neural_net_forward.2} parent=0 // pred_fallthru
    _
  // Predicated region
  $region14: #{neural_net_forward.2} parent=0 // pred_check
    _
  $region15: #{neural_net_forward.2} parent=0 // pred_check_branch
    %19 = sbr.rel (0) target = $region17
  $region16: #{neural_net_forward.2} parent=0 // pred_region
    _
  $region17: #{neural_net_forward.2} parent=0 // pred_fallthru
    _
  %v21 = vld [vmem:[%s0] sm:$0xff]
  %v22 = vld [vmem:[%s0 + $0x8] sm:$0xff]
  %v23 = vld [vmem:[%s0 + $0x10] sm:$0xff]
  %v24 = vld [vmem:[%s0 + $0x18] sm:$0xff]
  %v25 = vld [vmem:[%s0 + $0x20] sm:$0xff]
  %v26 = vld [vmem:[%s0 + $0x28] sm:$0xff]
  %v27 = vld [vmem:[%s0 + $0x30] sm:$0xff]
  %v28 = vld [vmem:[%s0 + $0x38] sm:$0xff]
  %v29 = vld [vmem:[%s0 + $0x40] sm:$0xff]
  %v30 = vld [vmem:[%s0 + $0x48] sm:$0xff]
  %v31 = vld [vmem:[%s0 + $0x50] sm:$0xff]
  %v32 = vld [vmem:[%s0 + $0x58] sm:$0xff]
  %v33 = vld [vmem:[%s0 + $0x60] sm:$0xff]
  %v34 = vunpack.c.l.bf16 %v21
  %v35 = vunpack.c.h.bf16 %v21
  %v36 = vunpack.c.l.bf16 %v22
  %v37 = vunpack.c.h.bf16 %v22
  %v38 = vunpack.c.l.bf16 %v23
  %v39 = vunpack.c.h.bf16 %v23
  %v40 = vunpack.c.l.bf16 %v24
  %v41 = vunpack.c.h.bf16 %v24
  %v42 = vunpack.c.l.bf16 %v25
  %v43 = vunpack.c.h.bf16 %v25
  %v44 = vunpack.c.l.bf16 %v26
  %v45 = vunpack.c.h.bf16 %v26
  %v46 = vunpack.c.l.bf16 %v27
  %v47 = vunpack.c.h.bf16 %v27
  %v48 = vunpack.c.l.bf16 %v28
  %v49 = vunpack.c.h.bf16 %v28
  %v50 = vunpack.c.l.bf16 %v29
  %v51 = vunpack.c.h.bf16 %v29
  %v52 = vunpack.c.l.bf16 %v30
  %v53 = vunpack.c.h.bf16 %v30
  %v54 = vunpack.c.l.bf16 %v31
  %v55 = vunpack.c.h.bf16 %v31
  %v56 = vunpack.c.l.bf16 %v32
  %v57 = vunpack.c.h.bf16 %v32
  %v58 = vunpack.c.l.bf16 %v33
  %v59 = vunpack.c.h.bf16 %v33
  %vm87 = vcmask 1046528
  %v88 = vrot.slane %v34, 1
  %v89 = vrot.slane %v36, 1
  %v90 = vsel %vm87, %v88, %v89
  %v91 = vrot.slane %v35, 1
  %v92 = vrot.slane %v37, 1
  %v93 = vsel %vm87, %v91, %v92
  %v94 = vrot.slane %v38, 1
  %v95 = vsel %vm87, %v89, %v94
  %v96 = vrot.slane %v39, 1
  %v97 = vsel %vm87, %v92, %v96
  %v98 = vrot.slane %v40, 1
  %v99 = vsel %vm87, %v94, %v98
  %v100 = vrot.slane %v41, 1
  %v101 = vsel %vm87, %v96, %v100
  %v102 = vrot.slane %v42, 1
  %v103 = vsel %vm87, %v98, %v102
  %v104 = vrot.slane %v43, 1
  %v105 = vsel %vm87, %v100, %v104
  %v106 = vrot.slane %v44, 1
  %v107 = vsel %vm87, %v102, %v106
  %v108 = vrot.slane %v45, 1
  %v109 = vsel %vm87, %v104, %v108
  %v110 = vrot.slane %v46, 1
  %v111 = vsel %vm87, %v106, %v110
  %v112 = vrot.slane %v47, 1
  %v113 = vsel %vm87, %v108, %v112
  %v114 = vrot.slane %v48, 1
  %v115 = vsel %vm87, %v110, %v114
  %v116 = vrot.slane %v49, 1
  %v117 = vsel %vm87, %v112, %v116
  %v118 = vrot.slane %v50, 1
  %v119 = vsel %vm87, %v114, %v118
  %v120 = vrot.slane %v51, 1
  %v121 = vsel %vm87, %v116, %v120
  %v122 = vrot.slane %v52, 1
  %v123 = vsel %vm87, %v118, %v122
  %v124 = vrot.slane %v53, 1
  %v125 = vsel %vm87, %v120, %v124
  %v126 = vrot.slane %v54, 1
  %v127 = vsel %vm87, %v122, %v126
  %v128 = vrot.slane %v55, 1
  %v129 = vsel %vm87, %v124, %v128
  %v130 = vrot.slane %v56, 1
  %v131 = vsel %vm87, %v126, %v130
  %v132 = vrot.slane %v57, 1
  %v133 = vsel %vm87, %v128, %v132
  %v134 = vrot.slane %v58, 1
  %v135 = vsel %vm87, %v130, %v134
  %v136 = vrot.slane %v59, 1
  %v137 = vsel %vm87, %v132, %v136
  %v138 = vrot.slane 0.0, 1
  %v139 = vsel %vm87, %v134, %v138
  %v140 = vsel %vm87, %v136, %v138
  %141 = vrot.lane.b32.xlu0 %v90, 100
  %v142 = vpop.permute.xlu0 %141
  %143 = vrot.lane.b32.xlu0 %v93, 100
  %v144 = vpop.permute.xlu0 %143
  %145 = vrot.lane.b32.xlu0 %v95, 100
  %v146 = vpop.permute.xlu0 %145
  %147 = vrot.lane.b32.xlu0 %v97, 100
  %v148 = vpop.permute.xlu0 %147
  %149 = vrot.lane.b32.xlu0 %v99, 100
  %v150 = vpop.permute.xlu0 %149
  %151 = vrot.lane.b32.xlu0 %v101, 100
  %v152 = vpop.permute.xlu0 %151
  %153 = vrot.lane.b32.xlu0 %v103, 100
  %v154 = vpop.permute.xlu0 %153
  %155 = vrot.lane.b32.xlu0 %v105, 100
  %v156 = vpop.permute.xlu0 %155
  %157 = vrot.lane.b32.xlu0 %v107, 100
  %v158 = vpop.permute.xlu0 %157
  %159 = vrot.lane.b32.xlu0 %v109, 100
  %v160 = vpop.permute.xlu0 %159
  %161 = vrot.lane.b32.xlu0 %v111, 100
  %v162 = vpop.permute.xlu0 %161
  %163 = vrot.lane.b32.xlu0 %v113, 100
  %v164 = vpop.permute.xlu0 %163
  %165 = vrot.lane.b32.xlu0 %v115, 100
  %v166 = vpop.permute.xlu0 %165
  %167 = vrot.lane.b32.xlu0 %v117, 100
  %v168 = vpop.permute.xlu0 %167
  %169 = vrot.lane.b32.xlu0 %v119, 100
  %v170 = vpop.permute.xlu0 %169
  %171 = vrot.lane.b32.xlu0 %v121, 100
  %v172 = vpop.permute.xlu0 %171
  %173 = vrot.lane.b32.xlu0 %v123, 100
  %v174 = vpop.permute.xlu0 %173
  %175 = vrot.lane.b32.xlu0 %v125, 100
  %v176 = vpop.permute.xlu0 %175
  %177 = vrot.lane.b32.xlu0 %v127, 100
  %v178 = vpop.permute.xlu0 %177
  %179 = vrot.lane.b32.xlu0 %v129, 100
  %v180 = vpop.permute.xlu0 %179
  %181 = vrot.lane.b32.xlu0 %v131, 100
  %v182 = vpop.permute.xlu0 %181
  %183 = vrot.lane.b32.xlu0 %v133, 100
  %v184 = vpop.permute.xlu0 %183
  %185 = vrot.lane.b32.xlu0 %v135, 100
  %v186 = vpop.permute.xlu0 %185
  %187 = vrot.lane.b32.xlu0 %v137, 100
  %v188 = vpop.permute.xlu0 %187
  %189 = vrot.lane.b32.xlu0 %v139, 100
  %v190 = vpop.permute.xlu0 %189
  %191 = vrot.lane.b32.xlu0 %v140, 100
  %v192 = vpop.permute.xlu0 %191
  %vm193 = vcmask 818176
  %v194 = vsel %vm193, %v142, %v144
  %v195 = vsel %vm193, %v146, %v148
  %v196 = vsel %vm193, %v150, %v152
  %v197 = vsel %vm193, %v154, %v156
  %v198 = vsel %vm193, %v158, %v160
  %v199 = vsel %vm193, %v162, %v164
  %v200 = vsel %vm193, %v166, %v168
  %v201 = vsel %vm193, %v170, %v172
  %v202 = vsel %vm193, %v174, %v176
  %v203 = vsel %vm193, %v178, %v180
  %v204 = vsel %vm193, %v182, %v184
  %v205 = vsel %vm193, %v186, %v188
  %v206 = vsel %vm193, %v190, %v192
  %vm246 = vcmask 1045504
  %v247 = vrot.slane %v34, 2
  %v248 = vrot.slane %v36, 2
  %v249 = vsel %vm246, %v247, %v248
  %v250 = vrot.slane %v35, 2
  %v251 = vrot.slane %v37, 2
  %v252 = vsel %vm246, %v250, %v251
  %v253 = vrot.slane %v38, 2
  %v254 = vsel %vm246, %v248, %v253
  %v255 = vrot.slane %v39, 2
  %v256 = vsel %vm246, %v251, %v255
  %v257 = vrot.slane %v40, 2
  %v258 = vsel %vm246, %v253, %v257
  %v259 = vrot.slane %v41, 2
  %v260 = vsel %vm246, %v255, %v259
  %v261 = vrot.slane %v42, 2
  %v262 = vsel %vm246, %v257, %v261
  %v263 = vrot.slane %v43, 2
  %v264 = vsel %vm246, %v259, %v263
  %v265 = vrot.slane %v44, 2
  %v266 = vsel %vm246, %v261, %v265
  %v267 = vrot.slane %v45, 2
  %v268 = vsel %vm246, %v263, %v267
  %v269 = vrot.slane %v46, 2
  %v270 = vsel %vm246, %v265, %v269
  %v271 = vrot.slane %v47, 2
  %v272 = vsel %vm246, %v267, %v271
  %v273 = vrot.slane %v48, 2
  %v274 = vsel %vm246, %v269, %v273
  %v275 = vrot.slane %v49, 2
  %v276 = vsel %vm246, %v271, %v275
  %v277 = vrot.slane %v50, 2
  %v278 = vsel %vm246, %v273, %v277
  %v279 = vrot.slane %v51, 2
  %v280 = vsel %vm246, %v275, %v279
  %v281 = vrot.slane %v52, 2
  %v282 = vsel %vm246, %v277, %v281
  %v283 = vrot.slane %v53, 2
  %v284 = vsel %vm246, %v279, %v283
  %v285 = vrot.slane %v54, 2
  %v286 = vsel %vm246, %v281, %v285
  %v287 = vrot.slane %v55, 2
  %v288 = vsel %vm246, %v283, %v287
  %v289 = vrot.slane %v56, 2
  %v290 = vsel %vm246, %v285, %v289
  %v291 = vrot.slane %v57, 2
  %v292 = vsel %vm246, %v287, %v291
  %v293 = vrot.slane %v58, 2
  %v294 = vsel %vm246, %v289, %v293
  %v295 = vrot.slane %v59, 2
  %v296 = vsel %vm246, %v291, %v295
  %v297 = vrot.slane 0.0, 2
  %v298 = vsel %vm246, %v293, %v297
  %v299 = vsel %vm246, %v295, %v297
  %300 = vrot.lane.b32.xlu0 %v249, 72
  %v301 = vpop.permute.xlu0 %300
  %302 = vrot.lane.b32.xlu0 %v252, 72
  %v303 = vpop.permute.xlu0 %302
  %304 = vrot.lane.b32.xlu0 %v254, 72
  %v305 = vpop.permute.xlu0 %304
  %306 = vrot.lane.b32.xlu0 %v256, 72
  %v307 = vpop.permute.xlu0 %306
  %308 = vrot.lane.b32.xlu0 %v258, 72
  %v309 = vpop.permute.xlu0 %308
  %310 = vrot.lane.b32.xlu0 %v260, 72
  %v311 = vpop.permute.xlu0 %310
  %312 = vrot.lane.b32.xlu0 %v262, 72
  %v313 = vpop.permute.xlu0 %312
  %314 = vrot.lane.b32.xlu0 %v264, 72
  %v315 = vpop.permute.xlu0 %314
  %316 = vrot.lane.b32.xlu0 %v266, 72
  %v317 = vpop.permute.xlu0 %316
  %318 = vrot.lane.b32.xlu0 %v268, 72
  %v319 = vpop.permute.xlu0 %318
  %320 = vrot.lane.b32.xlu0 %v270, 72
  %v321 = vpop.permute.xlu0 %320
  %322 = vrot.lane.b32.xlu0 %v272, 72
  %v323 = vpop.permute.xlu0 %322
  %324 = vrot.lane.b32.xlu0 %v274, 72
  %v325 = vpop.permute.xlu0 %324
  %326 = vrot.lane.b32.xlu0 %v276, 72
  %v327 = vpop.permute.xlu0 %326
  %328 = vrot.lane.b32.xlu0 %v278, 72
  %v329 = vpop.permute.xlu0 %328
  %330 = vrot.lane.b32.xlu0 %v280, 72
  %v331 = vpop.permute.xlu0 %330
  %332 = vrot.lane.b32.xlu0 %v282, 72
  %v333 = vpop.permute.xlu0 %332
  %334 = vrot.lane.b32.xlu0 %v284, 72
  %v335 = vpop.permute.xlu0 %334
  %336 = vrot.lane.b32.xlu0 %v286, 72
  %v337 = vpop.permute.xlu0 %336
  %338 = vrot.lane.b32.xlu0 %v288, 72
  %v339 = vpop.permute.xlu0 %338
  %340 = vrot.lane.b32.xlu0 %v290, 72
  %v341 = vpop.permute.xlu0 %340
  %342 = vrot.lane.b32.xlu0 %v292, 72
  %v343 = vpop.permute.xlu0 %342
  %344 = vrot.lane.b32.xlu0 %v294, 72
  %v345 = vpop.permute.xlu0 %344
  %346 = vrot.lane.b32.xlu0 %v296, 72
  %v347 = vpop.permute.xlu0 %346
  %348 = vrot.lane.b32.xlu0 %v298, 72
  %v349 = vpop.permute.xlu0 %348
  %350 = vrot.lane.b32.xlu0 %v299, 72
  %v351 = vpop.permute.xlu0 %350
  %vm352 = vcmask 588800
  %v353 = vsel %vm352, %v301, %v303
  %v354 = vsel %vm352, %v305, %v307
  %v355 = vsel %vm352, %v309, %v311
  %v356 = vsel %vm352, %v313, %v315
  %v357 = vsel %vm352, %v317, %v319
  %v358 = vsel %vm352, %v321, %v323
  %v359 = vsel %vm352, %v325, %v327
  %v360 = vsel %vm352, %v329, %v331
  %v361 = vsel %vm352, %v333, %v335
  %v362 = vsel %vm352, %v337, %v339
  %v363 = vsel %vm352, %v341, %v343
  %v364 = vsel %vm352, %v345, %v347
  %v365 = vsel %vm352, %v349, %v351
  %v405 = vsel %vm193, %v35, %v142
  %v406 = vsel %vm193, %v37, %v146
  %v407 = vsel %vm193, %v39, %v150
  %v408 = vsel %vm193, %v41, %v154
  %v409 = vsel %vm193, %v43, %v158
  %v410 = vsel %vm193, %v45, %v162
  %v411 = vsel %vm193, %v47, %v166
  %v412 = vsel %vm193, %v49, %v170
  %v413 = vsel %vm193, %v51, %v174
  %v414 = vsel %vm193, %v53, %v178
  %v415 = vsel %vm193, %v55, %v182
  %v416 = vsel %vm193, %v57, %v186
  %v417 = vsel %vm193, %v59, %v190
  %v418 = vsel %vm352, %v144, %v301
  %v419 = vsel %vm352, %v148, %v305
  %v420 = vsel %vm352, %v152, %v309
  %v421 = vsel %vm352, %v156, %v313
  %v422 = vsel %vm352, %v160, %v317
  %v423 = vsel %vm352, %v164, %v321
  %v424 = vsel %vm352, %v168, %v325
  %v425 = vsel %vm352, %v172, %v329
  %v426 = vsel %vm352, %v176, %v333
  %v427 = vsel %vm352, %v180, %v337
  %v428 = vsel %vm352, %v184, %v341
  %v429 = vsel %vm352, %v188, %v345
  %v430 = vsel %vm352, %v192, %v349
  %v431 = vpack.c.bf16 %v36, %v34
  %v432 = vpack.c.bf16 %v406, %v405
  %v433 = vpack.c.bf16 %v195, %v194
  %v434 = vpack.c.bf16 %v419, %v418
  %v435 = vpack.c.bf16 %v354, %v353
  %v436 = vpack.c.bf16 %v307, %v303
  %v437 = vpack.c.bf16 %v40, %v38
  %v438 = vpack.c.bf16 %v408, %v407
  %v439 = vpack.c.bf16 %v197, %v196
  %v440 = vpack.c.bf16 %v421, %v420
  %v441 = vpack.c.bf16 %v356, %v355
  %v442 = vpack.c.bf16 %v315, %v311
  %v443 = vpack.c.bf16 %v44, %v42
  %v444 = vpack.c.bf16 %v410, %v409
  %v445 = vpack.c.bf16 %v199, %v198
  %v446 = vpack.c.bf16 %v423, %v422
  %v447 = vpack.c.bf16 %v358, %v357
  %v448 = vpack.c.bf16 %v323, %v319
  %v449 = vpack.c.bf16 %v48, %v46
  %v450 = vpack.c.bf16 %v412, %v411
  %v451 = vpack.c.bf16 %v201, %v200
  %v452 = vpack.c.bf16 %v425, %v424
  %v453 = vpack.c.bf16 %v360, %v359
  %v454 = vpack.c.bf16 %v331, %v327
  %v455 = vpack.c.bf16 %v52, %v50
  %v456 = vpack.c.bf16 %v414, %v413
  %v457 = vpack.c.bf16 %v203, %v202
  %v458 = vpack.c.bf16 %v427, %v426
  %v459 = vpack.c.bf16 %v362, %v361
  %v460 = vpack.c.bf16 %v339, %v335
  %v461 = vpack.c.bf16 %v56, %v54
  %v462 = vpack.c.bf16 %v416, %v415
  %v463 = vpack.c.bf16 %v205, %v204
  %v464 = vpack.c.bf16 %v429, %v428
  %v465 = vpack.c.bf16 %v364, %v363
  %v466 = vpack.c.bf16 %v347, %v343
  %v467 = vpack.c.bf16 %v58, %v58
  %v468 = vpack.c.bf16 %v417, %v417
  %v469 = vpack.c.bf16 %v206, %v206
  %v470 = vpack.c.bf16 %v430, %v430
  %v471 = vpack.c.bf16 %v365, %v365
  %v472 = vpack.c.bf16 %v351, %v351
  %v473 = vld [vmem:[%s1] sm:$0xff]
  %v474 = vld [vmem:[%s1 + $0x8] sm:$0xff]
  %v475 = vld [vmem:[%s1 + $0x10] sm:$0xff]
  %v476 = vld [vmem:[%s1 + $0x18] sm:$0xff]
  %v477 = vld [vmem:[%s1 + $0x20] sm:$0xff]
  %v478 = vld [vmem:[%s1 + $0x28] sm:$0xff]
  %v479 = vld [vmem:[%s1 + $0x30] sm:$0xff]
  %v480 = vld [vmem:[%s1 + $0x38] sm:$0xff]
  %v481 = vld [vmem:[%s1 + $0x40] sm:$0xff]
  %v482 = vld [vmem:[%s1 + $0x48] sm:$0xff]
  %v483 = vld [vmem:[%s1 + $0x50] sm:$0xff]
  %v484 = vld [vmem:[%s1 + $0x58] sm:$0xff]
  %v485 = vld [vmem:[%s1 + $0x60] sm:$0xff]
  %v486 = vld [vmem:[%s1 + $0x68] sm:$0xff]
  %v487 = vld [vmem:[%s1 + $0x70] sm:$0xff]
  %v488 = vld [vmem:[%s1 + $0x78] sm:$0xff]
  %v489 = vld [vmem:[%s1 + $0x80] sm:$0xff]
  %v490 = vld [vmem:[%s1 + $0x88] sm:$0xff]
  %v491 = vld [vmem:[%s1 + $0x90] sm:$0xff]
  %v492 = vld [vmem:[%s1 + $0x98] sm:$0xff]
  %v493 = vld [vmem:[%s1 + $0xa0] sm:$0xff]
  %v494 = vld [vmem:[%s1 + $0xa8] sm:$0xff]
  %v495 = vld [vmem:[%s1 + $0xb0] sm:$0xff]
  %v496 = vld [vmem:[%s1 + $0xb8] sm:$0xff]
  %v497 = vld [vmem:[%s1 + $0xc0] sm:$0xff]
  %v498 = vld [vmem:[%s1 + $0xc8] sm:$0xff]
  %v499 = vld [vmem:[%s1 + $0xd0] sm:$0xff]
  %v500 = vld [vmem:[%s1 + $0xd8] sm:$0xff]
  %v501 = vld [vmem:[%s1 + $0xe0] sm:$0xff]
  %v502 = vld [vmem:[%s1 + $0xe8] sm:$0xff]
  %v503 = vld [vmem:[%s1 + $0xf0] sm:$0xff]
  %v504 = vld [vmem:[%s1 + $0xf8] sm:$0xff]
  %v505 = vld [vmem:[%s1 + $0x100] sm:$0xff]
  %v506 = vld [vmem:[%s1 + $0x108] sm:$0xff]
  %v507 = vld [vmem:[%s1 + $0x110] sm:$0xff]
  %v508 = vld [vmem:[%s1 + $0x118] sm:$0xff]
  %v509 = vld [vmem:[%s1 + $0x120] sm:$0xff]
  %v510 = vld [vmem:[%s1 + $0x128] sm:$0xff]
  %v511 = vld [vmem:[%s1 + $0x130] sm:$0xff]
  %v512 = vld [vmem:[%s1 + $0x138] sm:$0xff]
  %v513 = vld [vmem:[%s1 + $0x140] sm:$0xff]
  %v514 = vld [vmem:[%s1 + $0x148] sm:$0xff]
  %v515 = vld [vmem:[%s1 + $0x150] sm:$0xff]
  %v516 = vld [vmem:[%s1 + $0x158] sm:$0xff]
  %v517 = vld [vmem:[%s1 + $0x160] sm:$0xff]
  %v518 = vld [vmem:[%s1 + $0x168] sm:$0xff]
  %v519 = vld [vmem:[%s1 + $0x170] sm:$0xff]
  %v520 = vld [vmem:[%s1 + $0x178] sm:$0xff]
  %v521 = vld [vmem:[%s1 + $0x180] sm:$0xff]
  %v522 = vld [vmem:[%s1 + $0x188] sm:$0xff]
  %v523 = vld [vmem:[%s1 + $0x190] sm:$0xff]
  %v524 = vld [vmem:[%s1 + $0x198] sm:$0xff]
  %v525 = vld [vmem:[%s1 + $0x1a0] sm:$0xff]
  %v526 = vld [vmem:[%s1 + $0x1a8] sm:$0xff]
  %v527 = vld [vmem:[%s1 + $0x1b0] sm:$0xff]
  %v528 = vld [vmem:[%s1 + $0x1b8] sm:$0xff]
  %v529 = vld [vmem:[%s1 + $0x1c0] sm:$0xff]
  %v530 = vld [vmem:[%s1 + $0x1c8] sm:$0xff]
  %v531 = vld [vmem:[%s1 + $0x1d0] sm:$0xff]
  %v532 = vld [vmem:[%s1 + $0x1d8] sm:$0xff]
  %v533 = vld [vmem:[%s1 + $0x1e0] sm:$0xff]
  %v534 = vld [vmem:[%s1 + $0x1e8] sm:$0xff]
  %v535 = vld [vmem:[%s1 + $0x1f0] sm:$0xff]
  %v536 = vld [vmem:[%s1 + $0x1f8] sm:$0xff]
  %v537 = vld [vmem:[%s1 + $0x200] sm:$0xff]
  %v538 = vld [vmem:[%s1 + $0x208] sm:$0xff]
  %v539 = vld [vmem:[%s1 + $0x210] sm:$0xff]
  %v540 = vld [vmem:[%s1 + $0x218] sm:$0xff]
  %v541 = vld [vmem:[%s1 + $0x220] sm:$0xff]
  %v542 = vld [vmem:[%s1 + $0x228] sm:$0xff]
  %v543 = vld [vmem:[%s1 + $0x230] sm:$0xff]
  %v544 = vld [vmem:[%s1 + $0x238] sm:$0xff]
  %v545 = vld [vmem:[%s1 + $0x240] sm:$0xff]
  %v546 = vld [vmem:[%s1 + $0x248] sm:$0xff]
  %v547 = vld [vmem:[%s1 + $0x250] sm:$0xff]
  %v548 = vld [vmem:[%s1 + $0x258] sm:$0xff]
  %v549 = vld [vmem:[%s1 + $0x260] sm:$0xff]
  %v550 = vld [vmem:[%s1 + $0x268] sm:$0xff]
  %v551 = vld [vmem:[%s1 + $0x270] sm:$0xff]
  %v552 = vld [vmem:[%s1 + $0x278] sm:$0xff]
  %v553 = vld [vmem:[%s1 + $0x280] sm:$0xff]
  %v554 = vld [vmem:[%s1 + $0x288] sm:$0xff]
  %v555 = vld [vmem:[%s1 + $0x290] sm:$0xff]
  %v556 = vld [vmem:[%s1 + $0x298] sm:$0xff]
  %v557 = vld [vmem:[%s1 + $0x2a0] sm:$0xff]
  %v558 = vld [vmem:[%s1 + $0x2a8] sm:$0xff]
  %v559 = vld [vmem:[%s1 + $0x2b0] sm:$0xff]
  %v560 = vld [vmem:[%s1 + $0x2b8] sm:$0xff]
  %v561 = vld [vmem:[%s1 + $0x2c0] sm:$0xff]
  %v562 = vld [vmem:[%s1 + $0x2c8] sm:$0xff]
  %v563 = vld [vmem:[%s1 + $0x2d0] sm:$0xff]
  %v564 = vld [vmem:[%s1 + $0x2d8] sm:$0xff]
  %v565 = vld [vmem:[%s1 + $0x2e0] sm:$0xff]
  %v566 = vld [vmem:[%s1 + $0x2e8] sm:$0xff]
  %v567 = vld [vmem:[%s1 + $0x2f0] sm:$0xff]
  %v568 = vld [vmem:[%s1 + $0x2f8] sm:$0xff]
  %v569 = vld [vmem:[%s1 + $0x300] sm:$0xff]
  %v570 = vld [vmem:[%s1 + $0x308] sm:$0xff]
  %v571 = vld [vmem:[%s1 + $0x310] sm:$0xff]
  %v572 = vld [vmem:[%s1 + $0x318] sm:$0xff]
  %v573 = vld [vmem:[%s1 + $0x320] sm:$0xff]
  %v574 = vld [vmem:[%s1 + $0x328] sm:$0xff]
  %v575 = vld [vmem:[%s1 + $0x330] sm:$0xff]
  %v576 = vld [vmem:[%s1 + $0x338] sm:$0xff]
  %v577 = vld [vmem:[%s1 + $0x340] sm:$0xff]
  %v578 = vld [vmem:[%s1 + $0x348] sm:$0xff]
  %v579 = vld [vmem:[%s1 + $0x350] sm:$0xff]
  %v580 = vld [vmem:[%s1 + $0x358] sm:$0xff]
  %v581 = vld [vmem:[%s1 + $0x360] sm:$0xff]
  %v582 = vld [vmem:[%s1 + $0x368] sm:$0xff]
  %v583 = vld [vmem:[%s1 + $0x370] sm:$0xff]
  %v584 = vld [vmem:[%s1 + $0x378] sm:$0xff]
  %v585 = vld [vmem:[%s1 + $0x380] sm:$0xff]
  %v586 = vld [vmem:[%s1 + $0x388] sm:$0xff]
  %v587 = vld [vmem:[%s1 + $0x390] sm:$0xff]
  %v588 = vld [vmem:[%s1 + $0x398] sm:$0xff]
  %v589 = vld [vmem:[%s1 + $0x3a0] sm:$0xff]
  %v590 = vld [vmem:[%s1 + $0x3a8] sm:$0xff]
  %v591 = vld [vmem:[%s1 + $0x3b0] sm:$0xff]
  %v592 = vld [vmem:[%s1 + $0x3b8] sm:$0xff]
  %v593 = vld [vmem:[%s1 + $0x3c0] sm:$0xff]
  %v594 = vld [vmem:[%s1 + $0x3c8] sm:$0xff]
  %v595 = vld [vmem:[%s1 + $0x3d0] sm:$0xff]
  %v596 = vld [vmem:[%s1 + $0x3d8] sm:$0xff]
  %v597 = vld [vmem:[%s1 + $0x3e0] sm:$0xff]
  %v598 = vld [vmem:[%s1 + $0x3e8] sm:$0xff]
  %v599 = vld [vmem:[%s1 + $0x3f0] sm:$0xff]
  %v600 = vld [vmem:[%s1 + $0x3f8] sm:$0xff]
  %v601 = vld [vmem:[%s1 + $0x400] sm:$0xff]
  %v602 = vld [vmem:[%s1 + $0x408] sm:$0xff]
  %v603 = vld [vmem:[%s1 + $0x410] sm:$0xff]
  %v604 = vld [vmem:[%s1 + $0x418] sm:$0xff]
  %v605 = vld [vmem:[%s1 + $0x420] sm:$0xff]
  %v606 = vld [vmem:[%s1 + $0x428] sm:$0xff]
  %v607 = vld [vmem:[%s1 + $0x430] sm:$0xff]
  %v608 = vld [vmem:[%s1 + $0x438] sm:$0xff]
  %v609 = vld [vmem:[%s1 + $0x440] sm:$0xff]
  %v610 = vld [vmem:[%s1 + $0x448] sm:$0xff]
  %v611 = vld [vmem:[%s1 + $0x450] sm:$0xff]
  %v612 = vld [vmem:[%s1 + $0x458] sm:$0xff]
  %v613 = vld [vmem:[%s1 + $0x460] sm:$0xff]
  %v614 = vld [vmem:[%s1 + $0x468] sm:$0xff]
  %v615 = vld [vmem:[%s1 + $0x470] sm:$0xff]
  %v616 = vld [vmem:[%s1 + $0x478] sm:$0xff]
  %v617 = vld [vmem:[%s1 + $0x480] sm:$0xff]
  %v618 = vld [vmem:[%s1 + $0x488] sm:$0xff]
  %v619 = vld [vmem:[%s1 + $0x490] sm:$0xff]
  %v620 = vld [vmem:[%s1 + $0x498] sm:$0xff]
  %v621 = vld [vmem:[%s1 + $0x4a0] sm:$0xff]
  %v622 = vld [vmem:[%s1 + $0x4a8] sm:$0xff]
  %v623 = vld [vmem:[%s1 + $0x4b0] sm:$0xff]
  %v624 = vld [vmem:[%s1 + $0x4b8] sm:$0xff]
  %v625 = vld [vmem:[%s1 + $0x4c0] sm:$0xff]
  %v626 = vld [vmem:[%s1 + $0x4c8] sm:$0xff]
  %v627 = vld [vmem:[%s1 + $0x4d0] sm:$0xff]
  %v628 = vld [vmem:[%s1 + $0x4d8] sm:$0xff]
  %v629 = vld [vmem:[%s1 + $0x4e0] sm:$0xff]
  %v630 = vld [vmem:[%s1 + $0x4e8] sm:$0xff]
  %v631 = vld [vmem:[%s1 + $0x4f0] sm:$0xff]
  %v632 = vld [vmem:[%s1 + $0x4f8] sm:$0xff]
  %v633 = vld [vmem:[%s1 + $0x500] sm:$0xff]
  %v634 = vld [vmem:[%s1 + $0x508] sm:$0xff]
  %v635 = vld [vmem:[%s1 + $0x510] sm:$0xff]
  %v636 = vld [vmem:[%s1 + $0x518] sm:$0xff]
  %v637 = vld [vmem:[%s1 + $0x520] sm:$0xff]
  %v638 = vld [vmem:[%s1 + $0x528] sm:$0xff]
  %v639 = vld [vmem:[%s1 + $0x530] sm:$0xff]
  %v640 = vld [vmem:[%s1 + $0x538] sm:$0xff]
  %v641 = vld [vmem:[%s1 + $0x540] sm:$0xff]
  %v642 = vld [vmem:[%s1 + $0x548] sm:$0xff]
  %v643 = vld [vmem:[%s1 + $0x550] sm:$0xff]
  %v644 = vld [vmem:[%s1 + $0x558] sm:$0xff]
  %v645 = vld [vmem:[%s1 + $0x560] sm:$0xff]
  %v646 = vld [vmem:[%s1 + $0x568] sm:$0xff]
  %v647 = vld [vmem:[%s1 + $0x570] sm:$0xff]
  %v648 = vld [vmem:[%s1 + $0x578] sm:$0xff]
  %v649 = vld [vmem:[%s1 + $0x580] sm:$0xff]
  %v650 = vld [vmem:[%s1 + $0x588] sm:$0xff]
  %v651 = vld [vmem:[%s1 + $0x590] sm:$0xff]
  %v652 = vld [vmem:[%s1 + $0x598] sm:$0xff]
  %v653 = vld [vmem:[%s1 + $0x5a0] sm:$0xff]
  %v654 = vld [vmem:[%s1 + $0x5a8] sm:$0xff]
  %v655 = vld [vmem:[%s1 + $0x5b0] sm:$0xff]
  %v656 = vld [vmem:[%s1 + $0x5b8] sm:$0xff]
  %v657 = vld [vmem:[%s1 + $0x5c0] sm:$0xff]
  %v658 = vld [vmem:[%s1 + $0x5c8] sm:$0xff]
  %v659 = vld [vmem:[%s1 + $0x5d0] sm:$0xff]
  %v660 = vld [vmem:[%s1 + $0x5d8] sm:$0xff]
  %v661 = vld [vmem:[%s1 + $0x5e0] sm:$0xff]
  %v662 = vld [vmem:[%s1 + $0x5e8] sm:$0xff]
  %v663 = vld [vmem:[%s1 + $0x5f0] sm:$0xff]
  %v664 = vld [vmem:[%s1 + $0x5f8] sm:$0xff]
  %v665 = vld [vmem:[%s1 + $0x600] sm:$0xff]
  %v666 = vld [vmem:[%s1 + $0x608] sm:$0xff]
  %v667 = vld [vmem:[%s1 + $0x610] sm:$0xff]
  %v668 = vld [vmem:[%s1 + $0x618] sm:$0xff]
  %v669 = vld [vmem:[%s1 + $0x620] sm:$0xff]
  %v670 = vld [vmem:[%s1 + $0x628] sm:$0xff]
  %v671 = vld [vmem:[%s1 + $0x630] sm:$0xff]
  %v672 = vld [vmem:[%s1 + $0x638] sm:$0xff]
  %v673 = vld [vmem:[%s1 + $0x640] sm:$0xff]
  %v674 = vld [vmem:[%s1 + $0x648] sm:$0xff]
  %v675 = vld [vmem:[%s1 + $0x650] sm:$0xff]
  %v676 = vld [vmem:[%s1 + $0x658] sm:$0xff]
  %v677 = vld [vmem:[%s1 + $0x660] sm:$0xff]
  %v678 = vld [vmem:[%s1 + $0x668] sm:$0xff]
  %v679 = vld [vmem:[%s1 + $0x670] sm:$0xff]
  %v680 = vld [vmem:[%s1 + $0x678] sm:$0xff]
  %v681 = vld [vmem:[%s1 + $0x680] sm:$0xff]
  %v682 = vld [vmem:[%s1 + $0x688] sm:$0xff]
  %v683 = vld [vmem:[%s1 + $0x690] sm:$0xff]
  %v684 = vld [vmem:[%s1 + $0x698] sm:$0xff]
  %v685 = vld [vmem:[%s1 + $0x6a0] sm:$0xff]
  %v686 = vld [vmem:[%s1 + $0x6a8] sm:$0xff]
  %v687 = vld [vmem:[%s1 + $0x6b0] sm:$0xff]
  %v688 = vld [vmem:[%s1 + $0x6b8] sm:$0xff]
  %v689 = vld [vmem:[%s1 + $0x6c0] sm:$0xff]
  %v690 = vld [vmem:[%s1 + $0x6c8] sm:$0xff]
  %v691 = vld [vmem:[%s1 + $0x6d0] sm:$0xff]
  %v692 = vld [vmem:[%s1 + $0x6d8] sm:$0xff]
  %v693 = vld [vmem:[%s1 + $0x6e0] sm:$0xff]
  %v694 = vld [vmem:[%s1 + $0x6e8] sm:$0xff]
  %v695 = vld [vmem:[%s1 + $0x6f0] sm:$0xff]
  %v696 = vld [vmem:[%s1 + $0x6f8] sm:$0xff]
  %v697 = vld [vmem:[%s1 + $0x700] sm:$0xff]
  %v698 = vld [vmem:[%s1 + $0x708] sm:$0xff]
  %v699 = vld [vmem:[%s1 + $0x710] sm:$0xff]
  %v700 = vld [vmem:[%s1 + $0x718] sm:$0xff]
  %v701 = vld [vmem:[%s1 + $0x720] sm:$0xff]
  %v702 = vld [vmem:[%s1 + $0x728] sm:$0xff]
  %v703 = vld [vmem:[%s1 + $0x730] sm:$0xff]
  %v704 = vld [vmem:[%s1 + $0x738] sm:$0xff]
  %v705 = vld [vmem:[%s1 + $0x740] sm:$0xff]
  %v706 = vld [vmem:[%s1 + $0x748] sm:$0xff]
  %v707 = vld [vmem:[%s1 + $0x750] sm:$0xff]
  %v708 = vld [vmem:[%s1 + $0x758] sm:$0xff]
  %v709 = vld [vmem:[%s1 + $0x760] sm:$0xff]
  %v710 = vld [vmem:[%s1 + $0x768] sm:$0xff]
  %v711 = vld [vmem:[%s1 + $0x770] sm:$0xff]
  %v712 = vld [vmem:[%s1 + $0x778] sm:$0xff]
  %v713 = vld [vmem:[%s1 + $0x780] sm:$0xff]
  %v714 = vld [vmem:[%s1 + $0x788] sm:$0xff]
  %v715 = vld [vmem:[%s1 + $0x790] sm:$0xff]
  %v716 = vld [vmem:[%s1 + $0x798] sm:$0xff]
  %v717 = vld [vmem:[%s1 + $0x7a0] sm:$0xff]
  %v718 = vld [vmem:[%s1 + $0x7a8] sm:$0xff]
  %v719 = vld [vmem:[%s1 + $0x7b0] sm:$0xff]
  %v720 = vld [vmem:[%s1 + $0x7b8] sm:$0xff]
  %v721 = vld [vmem:[%s1 + $0x7c0] sm:$0xff]
  %v722 = vld [vmem:[%s1 + $0x7c8] sm:$0xff]
  %v723 = vld [vmem:[%s1 + $0x7d0] sm:$0xff]
  %v724 = vld [vmem:[%s1 + $0x7d8] sm:$0xff]
  %v725 = vld [vmem:[%s1 + $0x7e0] sm:$0xff]
  %v726 = vld [vmem:[%s1 + $0x7e8] sm:$0xff]
  %v727 = vld [vmem:[%s1 + $0x7f0] sm:$0xff]
  %v728 = vld [vmem:[%s1 + $0x7f8] sm:$0xff]
  %v729 = vld [vmem:[%s1 + $0x800] sm:$0xff]
  %v730 = vld [vmem:[%s1 + $0x808] sm:$0xff]
  %v731 = vld [vmem:[%s1 + $0x810] sm:$0xff]
  %v732 = vld [vmem:[%s1 + $0x818] sm:$0xff]
  %v733 = vld [vmem:[%s1 + $0x820] sm:$0xff]
  %v734 = vld [vmem:[%s1 + $0x828] sm:$0xff]
  %v735 = vld [vmem:[%s1 + $0x830] sm:$0xff]
  %v736 = vld [vmem:[%s1 + $0x838] sm:$0xff]
  %v737 = vld [vmem:[%s1 + $0x840] sm:$0xff]
  %v738 = vld [vmem:[%s1 + $0x848] sm:$0xff]
  %v739 = vld [vmem:[%s1 + $0x850] sm:$0xff]
  %v740 = vld [vmem:[%s1 + $0x858] sm:$0xff]
  %v741 = vld [vmem:[%s1 + $0x860] sm:$0xff]
  %v742 = vld [vmem:[%s1 + $0x868] sm:$0xff]
  %v743 = vld [vmem:[%s1 + $0x870] sm:$0xff]
  %v744 = vld [vmem:[%s1 + $0x878] sm:$0xff]
  %v745 = vld [vmem:[%s1 + $0x880] sm:$0xff]
  %v746 = vld [vmem:[%s1 + $0x888] sm:$0xff]
  %v747 = vld [vmem:[%s1 + $0x890] sm:$0xff]
  %v748 = vld [vmem:[%s1 + $0x898] sm:$0xff]
  %v749 = vld [vmem:[%s1 + $0x8a0] sm:$0xff]
  %v750 = vld [vmem:[%s1 + $0x8a8] sm:$0xff]
  %v751 = vld [vmem:[%s1 + $0x8b0] sm:$0xff]
  %v752 = vld [vmem:[%s1 + $0x8b8] sm:$0xff]
  %v753 = vld [vmem:[%s1 + $0x8c0] sm:$0xff]
  %v754 = vld [vmem:[%s1 + $0x8c8] sm:$0xff]
  %v755 = vld [vmem:[%s1 + $0x8d0] sm:$0xff]
  %v756 = vld [vmem:[%s1 + $0x8d8] sm:$0xff]
  %v757 = vld [vmem:[%s1 + $0x8e0] sm:$0xff]
  %v758 = vld [vmem:[%s1 + $0x8e8] sm:$0xff]
  %v759 = vld [vmem:[%s1 + $0x8f0] sm:$0xff]
  %v760 = vld [vmem:[%s1 + $0x8f8] sm:$0xff]
  %v761 = vld [vmem:[%s1 + $0x900] sm:$0xff]
  %v762 = vld [vmem:[%s1 + $0x908] sm:$0xff]
  %v763 = vld [vmem:[%s1 + $0x910] sm:$0xff]
  %v764 = vld [vmem:[%s1 + $0x918] sm:$0xff]
  %v765 = vld [vmem:[%s1 + $0x920] sm:$0xff]
  %v766 = vld [vmem:[%s1 + $0x928] sm:$0xff]
  %v767 = vld [vmem:[%s1 + $0x930] sm:$0xff]
  %v768 = vld [vmem:[%s1 + $0x938] sm:$0xff]
  %v769 = vld [vmem:[%s1 + $0x940] sm:$0xff]
  %v770 = vld [vmem:[%s1 + $0x948] sm:$0xff]
  %v771 = vld [vmem:[%s1 + $0x950] sm:$0xff]
  %v772 = vld [vmem:[%s1 + $0x958] sm:$0xff]
  %v773 = vld [vmem:[%s1 + $0x960] sm:$0xff]
  %v774 = vld [vmem:[%s1 + $0x968] sm:$0xff]
  %v775 = vld [vmem:[%s1 + $0x970] sm:$0xff]
  %v776 = vld [vmem:[%s1 + $0x978] sm:$0xff]
  %v777 = vld [vmem:[%s1 + $0x980] sm:$0xff]
  %v778 = vld [vmem:[%s1 + $0x988] sm:$0xff]
  %v779 = vld [vmem:[%s1 + $0x990] sm:$0xff]
  %v780 = vld [vmem:[%s1 + $0x998] sm:$0xff]
  %v781 = vld [vmem:[%s1 + $0x9a0] sm:$0xff]
  %v782 = vld [vmem:[%s1 + $0x9a8] sm:$0xff]
  %v783 = vld [vmem:[%s1 + $0x9b0] sm:$0xff]
  %v784 = vld [vmem:[%s1 + $0x9b8] sm:$0xff]
  %v785 = vld [vmem:[%s1 + $0x9c0] sm:$0xff]
  %v786 = vld [vmem:[%s1 + $0x9c8] sm:$0xff]
  %v787 = vld [vmem:[%s1 + $0x9d0] sm:$0xff]
  %v788 = vld [vmem:[%s1 + $0x9d8] sm:$0xff]
  %v789 = vld [vmem:[%s1 + $0x9e0] sm:$0xff]
  %v790 = vld [vmem:[%s1 + $0x9e8] sm:$0xff]
  %v791 = vld [vmem:[%s1 + $0x9f0] sm:$0xff]
  %v792 = vld [vmem:[%s1 + $0x9f8] sm:$0xff]
  %v793 = vld [vmem:[%s1 + $0xa00] sm:$0xff]
  %v794 = vld [vmem:[%s1 + $0xa08] sm:$0xff]
  %v795 = vld [vmem:[%s1 + $0xa10] sm:$0xff]
  %v796 = vld [vmem:[%s1 + $0xa18] sm:$0xff]
  %v797 = vld [vmem:[%s1 + $0xa20] sm:$0xff]
  %v798 = vld [vmem:[%s1 + $0xa28] sm:$0xff]
  %v799 = vld [vmem:[%s1 + $0xa30] sm:$0xff]
  %v800 = vld [vmem:[%s1 + $0xa38] sm:$0xff]
  %v801 = vld [vmem:[%s1 + $0xa40] sm:$0xff]
  %v802 = vld [vmem:[%s1 + $0xa48] sm:$0xff]
  %v803 = vld [vmem:[%s1 + $0xa50] sm:$0xff]
  %v804 = vld [vmem:[%s1 + $0xa58] sm:$0xff]
  %v805 = vld [vmem:[%s1 + $0xa60] sm:$0xff]
  %v806 = vld [vmem:[%s1 + $0xa68] sm:$0xff]
  %v807 = vld [vmem:[%s1 + $0xa70] sm:$0xff]
  %v808 = vld [vmem:[%s1 + $0xa78] sm:$0xff]
  %v809 = vld [vmem:[%s1 + $0xa80] sm:$0xff]
  %v810 = vld [vmem:[%s1 + $0xa88] sm:$0xff]
  %v811 = vld [vmem:[%s1 + $0xa90] sm:$0xff]
  %v812 = vld [vmem:[%s1 + $0xa98] sm:$0xff]
  %v813 = vld [vmem:[%s1 + $0xaa0] sm:$0xff]
  %v814 = vld [vmem:[%s1 + $0xaa8] sm:$0xff]
  %v815 = vld [vmem:[%s1 + $0xab0] sm:$0xff]
  %v816 = vld [vmem:[%s1 + $0xab8] sm:$0xff]
  %v817 = vld [vmem:[%s1 + $0xac0] sm:$0xff]
  %v818 = vld [vmem:[%s1 + $0xac8] sm:$0xff]
  %v819 = vld [vmem:[%s1 + $0xad0] sm:$0xff]
  %v820 = vld [vmem:[%s1 + $0xad8] sm:$0xff]
  %v821 = vld [vmem:[%s1 + $0xae0] sm:$0xff]
  %v822 = vld [vmem:[%s1 + $0xae8] sm:$0xff]
  %v823 = vld [vmem:[%s1 + $0xaf0] sm:$0xff]
  %v824 = vld [vmem:[%s1 + $0xaf8] sm:$0xff]
  %v825 = vld [vmem:[%s1 + $0xb00] sm:$0xff]
  %v826 = vld [vmem:[%s1 + $0xb08] sm:$0xff]
  %v827 = vld [vmem:[%s1 + $0xb10] sm:$0xff]
  %v828 = vld [vmem:[%s1 + $0xb18] sm:$0xff]
  %v829 = vld [vmem:[%s1 + $0xb20] sm:$0xff]
  %v830 = vld [vmem:[%s1 + $0xb28] sm:$0xff]
  %v831 = vld [vmem:[%s1 + $0xb30] sm:$0xff]
  %v832 = vld [vmem:[%s1 + $0xb38] sm:$0xff]
  %v833 = vld [vmem:[%s1 + $0xb40] sm:$0xff]
  %v834 = vld [vmem:[%s1 + $0xb48] sm:$0xff]
  %v835 = vld [vmem:[%s1 + $0xb50] sm:$0xff]
  %v836 = vld [vmem:[%s1 + $0xb58] sm:$0xff]
  %v837 = vld [vmem:[%s1 + $0xb60] sm:$0xff]
  %v838 = vld [vmem:[%s1 + $0xb68] sm:$0xff]
  %v839 = vld [vmem:[%s1 + $0xb70] sm:$0xff]
  %v840 = vld [vmem:[%s1 + $0xb78] sm:$0xff]
  %v841 = vld [vmem:[%s1 + $0xb80] sm:$0xff]
  %v842 = vld [vmem:[%s1 + $0xb88] sm:$0xff]
  %v843 = vld [vmem:[%s1 + $0xb90] sm:$0xff]
  %v844 = vld [vmem:[%s1 + $0xb98] sm:$0xff]
  %v845 = vld [vmem:[%s1 + $0xba0] sm:$0xff]
  %v846 = vld [vmem:[%s1 + $0xba8] sm:$0xff]
  %v847 = vld [vmem:[%s1 + $0xbb0] sm:$0xff]
  %v848 = vld [vmem:[%s1 + $0xbb8] sm:$0xff]
  %v849 = vld [vmem:[%s1 + $0xbc0] sm:$0xff]
  %v850 = vld [vmem:[%s1 + $0xbc8] sm:$0xff]
  %v851 = vld [vmem:[%s1 + $0xbd0] sm:$0xff]
  %v852 = vld [vmem:[%s1 + $0xbd8] sm:$0xff]
  %v853 = vld [vmem:[%s1 + $0xbe0] sm:$0xff]
  %v854 = vld [vmem:[%s1 + $0xbe8] sm:$0xff]
  %v855 = vld [vmem:[%s1 + $0xbf0] sm:$0xff]
  %v856 = vld [vmem:[%s1 + $0xbf8] sm:$0xff]
  %v857 = vld [vmem:[%s1 + $0xc00] sm:$0xff]
  %v858 = vld [vmem:[%s1 + $0xc08] sm:$0xff]
  %v859 = vld [vmem:[%s1 + $0xc10] sm:$0xff]
  %v860 = vld [vmem:[%s1 + $0xc18] sm:$0xff]
  %v861 = vld [vmem:[%s1 + $0xc20] sm:$0xff]
  %v862 = vld [vmem:[%s1 + $0xc28] sm:$0xff]
  %v863 = vld [vmem:[%s1 + $0xc30] sm:$0xff]
  %v864 = vld [vmem:[%s1 + $0xc38] sm:$0xff]
  %v865 = vld [vmem:[%s1 + $0xc40] sm:$0xff]
  %v866 = vld [vmem:[%s1 + $0xc48] sm:$0xff]
  %v867 = vld [vmem:[%s1 + $0xc50] sm:$0xff]
  %v868 = vld [vmem:[%s1 + $0xc58] sm:$0xff]
  %v869 = vld [vmem:[%s1 + $0xc60] sm:$0xff]
  %v870 = vld [vmem:[%s1 + $0xc68] sm:$0xff]
  %v871 = vld [vmem:[%s1 + $0xc70] sm:$0xff]
  %v872 = vld [vmem:[%s1 + $0xc78] sm:$0xff]
  %v873 = vld [vmem:[%s1 + $0xc80] sm:$0xff]
  %v874 = vld [vmem:[%s1 + $0xc88] sm:$0xff]
  %v875 = vld [vmem:[%s1 + $0xc90] sm:$0xff]
  %v876 = vld [vmem:[%s1 + $0xc98] sm:$0xff]
  %v877 = vld [vmem:[%s1 + $0xca0] sm:$0xff]
  %v878 = vld [vmem:[%s1 + $0xca8] sm:$0xff]
  %v879 = vld [vmem:[%s1 + $0xcb0] sm:$0xff]
  %v880 = vld [vmem:[%s1 + $0xcb8] sm:$0xff]
  %v881 = vld [vmem:[%s1 + $0xcc0] sm:$0xff]
  %v882 = vld [vmem:[%s1 + $0xcc8] sm:$0xff]
  %v883 = vld [vmem:[%s1 + $0xcd0] sm:$0xff]
  %v884 = vld [vmem:[%s1 + $0xcd8] sm:$0xff]
  %v885 = vld [vmem:[%s1 + $0xce0] sm:$0xff]
  %v886 = vld [vmem:[%s1 + $0xce8] sm:$0xff]
  %v887 = vld [vmem:[%s1 + $0xcf0] sm:$0xff]
  %v888 = vld [vmem:[%s1 + $0xcf8] sm:$0xff]
  %v889 = vld [vmem:[%s1 + $0xd00] sm:$0xff]
  %v890 = vld [vmem:[%s1 + $0xd08] sm:$0xff]
  %v891 = vld [vmem:[%s1 + $0xd10] sm:$0xff]
  %v892 = vld [vmem:[%s1 + $0xd18] sm:$0xff]
  %v893 = vld [vmem:[%s1 + $0xd20] sm:$0xff]
  %v894 = vld [vmem:[%s1 + $0xd28] sm:$0xff]
  %v895 = vld [vmem:[%s1 + $0xd30] sm:$0xff]
  %v896 = vld [vmem:[%s1 + $0xd38] sm:$0xff]
  %v897 = vld [vmem:[%s1 + $0xd40] sm:$0xff]
  %v898 = vld [vmem:[%s1 + $0xd48] sm:$0xff]
  %v899 = vld [vmem:[%s1 + $0xd50] sm:$0xff]
  %v900 = vld [vmem:[%s1 + $0xd58] sm:$0xff]
  %v901 = vld [vmem:[%s1 + $0xd60] sm:$0xff]
  %v902 = vld [vmem:[%s1 + $0xd68] sm:$0xff]
  %v903 = vld [vmem:[%s1 + $0xd70] sm:$0xff]
  %v904 = vld [vmem:[%s1 + $0xd78] sm:$0xff]
  %v905 = vld [vmem:[%s1 + $0xd80] sm:$0xff]
  %v906 = vld [vmem:[%s1 + $0xd88] sm:$0xff]
  %v907 = vld [vmem:[%s1 + $0xd90] sm:$0xff]
  %v908 = vld [vmem:[%s1 + $0xd98] sm:$0xff]
  %v909 = vld [vmem:[%s1 + $0xda0] sm:$0xff]
  %v910 = vld [vmem:[%s1 + $0xda8] sm:$0xff]
  %v911 = vld [vmem:[%s1 + $0xdb0] sm:$0xff]
  %v912 = vld [vmem:[%s1 + $0xdb8] sm:$0xff]
  %v913 = vld [vmem:[%s1 + $0xdc0] sm:$0xff]
  %v914 = vld [vmem:[%s1 + $0xdc8] sm:$0xff]
  %v915 = vld [vmem:[%s1 + $0xdd0] sm:$0xff]
  %v916 = vld [vmem:[%s1 + $0xdd8] sm:$0xff]
  %v917 = vld [vmem:[%s1 + $0xde0] sm:$0xff]
  %v918 = vld [vmem:[%s1 + $0xde8] sm:$0xff]
  %v919 = vld [vmem:[%s1 + $0xdf0] sm:$0xff]
  %v920 = vld [vmem:[%s1 + $0xdf8] sm:$0xff]
  %v921 = vld [vmem:[%s1 + $0xe00] sm:$0xff]
  %v922 = vld [vmem:[%s1 + $0xe08] sm:$0xff]
  %v923 = vld [vmem:[%s1 + $0xe10] sm:$0xff]
  %v924 = vld [vmem:[%s1 + $0xe18] sm:$0xff]
  %v925 = vld [vmem:[%s1 + $0xe20] sm:$0xff]
  %v926 = vld [vmem:[%s1 + $0xe28] sm:$0xff]
  %v927 = vld [vmem:[%s1 + $0xe30] sm:$0xff]
  %v928 = vld [vmem:[%s1 + $0xe38] sm:$0xff]
  %v929 = vld [vmem:[%s1 + $0xe40] sm:$0xff]
  %v930 = vld [vmem:[%s1 + $0xe48] sm:$0xff]
  %v931 = vld [vmem:[%s1 + $0xe50] sm:$0xff]
  %v932 = vld [vmem:[%s1 + $0xe58] sm:$0xff]
  %v933 = vld [vmem:[%s1 + $0xe60] sm:$0xff]
  %v934 = vld [vmem:[%s1 + $0xe68] sm:$0xff]
  %v935 = vld [vmem:[%s1 + $0xe70] sm:$0xff]
  %v936 = vld [vmem:[%s1 + $0xe78] sm:$0xff]
  %v937 = vld [vmem:[%s1 + $0xe80] sm:$0xff]
  %v938 = vld [vmem:[%s1 + $0xe88] sm:$0xff]
  %v939 = vld [vmem:[%s1 + $0xe90] sm:$0xff]
  %v940 = vld [vmem:[%s1 + $0xe98] sm:$0xff]
  %v941 = vld [vmem:[%s1 + $0xea0] sm:$0xff]
  %v942 = vld [vmem:[%s1 + $0xea8] sm:$0xff]
  %v943 = vld [vmem:[%s1 + $0xeb0] sm:$0xff]
  %v944 = vld [vmem:[%s1 + $0xeb8] sm:$0xff]
  %v945 = vld [vmem:[%s1 + $0xec0] sm:$0xff]
  %v946 = vld [vmem:[%s1 + $0xec8] sm:$0xff]
  %v947 = vld [vmem:[%s1 + $0xed0] sm:$0xff]
  %v948 = vld [vmem:[%s1 + $0xed8] sm:$0xff]
  %v949 = vld [vmem:[%s1 + $0xee0] sm:$0xff]
  %v950 = vld [vmem:[%s1 + $0xee8] sm:$0xff]
  %v951 = vld [vmem:[%s1 + $0xef0] sm:$0xff]
  %v952 = vld [vmem:[%s1 + $0xef8] sm:$0xff]
  %v953 = vld [vmem:[%s1 + $0xf00] sm:$0xff]
  %v954 = vld [vmem:[%s1 + $0xf08] sm:$0xff]
  %v955 = vld [vmem:[%s1 + $0xf10] sm:$0xff]
  %v956 = vld [vmem:[%s1 + $0xf18] sm:$0xff]
  %v957 = vld [vmem:[%s1 + $0xf20] sm:$0xff]
  %v958 = vld [vmem:[%s1 + $0xf28] sm:$0xff]
  %v959 = vld [vmem:[%s1 + $0xf30] sm:$0xff]
  %v960 = vld [vmem:[%s1 + $0xf38] sm:$0xff]
  %v961 = vld [vmem:[%s1 + $0xf40] sm:$0xff]
  %v962 = vld [vmem:[%s1 + $0xf48] sm:$0xff]
  %v963 = vld [vmem:[%s1 + $0xf50] sm:$0xff]
  %v964 = vld [vmem:[%s1 + $0xf58] sm:$0xff]
  %v965 = vld [vmem:[%s1 + $0xf60] sm:$0xff]
  %v966 = vld [vmem:[%s1 + $0xf68] sm:$0xff]
  %v967 = vld [vmem:[%s1 + $0xf70] sm:$0xff]
  %v968 = vld [vmem:[%s1 + $0xf78] sm:$0xff]
  %v969 = vld [vmem:[%s1 + $0xf80] sm:$0xff]
  %v970 = vld [vmem:[%s1 + $0xf88] sm:$0xff]
  %v971 = vld [vmem:[%s1 + $0xf90] sm:$0xff]
  %v972 = vld [vmem:[%s1 + $0xf98] sm:$0xff]
  %v973 = vld [vmem:[%s1 + $0xfa0] sm:$0xff]
  %v974 = vld [vmem:[%s1 + $0xfa8] sm:$0xff]
  %v975 = vld [vmem:[%s1 + $0xfb0] sm:$0xff]
  %v976 = vld [vmem:[%s1 + $0xfb8] sm:$0xff]
  %v977 = vld [vmem:[%s1 + $0xfc0] sm:$0xff]
  %v978 = vld [vmem:[%s1 + $0xfc8] sm:$0xff]
  %v979 = vld [vmem:[%s1 + $0xfd0] sm:$0xff]
  %v980 = vld [vmem:[%s1 + $0xfd8] sm:$0xff]
  %v981 = vld [vmem:[%s1 + $0xfe0] sm:$0xff]
  %v982 = vld [vmem:[%s1 + $0xfe8] sm:$0xff]
  %v983 = vld [vmem:[%s1 + $0xff0] sm:$0x33]
  %v984 = vld [vmem:[%s1 + $0xff8] sm:$0x33]
  %v985 = vld [vmem:[%s1 + $0x1000] sm:$0x33]
  %v986 = vld [vmem:[%s1 + $0x1008] sm:$0x33]
  %v987 = vld [vmem:[%s1 + $0x1010] sm:$0x33]
  %v988 = vld [vmem:[%s1 + $0x1018] sm:$0x33]
  %v1505 = vunpack.c.l.b16 %v473
  %v1506 = vunpack.c.h.b16 %v473
  %v1507 = vunpack.c.l.b16 %v474
  %v1508 = vunpack.c.h.b16 %v474
  %v1509 = vunpack.c.l.b16 %v475
  %v1510 = vunpack.c.h.b16 %v475
  %v1511 = vunpack.c.l.b16 %v476
  %v1512 = vunpack.c.h.b16 %v476
  %v1513 = vunpack.c.l.b16 %v477
  %v1514 = vunpack.c.h.b16 %v477
  %v1515 = vunpack.c.l.b16 %v478
  %v1516 = vunpack.c.h.b16 %v478
  %v1517 = vunpack.c.l.b16 %v479
  %v1518 = vunpack.c.h.b16 %v479
  %v1519 = vunpack.c.l.b16 %v480
  %v1520 = vunpack.c.h.b16 %v480
  %v1521 = vunpack.c.l.b16 %v481
  %v1522 = vunpack.c.h.b16 %v481
  %v1523 = vunpack.c.l.b16 %v482
  %v1524 = vunpack.c.h.b16 %v482
  %v1525 = vunpack.c.l.b16 %v483
  %v1526 = vunpack.c.h.b16 %v483
  %v1527 = vunpack.c.l.b16 %v484
  %v1528 = vunpack.c.h.b16 %v484
  %v1529 = vunpack.c.l.b16 %v485
  %v1530 = vunpack.c.h.b16 %v485
  %v1531 = vunpack.c.l.b16 %v486
  %v1532 = vunpack.c.h.b16 %v486
  %v1533 = vunpack.c.l.b16 %v487
  %v1534 = vunpack.c.h.b16 %v487
  %v1535 = vunpack.c.l.b16 %v488
  %v1536 = vunpack.c.h.b16 %v488
  %v1537 = vunpack.c.l.b16 %v489
  %v1538 = vunpack.c.h.b16 %v489
  %v1539 = vunpack.c.l.b16 %v490
  %v1540 = vunpack.c.h.b16 %v490
  %v1541 = vunpack.c.l.b16 %v491
  %v1542 = vunpack.c.h.b16 %v491
  %v1543 = vunpack.c.l.b16 %v492
  %v1544 = vunpack.c.h.b16 %v492
  %v1545 = vunpack.c.l.b16 %v493
  %v1546 = vunpack.c.h.b16 %v493
  %v1547 = vunpack.c.l.b16 %v494
  %v1548 = vunpack.c.h.b16 %v494
  %v1549 = vunpack.c.l.b16 %v495
  %v1550 = vunpack.c.h.b16 %v495
  %v1551 = vunpack.c.l.b16 %v496
  %v1552 = vunpack.c.h.b16 %v496
  %v1553 = vunpack.c.l.b16 %v497
  %v1554 = vunpack.c.h.b16 %v497
  %v1555 = vunpack.c.l.b16 %v498
  %v1556 = vunpack.c.h.b16 %v498
  %v1557 = vunpack.c.l.b16 %v499
  %v1558 = vunpack.c.h.b16 %v499
  %v1559 = vunpack.c.l.b16 %v500
  %v1560 = vunpack.c.h.b16 %v500
  %v1561 = vunpack.c.l.b16 %v501
  %v1562 = vunpack.c.h.b16 %v501
  %v1563 = vunpack.c.l.b16 %v502
  %v1564 = vunpack.c.h.b16 %v502
  %v1565 = vunpack.c.l.b16 %v503
  %v1566 = vunpack.c.h.b16 %v503
  %v1567 = vunpack.c.l.b16 %v504
  %v1568 = vunpack.c.h.b16 %v504
  %v1569 = vunpack.c.l.b16 %v505
  %v1570 = vunpack.c.h.b16 %v505
  %v1571 = vunpack.c.l.b16 %v506
  %v1572 = vunpack.c.h.b16 %v506
  %v1573 = vunpack.c.l.b16 %v507
  %v1574 = vunpack.c.h.b16 %v507
  %v1575 = vunpack.c.l.b16 %v508
  %v1576 = vunpack.c.h.b16 %v508
  %v1577 = vunpack.c.l.b16 %v509
  %v1578 = vunpack.c.h.b16 %v509
  %v1579 = vunpack.c.l.b16 %v510
  %v1580 = vunpack.c.h.b16 %v510
  %v1581 = vunpack.c.l.b16 %v511
  %v1582 = vunpack.c.h.b16 %v511
  %v1583 = vunpack.c.l.b16 %v512
  %v1584 = vunpack.c.h.b16 %v512
  %v1585 = vunpack.c.l.b16 %v513
  %v1586 = vunpack.c.h.b16 %v513
  %v1587 = vunpack.c.l.b16 %v514
  %v1588 = vunpack.c.h.b16 %v514
  %v1589 = vunpack.c.l.b16 %v515
  %v1590 = vunpack.c.h.b16 %v515
  %v1591 = vunpack.c.l.b16 %v516
  %v1592 = vunpack.c.h.b16 %v516
  %v1593 = vunpack.c.l.b16 %v517
  %v1594 = vunpack.c.h.b16 %v517
  %v1595 = vunpack.c.l.b16 %v518
  %v1596 = vunpack.c.h.b16 %v518
  %v1597 = vunpack.c.l.b16 %v519
  %v1598 = vunpack.c.h.b16 %v519
  %v1599 = vunpack.c.l.b16 %v520
  %v1600 = vunpack.c.h.b16 %v520
  %v1601 = vunpack.c.l.b16 %v521
  %v1602 = vunpack.c.h.b16 %v521
  %v1603 = vunpack.c.l.b16 %v522
  %v1604 = vunpack.c.h.b16 %v522
  %v1605 = vunpack.c.l.b16 %v523
  %v1606 = vunpack.c.h.b16 %v523
  %v1607 = vunpack.c.l.b16 %v524
  %v1608 = vunpack.c.h.b16 %v524
  %v1609 = vunpack.c.l.b16 %v525
  %v1610 = vunpack.c.h.b16 %v525
  %v1611 = vunpack.c.l.b16 %v526
  %v1612 = vunpack.c.h.b16 %v526
  %v1613 = vunpack.c.l.b16 %v527
  %v1614 = vunpack.c.h.b16 %v527
  %v1615 = vunpack.c.l.b16 %v528
  %v1616 = vunpack.c.h.b16 %v528
  %v1617 = vunpack.c.l.b16 %v529
  %v1618 = vunpack.c.h.b16 %v529
  %v1619 = vunpack.c.l.b16 %v530
  %v1620 = vunpack.c.h.b16 %v530
  %v1621 = vunpack.c.l.b16 %v531
  %v1622 = vunpack.c.h.b16 %v531
  %v1623 = vunpack.c.l.b16 %v532
  %v1624 = vunpack.c.h.b16 %v532
  %v1625 = vunpack.c.l.b16 %v533
  %v1626 = vunpack.c.h.b16 %v533
  %v1627 = vunpack.c.l.b16 %v534
  %v1628 = vunpack.c.h.b16 %v534
  %v1629 = vunpack.c.l.b16 %v535
  %v1630 = vunpack.c.h.b16 %v535
  %v1631 = vunpack.c.l.b16 %v536
  %v1632 = vunpack.c.h.b16 %v536
  %v1633 = vunpack.c.l.b16 %v537
  %v1634 = vunpack.c.h.b16 %v537
  %v1635 = vunpack.c.l.b16 %v538
  %v1636 = vunpack.c.h.b16 %v538
  %v1637 = vunpack.c.l.b16 %v539
  %v1638 = vunpack.c.h.b16 %v539
  %v1639 = vunpack.c.l.b16 %v540
  %v1640 = vunpack.c.h.b16 %v540
  %v1641 = vunpack.c.l.b16 %v541
  %v1642 = vunpack.c.h.b16 %v541
  %v1643 = vunpack.c.l.b16 %v542
  %v1644 = vunpack.c.h.b16 %v542
  %v1645 = vunpack.c.l.b16 %v543
  %v1646 = vunpack.c.h.b16 %v543
  %v1647 = vunpack.c.l.b16 %v544
  %v1648 = vunpack.c.h.b16 %v544
  %v1649 = vunpack.c.l.b16 %v545
  %v1650 = vunpack.c.h.b16 %v545
  %v1651 = vunpack.c.l.b16 %v546
  %v1652 = vunpack.c.h.b16 %v546
  %v1653 = vunpack.c.l.b16 %v547
  %v1654 = vunpack.c.h.b16 %v547
  %v1655 = vunpack.c.l.b16 %v548
  %v1656 = vunpack.c.h.b16 %v548
  %v1657 = vunpack.c.l.b16 %v549
  %v1658 = vunpack.c.h.b16 %v549
  %v1659 = vunpack.c.l.b16 %v550
  %v1660 = vunpack.c.h.b16 %v550
  %v1661 = vunpack.c.l.b16 %v551
  %v1662 = vunpack.c.h.b16 %v551
  %v1663 = vunpack.c.l.b16 %v552
  %v1664 = vunpack.c.h.b16 %v552
  %v1665 = vunpack.c.l.b16 %v553
  %v1666 = vunpack.c.h.b16 %v553
  %v1667 = vunpack.c.l.b16 %v554
  %v1668 = vunpack.c.h.b16 %v554
  %v1669 = vunpack.c.l.b16 %v555
  %v1670 = vunpack.c.h.b16 %v555
  %v1671 = vunpack.c.l.b16 %v556
  %v1672 = vunpack.c.h.b16 %v556
  %v1673 = vunpack.c.l.b16 %v557
  %v1674 = vunpack.c.h.b16 %v557
  %v1675 = vunpack.c.l.b16 %v558
  %v1676 = vunpack.c.h.b16 %v558
  %v1677 = vunpack.c.l.b16 %v559
  %v1678 = vunpack.c.h.b16 %v559
  %v1679 = vunpack.c.l.b16 %v560
  %v1680 = vunpack.c.h.b16 %v560
  %v1681 = vunpack.c.l.b16 %v561
  %v1682 = vunpack.c.h.b16 %v561
  %v1683 = vunpack.c.l.b16 %v562
  %v1684 = vunpack.c.h.b16 %v562
  %v1685 = vunpack.c.l.b16 %v563
  %v1686 = vunpack.c.h.b16 %v563
  %v1687 = vunpack.c.l.b16 %v564
  %v1688 = vunpack.c.h.b16 %v564
  %v1689 = vunpack.c.l.b16 %v565
  %v1690 = vunpack.c.h.b16 %v565
  %v1691 = vunpack.c.l.b16 %v566
  %v1692 = vunpack.c.h.b16 %v566
  %v1693 = vunpack.c.l.b16 %v567
  %v1694 = vunpack.c.h.b16 %v567
  %v1695 = vunpack.c.l.b16 %v568
  %v1696 = vunpack.c.h.b16 %v568
  %v1697 = vunpack.c.l.b16 %v569
  %v1698 = vunpack.c.h.b16 %v569
  %v1699 = vunpack.c.l.b16 %v570
  %v1700 = vunpack.c.h.b16 %v570
  %v1701 = vunpack.c.l.b16 %v571
  %v1702 = vunpack.c.h.b16 %v571
  %v1703 = vunpack.c.l.b16 %v572
  %v1704 = vunpack.c.h.b16 %v572
  %v1705 = vunpack.c.l.b16 %v573
  %v1706 = vunpack.c.h.b16 %v573
  %v1707 = vunpack.c.l.b16 %v574
  %v1708 = vunpack.c.h.b16 %v574
  %v1709 = vunpack.c.l.b16 %v575
  %v1710 = vunpack.c.h.b16 %v575
  %v1711 = vunpack.c.l.b16 %v576
  %v1712 = vunpack.c.h.b16 %v576
  %v1713 = vunpack.c.l.b16 %v577
  %v1714 = vunpack.c.h.b16 %v577
  %v1715 = vunpack.c.l.b16 %v578
  %v1716 = vunpack.c.h.b16 %v578
  %v1717 = vunpack.c.l.b16 %v579
  %v1718 = vunpack.c.h.b16 %v579
  %v1719 = vunpack.c.l.b16 %v580
  %v1720 = vunpack.c.h.b16 %v580
  %v1721 = vunpack.c.l.b16 %v581
  %v1722 = vunpack.c.h.b16 %v581
  %v1723 = vunpack.c.l.b16 %v582
  %v1724 = vunpack.c.h.b16 %v582
  %v1725 = vunpack.c.l.b16 %v583
  %v1726 = vunpack.c.h.b16 %v583
  %v1727 = vunpack.c.l.b16 %v584
  %v1728 = vunpack.c.h.b16 %v584
  %v1729 = vunpack.c.l.b16 %v585
  %v1730 = vunpack.c.h.b16 %v585
  %v1731 = vunpack.c.l.b16 %v586
  %v1732 = vunpack.c.h.b16 %v586
  %v1733 = vunpack.c.l.b16 %v587
  %v1734 = vunpack.c.h.b16 %v587
  %v1735 = vunpack.c.l.b16 %v588
  %v1736 = vunpack.c.h.b16 %v588
  %v1737 = vunpack.c.l.b16 %v589
  %v1738 = vunpack.c.h.b16 %v589
  %v1739 = vunpack.c.l.b16 %v590
  %v1740 = vunpack.c.h.b16 %v590
  %v1741 = vunpack.c.l.b16 %v591
  %v1742 = vunpack.c.h.b16 %v591
  %v1743 = vunpack.c.l.b16 %v592
  %v1744 = vunpack.c.h.b16 %v592
  %v1745 = vunpack.c.l.b16 %v593
  %v1746 = vunpack.c.h.b16 %v593
  %v1747 = vunpack.c.l.b16 %v594
  %v1748 = vunpack.c.h.b16 %v594
  %v1749 = vunpack.c.l.b16 %v595
  %v1750 = vunpack.c.h.b16 %v595
  %v1751 = vunpack.c.l.b16 %v596
  %v1752 = vunpack.c.h.b16 %v596
  %v1753 = vunpack.c.l.b16 %v597
  %v1754 = vunpack.c.h.b16 %v597
  %v1755 = vunpack.c.l.b16 %v598
  %v1756 = vunpack.c.h.b16 %v598
  %v1757 = vunpack.c.l.b16 %v599
  %v1758 = vunpack.c.h.b16 %v599
  %v1759 = vunpack.c.l.b16 %v600
  %v1760 = vunpack.c.h.b16 %v600
  %v1761 = vunpack.c.l.b16 %v601
  %v1762 = vunpack.c.h.b16 %v601
  %v1763 = vunpack.c.l.b16 %v602
  %v1764 = vunpack.c.h.b16 %v602
  %v1765 = vunpack.c.l.b16 %v603
  %v1766 = vunpack.c.h.b16 %v603
  %v1767 = vunpack.c.l.b16 %v604
  %v1768 = vunpack.c.h.b16 %v604
  %v1769 = vunpack.c.l.b16 %v605
  %v1770 = vunpack.c.h.b16 %v605
  %v1771 = vunpack.c.l.b16 %v606
  %v1772 = vunpack.c.h.b16 %v606
  %v1773 = vunpack.c.l.b16 %v607
  %v1774 = vunpack.c.h.b16 %v607
  %v1775 = vunpack.c.l.b16 %v608
  %v1776 = vunpack.c.h.b16 %v608
  %v1777 = vunpack.c.l.b16 %v609
  %v1778 = vunpack.c.h.b16 %v609
  %v1779 = vunpack.c.l.b16 %v610
  %v1780 = vunpack.c.h.b16 %v610
  %v1781 = vunpack.c.l.b16 %v611
  %v1782 = vunpack.c.h.b16 %v611
  %v1783 = vunpack.c.l.b16 %v612
  %v1784 = vunpack.c.h.b16 %v612
  %v1785 = vunpack.c.l.b16 %v613
  %v1786 = vunpack.c.h.b16 %v613
  %v1787 = vunpack.c.l.b16 %v614
  %v1788 = vunpack.c.h.b16 %v614
  %v1789 = vunpack.c.l.b16 %v615
  %v1790 = vunpack.c.h.b16 %v615
  %v1791 = vunpack.c.l.b16 %v616
  %v1792 = vunpack.c.h.b16 %v616
  %v1793 = vunpack.c.l.b16 %v617
  %v1794 = vunpack.c.h.b16 %v617
  %v1795 = vunpack.c.l.b16 %v618
  %v1796 = vunpack.c.h.b16 %v618
  %v1797 = vunpack.c.l.b16 %v619
  %v1798 = vunpack.c.h.b16 %v619
  %v1799 = vunpack.c.l.b16 %v620
  %v1800 = vunpack.c.h.b16 %v620
  %v1801 = vunpack.c.l.b16 %v621
  %v1802 = vunpack.c.h.b16 %v621
  %v1803 = vunpack.c.l.b16 %v622
  %v1804 = vunpack.c.h.b16 %v622
  %v1805 = vunpack.c.l.b16 %v623
  %v1806 = vunpack.c.h.b16 %v623
  %v1807 = vunpack.c.l.b16 %v624
  %v1808 = vunpack.c.h.b16 %v624
  %v1809 = vunpack.c.l.b16 %v625
  %v1810 = vunpack.c.h.b16 %v625
  %v1811 = vunpack.c.l.b16 %v626
  %v1812 = vunpack.c.h.b16 %v626
  %v1813 = vunpack.c.l.b16 %v627
  %v1814 = vunpack.c.h.b16 %v627
  %v1815 = vunpack.c.l.b16 %v628
  %v1816 = vunpack.c.h.b16 %v628
  %v1817 = vunpack.c.l.b16 %v629
  %v1818 = vunpack.c.h.b16 %v629
  %v1819 = vunpack.c.l.b16 %v630
  %v1820 = vunpack.c.h.b16 %v630
  %v1821 = vunpack.c.l.b16 %v631
  %v1822 = vunpack.c.h.b16 %v631
  %v1823 = vunpack.c.l.b16 %v632
  %v1824 = vunpack.c.h.b16 %v632
  %v1825 = vunpack.c.l.b16 %v633
  %v1826 = vunpack.c.h.b16 %v633
  %v1827 = vunpack.c.l.b16 %v634
  %v1828 = vunpack.c.h.b16 %v634
  %v1829 = vunpack.c.l.b16 %v635
  %v1830 = vunpack.c.h.b16 %v635
  %v1831 = vunpack.c.l.b16 %v636
  %v1832 = vunpack.c.h.b16 %v636
  %v1833 = vunpack.c.l.b16 %v637
  %v1834 = vunpack.c.h.b16 %v637
  %v1835 = vunpack.c.l.b16 %v638
  %v1836 = vunpack.c.h.b16 %v638
  %v1837 = vunpack.c.l.b16 %v639
  %v1838 = vunpack.c.h.b16 %v639
  %v1839 = vunpack.c.l.b16 %v640
  %v1840 = vunpack.c.h.b16 %v640
  %v1841 = vunpack.c.l.b16 %v641
  %v1842 = vunpack.c.h.b16 %v641
  %v1843 = vunpack.c.l.b16 %v642
  %v1844 = vunpack.c.h.b16 %v642
  %v1845 = vunpack.c.l.b16 %v643
  %v1846 = vunpack.c.h.b16 %v643
  %v1847 = vunpack.c.l.b16 %v644
  %v1848 = vunpack.c.h.b16 %v644
  %v1849 = vunpack.c.l.b16 %v645
  %v1850 = vunpack.c.h.b16 %v645
  %v1851 = vunpack.c.l.b16 %v646
  %v1852 = vunpack.c.h.b16 %v646
  %v1853 = vunpack.c.l.b16 %v647
  %v1854 = vunpack.c.h.b16 %v647
  %v1855 = vunpack.c.l.b16 %v648
  %v1856 = vunpack.c.h.b16 %v648
  %v1857 = vunpack.c.l.b16 %v649
  %v1858 = vunpack.c.h.b16 %v649
  %v1859 = vunpack.c.l.b16 %v650
  %v1860 = vunpack.c.h.b16 %v650
  %v1861 = vunpack.c.l.b16 %v651
  %v1862 = vunpack.c.h.b16 %v651
  %v1863 = vunpack.c.l.b16 %v652
  %v1864 = vunpack.c.h.b16 %v652
  %v1865 = vunpack.c.l.b16 %v653
  %v1866 = vunpack.c.h.b16 %v653
  %v1867 = vunpack.c.l.b16 %v654
  %v1868 = vunpack.c.h.b16 %v654
  %v1869 = vunpack.c.l.b16 %v655
  %v1870 = vunpack.c.h.b16 %v655
  %v1871 = vunpack.c.l.b16 %v656
  %v1872 = vunpack.c.h.b16 %v656
  %v1873 = vunpack.c.l.b16 %v657
  %v1874 = vunpack.c.h.b16 %v657
  %v1875 = vunpack.c.l.b16 %v658
  %v1876 = vunpack.c.h.b16 %v658
  %v1877 = vunpack.c.l.b16 %v659
  %v1878 = vunpack.c.h.b16 %v659
  %v1879 = vunpack.c.l.b16 %v660
  %v1880 = vunpack.c.h.b16 %v660
  %v1881 = vunpack.c.l.b16 %v661
  %v1882 = vunpack.c.h.b16 %v661
  %v1883 = vunpack.c.l.b16 %v662
  %v1884 = vunpack.c.h.b16 %v662
  %v1885 = vunpack.c.l.b16 %v663
  %v1886 = vunpack.c.h.b16 %v663
  %v1887 = vunpack.c.l.b16 %v664
  %v1888 = vunpack.c.h.b16 %v664
  %v1889 = vunpack.c.l.b16 %v665
  %v1890 = vunpack.c.h.b16 %v665
  %v1891 = vunpack.c.l.b16 %v666
  %v1892 = vunpack.c.h.b16 %v666
  %v1893 = vunpack.c.l.b16 %v667
  %v1894 = vunpack.c.h.b16 %v667
  %v1895 = vunpack.c.l.b16 %v668
  %v1896 = vunpack.c.h.b16 %v668
  %v1897 = vunpack.c.l.b16 %v669
  %v1898 = vunpack.c.h.b16 %v669
  %v1899 = vunpack.c.l.b16 %v670
  %v1900 = vunpack.c.h.b16 %v670
  %v1901 = vunpack.c.l.b16 %v671
  %v1902 = vunpack.c.h.b16 %v671
  %v1903 = vunpack.c.l.b16 %v672
  %v1904 = vunpack.c.h.b16 %v672
  %v1905 = vunpack.c.l.b16 %v673
  %v1906 = vunpack.c.h.b16 %v673
  %v1907 = vunpack.c.l.b16 %v674
  %v1908 = vunpack.c.h.b16 %v674
  %v1909 = vunpack.c.l.b16 %v675
  %v1910 = vunpack.c.h.b16 %v675
  %v1911 = vunpack.c.l.b16 %v676
  %v1912 = vunpack.c.h.b16 %v676
  %v1913 = vunpack.c.l.b16 %v677
  %v1914 = vunpack.c.h.b16 %v677
  %v1915 = vunpack.c.l.b16 %v678
  %v1916 = vunpack.c.h.b16 %v678
  %v1917 = vunpack.c.l.b16 %v679
  %v1918 = vunpack.c.h.b16 %v679
  %v1919 = vunpack.c.l.b16 %v680
  %v1920 = vunpack.c.h.b16 %v680
  %v1921 = vunpack.c.l.b16 %v681
  %v1922 = vunpack.c.h.b16 %v681
  %v1923 = vunpack.c.l.b16 %v682
  %v1924 = vunpack.c.h.b16 %v682
  %v1925 = vunpack.c.l.b16 %v683
  %v1926 = vunpack.c.h.b16 %v683
  %v1927 = vunpack.c.l.b16 %v684
  %v1928 = vunpack.c.h.b16 %v684
  %v1929 = vunpack.c.l.b16 %v685
  %v1930 = vunpack.c.h.b16 %v685
  %v1931 = vunpack.c.l.b16 %v686
  %v1932 = vunpack.c.h.b16 %v686
  %v1933 = vunpack.c.l.b16 %v687
  %v1934 = vunpack.c.h.b16 %v687
  %v1935 = vunpack.c.l.b16 %v688
  %v1936 = vunpack.c.h.b16 %v688
  %v1937 = vunpack.c.l.b16 %v689
  %v1938 = vunpack.c.h.b16 %v689
  %v1939 = vunpack.c.l.b16 %v690
  %v1940 = vunpack.c.h.b16 %v690
  %v1941 = vunpack.c.l.b16 %v691
  %v1942 = vunpack.c.h.b16 %v691
  %v1943 = vunpack.c.l.b16 %v692
  %v1944 = vunpack.c.h.b16 %v692
  %v1945 = vunpack.c.l.b16 %v693
  %v1946 = vunpack.c.h.b16 %v693
  %v1947 = vunpack.c.l.b16 %v694
  %v1948 = vunpack.c.h.b16 %v694
  %v1949 = vunpack.c.l.b16 %v695
  %v1950 = vunpack.c.h.b16 %v695
  %v1951 = vunpack.c.l.b16 %v696
  %v1952 = vunpack.c.h.b16 %v696
  %v1953 = vunpack.c.l.b16 %v697
  %v1954 = vunpack.c.h.b16 %v697
  %v1955 = vunpack.c.l.b16 %v698
  %v1956 = vunpack.c.h.b16 %v698
  %v1957 = vunpack.c.l.b16 %v699
  %v1958 = vunpack.c.h.b16 %v699
  %v1959 = vunpack.c.l.b16 %v700
  %v1960 = vunpack.c.h.b16 %v700
  %v1961 = vunpack.c.l.b16 %v701
  %v1962 = vunpack.c.h.b16 %v701
  %v1963 = vunpack.c.l.b16 %v702
  %v1964 = vunpack.c.h.b16 %v702
  %v1965 = vunpack.c.l.b16 %v703
  %v1966 = vunpack.c.h.b16 %v703
  %v1967 = vunpack.c.l.b16 %v704
  %v1968 = vunpack.c.h.b16 %v704
  %v1969 = vunpack.c.l.b16 %v705
  %v1970 = vunpack.c.h.b16 %v705
  %v1971 = vunpack.c.l.b16 %v706
  %v1972 = vunpack.c.h.b16 %v706
  %v1973 = vunpack.c.l.b16 %v707
  %v1974 = vunpack.c.h.b16 %v707
  %v1975 = vunpack.c.l.b16 %v708
  %v1976 = vunpack.c.h.b16 %v708
  %v1977 = vunpack.c.l.b16 %v709
  %v1978 = vunpack.c.h.b16 %v709
  %v1979 = vunpack.c.l.b16 %v710
  %v1980 = vunpack.c.h.b16 %v710
  %v1981 = vunpack.c.l.b16 %v711
  %v1982 = vunpack.c.h.b16 %v711
  %v1983 = vunpack.c.l.b16 %v712
  %v1984 = vunpack.c.h.b16 %v712
  %v1985 = vunpack.c.l.b16 %v713
  %v1986 = vunpack.c.h.b16 %v713
  %v1987 = vunpack.c.l.b16 %v714
  %v1988 = vunpack.c.h.b16 %v714
  %v1989 = vunpack.c.l.b16 %v715
  %v1990 = vunpack.c.h.b16 %v715
  %v1991 = vunpack.c.l.b16 %v716
  %v1992 = vunpack.c.h.b16 %v716
  %v1993 = vunpack.c.l.b16 %v717
  %v1994 = vunpack.c.h.b16 %v717
  %v1995 = vunpack.c.l.b16 %v718
  %v1996 = vunpack.c.h.b16 %v718
  %v1997 = vunpack.c.l.b16 %v719
  %v1998 = vunpack.c.h.b16 %v719
  %v1999 = vunpack.c.l.b16 %v720
  %v2000 = vunpack.c.h.b16 %v720
  %v2001 = vunpack.c.l.b16 %v721
  %v2002 = vunpack.c.h.b16 %v721
  %v2003 = vunpack.c.l.b16 %v722
  %v2004 = vunpack.c.h.b16 %v722
  %v2005 = vunpack.c.l.b16 %v723
  %v2006 = vunpack.c.h.b16 %v723
  %v2007 = vunpack.c.l.b16 %v724
  %v2008 = vunpack.c.h.b16 %v724
  %v2009 = vunpack.c.l.b16 %v725
  %v2010 = vunpack.c.h.b16 %v725
  %v2011 = vunpack.c.l.b16 %v726
  %v2012 = vunpack.c.h.b16 %v726
  %v2013 = vunpack.c.l.b16 %v727
  %v2014 = vunpack.c.h.b16 %v727
  %v2015 = vunpack.c.l.b16 %v728
  %v2016 = vunpack.c.h.b16 %v728
  %v2017 = vunpack.c.l.b16 %v729
  %v2018 = vunpack.c.h.b16 %v729
  %v2019 = vunpack.c.l.b16 %v730
  %v2020 = vunpack.c.h.b16 %v730
  %v2021 = vunpack.c.l.b16 %v731
  %v2022 = vunpack.c.h.b16 %v731
  %v2023 = vunpack.c.l.b16 %v732
  %v2024 = vunpack.c.h.b16 %v732
  %v2025 = vunpack.c.l.b16 %v733
  %v2026 = vunpack.c.h.b16 %v733
  %v2027 = vunpack.c.l.b16 %v734
  %v2028 = vunpack.c.h.b16 %v734
  %v2029 = vunpack.c.l.b16 %v735
  %v2030 = vunpack.c.h.b16 %v735
  %v2031 = vunpack.c.l.b16 %v736
  %v2032 = vunpack.c.h.b16 %v736
  %v2033 = vunpack.c.l.b16 %v737
  %v2034 = vunpack.c.h.b16 %v737
  %v2035 = vunpack.c.l.b16 %v738
  %v2036 = vunpack.c.h.b16 %v738
  %v2037 = vunpack.c.l.b16 %v739
  %v2038 = vunpack.c.h.b16 %v739
  %v2039 = vunpack.c.l.b16 %v740
  %v2040 = vunpack.c.h.b16 %v740
  %v2041 = vunpack.c.l.b16 %v741
  %v2042 = vunpack.c.h.b16 %v741
  %v2043 = vunpack.c.l.b16 %v742
  %v2044 = vunpack.c.h.b16 %v742
  %v2045 = vunpack.c.l.b16 %v743
  %v2046 = vunpack.c.h.b16 %v743
  %v2047 = vunpack.c.l.b16 %v744
  %v2048 = vunpack.c.h.b16 %v744
  %v2049 = vunpack.c.l.b16 %v745
  %v2050 = vunpack.c.h.b16 %v745
  %v2051 = vunpack.c.l.b16 %v746
  %v2052 = vunpack.c.h.b16 %v746
  %v2053 = vunpack.c.l.b16 %v747
  %v2054 = vunpack.c.h.b16 %v747
  %v2055 = vunpack.c.l.b16 %v748
  %v2056 = vunpack.c.h.b16 %v748
  %v2057 = vunpack.c.l.b16 %v749
  %v2058 = vunpack.c.h.b16 %v749
  %v2059 = vunpack.c.l.b16 %v750
  %v2060 = vunpack.c.h.b16 %v750
  %v2061 = vunpack.c.l.b16 %v751
  %v2062 = vunpack.c.h.b16 %v751
  %v2063 = vunpack.c.l.b16 %v752
  %v2064 = vunpack.c.h.b16 %v752
  %v2065 = vunpack.c.l.b16 %v753
  %v2066 = vunpack.c.h.b16 %v753
  %v2067 = vunpack.c.l.b16 %v754
  %v2068 = vunpack.c.h.b16 %v754
  %v2069 = vunpack.c.l.b16 %v755
  %v2070 = vunpack.c.h.b16 %v755
  %v2071 = vunpack.c.l.b16 %v756
  %v2072 = vunpack.c.h.b16 %v756
  %v2073 = vunpack.c.l.b16 %v757
  %v2074 = vunpack.c.h.b16 %v757
  %v2075 = vunpack.c.l.b16 %v758
  %v2076 = vunpack.c.h.b16 %v758
  %v2077 = vunpack.c.l.b16 %v759
  %v2078 = vunpack.c.h.b16 %v759
  %v2079 = vunpack.c.l.b16 %v760
  %v2080 = vunpack.c.h.b16 %v760
  %v2081 = vunpack.c.l.b16 %v761
  %v2082 = vunpack.c.h.b16 %v761
  %v2083 = vunpack.c.l.b16 %v762
  %v2084 = vunpack.c.h.b16 %v762
  %v2085 = vunpack.c.l.b16 %v763
  %v2086 = vunpack.c.h.b16 %v763
  %v2087 = vunpack.c.l.b16 %v764
  %v2088 = vunpack.c.h.b16 %v764
  %v2089 = vunpack.c.l.b16 %v765
  %v2090 = vunpack.c.h.b16 %v765
  %v2091 = vunpack.c.l.b16 %v766
  %v2092 = vunpack.c.h.b16 %v766
  %v2093 = vunpack.c.l.b16 %v767
  %v2094 = vunpack.c.h.b16 %v767
  %v2095 = vunpack.c.l.b16 %v768
  %v2096 = vunpack.c.h.b16 %v768
  %v2097 = vunpack.c.l.b16 %v769
  %v2098 = vunpack.c.h.b16 %v769
  %v2099 = vunpack.c.l.b16 %v770
  %v2100 = vunpack.c.h.b16 %v770
  %v2101 = vunpack.c.l.b16 %v771
  %v2102 = vunpack.c.h.b16 %v771
  %v2103 = vunpack.c.l.b16 %v772
  %v2104 = vunpack.c.h.b16 %v772
  %v2105 = vunpack.c.l.b16 %v773
  %v2106 = vunpack.c.h.b16 %v773
  %v2107 = vunpack.c.l.b16 %v774
  %v2108 = vunpack.c.h.b16 %v774
  %v2109 = vunpack.c.l.b16 %v775
  %v2110 = vunpack.c.h.b16 %v775
  %v2111 = vunpack.c.l.b16 %v776
  %v2112 = vunpack.c.h.b16 %v776
  %v2113 = vunpack.c.l.b16 %v777
  %v2114 = vunpack.c.h.b16 %v777
  %v2115 = vunpack.c.l.b16 %v778
  %v2116 = vunpack.c.h.b16 %v778
  %v2117 = vunpack.c.l.b16 %v779
  %v2118 = vunpack.c.h.b16 %v779
  %v2119 = vunpack.c.l.b16 %v780
  %v2120 = vunpack.c.h.b16 %v780
  %v2121 = vunpack.c.l.b16 %v781
  %v2122 = vunpack.c.h.b16 %v781
  %v2123 = vunpack.c.l.b16 %v782
  %v2124 = vunpack.c.h.b16 %v782
  %v2125 = vunpack.c.l.b16 %v783
  %v2126 = vunpack.c.h.b16 %v783
  %v2127 = vunpack.c.l.b16 %v784
  %v2128 = vunpack.c.h.b16 %v784
  %v2129 = vunpack.c.l.b16 %v785
  %v2130 = vunpack.c.h.b16 %v785
  %v2131 = vunpack.c.l.b16 %v786
  %v2132 = vunpack.c.h.b16 %v786
  %v2133 = vunpack.c.l.b16 %v787
  %v2134 = vunpack.c.h.b16 %v787
  %v2135 = vunpack.c.l.b16 %v788
  %v2136 = vunpack.c.h.b16 %v788
  %v2137 = vunpack.c.l.b16 %v789
  %v2138 = vunpack.c.h.b16 %v789
  %v2139 = vunpack.c.l.b16 %v790
  %v2140 = vunpack.c.h.b16 %v790
  %v2141 = vunpack.c.l.b16 %v791
  %v2142 = vunpack.c.h.b16 %v791
  %v2143 = vunpack.c.l.b16 %v792
  %v2144 = vunpack.c.h.b16 %v792
  %v2145 = vunpack.c.l.b16 %v793
  %v2146 = vunpack.c.h.b16 %v793
  %v2147 = vunpack.c.l.b16 %v794
  %v2148 = vunpack.c.h.b16 %v794
  %v2149 = vunpack.c.l.b16 %v795
  %v2150 = vunpack.c.h.b16 %v795
  %v2151 = vunpack.c.l.b16 %v796
  %v2152 = vunpack.c.h.b16 %v796
  %v2153 = vunpack.c.l.b16 %v797
  %v2154 = vunpack.c.h.b16 %v797
  %v2155 = vunpack.c.l.b16 %v798
  %v2156 = vunpack.c.h.b16 %v798
  %v2157 = vunpack.c.l.b16 %v799
  %v2158 = vunpack.c.h.b16 %v799
  %v2159 = vunpack.c.l.b16 %v800
  %v2160 = vunpack.c.h.b16 %v800
  %v2161 = vunpack.c.l.b16 %v801
  %v2162 = vunpack.c.h.b16 %v801
  %v2163 = vunpack.c.l.b16 %v802
  %v2164 = vunpack.c.h.b16 %v802
  %v2165 = vunpack.c.l.b16 %v803
  %v2166 = vunpack.c.h.b16 %v803
  %v2167 = vunpack.c.l.b16 %v804
  %v2168 = vunpack.c.h.b16 %v804
  %v2169 = vunpack.c.l.b16 %v805
  %v2170 = vunpack.c.h.b16 %v805
  %v2171 = vunpack.c.l.b16 %v806
  %v2172 = vunpack.c.h.b16 %v806
  %v2173 = vunpack.c.l.b16 %v807
  %v2174 = vunpack.c.h.b16 %v807
  %v2175 = vunpack.c.l.b16 %v808
  %v2176 = vunpack.c.h.b16 %v808
  %v2177 = vunpack.c.l.b16 %v809
  %v2178 = vunpack.c.h.b16 %v809
  %v2179 = vunpack.c.l.b16 %v810
  %v2180 = vunpack.c.h.b16 %v810
  %v2181 = vunpack.c.l.b16 %v811
  %v2182 = vunpack.c.h.b16 %v811
  %v2183 = vunpack.c.l.b16 %v812
  %v2184 = vunpack.c.h.b16 %v812
  %v2185 = vunpack.c.l.b16 %v813
  %v2186 = vunpack.c.h.b16 %v813
  %v2187 = vunpack.c.l.b16 %v814
  %v2188 = vunpack.c.h.b16 %v814
  %v2189 = vunpack.c.l.b16 %v815
  %v2190 = vunpack.c.h.b16 %v815
  %v2191 = vunpack.c.l.b16 %v816
  %v2192 = vunpack.c.h.b16 %v816
  %v2193 = vunpack.c.l.b16 %v817
  %v2194 = vunpack.c.h.b16 %v817
  %v2195 = vunpack.c.l.b16 %v818
  %v2196 = vunpack.c.h.b16 %v818
  %v2197 = vunpack.c.l.b16 %v819
  %v2198 = vunpack.c.h.b16 %v819
  %v2199 = vunpack.c.l.b16 %v820
  %v2200 = vunpack.c.h.b16 %v820
  %v2201 = vunpack.c.l.b16 %v821
  %v2202 = vunpack.c.h.b16 %v821
  %v2203 = vunpack.c.l.b16 %v822
  %v2204 = vunpack.c.h.b16 %v822
  %v2205 = vunpack.c.l.b16 %v823
  %v2206 = vunpack.c.h.b16 %v823
  %v2207 = vunpack.c.l.b16 %v824
  %v2208 = vunpack.c.h.b16 %v824
  %v2209 = vunpack.c.l.b16 %v825
  %v2210 = vunpack.c.h.b16 %v825
  %v2211 = vunpack.c.l.b16 %v826
  %v2212 = vunpack.c.h.b16 %v826
  %v2213 = vunpack.c.l.b16 %v827
  %v2214 = vunpack.c.h.b16 %v827
  %v2215 = vunpack.c.l.b16 %v828
  %v2216 = vunpack.c.h.b16 %v828
  %v2217 = vunpack.c.l.b16 %v829
  %v2218 = vunpack.c.h.b16 %v829
  %v2219 = vunpack.c.l.b16 %v830
  %v2220 = vunpack.c.h.b16 %v830
  %v2221 = vunpack.c.l.b16 %v831
  %v2222 = vunpack.c.h.b16 %v831
  %v2223 = vunpack.c.l.b16 %v832
  %v2224 = vunpack.c.h.b16 %v832
  %v2225 = vunpack.c.l.b16 %v833
  %v2226 = vunpack.c.h.b16 %v833
  %v2227 = vunpack.c.l.b16 %v834
  %v2228 = vunpack.c.h.b16 %v834
  %v2229 = vunpack.c.l.b16 %v835
  %v2230 = vunpack.c.h.b16 %v835
  %v2231 = vunpack.c.l.b16 %v836
  %v2232 = vunpack.c.h.b16 %v836
  %v2233 = vunpack.c.l.b16 %v837
  %v2234 = vunpack.c.h.b16 %v837
  %v2235 = vunpack.c.l.b16 %v838
  %v2236 = vunpack.c.h.b16 %v838
  %v2237 = vunpack.c.l.b16 %v839
  %v2238 = vunpack.c.h.b16 %v839
  %v2239 = vunpack.c.l.b16 %v840
  %v2240 = vunpack.c.h.b16 %v840
  %v2241 = vunpack.c.l.b16 %v841
  %v2242 = vunpack.c.h.b16 %v841
  %v2243 = vunpack.c.l.b16 %v842
  %v2244 = vunpack.c.h.b16 %v842
  %v2245 = vunpack.c.l.b16 %v843
  %v2246 = vunpack.c.h.b16 %v843
  %v2247 = vunpack.c.l.b16 %v844
  %v2248 = vunpack.c.h.b16 %v844
  %v2249 = vunpack.c.l.b16 %v845
  %v2250 = vunpack.c.h.b16 %v845
  %v2251 = vunpack.c.l.b16 %v846
  %v2252 = vunpack.c.h.b16 %v846
  %v2253 = vunpack.c.l.b16 %v847
  %v2254 = vunpack.c.h.b16 %v847
  %v2255 = vunpack.c.l.b16 %v848
  %v2256 = vunpack.c.h.b16 %v848
  %v2257 = vunpack.c.l.b16 %v849
  %v2258 = vunpack.c.h.b16 %v849
  %v2259 = vunpack.c.l.b16 %v850
  %v2260 = vunpack.c.h.b16 %v850
  %v2261 = vunpack.c.l.b16 %v851
  %v2262 = vunpack.c.h.b16 %v851
  %v2263 = vunpack.c.l.b16 %v852
  %v2264 = vunpack.c.h.b16 %v852
  %v2265 = vunpack.c.l.b16 %v853
  %v2266 = vunpack.c.h.b16 %v853
  %v2267 = vunpack.c.l.b16 %v854
  %v2268 = vunpack.c.h.b16 %v854
  %v2269 = vunpack.c.l.b16 %v855
  %v2270 = vunpack.c.h.b16 %v855
  %v2271 = vunpack.c.l.b16 %v856
  %v2272 = vunpack.c.h.b16 %v856
  %v2273 = vunpack.c.l.b16 %v857
  %v2274 = vunpack.c.h.b16 %v857
  %v2275 = vunpack.c.l.b16 %v858
  %v2276 = vunpack.c.h.b16 %v858
  %v2277 = vunpack.c.l.b16 %v859
  %v2278 = vunpack.c.h.b16 %v859
  %v2279 = vunpack.c.l.b16 %v860
  %v2280 = vunpack.c.h.b16 %v860
  %v2281 = vunpack.c.l.b16 %v861
  %v2282 = vunpack.c.h.b16 %v861
  %v2283 = vunpack.c.l.b16 %v862
  %v2284 = vunpack.c.h.b16 %v862
  %v2285 = vunpack.c.l.b16 %v863
  %v2286 = vunpack.c.h.b16 %v863
  %v2287 = vunpack.c.l.b16 %v864
  %v2288 = vunpack.c.h.b16 %v864
  %v2289 = vunpack.c.l.b16 %v865
  %v2290 = vunpack.c.h.b16 %v865
  %v2291 = vunpack.c.l.b16 %v866
  %v2292 = vunpack.c.h.b16 %v866
  %v2293 = vunpack.c.l.b16 %v867
  %v2294 = vunpack.c.h.b16 %v867
  %v2295 = vunpack.c.l.b16 %v868
  %v2296 = vunpack.c.h.b16 %v868
  %v2297 = vunpack.c.l.b16 %v869
  %v2298 = vunpack.c.h.b16 %v869
  %v2299 = vunpack.c.l.b16 %v870
  %v2300 = vunpack.c.h.b16 %v870
  %v2301 = vunpack.c.l.b16 %v871
  %v2302 = vunpack.c.h.b16 %v871
  %v2303 = vunpack.c.l.b16 %v872
  %v2304 = vunpack.c.h.b16 %v872
  %v2305 = vunpack.c.l.b16 %v873
  %v2306 = vunpack.c.h.b16 %v873
  %v2307 = vunpack.c.l.b16 %v874
  %v2308 = vunpack.c.h.b16 %v874
  %v2309 = vunpack.c.l.b16 %v875
  %v2310 = vunpack.c.h.b16 %v875
  %v2311 = vunpack.c.l.b16 %v876
  %v2312 = vunpack.c.h.b16 %v876
  %v2313 = vunpack.c.l.b16 %v877
  %v2314 = vunpack.c.h.b16 %v877
  %v2315 = vunpack.c.l.b16 %v878
  %v2316 = vunpack.c.h.b16 %v878
  %v2317 = vunpack.c.l.b16 %v879
  %v2318 = vunpack.c.h.b16 %v879
  %v2319 = vunpack.c.l.b16 %v880
  %v2320 = vunpack.c.h.b16 %v880
  %v2321 = vunpack.c.l.b16 %v881
  %v2322 = vunpack.c.h.b16 %v881
  %v2323 = vunpack.c.l.b16 %v882
  %v2324 = vunpack.c.h.b16 %v882
  %v2325 = vunpack.c.l.b16 %v883
  %v2326 = vunpack.c.h.b16 %v883
  %v2327 = vunpack.c.l.b16 %v884
  %v2328 = vunpack.c.h.b16 %v884
  %v2329 = vunpack.c.l.b16 %v885
  %v2330 = vunpack.c.h.b16 %v885
  %v2331 = vunpack.c.l.b16 %v886
  %v2332 = vunpack.c.h.b16 %v886
  %v2333 = vunpack.c.l.b16 %v887
  %v2334 = vunpack.c.h.b16 %v887
  %v2335 = vunpack.c.l.b16 %v888
  %v2336 = vunpack.c.h.b16 %v888
  %v2337 = vunpack.c.l.b16 %v889
  %v2338 = vunpack.c.h.b16 %v889
  %v2339 = vunpack.c.l.b16 %v890
  %v2340 = vunpack.c.h.b16 %v890
  %v2341 = vunpack.c.l.b16 %v891
  %v2342 = vunpack.c.h.b16 %v891
  %v2343 = vunpack.c.l.b16 %v892
  %v2344 = vunpack.c.h.b16 %v892
  %v2345 = vunpack.c.l.b16 %v893
  %v2346 = vunpack.c.h.b16 %v893
  %v2347 = vunpack.c.l.b16 %v894
  %v2348 = vunpack.c.h.b16 %v894
  %v2349 = vunpack.c.l.b16 %v895
  %v2350 = vunpack.c.h.b16 %v895
  %v2351 = vunpack.c.l.b16 %v896
  %v2352 = vunpack.c.h.b16 %v896
  %v2353 = vunpack.c.l.b16 %v897
  %v2354 = vunpack.c.h.b16 %v897
  %v2355 = vunpack.c.l.b16 %v898
  %v2356 = vunpack.c.h.b16 %v898
  %v2357 = vunpack.c.l.b16 %v899
  %v2358 = vunpack.c.h.b16 %v899
  %v2359 = vunpack.c.l.b16 %v900
  %v2360 = vunpack.c.h.b16 %v900
  %v2361 = vunpack.c.l.b16 %v901
  %v2362 = vunpack.c.h.b16 %v901
  %v2363 = vunpack.c.l.b16 %v902
  %v2364 = vunpack.c.h.b16 %v902
  %v2365 = vunpack.c.l.b16 %v903
  %v2366 = vunpack.c.h.b16 %v903
  %v2367 = vunpack.c.l.b16 %v904
  %v2368 = vunpack.c.h.b16 %v904
  %v2369 = vunpack.c.l.b16 %v905
  %v2370 = vunpack.c.h.b16 %v905
  %v2371 = vunpack.c.l.b16 %v906
  %v2372 = vunpack.c.h.b16 %v906
  %v2373 = vunpack.c.l.b16 %v907
  %v2374 = vunpack.c.h.b16 %v907
  %v2375 = vunpack.c.l.b16 %v908
  %v2376 = vunpack.c.h.b16 %v908
  %v2377 = vunpack.c.l.b16 %v909
  %v2378 = vunpack.c.h.b16 %v909
  %v2379 = vunpack.c.l.b16 %v910
  %v2380 = vunpack.c.h.b16 %v910
  %v2381 = vunpack.c.l.b16 %v911
  %v2382 = vunpack.c.h.b16 %v911
  %v2383 = vunpack.c.l.b16 %v912
  %v2384 = vunpack.c.h.b16 %v912
  %v2385 = vunpack.c.l.b16 %v913
  %v2386 = vunpack.c.h.b16 %v913
  %v2387 = vunpack.c.l.b16 %v914
  %v2388 = vunpack.c.h.b16 %v914
  %v2389 = vunpack.c.l.b16 %v915
  %v2390 = vunpack.c.h.b16 %v915
  %v2391 = vunpack.c.l.b16 %v916
  %v2392 = vunpack.c.h.b16 %v916
  %v2393 = vunpack.c.l.b16 %v917
  %v2394 = vunpack.c.h.b16 %v917
  %v2395 = vunpack.c.l.b16 %v918
  %v2396 = vunpack.c.h.b16 %v918
  %v2397 = vunpack.c.l.b16 %v919
  %v2398 = vunpack.c.h.b16 %v919
  %v2399 = vunpack.c.l.b16 %v920
  %v2400 = vunpack.c.h.b16 %v920
  %v2401 = vunpack.c.l.b16 %v921
  %v2402 = vunpack.c.h.b16 %v921
  %v2403 = vunpack.c.l.b16 %v922
  %v2404 = vunpack.c.h.b16 %v922
  %v2405 = vunpack.c.l.b16 %v923
  %v2406 = vunpack.c.h.b16 %v923
  %v2407 = vunpack.c.l.b16 %v924
  %v2408 = vunpack.c.h.b16 %v924
  %v2409 = vunpack.c.l.b16 %v925
  %v2410 = vunpack.c.h.b16 %v925
  %v2411 = vunpack.c.l.b16 %v926
  %v2412 = vunpack.c.h.b16 %v926
  %v2413 = vunpack.c.l.b16 %v927
  %v2414 = vunpack.c.h.b16 %v927
  %v2415 = vunpack.c.l.b16 %v928
  %v2416 = vunpack.c.h.b16 %v928
  %v2417 = vunpack.c.l.b16 %v929
  %v2418 = vunpack.c.h.b16 %v929
  %v2419 = vunpack.c.l.b16 %v930
  %v2420 = vunpack.c.h.b16 %v930
  %v2421 = vunpack.c.l.b16 %v931
  %v2422 = vunpack.c.h.b16 %v931
  %v2423 = vunpack.c.l.b16 %v932
  %v2424 = vunpack.c.h.b16 %v932
  %v2425 = vunpack.c.l.b16 %v933
  %v2426 = vunpack.c.h.b16 %v933
  %v2427 = vunpack.c.l.b16 %v934
  %v2428 = vunpack.c.h.b16 %v934
  %v2429 = vunpack.c.l.b16 %v935
  %v2430 = vunpack.c.h.b16 %v935
  %v2431 = vunpack.c.l.b16 %v936
  %v2432 = vunpack.c.h.b16 %v936
  %v2433 = vunpack.c.l.b16 %v937
  %v2434 = vunpack.c.h.b16 %v937
  %v2435 = vunpack.c.l.b16 %v938
  %v2436 = vunpack.c.h.b16 %v938
  %v2437 = vunpack.c.l.b16 %v939
  %v2438 = vunpack.c.h.b16 %v939
  %v2439 = vunpack.c.l.b16 %v940
  %v2440 = vunpack.c.h.b16 %v940
  %v2441 = vunpack.c.l.b16 %v941
  %v2442 = vunpack.c.h.b16 %v941
  %v2443 = vunpack.c.l.b16 %v942
  %v2444 = vunpack.c.h.b16 %v942
  %v2445 = vunpack.c.l.b16 %v943
  %v2446 = vunpack.c.h.b16 %v943
  %v2447 = vunpack.c.l.b16 %v944
  %v2448 = vunpack.c.h.b16 %v944
  %v2449 = vunpack.c.l.b16 %v945
  %v2450 = vunpack.c.h.b16 %v945
  %v2451 = vunpack.c.l.b16 %v946
  %v2452 = vunpack.c.h.b16 %v946
  %v2453 = vunpack.c.l.b16 %v947
  %v2454 = vunpack.c.h.b16 %v947
  %v2455 = vunpack.c.l.b16 %v948
  %v2456 = vunpack.c.h.b16 %v948
  %v2457 = vunpack.c.l.b16 %v949
  %v2458 = vunpack.c.h.b16 %v949
  %v2459 = vunpack.c.l.b16 %v950
  %v2460 = vunpack.c.h.b16 %v950
  %v2461 = vunpack.c.l.b16 %v951
  %v2462 = vunpack.c.h.b16 %v951
  %v2463 = vunpack.c.l.b16 %v952
  %v2464 = vunpack.c.h.b16 %v952
  %v2465 = vunpack.c.l.b16 %v953
  %v2466 = vunpack.c.h.b16 %v953
  %v2467 = vunpack.c.l.b16 %v954
  %v2468 = vunpack.c.h.b16 %v954
  %v2469 = vunpack.c.l.b16 %v955
  %v2470 = vunpack.c.h.b16 %v955
  %v2471 = vunpack.c.l.b16 %v956
  %v2472 = vunpack.c.h.b16 %v956
  %v2473 = vunpack.c.l.b16 %v957
  %v2474 = vunpack.c.h.b16 %v957
  %v2475 = vunpack.c.l.b16 %v958
  %v2476 = vunpack.c.h.b16 %v958
  %v2477 = vunpack.c.l.b16 %v959
  %v2478 = vunpack.c.h.b16 %v959
  %v2479 = vunpack.c.l.b16 %v960
  %v2480 = vunpack.c.h.b16 %v960
  %v2481 = vunpack.c.l.b16 %v961
  %v2482 = vunpack.c.h.b16 %v961
  %v2483 = vunpack.c.l.b16 %v962
  %v2484 = vunpack.c.h.b16 %v962
  %v2485 = vunpack.c.l.b16 %v963
  %v2486 = vunpack.c.h.b16 %v963
  %v2487 = vunpack.c.l.b16 %v964
  %v2488 = vunpack.c.h.b16 %v964
  %v2489 = vunpack.c.l.b16 %v965
  %v2490 = vunpack.c.h.b16 %v965
  %v2491 = vunpack.c.l.b16 %v966
  %v2492 = vunpack.c.h.b16 %v966
  %v2493 = vunpack.c.l.b16 %v967
  %v2494 = vunpack.c.h.b16 %v967
  %v2495 = vunpack.c.l.b16 %v968
  %v2496 = vunpack.c.h.b16 %v968
  %v2497 = vunpack.c.l.b16 %v969
  %v2498 = vunpack.c.h.b16 %v969
  %v2499 = vunpack.c.l.b16 %v970
  %v2500 = vunpack.c.h.b16 %v970
  %v2501 = vunpack.c.l.b16 %v971
  %v2502 = vunpack.c.h.b16 %v971
  %v2503 = vunpack.c.l.b16 %v972
  %v2504 = vunpack.c.h.b16 %v972
  %v2505 = vunpack.c.l.b16 %v973
  %v2506 = vunpack.c.h.b16 %v973
  %v2507 = vunpack.c.l.b16 %v974
  %v2508 = vunpack.c.h.b16 %v974
  %v2509 = vunpack.c.l.b16 %v975
  %v2510 = vunpack.c.h.b16 %v975
  %v2511 = vunpack.c.l.b16 %v976
  %v2512 = vunpack.c.h.b16 %v976
  %v2513 = vunpack.c.l.b16 %v977
  %v2514 = vunpack.c.h.b16 %v977
  %v2515 = vunpack.c.l.b16 %v978
  %v2516 = vunpack.c.h.b16 %v978
  %v2517 = vunpack.c.l.b16 %v979
  %v2518 = vunpack.c.h.b16 %v979
  %v2519 = vunpack.c.l.b16 %v980
  %v2520 = vunpack.c.h.b16 %v980
  %v2521 = vunpack.c.l.b16 %v981
  %v2522 = vunpack.c.h.b16 %v981
  %v2523 = vunpack.c.l.b16 %v982
  %v2524 = vunpack.c.h.b16 %v982
  %v2525 = vunpack.c.l.b16 %v983
  %v2526 = vunpack.c.h.b16 %v983
  %v2527 = vunpack.c.l.b16 %v984
  %v2528 = vunpack.c.h.b16 %v984
  %v2529 = vunpack.c.l.b16 %v985
  %v2530 = vunpack.c.h.b16 %v985
  %v2531 = vunpack.c.l.b16 %v986
  %v2532 = vunpack.c.h.b16 %v986
  %v2533 = vunpack.c.l.b16 %v987
  %v2534 = vunpack.c.h.b16 %v987
  %v2535 = vunpack.c.l.b16 %v988
  %v2536 = vunpack.c.h.b16 %v988
  %v2537 = vpack.c.b16 %v1517, %v1505
  %v2538 = vpack.c.b16 %v1518, %v1506
  %v2539 = vpack.c.b16 %v1519, %v1507
  %v2540 = vpack.c.b16 %v1520, %v1508
  %v2541 = vpack.c.b16 %v1521, %v1509
  %v2542 = vpack.c.b16 %v1522, %v1510
  %v2543 = vpack.c.b16 %v1523, %v1511
  %v2544 = vpack.c.b16 %v1524, %v1512
  %v2545 = vpack.c.b16 %v1525, %v1513
  %v2546 = vpack.c.b16 %v1526, %v1514
  %v2547 = vpack.c.b16 %v1527, %v1515
  %v2548 = vpack.c.b16 %v1528, %v1516
  %v2549 = vpack.c.b16 %v1541, %v1529
  %v2550 = vpack.c.b16 %v1542, %v1530
  %v2551 = vpack.c.b16 %v1543, %v1531
  %v2552 = vpack.c.b16 %v1544, %v1532
  %v2553 = vpack.c.b16 %v1545, %v1533
  %v2554 = vpack.c.b16 %v1546, %v1534
  %v2555 = vpack.c.b16 %v1547, %v1535
  %v2556 = vpack.c.b16 %v1548, %v1536
  %v2557 = vpack.c.b16 %v1549, %v1537
  %v2558 = vpack.c.b16 %v1550, %v1538
  %v2559 = vpack.c.b16 %v1551, %v1539
  %v2560 = vpack.c.b16 %v1552, %v1540
  %v2561 = vpack.c.b16 %v1565, %v1553
  %v2562 = vpack.c.b16 %v1566, %v1554
  %v2563 = vpack.c.b16 %v1567, %v1555
  %v2564 = vpack.c.b16 %v1568, %v1556
  %v2565 = vpack.c.b16 %v1569, %v1557
  %v2566 = vpack.c.b16 %v1570, %v1558
  %v2567 = vpack.c.b16 %v1571, %v1559
  %v2568 = vpack.c.b16 %v1572, %v1560
  %v2569 = vpack.c.b16 %v1573, %v1561
  %v2570 = vpack.c.b16 %v1574, %v1562
  %v2571 = vpack.c.b16 %v1575, %v1563
  %v2572 = vpack.c.b16 %v1576, %v1564
  %v2573 = vpack.c.b16 %v1589, %v1577
  %v2574 = vpack.c.b16 %v1590, %v1578
  %v2575 = vpack.c.b16 %v1591, %v1579
  %v2576 = vpack.c.b16 %v1592, %v1580
  %v2577 = vpack.c.b16 %v1593, %v1581
  %v2578 = vpack.c.b16 %v1594, %v1582
  %v2579 = vpack.c.b16 %v1595, %v1583
  %v2580 = vpack.c.b16 %v1596, %v1584
  %v2581 = vpack.c.b16 %v1597, %v1585
  %v2582 = vpack.c.b16 %v1598, %v1586
  %v2583 = vpack.c.b16 %v1599, %v1587
  %v2584 = vpack.c.b16 %v1600, %v1588
  %v2585 = vpack.c.b16 %v1613, %v1601
  %v2586 = vpack.c.b16 %v1614, %v1602
  %v2587 = vpack.c.b16 %v1615, %v1603
  %v2588 = vpack.c.b16 %v1616, %v1604
  %v2589 = vpack.c.b16 %v1617, %v1605
  %v2590 = vpack.c.b16 %v1618, %v1606
  %v2591 = vpack.c.b16 %v1619, %v1607
  %v2592 = vpack.c.b16 %v1620, %v1608
  %v2593 = vpack.c.b16 %v1621, %v1609
  %v2594 = vpack.c.b16 %v1622, %v1610
  %v2595 = vpack.c.b16 %v1623, %v1611
  %v2596 = vpack.c.b16 %v1624, %v1612
  %v2597 = vpack.c.b16 %v1637, %v1625
  %v2598 = vpack.c.b16 %v1638, %v1626
  %v2599 = vpack.c.b16 %v1639, %v1627
  %v2600 = vpack.c.b16 %v1640, %v1628
  %v2601 = vpack.c.b16 %v1641, %v1629
  %v2602 = vpack.c.b16 %v1642, %v1630
  %v2603 = vpack.c.b16 %v1643, %v1631
  %v2604 = vpack.c.b16 %v1644, %v1632
  %v2605 = vpack.c.b16 %v1645, %v1633
  %v2606 = vpack.c.b16 %v1646, %v1634
  %v2607 = vpack.c.b16 %v1647, %v1635
  %v2608 = vpack.c.b16 %v1648, %v1636
  %v2609 = vpack.c.b16 %v1661, %v1649
  %v2610 = vpack.c.b16 %v1662, %v1650
  %v2611 = vpack.c.b16 %v1663, %v1651
  %v2612 = vpack.c.b16 %v1664, %v1652
  %v2613 = vpack.c.b16 %v1665, %v1653
  %v2614 = vpack.c.b16 %v1666, %v1654
  %v2615 = vpack.c.b16 %v1667, %v1655
  %v2616 = vpack.c.b16 %v1668, %v1656
  %v2617 = vpack.c.b16 %v1669, %v1657
  %v2618 = vpack.c.b16 %v1670, %v1658
  %v2619 = vpack.c.b16 %v1671, %v1659
  %v2620 = vpack.c.b16 %v1672, %v1660
  %v2621 = vpack.c.b16 %v1685, %v1673
  %v2622 = vpack.c.b16 %v1686, %v1674
  %v2623 = vpack.c.b16 %v1687, %v1675
  %v2624 = vpack.c.b16 %v1688, %v1676
  %v2625 = vpack.c.b16 %v1689, %v1677
  %v2626 = vpack.c.b16 %v1690, %v1678
  %v2627 = vpack.c.b16 %v1691, %v1679
  %v2628 = vpack.c.b16 %v1692, %v1680
  %v2629 = vpack.c.b16 %v1693, %v1681
  %v2630 = vpack.c.b16 %v1694, %v1682
  %v2631 = vpack.c.b16 %v1695, %v1683
  %v2632 = vpack.c.b16 %v1696, %v1684
  %v2633 = vpack.c.b16 %v1709, %v1697
  %v2634 = vpack.c.b16 %v1710, %v1698
  %v2635 = vpack.c.b16 %v1711, %v1699
  %v2636 = vpack.c.b16 %v1712, %v1700
  %v2637 = vpack.c.b16 %v1713, %v1701
  %v2638 = vpack.c.b16 %v1714, %v1702
  %v2639 = vpack.c.b16 %v1715, %v1703
  %v2640 = vpack.c.b16 %v1716, %v1704
  %v2641 = vpack.c.b16 %v1717, %v1705
  %v2642 = vpack.c.b16 %v1718, %v1706
  %v2643 = vpack.c.b16 %v1719, %v1707
  %v2644 = vpack.c.b16 %v1720, %v1708
  %v2645 = vpack.c.b16 %v1733, %v1721
  %v2646 = vpack.c.b16 %v1734, %v1722
  %v2647 = vpack.c.b16 %v1735, %v1723
  %v2648 = vpack.c.b16 %v1736, %v1724
  %v2649 = vpack.c.b16 %v1737, %v1725
  %v2650 = vpack.c.b16 %v1738, %v1726
  %v2651 = vpack.c.b16 %v1739, %v1727
  %v2652 = vpack.c.b16 %v1740, %v1728
  %v2653 = vpack.c.b16 %v1741, %v1729
  %v2654 = vpack.c.b16 %v1742, %v1730
  %v2655 = vpack.c.b16 %v1743, %v1731
  %v2656 = vpack.c.b16 %v1744, %v1732
  %v2657 = vpack.c.b16 %v1757, %v1745
  %v2658 = vpack.c.b16 %v1758, %v1746
  %v2659 = vpack.c.b16 %v1759, %v1747
  %v2660 = vpack.c.b16 %v1760, %v1748
  %v2661 = vpack.c.b16 %v1761, %v1749
  %v2662 = vpack.c.b16 %v1762, %v1750
  %v2663 = vpack.c.b16 %v1763, %v1751
  %v2664 = vpack.c.b16 %v1764, %v1752
  %v2665 = vpack.c.b16 %v1765, %v1753
  %v2666 = vpack.c.b16 %v1766, %v1754
  %v2667 = vpack.c.b16 %v1767, %v1755
  %v2668 = vpack.c.b16 %v1768, %v1756
  %v2669 = vpack.c.b16 %v1781, %v1769
  %v2670 = vpack.c.b16 %v1782, %v1770
  %v2671 = vpack.c.b16 %v1783, %v1771
  %v2672 = vpack.c.b16 %v1784, %v1772
  %v2673 = vpack.c.b16 %v1785, %v1773
  %v2674 = vpack.c.b16 %v1786, %v1774
  %v2675 = vpack.c.b16 %v1787, %v1775
  %v2676 = vpack.c.b16 %v1788, %v1776
  %v2677 = vpack.c.b16 %v1789, %v1777
  %v2678 = vpack.c.b16 %v1790, %v1778
  %v2679 = vpack.c.b16 %v1791, %v1779
  %v2680 = vpack.c.b16 %v1792, %v1780
  %v2681 = vpack.c.b16 %v1805, %v1793
  %v2682 = vpack.c.b16 %v1806, %v1794
  %v2683 = vpack.c.b16 %v1807, %v1795
  %v2684 = vpack.c.b16 %v1808, %v1796
  %v2685 = vpack.c.b16 %v1809, %v1797
  %v2686 = vpack.c.b16 %v1810, %v1798
  %v2687 = vpack.c.b16 %v1811, %v1799
  %v2688 = vpack.c.b16 %v1812, %v1800
  %v2689 = vpack.c.b16 %v1813, %v1801
  %v2690 = vpack.c.b16 %v1814, %v1802
  %v2691 = vpack.c.b16 %v1815, %v1803
  %v2692 = vpack.c.b16 %v1816, %v1804
  %v2693 = vpack.c.b16 %v1829, %v1817
  %v2694 = vpack.c.b16 %v1830, %v1818
  %v2695 = vpack.c.b16 %v1831, %v1819
  %v2696 = vpack.c.b16 %v1832, %v1820
  %v2697 = vpack.c.b16 %v1833, %v1821
  %v2698 = vpack.c.b16 %v1834, %v1822
  %v2699 = vpack.c.b16 %v1835, %v1823
  %v2700 = vpack.c.b16 %v1836, %v1824
  %v2701 = vpack.c.b16 %v1837, %v1825
  %v2702 = vpack.c.b16 %v1838, %v1826
  %v2703 = vpack.c.b16 %v1839, %v1827
  %v2704 = vpack.c.b16 %v1840, %v1828
  %v2705 = vpack.c.b16 %v1853, %v1841
  %v2706 = vpack.c.b16 %v1854, %v1842
  %v2707 = vpack.c.b16 %v1855, %v1843
  %v2708 = vpack.c.b16 %v1856, %v1844
  %v2709 = vpack.c.b16 %v1857, %v1845
  %v2710 = vpack.c.b16 %v1858, %v1846
  %v2711 = vpack.c.b16 %v1859, %v1847
  %v2712 = vpack.c.b16 %v1860, %v1848
  %v2713 = vpack.c.b16 %v1861, %v1849
  %v2714 = vpack.c.b16 %v1862, %v1850
  %v2715 = vpack.c.b16 %v1863, %v1851
  %v2716 = vpack.c.b16 %v1864, %v1852
  %v2717 = vpack.c.b16 %v1877, %v1865
  %v2718 = vpack.c.b16 %v1878, %v1866
  %v2719 = vpack.c.b16 %v1879, %v1867
  %v2720 = vpack.c.b16 %v1880, %v1868
  %v2721 = vpack.c.b16 %v1881, %v1869
  %v2722 = vpack.c.b16 %v1882, %v1870
  %v2723 = vpack.c.b16 %v1883, %v1871
  %v2724 = vpack.c.b16 %v1884, %v1872
  %v2725 = vpack.c.b16 %v1885, %v1873
  %v2726 = vpack.c.b16 %v1886, %v1874
  %v2727 = vpack.c.b16 %v1887, %v1875
  %v2728 = vpack.c.b16 %v1888, %v1876
  %v2729 = vpack.c.b16 %v1901, %v1889
  %v2730 = vpack.c.b16 %v1902, %v1890
  %v2731 = vpack.c.b16 %v1903, %v1891
  %v2732 = vpack.c.b16 %v1904, %v1892
  %v2733 = vpack.c.b16 %v1905, %v1893
  %v2734 = vpack.c.b16 %v1906, %v1894
  %v2735 = vpack.c.b16 %v1907, %v1895
  %v2736 = vpack.c.b16 %v1908, %v1896
  %v2737 = vpack.c.b16 %v1909, %v1897
  %v2738 = vpack.c.b16 %v1910, %v1898
  %v2739 = vpack.c.b16 %v1911, %v1899
  %v2740 = vpack.c.b16 %v1912, %v1900
  %v2741 = vpack.c.b16 %v1925, %v1913
  %v2742 = vpack.c.b16 %v1926, %v1914
  %v2743 = vpack.c.b16 %v1927, %v1915
  %v2744 = vpack.c.b16 %v1928, %v1916
  %v2745 = vpack.c.b16 %v1929, %v1917
  %v2746 = vpack.c.b16 %v1930, %v1918
  %v2747 = vpack.c.b16 %v1931, %v1919
  %v2748 = vpack.c.b16 %v1932, %v1920
  %v2749 = vpack.c.b16 %v1933, %v1921
  %v2750 = vpack.c.b16 %v1934, %v1922
  %v2751 = vpack.c.b16 %v1935, %v1923
  %v2752 = vpack.c.b16 %v1936, %v1924
  %v2753 = vpack.c.b16 %v1949, %v1937
  %v2754 = vpack.c.b16 %v1950, %v1938
  %v2755 = vpack.c.b16 %v1951, %v1939
  %v2756 = vpack.c.b16 %v1952, %v1940
  %v2757 = vpack.c.b16 %v1953, %v1941
  %v2758 = vpack.c.b16 %v1954, %v1942
  %v2759 = vpack.c.b16 %v1955, %v1943
  %v2760 = vpack.c.b16 %v1956, %v1944
  %v2761 = vpack.c.b16 %v1957, %v1945
  %v2762 = vpack.c.b16 %v1958, %v1946
  %v2763 = vpack.c.b16 %v1959, %v1947
  %v2764 = vpack.c.b16 %v1960, %v1948
  %v2765 = vpack.c.b16 %v1973, %v1961
  %v2766 = vpack.c.b16 %v1974, %v1962
  %v2767 = vpack.c.b16 %v1975, %v1963
  %v2768 = vpack.c.b16 %v1976, %v1964
  %v2769 = vpack.c.b16 %v1977, %v1965
  %v2770 = vpack.c.b16 %v1978, %v1966
  %v2771 = vpack.c.b16 %v1979, %v1967
  %v2772 = vpack.c.b16 %v1980, %v1968
  %v2773 = vpack.c.b16 %v1981, %v1969
  %v2774 = vpack.c.b16 %v1982, %v1970
  %v2775 = vpack.c.b16 %v1983, %v1971
  %v2776 = vpack.c.b16 %v1984, %v1972
  %v2777 = vpack.c.b16 %v1997, %v1985
  %v2778 = vpack.c.b16 %v1998, %v1986
  %v2779 = vpack.c.b16 %v1999, %v1987
  %v2780 = vpack.c.b16 %v2000, %v1988
  %v2781 = vpack.c.b16 %v2001, %v1989
  %v2782 = vpack.c.b16 %v2002, %v1990
  %v2783 = vpack.c.b16 %v2003, %v1991
  %v2784 = vpack.c.b16 %v2004, %v1992
  %v2785 = vpack.c.b16 %v2005, %v1993
  %v2786 = vpack.c.b16 %v2006, %v1994
  %v2787 = vpack.c.b16 %v2007, %v1995
  %v2788 = vpack.c.b16 %v2008, %v1996
  %v2789 = vpack.c.b16 %v2021, %v2009
  %v2790 = vpack.c.b16 %v2022, %v2010
  %v2791 = vpack.c.b16 %v2023, %v2011
  %v2792 = vpack.c.b16 %v2024, %v2012
  %v2793 = vpack.c.b16 %v2025, %v2013
  %v2794 = vpack.c.b16 %v2026, %v2014
  %v2795 = vpack.c.b16 %v2027, %v2015
  %v2796 = vpack.c.b16 %v2028, %v2016
  %v2797 = vpack.c.b16 %v2029, %v2017
  %v2798 = vpack.c.b16 %v2030, %v2018
  %v2799 = vpack.c.b16 %v2031, %v2019
  %v2800 = vpack.c.b16 %v2032, %v2020
  %v2801 = vpack.c.b16 %v2045, %v2033
  %v2802 = vpack.c.b16 %v2046, %v2034
  %v2803 = vpack.c.b16 %v2047, %v2035
  %v2804 = vpack.c.b16 %v2048, %v2036
  %v2805 = vpack.c.b16 %v2049, %v2037
  %v2806 = vpack.c.b16 %v2050, %v2038
  %v2807 = vpack.c.b16 %v2051, %v2039
  %v2808 = vpack.c.b16 %v2052, %v2040
  %v2809 = vpack.c.b16 %v2053, %v2041
  %v2810 = vpack.c.b16 %v2054, %v2042
  %v2811 = vpack.c.b16 %v2055, %v2043
  %v2812 = vpack.c.b16 %v2056, %v2044
  %v2813 = vpack.c.b16 %v2069, %v2057
  %v2814 = vpack.c.b16 %v2070, %v2058
  %v2815 = vpack.c.b16 %v2071, %v2059
  %v2816 = vpack.c.b16 %v2072, %v2060
  %v2817 = vpack.c.b16 %v2073, %v2061
  %v2818 = vpack.c.b16 %v2074, %v2062
  %v2819 = vpack.c.b16 %v2075, %v2063
  %v2820 = vpack.c.b16 %v2076, %v2064
  %v2821 = vpack.c.b16 %v2077, %v2065
  %v2822 = vpack.c.b16 %v2078, %v2066
  %v2823 = vpack.c.b16 %v2079, %v2067
  %v2824 = vpack.c.b16 %v2080, %v2068
  %v2825 = vpack.c.b16 %v2093, %v2081
  %v2826 = vpack.c.b16 %v2094, %v2082
  %v2827 = vpack.c.b16 %v2095, %v2083
  %v2828 = vpack.c.b16 %v2096, %v2084
  %v2829 = vpack.c.b16 %v2097, %v2085
  %v2830 = vpack.c.b16 %v2098, %v2086
  %v2831 = vpack.c.b16 %v2099, %v2087
  %v2832 = vpack.c.b16 %v2100, %v2088
  %v2833 = vpack.c.b16 %v2101, %v2089
  %v2834 = vpack.c.b16 %v2102, %v2090
  %v2835 = vpack.c.b16 %v2103, %v2091
  %v2836 = vpack.c.b16 %v2104, %v2092
  %v2837 = vpack.c.b16 %v2117, %v2105
  %v2838 = vpack.c.b16 %v2118, %v2106
  %v2839 = vpack.c.b16 %v2119, %v2107
  %v2840 = vpack.c.b16 %v2120, %v2108
  %v2841 = vpack.c.b16 %v2121, %v2109
  %v2842 = vpack.c.b16 %v2122, %v2110
  %v2843 = vpack.c.b16 %v2123, %v2111
  %v2844 = vpack.c.b16 %v2124, %v2112
  %v2845 = vpack.c.b16 %v2125, %v2113
  %v2846 = vpack.c.b16 %v2126, %v2114
  %v2847 = vpack.c.b16 %v2127, %v2115
  %v2848 = vpack.c.b16 %v2128, %v2116
  %v2849 = vpack.c.b16 %v2141, %v2129
  %v2850 = vpack.c.b16 %v2142, %v2130
  %v2851 = vpack.c.b16 %v2143, %v2131
  %v2852 = vpack.c.b16 %v2144, %v2132
  %v2853 = vpack.c.b16 %v2145, %v2133
  %v2854 = vpack.c.b16 %v2146, %v2134
  %v2855 = vpack.c.b16 %v2147, %v2135
  %v2856 = vpack.c.b16 %v2148, %v2136
  %v2857 = vpack.c.b16 %v2149, %v2137
  %v2858 = vpack.c.b16 %v2150, %v2138
  %v2859 = vpack.c.b16 %v2151, %v2139
  %v2860 = vpack.c.b16 %v2152, %v2140
  %v2861 = vpack.c.b16 %v2165, %v2153
  %v2862 = vpack.c.b16 %v2166, %v2154
  %v2863 = vpack.c.b16 %v2167, %v2155
  %v2864 = vpack.c.b16 %v2168, %v2156
  %v2865 = vpack.c.b16 %v2169, %v2157
  %v2866 = vpack.c.b16 %v2170, %v2158
  %v2867 = vpack.c.b16 %v2171, %v2159
  %v2868 = vpack.c.b16 %v2172, %v2160
  %v2869 = vpack.c.b16 %v2173, %v2161
  %v2870 = vpack.c.b16 %v2174, %v2162
  %v2871 = vpack.c.b16 %v2175, %v2163
  %v2872 = vpack.c.b16 %v2176, %v2164
  %v2873 = vpack.c.b16 %v2189, %v2177
  %v2874 = vpack.c.b16 %v2190, %v2178
  %v2875 = vpack.c.b16 %v2191, %v2179
  %v2876 = vpack.c.b16 %v2192, %v2180
  %v2877 = vpack.c.b16 %v2193, %v2181
  %v2878 = vpack.c.b16 %v2194, %v2182
  %v2879 = vpack.c.b16 %v2195, %v2183
  %v2880 = vpack.c.b16 %v2196, %v2184
  %v2881 = vpack.c.b16 %v2197, %v2185
  %v2882 = vpack.c.b16 %v2198, %v2186
  %v2883 = vpack.c.b16 %v2199, %v2187
  %v2884 = vpack.c.b16 %v2200, %v2188
  %v2885 = vpack.c.b16 %v2213, %v2201
  %v2886 = vpack.c.b16 %v2214, %v2202
  %v2887 = vpack.c.b16 %v2215, %v2203
  %v2888 = vpack.c.b16 %v2216, %v2204
  %v2889 = vpack.c.b16 %v2217, %v2205
  %v2890 = vpack.c.b16 %v2218, %v2206
  %v2891 = vpack.c.b16 %v2219, %v2207
  %v2892 = vpack.c.b16 %v2220, %v2208
  %v2893 = vpack.c.b16 %v2221, %v2209
  %v2894 = vpack.c.b16 %v2222, %v2210
  %v2895 = vpack.c.b16 %v2223, %v2211
  %v2896 = vpack.c.b16 %v2224, %v2212
  %v2897 = vpack.c.b16 %v2237, %v2225
  %v2898 = vpack.c.b16 %v2238, %v2226
  %v2899 = vpack.c.b16 %v2239, %v2227
  %v2900 = vpack.c.b16 %v2240, %v2228
  %v2901 = vpack.c.b16 %v2241, %v2229
  %v2902 = vpack.c.b16 %v2242, %v2230
  %v2903 = vpack.c.b16 %v2243, %v2231
  %v2904 = vpack.c.b16 %v2244, %v2232
  %v2905 = vpack.c.b16 %v2245, %v2233
  %v2906 = vpack.c.b16 %v2246, %v2234
  %v2907 = vpack.c.b16 %v2247, %v2235
  %v2908 = vpack.c.b16 %v2248, %v2236
  %v2909 = vpack.c.b16 %v2261, %v2249
  %v2910 = vpack.c.b16 %v2262, %v2250
  %v2911 = vpack.c.b16 %v2263, %v2251
  %v2912 = vpack.c.b16 %v2264, %v2252
  %v2913 = vpack.c.b16 %v2265, %v2253
  %v2914 = vpack.c.b16 %v2266, %v2254
  %v2915 = vpack.c.b16 %v2267, %v2255
  %v2916 = vpack.c.b16 %v2268, %v2256
  %v2917 = vpack.c.b16 %v2269, %v2257
  %v2918 = vpack.c.b16 %v2270, %v2258
  %v2919 = vpack.c.b16 %v2271, %v2259
  %v2920 = vpack.c.b16 %v2272, %v2260
  %v2921 = vpack.c.b16 %v2285, %v2273
  %v2922 = vpack.c.b16 %v2286, %v2274
  %v2923 = vpack.c.b16 %v2287, %v2275
  %v2924 = vpack.c.b16 %v2288, %v2276
  %v2925 = vpack.c.b16 %v2289, %v2277
  %v2926 = vpack.c.b16 %v2290, %v2278
  %v2927 = vpack.c.b16 %v2291, %v2279
  %v2928 = vpack.c.b16 %v2292, %v2280
  %v2929 = vpack.c.b16 %v2293, %v2281
  %v2930 = vpack.c.b16 %v2294, %v2282
  %v2931 = vpack.c.b16 %v2295, %v2283
  %v2932 = vpack.c.b16 %v2296, %v2284
  %v2933 = vpack.c.b16 %v2309, %v2297
  %v2934 = vpack.c.b16 %v2310, %v2298
  %v2935 = vpack.c.b16 %v2311, %v2299
  %v2936 = vpack.c.b16 %v2312, %v2300
  %v2937 = vpack.c.b16 %v2313, %v2301
  %v2938 = vpack.c.b16 %v2314, %v2302
  %v2939 = vpack.c.b16 %v2315, %v2303
  %v2940 = vpack.c.b16 %v2316, %v2304
  %v2941 = vpack.c.b16 %v2317, %v2305
  %v2942 = vpack.c.b16 %v2318, %v2306
  %v2943 = vpack.c.b16 %v2319, %v2307
  %v2944 = vpack.c.b16 %v2320, %v2308
  %v2945 = vpack.c.b16 %v2333, %v2321
  %v2946 = vpack.c.b16 %v2334, %v2322
  %v2947 = vpack.c.b16 %v2335, %v2323
  %v2948 = vpack.c.b16 %v2336, %v2324
  %v2949 = vpack.c.b16 %v2337, %v2325
  %v2950 = vpack.c.b16 %v2338, %v2326
  %v2951 = vpack.c.b16 %v2339, %v2327
  %v2952 = vpack.c.b16 %v2340, %v2328
  %v2953 = vpack.c.b16 %v2341, %v2329
  %v2954 = vpack.c.b16 %v2342, %v2330
  %v2955 = vpack.c.b16 %v2343, %v2331
  %v2956 = vpack.c.b16 %v2344, %v2332
  %v2957 = vpack.c.b16 %v2357, %v2345
  %v2958 = vpack.c.b16 %v2358, %v2346
  %v2959 = vpack.c.b16 %v2359, %v2347
  %v2960 = vpack.c.b16 %v2360, %v2348
  %v2961 = vpack.c.b16 %v2361, %v2349
  %v2962 = vpack.c.b16 %v2362, %v2350
  %v2963 = vpack.c.b16 %v2363, %v2351
  %v2964 = vpack.c.b16 %v2364, %v2352
  %v2965 = vpack.c.b16 %v2365, %v2353
  %v2966 = vpack.c.b16 %v2366, %v2354
  %v2967 = vpack.c.b16 %v2367, %v2355
  %v2968 = vpack.c.b16 %v2368, %v2356
  %v2969 = vpack.c.b16 %v2381, %v2369
  %v2970 = vpack.c.b16 %v2382, %v2370
  %v2971 = vpack.c.b16 %v2383, %v2371
  %v2972 = vpack.c.b16 %v2384, %v2372
  %v2973 = vpack.c.b16 %v2385, %v2373
  %v2974 = vpack.c.b16 %v2386, %v2374
  %v2975 = vpack.c.b16 %v2387, %v2375
  %v2976 = vpack.c.b16 %v2388, %v2376
  %v2977 = vpack.c.b16 %v2389, %v2377
  %v2978 = vpack.c.b16 %v2390, %v2378
  %v2979 = vpack.c.b16 %v2391, %v2379
  %v2980 = vpack.c.b16 %v2392, %v2380
  %v2981 = vpack.c.b16 %v2405, %v2393
  %v2982 = vpack.c.b16 %v2406, %v2394
  %v2983 = vpack.c.b16 %v2407, %v2395
  %v2984 = vpack.c.b16 %v2408, %v2396
  %v2985 = vpack.c.b16 %v2409, %v2397
  %v2986 = vpack.c.b16 %v2410, %v2398
  %v2987 = vpack.c.b16 %v2411, %v2399
  %v2988 = vpack.c.b16 %v2412, %v2400
  %v2989 = vpack.c.b16 %v2413, %v2401
  %v2990 = vpack.c.b16 %v2414, %v2402
  %v2991 = vpack.c.b16 %v2415, %v2403
  %v2992 = vpack.c.b16 %v2416, %v2404
  %v2993 = vpack.c.b16 %v2429, %v2417
  %v2994 = vpack.c.b16 %v2430, %v2418
  %v2995 = vpack.c.b16 %v2431, %v2419
  %v2996 = vpack.c.b16 %v2432, %v2420
  %v2997 = vpack.c.b16 %v2433, %v2421
  %v2998 = vpack.c.b16 %v2434, %v2422
  %v2999 = vpack.c.b16 %v2435, %v2423
  %v3000 = vpack.c.b16 %v2436, %v2424
  %v3001 = vpack.c.b16 %v2437, %v2425
  %v3002 = vpack.c.b16 %v2438, %v2426
  %v3003 = vpack.c.b16 %v2439, %v2427
  %v3004 = vpack.c.b16 %v2440, %v2428
  %v3005 = vpack.c.b16 %v2453, %v2441
  %v3006 = vpack.c.b16 %v2454, %v2442
  %v3007 = vpack.c.b16 %v2455, %v2443
  %v3008 = vpack.c.b16 %v2456, %v2444
  %v3009 = vpack.c.b16 %v2457, %v2445
  %v3010 = vpack.c.b16 %v2458, %v2446
  %v3011 = vpack.c.b16 %v2459, %v2447
  %v3012 = vpack.c.b16 %v2460, %v2448
  %v3013 = vpack.c.b16 %v2461, %v2449
  %v3014 = vpack.c.b16 %v2462, %v2450
  %v3015 = vpack.c.b16 %v2463, %v2451
  %v3016 = vpack.c.b16 %v2464, %v2452
  %v3017 = vpack.c.b16 %v2477, %v2465
  %v3018 = vpack.c.b16 %v2478, %v2466
  %v3019 = vpack.c.b16 %v2479, %v2467
  %v3020 = vpack.c.b16 %v2480, %v2468
  %v3021 = vpack.c.b16 %v2481, %v2469
  %v3022 = vpack.c.b16 %v2482, %v2470
  %v3023 = vpack.c.b16 %v2483, %v2471
  %v3024 = vpack.c.b16 %v2484, %v2472
  %v3025 = vpack.c.b16 %v2485, %v2473
  %v3026 = vpack.c.b16 %v2486, %v2474
  %v3027 = vpack.c.b16 %v2487, %v2475
  %v3028 = vpack.c.b16 %v2488, %v2476
  %v3029 = vpack.c.b16 %v2501, %v2489
  %v3030 = vpack.c.b16 %v2502, %v2490
  %v3031 = vpack.c.b16 %v2503, %v2491
  %v3032 = vpack.c.b16 %v2504, %v2492
  %v3033 = vpack.c.b16 %v2505, %v2493
  %v3034 = vpack.c.b16 %v2506, %v2494
  %v3035 = vpack.c.b16 %v2507, %v2495
  %v3036 = vpack.c.b16 %v2508, %v2496
  %v3037 = vpack.c.b16 %v2509, %v2497
  %v3038 = vpack.c.b16 %v2510, %v2498
  %v3039 = vpack.c.b16 %v2511, %v2499
  %v3040 = vpack.c.b16 %v2512, %v2500
  %v3041 = vpack.c.b16 %v2525, %v2513
  %v3042 = vpack.c.b16 %v2526, %v2514
  %v3043 = vpack.c.b16 %v2527, %v2515
  %v3044 = vpack.c.b16 %v2528, %v2516
  %v3045 = vpack.c.b16 %v2529, %v2517
  %v3046 = vpack.c.b16 %v2530, %v2518
  %v3047 = vpack.c.b16 %v2531, %v2519
  %v3048 = vpack.c.b16 %v2532, %v2520
  %v3049 = vpack.c.b16 %v2533, %v2521
  %v3050 = vpack.c.b16 %v2534, %v2522
  %v3051 = vpack.c.b16 %v2535, %v2523
  %v3052 = vpack.c.b16 %v2536, %v2524
  %vm3557 = vcmask 359424
  %v3559 = vsel %vm3557, %v436, 0
  %v3562 = vsel %vm3557, %v442, 0
  %v3565 = vsel %vm3557, %v448, 0
  %v3568 = vsel %vm3557, %v454, 0
  %v3571 = vsel %vm3557, %v460, 0
  %v3574 = vsel %vm3557, %v466, 0
  %v3577 = vsel %vm3557, %v472, 0
  %v3580 = vsel %vm246, %v3041, 0
  %v3583 = vsel %vm246, %v3042, 0
  %v3586 = vsel %vm246, %v3043, 0
  %v3589 = vsel %vm246, %v3044, 0
  %v3592 = vsel %vm246, %v3045, 0
  %v3595 = vsel %vm246, %v3046, 0
  %v3598 = vsel %vm246, %v3047, 0
  %v3601 = vsel %vm246, %v3048, 0
  %v3604 = vsel %vm246, %v3049, 0
  %v3607 = vsel %vm246, %v3050, 0
  %v3610 = vsel %vm246, %v3051, 0
  %v3613 = vsel %vm246, %v3052, 0
  %3615 = vmatprep.subr.bf16.mxu0 %v2622
  %3616 = vmatpush1.bf16.msra.mxu0 %v2621
  %3617 = vmatprep.subr.bf16.mxu0 %v2610
  %3618 = vmatpush1.bf16.msra.mxu0 %v2609
  %3619 = vmatprep.subr.bf16.mxu0 %v2598
  %3620 = vmatpush1.bf16.msra.mxu0 %v2597
  %3621 = vmatprep.subr.bf16.mxu0 %v2586
  %3622 = vmatpush1.bf16.msra.mxu0 %v2585
  %3623 = vmatprep.subr.bf16.mxu0 %v2574
  %3624 = vmatpush1.bf16.msra.mxu0 %v2573
  %3625 = vmatprep.subr.bf16.mxu0 %v2562
  %3626 = vmatpush1.bf16.msra.mxu0 %v2561
  %3627 = vmatprep.subr.bf16.mxu0 %v2550
  %3628 = vmatpush1.bf16.msra.mxu0 %v2549
  %3629 = vmatprep.subr.bf16.mxu0 %v2538
  %3630 = vmatpush1.bf16.msra.mxu0 %v2537
  %3631 = vmatprep.subr.bf16.mxu0 %v2718
  %3632 = vmatpush2.bf16.msra.mxu0 %v2717
  %3633 = vmatprep.subr.bf16.mxu0 %v2706
  %3634 = vmatpush2.bf16.msra.mxu0 %v2705
  %3635 = vmatprep.subr.bf16.mxu0 %v2694
  %3636 = vmatpush2.bf16.msra.mxu0 %v2693
  %3637 = vmatprep.subr.bf16.mxu0 %v2682
  %3638 = vmatpush2.bf16.msra.mxu0 %v2681
  %3639 = vmatprep.subr.bf16.mxu0 %v2670
  %3640 = vmatpush2.bf16.msra.mxu0 %v2669
  %3641 = vmatprep.subr.bf16.mxu0 %v2658
  %3642 = vmatpush2.bf16.msra.mxu0 %v2657
  %3643 = vmatprep.subr.bf16.mxu0 %v2646
  %3644 = vmatpush2.bf16.msra.mxu0 %v2645
  %3645 = vmatprep.subr.bf16.mxu0 %v2634
  %3646 = vmatpush2.bf16.msra.mxu0 %v2633
  %3647 = vmatprep.mubr.bf16.mxu0 %v432
  %3648 = vmatmul.mubr.bf16.gmra.mxu0 %v431
  %v3649 = vpop.f32.mrf.mxu0
  %v3650 = vadd.f32 0.0, %v3649
  %v3651 = vpop.f32.mrf.mxu0
  %v3652 = vadd.f32 0.0, %v3651
  %v3653 = vpop.f32.mrf.mxu0
  %v3654 = vadd.f32 0.0, %v3653
  %v3655 = vpop.f32.mrf.mxu0
  %v3656 = vadd.f32 0.0, %v3655
  %3657 = vmatprep.mubr.bf16.mxu0 %v438
  %3658 = vmatmul.mubr.bf16.gmra.mxu0 %v437
  %v3659 = vpop.f32.mrf.mxu0
  %v3660 = vadd.f32 0.0, %v3659
  %v3661 = vpop.f32.mrf.mxu0
  %v3662 = vadd.f32 0.0, %v3661
  %v3663 = vpop.f32.mrf.mxu0
  %v3664 = vadd.f32 0.0, %v3663
  %v3665 = vpop.f32.mrf.mxu0
  %v3666 = vadd.f32 0.0, %v3665
  %3667 = vmatprep.mubr.bf16.mxu0 %v444
  %3668 = vmatmul.mubr.bf16.gmra.mxu0 %v443
  %v3669 = vpop.f32.mrf.mxu0
  %v3670 = vadd.f32 0.0, %v3669
  %v3671 = vpop.f32.mrf.mxu0
  %v3672 = vadd.f32 0.0, %v3671
  %v3673 = vpop.f32.mrf.mxu0
  %v3674 = vadd.f32 0.0, %v3673
  %v3675 = vpop.f32.mrf.mxu0
  %v3676 = vadd.f32 0.0, %v3675
  %3677 = vmatprep.mubr.bf16.mxu0 %v450
  %3678 = vmatmul.mubr.bf16.gmra.mxu0 %v449
  %v3679 = vpop.f32.mrf.mxu0
  %v3680 = vadd.f32 0.0, %v3679
  %v3681 = vpop.f32.mrf.mxu0
  %v3682 = vadd.f32 0.0, %v3681
  %v3683 = vpop.f32.mrf.mxu0
  %v3684 = vadd.f32 0.0, %v3683
  %v3685 = vpop.f32.mrf.mxu0
  %v3686 = vadd.f32 0.0, %v3685
  %3687 = vmatprep.mubr.bf16.mxu0 %v456
  %3688 = vmatmul.mubr.bf16.gmra.mxu0 %v455
  %v3689 = vpop.f32.mrf.mxu0
  %v3690 = vadd.f32 0.0, %v3689
  %v3691 = vpop.f32.mrf.mxu0
  %v3692 = vadd.f32 0.0, %v3691
  %v3693 = vpop.f32.mrf.mxu0
  %v3694 = vadd.f32 0.0, %v3693
  %v3695 = vpop.f32.mrf.mxu0
  %v3696 = vadd.f32 0.0, %v3695
  %3697 = vmatprep.mubr.bf16.mxu0 %v462
  %3698 = vmatmul.mubr.bf16.gmra.mxu0 %v461
  %v3699 = vpop.f32.mrf.mxu0
  %v3700 = vadd.f32 0.0, %v3699
  %v3701 = vpop.f32.mrf.mxu0
  %v3702 = vadd.f32 0.0, %v3701
  %v3703 = vpop.f32.mrf.mxu0
  %v3704 = vadd.f32 0.0, %v3703
  %v3705 = vpop.f32.mrf.mxu0
  %v3706 = vadd.f32 0.0, %v3705
  %3707 = vmatprep.mubr.bf16.mxu0 %v468
  %3708 = vmatmul.mubr.bf16.gmra.mxu0 %v467
  %v3709 = vpop.f32.mrf.mxu0
  %v3710 = vadd.f32 0.0, %v3709
  %v3711 = vpop.f32.mrf.mxu0
  %v3712 = vadd.f32 0.0, %v3711
  %v3713 = vpop.f32.mrf.mxu0
  %v3714 = vpop.f32.mrf.mxu0
  %3715 = vdwg.mxu0
  %3716 = vmatprep.subr.bf16.mxu0 %v2814
  %3717 = vmatpush1.bf16.msra.mxu0 %v2813
  %3718 = vmatprep.subr.bf16.mxu0 %v2802
  %3719 = vmatpush1.bf16.msra.mxu0 %v2801
  %3720 = vmatprep.subr.bf16.mxu0 %v2790
  %3721 = vmatpush1.bf16.msra.mxu0 %v2789
  %3722 = vmatprep.subr.bf16.mxu0 %v2778
  %3723 = vmatpush1.bf16.msra.mxu0 %v2777
  %3724 = vmatprep.subr.bf16.mxu0 %v2766
  %3725 = vmatpush1.bf16.msra.mxu0 %v2765
  %3726 = vmatprep.subr.bf16.mxu0 %v2754
  %3727 = vmatpush1.bf16.msra.mxu0 %v2753
  %3728 = vmatprep.subr.bf16.mxu0 %v2742
  %3729 = vmatpush1.bf16.msra.mxu0 %v2741
  %3730 = vmatprep.subr.bf16.mxu0 %v2730
  %3731 = vmatpush1.bf16.msra.mxu0 %v2729
  %3732 = vmatprep.subr.bf16.mxu0 %v2910
  %3733 = vmatpush2.bf16.msra.mxu0 %v2909
  %3734 = vmatprep.subr.bf16.mxu0 %v2898
  %3735 = vmatpush2.bf16.msra.mxu0 %v2897
  %3736 = vmatprep.subr.bf16.mxu0 %v2886
  %3737 = vmatpush2.bf16.msra.mxu0 %v2885
  %3738 = vmatprep.subr.bf16.mxu0 %v2874
  %3739 = vmatpush2.bf16.msra.mxu0 %v2873
  %3740 = vmatprep.subr.bf16.mxu0 %v2862
  %3741 = vmatpush2.bf16.msra.mxu0 %v2861
  %3742 = vmatprep.subr.bf16.mxu0 %v2850
  %3743 = vmatpush2.bf16.msra.mxu0 %v2849
  %3744 = vmatprep.subr.bf16.mxu0 %v2838
  %3745 = vmatpush2.bf16.msra.mxu0 %v2837
  %3746 = vmatprep.subr.bf16.mxu0 %v2826
  %3747 = vmatpush2.bf16.msra.mxu0 %v2825
  %3748 = vmatprep.mubr.bf16.mxu0 %v434
  %3749 = vmatmul.mubr.bf16.gmra.mxu0 %v433
  %v3750 = vpop.f32.mrf.mxu0
  %v3751 = vadd.f32 %v3650, %v3750
  %v3752 = vpop.f32.mrf.mxu0
  %v3753 = vadd.f32 %v3652, %v3752
  %v3754 = vpop.f32.mrf.mxu0
  %v3755 = vadd.f32 %v3654, %v3754
  %v3756 = vpop.f32.mrf.mxu0
  %v3757 = vadd.f32 %v3656, %v3756
  %3758 = vmatprep.mubr.bf16.mxu0 %v440
  %3759 = vmatmul.mubr.bf16.gmra.mxu0 %v439
  %v3760 = vpop.f32.mrf.mxu0
  %v3761 = vadd.f32 %v3660, %v3760
  %v3762 = vpop.f32.mrf.mxu0
  %v3763 = vadd.f32 %v3662, %v3762
  %v3764 = vpop.f32.mrf.mxu0
  %v3765 = vadd.f32 %v3664, %v3764
  %v3766 = vpop.f32.mrf.mxu0
  %v3767 = vadd.f32 %v3666, %v3766
  %3768 = vmatprep.mubr.bf16.mxu0 %v446
  %3769 = vmatmul.mubr.bf16.gmra.mxu0 %v445
  %v3770 = vpop.f32.mrf.mxu0
  %v3771 = vadd.f32 %v3670, %v3770
  %v3772 = vpop.f32.mrf.mxu0
  %v3773 = vadd.f32 %v3672, %v3772
  %v3774 = vpop.f32.mrf.mxu0
  %v3775 = vadd.f32 %v3674, %v3774
  %v3776 = vpop.f32.mrf.mxu0
  %v3777 = vadd.f32 %v3676, %v3776
  %3778 = vmatprep.mubr.bf16.mxu0 %v452
  %3779 = vmatmul.mubr.bf16.gmra.mxu0 %v451
  %v3780 = vpop.f32.mrf.mxu0
  %v3781 = vadd.f32 %v3680, %v3780
  %v3782 = vpop.f32.mrf.mxu0
  %v3783 = vadd.f32 %v3682, %v3782
  %v3784 = vpop.f32.mrf.mxu0
  %v3785 = vadd.f32 %v3684, %v3784
  %v3786 = vpop.f32.mrf.mxu0
  %v3787 = vadd.f32 %v3686, %v3786
  %3788 = vmatprep.mubr.bf16.mxu0 %v458
  %3789 = vmatmul.mubr.bf16.gmra.mxu0 %v457
  %v3790 = vpop.f32.mrf.mxu0
  %v3791 = vadd.f32 %v3690, %v3790
  %v3792 = vpop.f32.mrf.mxu0
  %v3793 = vadd.f32 %v3692, %v3792
  %v3794 = vpop.f32.mrf.mxu0
  %v3795 = vadd.f32 %v3694, %v3794
  %v3796 = vpop.f32.mrf.mxu0
  %v3797 = vadd.f32 %v3696, %v3796
  %3798 = vmatprep.mubr.bf16.mxu0 %v464
  %3799 = vmatmul.mubr.bf16.gmra.mxu0 %v463
  %v3800 = vpop.f32.mrf.mxu0
  %v3801 = vadd.f32 %v3700, %v3800
  %v3802 = vpop.f32.mrf.mxu0
  %v3803 = vadd.f32 %v3702, %v3802
  %v3804 = vpop.f32.mrf.mxu0
  %v3805 = vadd.f32 %v3704, %v3804
  %v3806 = vpop.f32.mrf.mxu0
  %v3807 = vadd.f32 %v3706, %v3806
  %3808 = vmatprep.mubr.bf16.mxu0 %v470
  %3809 = vmatmul.mubr.bf16.gmra.mxu0 %v469
  %v3810 = vpop.f32.mrf.mxu0
  %v3811 = vadd.f32 %v3710, %v3810
  %v3812 = vpop.f32.mrf.mxu0
  %v3813 = vadd.f32 %v3712, %v3812
  %v3814 = vpop.f32.mrf.mxu0
  %v3815 = vpop.f32.mrf.mxu0
  %3816 = vdwg.mxu0
  %3817 = vmatprep.subr.bf16.mxu0 %v3006
  %3818 = vmatpush1.bf16.msra.mxu0 %v3005
  %3819 = vmatprep.subr.bf16.mxu0 %v2994
  %3820 = vmatpush1.bf16.msra.mxu0 %v2993
  %3821 = vmatprep.subr.bf16.mxu0 %v2982
  %3822 = vmatpush1.bf16.msra.mxu0 %v2981
  %3823 = vmatprep.subr.bf16.mxu0 %v2970
  %3824 = vmatpush1.bf16.msra.mxu0 %v2969
  %3825 = vmatprep.subr.bf16.mxu0 %v2958
  %3826 = vmatpush1.bf16.msra.mxu0 %v2957
  %3827 = vmatprep.subr.bf16.mxu0 %v2946
  %3828 = vmatpush1.bf16.msra.mxu0 %v2945
  %3829 = vmatprep.subr.bf16.mxu0 %v2934
  %3830 = vmatpush1.bf16.msra.mxu0 %v2933
  %3831 = vmatprep.subr.bf16.mxu0 %v2922
  %3832 = vmatpush1.bf16.msra.mxu0 %v2921
  %3833 = vmatprep.subr.bf16.mxu0 0
  %3834 = vmatpush2.bf16.msra.mxu0 0
  %3835 = vmatprep.subr.bf16.mxu0 0
  %3836 = vmatpush2.bf16.msra.mxu0 0
  %3837 = vmatprep.subr.bf16.mxu0 0
  %3838 = vmatpush2.bf16.msra.mxu0 0
  %3839 = vmatprep.subr.bf16.mxu0 0
  %3840 = vmatpush2.bf16.msra.mxu0 0
  %3841 = vmatprep.subr.bf16.mxu0 0
  %3842 = vmatpush2.bf16.msra.mxu0 0
  %3843 = vmatprep.subr.bf16.mxu0 %v3583
  %3844 = vmatpush2.bf16.msra.mxu0 %v3580
  %3845 = vmatprep.subr.bf16.mxu0 %v3030
  %3846 = vmatpush2.bf16.msra.mxu0 %v3029
  %3847 = vmatprep.subr.bf16.mxu0 %v3018
  %3848 = vmatpush2.bf16.msra.mxu0 %v3017
  %3849 = vmatprep.mubr.bf16.mxu0 %v3559
  %3850 = vmatmul.mubr.bf16.gmra.mxu0 %v435
  %v3851 = vpop.f32.mrf.mxu0
  %v3852 = vadd.f32 %v3751, %v3851
  %v3853 = vpop.f32.mrf.mxu0
  %v3854 = vadd.f32 %v3753, %v3853
  %v3855 = vpop.f32.mrf.mxu0
  %v3856 = vadd.f32 %v3755, %v3855
  %v3857 = vpop.f32.mrf.mxu0
  %v3858 = vadd.f32 %v3757, %v3857
  %3859 = vmatprep.mubr.bf16.mxu0 %v3562
  %3860 = vmatmul.mubr.bf16.gmra.mxu0 %v441
  %v3861 = vpop.f32.mrf.mxu0
  %v3862 = vadd.f32 %v3761, %v3861
  %v3863 = vpop.f32.mrf.mxu0
  %v3864 = vadd.f32 %v3763, %v3863
  %v3865 = vpop.f32.mrf.mxu0
  %v3866 = vadd.f32 %v3765, %v3865
  %v3867 = vpop.f32.mrf.mxu0
  %v3868 = vadd.f32 %v3767, %v3867
  %3869 = vmatprep.mubr.bf16.mxu0 %v3565
  %3870 = vmatmul.mubr.bf16.gmra.mxu0 %v447
  %v3871 = vpop.f32.mrf.mxu0
  %v3872 = vadd.f32 %v3771, %v3871
  %v3873 = vpop.f32.mrf.mxu0
  %v3874 = vadd.f32 %v3773, %v3873
  %v3875 = vpop.f32.mrf.mxu0
  %v3876 = vadd.f32 %v3775, %v3875
  %v3877 = vpop.f32.mrf.mxu0
  %v3878 = vadd.f32 %v3777, %v3877
  %3879 = vmatprep.mubr.bf16.mxu0 %v3568
  %3880 = vmatmul.mubr.bf16.gmra.mxu0 %v453
  %v3881 = vpop.f32.mrf.mxu0
  %v3882 = vadd.f32 %v3781, %v3881
  %v3883 = vpop.f32.mrf.mxu0
  %v3884 = vadd.f32 %v3783, %v3883
  %v3885 = vpop.f32.mrf.mxu0
  %v3886 = vadd.f32 %v3785, %v3885
  %v3887 = vpop.f32.mrf.mxu0
  %v3888 = vadd.f32 %v3787, %v3887
  %3889 = vmatprep.mubr.bf16.mxu0 %v3571
  %3890 = vmatmul.mubr.bf16.gmra.mxu0 %v459
  %v3891 = vpop.f32.mrf.mxu0
  %v3892 = vadd.f32 %v3791, %v3891
  %v3893 = vpop.f32.mrf.mxu0
  %v3894 = vadd.f32 %v3793, %v3893
  %v3895 = vpop.f32.mrf.mxu0
  %v3896 = vadd.f32 %v3795, %v3895
  %v3897 = vpop.f32.mrf.mxu0
  %v3898 = vadd.f32 %v3797, %v3897
  %3899 = vmatprep.mubr.bf16.mxu0 %v3574
  %3900 = vmatmul.mubr.bf16.gmra.mxu0 %v465
  %v3901 = vpop.f32.mrf.mxu0
  %v3902 = vadd.f32 %v3801, %v3901
  %v3903 = vpop.f32.mrf.mxu0
  %v3904 = vadd.f32 %v3803, %v3903
  %v3905 = vpop.f32.mrf.mxu0
  %v3906 = vadd.f32 %v3805, %v3905
  %v3907 = vpop.f32.mrf.mxu0
  %v3908 = vadd.f32 %v3807, %v3907
  %3909 = vmatprep.mubr.bf16.mxu0 %v3577
  %3910 = vmatmul.mubr.bf16.gmra.mxu0 %v471
  %v3911 = vpop.f32.mrf.mxu0
  %v3912 = vadd.f32 %v3811, %v3911
  %v3913 = vpop.f32.mrf.mxu0
  %v3914 = vadd.f32 %v3813, %v3913
  %v3915 = vpop.f32.mrf.mxu0
  %v3916 = vpop.f32.mrf.mxu0
  %3917 = vdwg.mxu0
  %3918 = vmatprep.subr.bf16.mxu0 %v2624
  %3919 = vmatpush1.bf16.msra.mxu0 %v2623
  %3920 = vmatprep.subr.bf16.mxu0 %v2612
  %3921 = vmatpush1.bf16.msra.mxu0 %v2611
  %3922 = vmatprep.subr.bf16.mxu0 %v2600
  %3923 = vmatpush1.bf16.msra.mxu0 %v2599
  %3924 = vmatprep.subr.bf16.mxu0 %v2588
  %3925 = vmatpush1.bf16.msra.mxu0 %v2587
  %3926 = vmatprep.subr.bf16.mxu0 %v2576
  %3927 = vmatpush1.bf16.msra.mxu0 %v2575
  %3928 = vmatprep.subr.bf16.mxu0 %v2564
  %3929 = vmatpush1.bf16.msra.mxu0 %v2563
  %3930 = vmatprep.subr.bf16.mxu0 %v2552
  %3931 = vmatpush1.bf16.msra.mxu0 %v2551
  %3932 = vmatprep.subr.bf16.mxu0 %v2540
  %3933 = vmatpush1.bf16.msra.mxu0 %v2539
  %3934 = vmatprep.subr.bf16.mxu0 %v2720
  %3935 = vmatpush2.bf16.msra.mxu0 %v2719
  %3936 = vmatprep.subr.bf16.mxu0 %v2708
  %3937 = vmatpush2.bf16.msra.mxu0 %v2707
  %3938 = vmatprep.subr.bf16.mxu0 %v2696
  %3939 = vmatpush2.bf16.msra.mxu0 %v2695
  %3940 = vmatprep.subr.bf16.mxu0 %v2684
  %3941 = vmatpush2.bf16.msra.mxu0 %v2683
  %3942 = vmatprep.subr.bf16.mxu0 %v2672
  %3943 = vmatpush2.bf16.msra.mxu0 %v2671
  %3944 = vmatprep.subr.bf16.mxu0 %v2660
  %3945 = vmatpush2.bf16.msra.mxu0 %v2659
  %3946 = vmatprep.subr.bf16.mxu0 %v2648
  %3947 = vmatpush2.bf16.msra.mxu0 %v2647
  %3948 = vmatprep.subr.bf16.mxu0 %v2636
  %3949 = vmatpush2.bf16.msra.mxu0 %v2635
  %3950 = vmatprep.mubr.bf16.mxu0 %v432
  %3951 = vmatmul.mubr.bf16.gmra.mxu0 %v431
  %v3952 = vpop.f32.mrf.mxu0
  %v3953 = vadd.f32 0.0, %v3952
  %v3954 = vpop.f32.mrf.mxu0
  %v3955 = vadd.f32 0.0, %v3954
  %v3956 = vpop.f32.mrf.mxu0
  %v3957 = vadd.f32 0.0, %v3956
  %v3958 = vpop.f32.mrf.mxu0
  %v3959 = vadd.f32 0.0, %v3958
  %3960 = vmatprep.mubr.bf16.mxu0 %v438
  %3961 = vmatmul.mubr.bf16.gmra.mxu0 %v437
  %v3962 = vpop.f32.mrf.mxu0
  %v3963 = vadd.f32 0.0, %v3962
  %v3964 = vpop.f32.mrf.mxu0
  %v3965 = vadd.f32 0.0, %v3964
  %v3966 = vpop.f32.mrf.mxu0
  %v3967 = vadd.f32 0.0, %v3966
  %v3968 = vpop.f32.mrf.mxu0
  %v3969 = vadd.f32 0.0, %v3968
  %3970 = vmatprep.mubr.bf16.mxu0 %v444
  %3971 = vmatmul.mubr.bf16.gmra.mxu0 %v443
  %v3972 = vpop.f32.mrf.mxu0
  %v3973 = vadd.f32 0.0, %v3972
  %v3974 = vpop.f32.mrf.mxu0
  %v3975 = vadd.f32 0.0, %v3974
  %v3976 = vpop.f32.mrf.mxu0
  %v3977 = vadd.f32 0.0, %v3976
  %v3978 = vpop.f32.mrf.mxu0
  %v3979 = vadd.f32 0.0, %v3978
  %3980 = vmatprep.mubr.bf16.mxu0 %v450
  %3981 = vmatmul.mubr.bf16.gmra.mxu0 %v449
  %v3982 = vpop.f32.mrf.mxu0
  %v3983 = vadd.f32 0.0, %v3982
  %v3984 = vpop.f32.mrf.mxu0
  %v3985 = vadd.f32 0.0, %v3984
  %v3986 = vpop.f32.mrf.mxu0
  %v3987 = vadd.f32 0.0, %v3986
  %v3988 = vpop.f32.mrf.mxu0
  %v3989 = vadd.f32 0.0, %v3988
  %3990 = vmatprep.mubr.bf16.mxu0 %v456
  %3991 = vmatmul.mubr.bf16.gmra.mxu0 %v455
  %v3992 = vpop.f32.mrf.mxu0
  %v3993 = vadd.f32 0.0, %v3992
  %v3994 = vpop.f32.mrf.mxu0
  %v3995 = vadd.f32 0.0, %v3994
  %v3996 = vpop.f32.mrf.mxu0
  %v3997 = vadd.f32 0.0, %v3996
  %v3998 = vpop.f32.mrf.mxu0
  %v3999 = vadd.f32 0.0, %v3998
  %4000 = vmatprep.mubr.bf16.mxu0 %v462
  %4001 = vmatmul.mubr.bf16.gmra.mxu0 %v461
  %v4002 = vpop.f32.mrf.mxu0
  %v4003 = vadd.f32 0.0, %v4002
  %v4004 = vpop.f32.mrf.mxu0
  %v4005 = vadd.f32 0.0, %v4004
  %v4006 = vpop.f32.mrf.mxu0
  %v4007 = vadd.f32 0.0, %v4006
  %v4008 = vpop.f32.mrf.mxu0
  %v4009 = vadd.f32 0.0, %v4008
  %4010 = vmatprep.mubr.bf16.mxu0 %v468
  %4011 = vmatmul.mubr.bf16.gmra.mxu0 %v467
  %v4012 = vpop.f32.mrf.mxu0
  %v4013 = vadd.f32 0.0, %v4012
  %v4014 = vpop.f32.mrf.mxu0
  %v4015 = vadd.f32 0.0, %v4014
  %v4016 = vpop.f32.mrf.mxu0
  %v4017 = vpop.f32.mrf.mxu0
  %4018 = vdwg.mxu0
  %4019 = vmatprep.subr.bf16.mxu0 %v2816
  %4020 = vmatpush1.bf16.msra.mxu0 %v2815
  %4021 = vmatprep.subr.bf16.mxu0 %v2804
  %4022 = vmatpush1.bf16.msra.mxu0 %v2803
  %4023 = vmatprep.subr.bf16.mxu0 %v2792
  %4024 = vmatpush1.bf16.msra.mxu0 %v2791
  %4025 = vmatprep.subr.bf16.mxu0 %v2780
  %4026 = vmatpush1.bf16.msra.mxu0 %v2779
  %4027 = vmatprep.subr.bf16.mxu0 %v2768
  %4028 = vmatpush1.bf16.msra.mxu0 %v2767
  %4029 = vmatprep.subr.bf16.mxu0 %v2756
  %4030 = vmatpush1.bf16.msra.mxu0 %v2755
  %4031 = vmatprep.subr.bf16.mxu0 %v2744
  %4032 = vmatpush1.bf16.msra.mxu0 %v2743
  %4033 = vmatprep.subr.bf16.mxu0 %v2732
  %4034 = vmatpush1.bf16.msra.mxu0 %v2731
  %4035 = vmatprep.subr.bf16.mxu0 %v2912
  %4036 = vmatpush2.bf16.msra.mxu0 %v2911
  %4037 = vmatprep.subr.bf16.mxu0 %v2900
  %4038 = vmatpush2.bf16.msra.mxu0 %v2899
  %4039 = vmatprep.subr.bf16.mxu0 %v2888
  %4040 = vmatpush2.bf16.msra.mxu0 %v2887
  %4041 = vmatprep.subr.bf16.mxu0 %v2876
  %4042 = vmatpush2.bf16.msra.mxu0 %v2875
  %4043 = vmatprep.subr.bf16.mxu0 %v2864
  %4044 = vmatpush2.bf16.msra.mxu0 %v2863
  %4045 = vmatprep.subr.bf16.mxu0 %v2852
  %4046 = vmatpush2.bf16.msra.mxu0 %v2851
  %4047 = vmatprep.subr.bf16.mxu0 %v2840
  %4048 = vmatpush2.bf16.msra.mxu0 %v2839
  %4049 = vmatprep.subr.bf16.mxu0 %v2828
  %4050 = vmatpush2.bf16.msra.mxu0 %v2827
  %4051 = vmatprep.mubr.bf16.mxu0 %v434
  %4052 = vmatmul.mubr.bf16.gmra.mxu0 %v433
  %v4053 = vpop.f32.mrf.mxu0
  %v4054 = vadd.f32 %v3953, %v4053
  %v4055 = vpop.f32.mrf.mxu0
  %v4056 = vadd.f32 %v3955, %v4055
  %v4057 = vpop.f32.mrf.mxu0
  %v4058 = vadd.f32 %v3957, %v4057
  %v4059 = vpop.f32.mrf.mxu0
  %v4060 = vadd.f32 %v3959, %v4059
  %4061 = vmatprep.mubr.bf16.mxu0 %v440
  %4062 = vmatmul.mubr.bf16.gmra.mxu0 %v439
  %v4063 = vpop.f32.mrf.mxu0
  %v4064 = vadd.f32 %v3963, %v4063
  %v4065 = vpop.f32.mrf.mxu0
  %v4066 = vadd.f32 %v3965, %v4065
  %v4067 = vpop.f32.mrf.mxu0
  %v4068 = vadd.f32 %v3967, %v4067
  %v4069 = vpop.f32.mrf.mxu0
  %v4070 = vadd.f32 %v3969, %v4069
  %4071 = vmatprep.mubr.bf16.mxu0 %v446
  %4072 = vmatmul.mubr.bf16.gmra.mxu0 %v445
  %v4073 = vpop.f32.mrf.mxu0
  %v4074 = vadd.f32 %v3973, %v4073
  %v4075 = vpop.f32.mrf.mxu0
  %v4076 = vadd.f32 %v3975, %v4075
  %v4077 = vpop.f32.mrf.mxu0
  %v4078 = vadd.f32 %v3977, %v4077
  %v4079 = vpop.f32.mrf.mxu0
  %v4080 = vadd.f32 %v3979, %v4079
  %4081 = vmatprep.mubr.bf16.mxu0 %v452
  %4082 = vmatmul.mubr.bf16.gmra.mxu0 %v451
  %v4083 = vpop.f32.mrf.mxu0
  %v4084 = vadd.f32 %v3983, %v4083
  %v4085 = vpop.f32.mrf.mxu0
  %v4086 = vadd.f32 %v3985, %v4085
  %v4087 = vpop.f32.mrf.mxu0
  %v4088 = vadd.f32 %v3987, %v4087
  %v4089 = vpop.f32.mrf.mxu0
  %v4090 = vadd.f32 %v3989, %v4089
  %4091 = vmatprep.mubr.bf16.mxu0 %v458
  %4092 = vmatmul.mubr.bf16.gmra.mxu0 %v457
  %v4093 = vpop.f32.mrf.mxu0
  %v4094 = vadd.f32 %v3993, %v4093
  %v4095 = vpop.f32.mrf.mxu0
  %v4096 = vadd.f32 %v3995, %v4095
  %v4097 = vpop.f32.mrf.mxu0
  %v4098 = vadd.f32 %v3997, %v4097
  %v4099 = vpop.f32.mrf.mxu0
  %v4100 = vadd.f32 %v3999, %v4099
  %4101 = vmatprep.mubr.bf16.mxu0 %v464
  %4102 = vmatmul.mubr.bf16.gmra.mxu0 %v463
  %v4103 = vpop.f32.mrf.mxu0
  %v4104 = vadd.f32 %v4003, %v4103
  %v4105 = vpop.f32.mrf.mxu0
  %v4106 = vadd.f32 %v4005, %v4105
  %v4107 = vpop.f32.mrf.mxu0
  %v4108 = vadd.f32 %v4007, %v4107
  %v4109 = vpop.f32.mrf.mxu0
  %v4110 = vadd.f32 %v4009, %v4109
  %4111 = vmatprep.mubr.bf16.mxu0 %v470
  %4112 = vmatmul.mubr.bf16.gmra.mxu0 %v469
  %v4113 = vpop.f32.mrf.mxu0
  %v4114 = vadd.f32 %v4013, %v4113
  %v4115 = vpop.f32.mrf.mxu0
  %v4116 = vadd.f32 %v4015, %v4115
  %v4117 = vpop.f32.mrf.mxu0
  %v4118 = vpop.f32.mrf.mxu0
  %4119 = vdwg.mxu0
  %4120 = vmatprep.subr.bf16.mxu0 %v3008
  %4121 = vmatpush1.bf16.msra.mxu0 %v3007
  %4122 = vmatprep.subr.bf16.mxu0 %v2996
  %4123 = vmatpush1.bf16.msra.mxu0 %v2995
  %4124 = vmatprep.subr.bf16.mxu0 %v2984
  %4125 = vmatpush1.bf16.msra.mxu0 %v2983
  %4126 = vmatprep.subr.bf16.mxu0 %v2972
  %4127 = vmatpush1.bf16.msra.mxu0 %v2971
  %4128 = vmatprep.subr.bf16.mxu0 %v2960
  %4129 = vmatpush1.bf16.msra.mxu0 %v2959
  %4130 = vmatprep.subr.bf16.mxu0 %v2948
  %4131 = vmatpush1.bf16.msra.mxu0 %v2947
  %4132 = vmatprep.subr.bf16.mxu0 %v2936
  %4133 = vmatpush1.bf16.msra.mxu0 %v2935
  %4134 = vmatprep.subr.bf16.mxu0 %v2924
  %4135 = vmatpush1.bf16.msra.mxu0 %v2923
  %4136 = vmatprep.subr.bf16.mxu0 0
  %4137 = vmatpush2.bf16.msra.mxu0 0
  %4138 = vmatprep.subr.bf16.mxu0 0
  %4139 = vmatpush2.bf16.msra.mxu0 0
  %4140 = vmatprep.subr.bf16.mxu0 0
  %4141 = vmatpush2.bf16.msra.mxu0 0
  %4142 = vmatprep.subr.bf16.mxu0 0
  %4143 = vmatpush2.bf16.msra.mxu0 0
  %4144 = vmatprep.subr.bf16.mxu0 0
  %4145 = vmatpush2.bf16.msra.mxu0 0
  %4146 = vmatprep.subr.bf16.mxu0 %v3589
  %4147 = vmatpush2.bf16.msra.mxu0 %v3586
  %4148 = vmatprep.subr.bf16.mxu0 %v3032
  %4149 = vmatpush2.bf16.msra.mxu0 %v3031
  %4150 = vmatprep.subr.bf16.mxu0 %v3020
  %4151 = vmatpush2.bf16.msra.mxu0 %v3019
  %4152 = vmatprep.mubr.bf16.mxu0 %v3559
  %4153 = vmatmul.mubr.bf16.gmra.mxu0 %v435
  %v4154 = vpop.f32.mrf.mxu0
  %v4155 = vadd.f32 %v4054, %v4154
  %v4156 = vpop.f32.mrf.mxu0
  %v4157 = vadd.f32 %v4056, %v4156
  %v4158 = vpop.f32.mrf.mxu0
  %v4159 = vadd.f32 %v4058, %v4158
  %v4160 = vpop.f32.mrf.mxu0
  %v4161 = vadd.f32 %v4060, %v4160
  %4162 = vmatprep.mubr.bf16.mxu0 %v3562
  %4163 = vmatmul.mubr.bf16.gmra.mxu0 %v441
  %v4164 = vpop.f32.mrf.mxu0
  %v4165 = vadd.f32 %v4064, %v4164
  %v4166 = vpop.f32.mrf.mxu0
  %v4167 = vadd.f32 %v4066, %v4166
  %v4168 = vpop.f32.mrf.mxu0
  %v4169 = vadd.f32 %v4068, %v4168
  %v4170 = vpop.f32.mrf.mxu0
  %v4171 = vadd.f32 %v4070, %v4170
  %4172 = vmatprep.mubr.bf16.mxu0 %v3565
  %4173 = vmatmul.mubr.bf16.gmra.mxu0 %v447
  %v4174 = vpop.f32.mrf.mxu0
  %v4175 = vadd.f32 %v4074, %v4174
  %v4176 = vpop.f32.mrf.mxu0
  %v4177 = vadd.f32 %v4076, %v4176
  %v4178 = vpop.f32.mrf.mxu0
  %v4179 = vadd.f32 %v4078, %v4178
  %v4180 = vpop.f32.mrf.mxu0
  %v4181 = vadd.f32 %v4080, %v4180
  %4182 = vmatprep.mubr.bf16.mxu0 %v3568
  %4183 = vmatmul.mubr.bf16.gmra.mxu0 %v453
  %v4184 = vpop.f32.mrf.mxu0
  %v4185 = vadd.f32 %v4084, %v4184
  %v4186 = vpop.f32.mrf.mxu0
  %v4187 = vadd.f32 %v4086, %v4186
  %v4188 = vpop.f32.mrf.mxu0
  %v4189 = vadd.f32 %v4088, %v4188
  %v4190 = vpop.f32.mrf.mxu0
  %v4191 = vadd.f32 %v4090, %v4190
  %4192 = vmatprep.mubr.bf16.mxu0 %v3571
  %4193 = vmatmul.mubr.bf16.gmra.mxu0 %v459
  %v4194 = vpop.f32.mrf.mxu0
  %v4195 = vadd.f32 %v4094, %v4194
  %v4196 = vpop.f32.mrf.mxu0
  %v4197 = vadd.f32 %v4096, %v4196
  %v4198 = vpop.f32.mrf.mxu0
  %v4199 = vadd.f32 %v4098, %v4198
  %v4200 = vpop.f32.mrf.mxu0
  %v4201 = vadd.f32 %v4100, %v4200
  %4202 = vmatprep.mubr.bf16.mxu0 %v3574
  %4203 = vmatmul.mubr.bf16.gmra.mxu0 %v465
  %v4204 = vpop.f32.mrf.mxu0
  %v4205 = vadd.f32 %v4104, %v4204
  %v4206 = vpop.f32.mrf.mxu0
  %v4207 = vadd.f32 %v4106, %v4206
  %v4208 = vpop.f32.mrf.mxu0
  %v4209 = vadd.f32 %v4108, %v4208
  %v4210 = vpop.f32.mrf.mxu0
  %v4211 = vadd.f32 %v4110, %v4210
  %4212 = vmatprep.mubr.bf16.mxu0 %v3577
  %4213 = vmatmul.mubr.bf16.gmra.mxu0 %v471
  %v4214 = vpop.f32.mrf.mxu0
  %v4215 = vadd.f32 %v4114, %v4214
  %v4216 = vpop.f32.mrf.mxu0
  %v4217 = vadd.f32 %v4116, %v4216
  %v4218 = vpop.f32.mrf.mxu0
  %v4219 = vpop.f32.mrf.mxu0
  %4220 = vdwg.mxu0
  %4221 = vmatprep.subr.bf16.mxu0 %v2626
  %4222 = vmatpush1.bf16.msra.mxu0 %v2625
  %4223 = vmatprep.subr.bf16.mxu0 %v2614
  %4224 = vmatpush1.bf16.msra.mxu0 %v2613
  %4225 = vmatprep.subr.bf16.mxu0 %v2602
  %4226 = vmatpush1.bf16.msra.mxu0 %v2601
  %4227 = vmatprep.subr.bf16.mxu0 %v2590
  %4228 = vmatpush1.bf16.msra.mxu0 %v2589
  %4229 = vmatprep.subr.bf16.mxu0 %v2578
  %4230 = vmatpush1.bf16.msra.mxu0 %v2577
  %4231 = vmatprep.subr.bf16.mxu0 %v2566
  %4232 = vmatpush1.bf16.msra.mxu0 %v2565
  %4233 = vmatprep.subr.bf16.mxu0 %v2554
  %4234 = vmatpush1.bf16.msra.mxu0 %v2553
  %4235 = vmatprep.subr.bf16.mxu0 %v2542
  %4236 = vmatpush1.bf16.msra.mxu0 %v2541
  %4237 = vmatprep.subr.bf16.mxu0 %v2722
  %4238 = vmatpush2.bf16.msra.mxu0 %v2721
  %4239 = vmatprep.subr.bf16.mxu0 %v2710
  %4240 = vmatpush2.bf16.msra.mxu0 %v2709
  %4241 = vmatprep.subr.bf16.mxu0 %v2698
  %4242 = vmatpush2.bf16.msra.mxu0 %v2697
  %4243 = vmatprep.subr.bf16.mxu0 %v2686
  %4244 = vmatpush2.bf16.msra.mxu0 %v2685
  %4245 = vmatprep.subr.bf16.mxu0 %v2674
  %4246 = vmatpush2.bf16.msra.mxu0 %v2673
  %4247 = vmatprep.subr.bf16.mxu0 %v2662
  %4248 = vmatpush2.bf16.msra.mxu0 %v2661
  %4249 = vmatprep.subr.bf16.mxu0 %v2650
  %4250 = vmatpush2.bf16.msra.mxu0 %v2649
  %4251 = vmatprep.subr.bf16.mxu0 %v2638
  %4252 = vmatpush2.bf16.msra.mxu0 %v2637
  %4253 = vmatprep.mubr.bf16.mxu0 %v432
  %4254 = vmatmul.mubr.bf16.gmra.mxu0 %v431
  %v4255 = vpop.f32.mrf.mxu0
  %v4256 = vadd.f32 0.0, %v4255
  %v4257 = vpop.f32.mrf.mxu0
  %v4258 = vadd.f32 0.0, %v4257
  %v4259 = vpop.f32.mrf.mxu0
  %v4260 = vadd.f32 0.0, %v4259
  %v4261 = vpop.f32.mrf.mxu0
  %v4262 = vadd.f32 0.0, %v4261
  %4263 = vmatprep.mubr.bf16.mxu0 %v438
  %4264 = vmatmul.mubr.bf16.gmra.mxu0 %v437
  %v4265 = vpop.f32.mrf.mxu0
  %v4266 = vadd.f32 0.0, %v4265
  %v4267 = vpop.f32.mrf.mxu0
  %v4268 = vadd.f32 0.0, %v4267
  %v4269 = vpop.f32.mrf.mxu0
  %v4270 = vadd.f32 0.0, %v4269
  %v4271 = vpop.f32.mrf.mxu0
  %v4272 = vadd.f32 0.0, %v4271
  %4273 = vmatprep.mubr.bf16.mxu0 %v444
  %4274 = vmatmul.mubr.bf16.gmra.mxu0 %v443
  %v4275 = vpop.f32.mrf.mxu0
  %v4276 = vadd.f32 0.0, %v4275
  %v4277 = vpop.f32.mrf.mxu0
  %v4278 = vadd.f32 0.0, %v4277
  %v4279 = vpop.f32.mrf.mxu0
  %v4280 = vadd.f32 0.0, %v4279
  %v4281 = vpop.f32.mrf.mxu0
  %v4282 = vadd.f32 0.0, %v4281
  %4283 = vmatprep.mubr.bf16.mxu0 %v450
  %4284 = vmatmul.mubr.bf16.gmra.mxu0 %v449
  %v4285 = vpop.f32.mrf.mxu0
  %v4286 = vadd.f32 0.0, %v4285
  %v4287 = vpop.f32.mrf.mxu0
  %v4288 = vadd.f32 0.0, %v4287
  %v4289 = vpop.f32.mrf.mxu0
  %v4290 = vadd.f32 0.0, %v4289
  %v4291 = vpop.f32.mrf.mxu0
  %v4292 = vadd.f32 0.0, %v4291
  %4293 = vmatprep.mubr.bf16.mxu0 %v456
  %4294 = vmatmul.mubr.bf16.gmra.mxu0 %v455
  %v4295 = vpop.f32.mrf.mxu0
  %v4296 = vadd.f32 0.0, %v4295
  %v4297 = vpop.f32.mrf.mxu0
  %v4298 = vadd.f32 0.0, %v4297
  %v4299 = vpop.f32.mrf.mxu0
  %v4300 = vadd.f32 0.0, %v4299
  %v4301 = vpop.f32.mrf.mxu0
  %v4302 = vadd.f32 0.0, %v4301
  %4303 = vmatprep.mubr.bf16.mxu0 %v462
  %4304 = vmatmul.mubr.bf16.gmra.mxu0 %v461
  %v4305 = vpop.f32.mrf.mxu0
  %v4306 = vadd.f32 0.0, %v4305
  %v4307 = vpop.f32.mrf.mxu0
  %v4308 = vadd.f32 0.0, %v4307
  %v4309 = vpop.f32.mrf.mxu0
  %v4310 = vadd.f32 0.0, %v4309
  %v4311 = vpop.f32.mrf.mxu0
  %v4312 = vadd.f32 0.0, %v4311
  %4313 = vmatprep.mubr.bf16.mxu0 %v468
  %4314 = vmatmul.mubr.bf16.gmra.mxu0 %v467
  %v4315 = vpop.f32.mrf.mxu0
  %v4316 = vadd.f32 0.0, %v4315
  %v4317 = vpop.f32.mrf.mxu0
  %v4318 = vadd.f32 0.0, %v4317
  %v4319 = vpop.f32.mrf.mxu0
  %v4320 = vpop.f32.mrf.mxu0
  %4321 = vdwg.mxu0
  %4322 = vmatprep.subr.bf16.mxu0 %v2818
  %4323 = vmatpush1.bf16.msra.mxu0 %v2817
  %4324 = vmatprep.subr.bf16.mxu0 %v2806
  %4325 = vmatpush1.bf16.msra.mxu0 %v2805
  %4326 = vmatprep.subr.bf16.mxu0 %v2794
  %4327 = vmatpush1.bf16.msra.mxu0 %v2793
  %4328 = vmatprep.subr.bf16.mxu0 %v2782
  %4329 = vmatpush1.bf16.msra.mxu0 %v2781
  %4330 = vmatprep.subr.bf16.mxu0 %v2770
  %4331 = vmatpush1.bf16.msra.mxu0 %v2769
  %4332 = vmatprep.subr.bf16.mxu0 %v2758
  %4333 = vmatpush1.bf16.msra.mxu0 %v2757
  %4334 = vmatprep.subr.bf16.mxu0 %v2746
  %4335 = vmatpush1.bf16.msra.mxu0 %v2745
  %4336 = vmatprep.subr.bf16.mxu0 %v2734
  %4337 = vmatpush1.bf16.msra.mxu0 %v2733
  %4338 = vmatprep.subr.bf16.mxu0 %v2914
  %4339 = vmatpush2.bf16.msra.mxu0 %v2913
  %4340 = vmatprep.subr.bf16.mxu0 %v2902
  %4341 = vmatpush2.bf16.msra.mxu0 %v2901
  %4342 = vmatprep.subr.bf16.mxu0 %v2890
  %4343 = vmatpush2.bf16.msra.mxu0 %v2889
  %4344 = vmatprep.subr.bf16.mxu0 %v2878
  %4345 = vmatpush2.bf16.msra.mxu0 %v2877
  %4346 = vmatprep.subr.bf16.mxu0 %v2866
  %4347 = vmatpush2.bf16.msra.mxu0 %v2865
  %4348 = vmatprep.subr.bf16.mxu0 %v2854
  %4349 = vmatpush2.bf16.msra.mxu0 %v2853
  %4350 = vmatprep.subr.bf16.mxu0 %v2842
  %4351 = vmatpush2.bf16.msra.mxu0 %v2841
  %4352 = vmatprep.subr.bf16.mxu0 %v2830
  %4353 = vmatpush2.bf16.msra.mxu0 %v2829
  %4354 = vmatprep.mubr.bf16.mxu0 %v434
  %4355 = vmatmul.mubr.bf16.gmra.mxu0 %v433
  %v4356 = vpop.f32.mrf.mxu0
  %v4357 = vadd.f32 %v4256, %v4356
  %v4358 = vpop.f32.mrf.mxu0
  %v4359 = vadd.f32 %v4258, %v4358
  %v4360 = vpop.f32.mrf.mxu0
  %v4361 = vadd.f32 %v4260, %v4360
  %v4362 = vpop.f32.mrf.mxu0
  %v4363 = vadd.f32 %v4262, %v4362
  %4364 = vmatprep.mubr.bf16.mxu0 %v440
  %4365 = vmatmul.mubr.bf16.gmra.mxu0 %v439
  %v4366 = vpop.f32.mrf.mxu0
  %v4367 = vadd.f32 %v4266, %v4366
  %v4368 = vpop.f32.mrf.mxu0
  %v4369 = vadd.f32 %v4268, %v4368
  %v4370 = vpop.f32.mrf.mxu0
  %v4371 = vadd.f32 %v4270, %v4370
  %v4372 = vpop.f32.mrf.mxu0
  %v4373 = vadd.f32 %v4272, %v4372
  %4374 = vmatprep.mubr.bf16.mxu0 %v446
  %4375 = vmatmul.mubr.bf16.gmra.mxu0 %v445
  %v4376 = vpop.f32.mrf.mxu0
  %v4377 = vadd.f32 %v4276, %v4376
  %v4378 = vpop.f32.mrf.mxu0
  %v4379 = vadd.f32 %v4278, %v4378
  %v4380 = vpop.f32.mrf.mxu0
  %v4381 = vadd.f32 %v4280, %v4380
  %v4382 = vpop.f32.mrf.mxu0
  %v4383 = vadd.f32 %v4282, %v4382
  %4384 = vmatprep.mubr.bf16.mxu0 %v452
  %4385 = vmatmul.mubr.bf16.gmra.mxu0 %v451
  %v4386 = vpop.f32.mrf.mxu0
  %v4387 = vadd.f32 %v4286, %v4386
  %v4388 = vpop.f32.mrf.mxu0
  %v4389 = vadd.f32 %v4288, %v4388
  %v4390 = vpop.f32.mrf.mxu0
  %v4391 = vadd.f32 %v4290, %v4390
  %v4392 = vpop.f32.mrf.mxu0
  %v4393 = vadd.f32 %v4292, %v4392
  %4394 = vmatprep.mubr.bf16.mxu0 %v458
  %4395 = vmatmul.mubr.bf16.gmra.mxu0 %v457
  %v4396 = vpop.f32.mrf.mxu0
  %v4397 = vadd.f32 %v4296, %v4396
  %v4398 = vpop.f32.mrf.mxu0
  %v4399 = vadd.f32 %v4298, %v4398
  %v4400 = vpop.f32.mrf.mxu0
  %v4401 = vadd.f32 %v4300, %v4400
  %v4402 = vpop.f32.mrf.mxu0
  %v4403 = vadd.f32 %v4302, %v4402
  %4404 = vmatprep.mubr.bf16.mxu0 %v464
  %4405 = vmatmul.mubr.bf16.gmra.mxu0 %v463
  %v4406 = vpop.f32.mrf.mxu0
  %v4407 = vadd.f32 %v4306, %v4406
  %v4408 = vpop.f32.mrf.mxu0
  %v4409 = vadd.f32 %v4308, %v4408
  %v4410 = vpop.f32.mrf.mxu0
  %v4411 = vadd.f32 %v4310, %v4410
  %v4412 = vpop.f32.mrf.mxu0
  %v4413 = vadd.f32 %v4312, %v4412
  %4414 = vmatprep.mubr.bf16.mxu0 %v470
  %4415 = vmatmul.mubr.bf16.gmra.mxu0 %v469
  %v4416 = vpop.f32.mrf.mxu0
  %v4417 = vadd.f32 %v4316, %v4416
  %v4418 = vpop.f32.mrf.mxu0
  %v4419 = vadd.f32 %v4318, %v4418
  %v4420 = vpop.f32.mrf.mxu0
  %v4421 = vpop.f32.mrf.mxu0
  %4422 = vdwg.mxu0
  %4423 = vmatprep.subr.bf16.mxu0 %v3010
  %4424 = vmatpush1.bf16.msra.mxu0 %v3009
  %4425 = vmatprep.subr.bf16.mxu0 %v2998
  %4426 = vmatpush1.bf16.msra.mxu0 %v2997
  %4427 = vmatprep.subr.bf16.mxu0 %v2986
  %4428 = vmatpush1.bf16.msra.mxu0 %v2985
  %4429 = vmatprep.subr.bf16.mxu0 %v2974
  %4430 = vmatpush1.bf16.msra.mxu0 %v2973
  %4431 = vmatprep.subr.bf16.mxu0 %v2962
  %4432 = vmatpush1.bf16.msra.mxu0 %v2961
  %4433 = vmatprep.subr.bf16.mxu0 %v2950
  %4434 = vmatpush1.bf16.msra.mxu0 %v2949
  %4435 = vmatprep.subr.bf16.mxu0 %v2938
  %4436 = vmatpush1.bf16.msra.mxu0 %v2937
  %4437 = vmatprep.subr.bf16.mxu0 %v2926
  %4438 = vmatpush1.bf16.msra.mxu0 %v2925
  %4439 = vmatprep.subr.bf16.mxu0 0
  %4440 = vmatpush2.bf16.msra.mxu0 0
  %4441 = vmatprep.subr.bf16.mxu0 0
  %4442 = vmatpush2.bf16.msra.mxu0 0
  %4443 = vmatprep.subr.bf16.mxu0 0
  %4444 = vmatpush2.bf16.msra.mxu0 0
  %4445 = vmatprep.subr.bf16.mxu0 0
  %4446 = vmatpush2.bf16.msra.mxu0 0
  %4447 = vmatprep.subr.bf16.mxu0 0
  %4448 = vmatpush2.bf16.msra.mxu0 0
  %4449 = vmatprep.subr.bf16.mxu0 %v3595
  %4450 = vmatpush2.bf16.msra.mxu0 %v3592
  %4451 = vmatprep.subr.bf16.mxu0 %v3034
  %4452 = vmatpush2.bf16.msra.mxu0 %v3033
  %4453 = vmatprep.subr.bf16.mxu0 %v3022
  %4454 = vmatpush2.bf16.msra.mxu0 %v3021
  %4455 = vmatprep.mubr.bf16.mxu0 %v3559
  %4456 = vmatmul.mubr.bf16.gmra.mxu0 %v435
  %v4457 = vpop.f32.mrf.mxu0
  %v4458 = vadd.f32 %v4357, %v4457
  %v4459 = vpop.f32.mrf.mxu0
  %v4460 = vadd.f32 %v4359, %v4459
  %v4461 = vpop.f32.mrf.mxu0
  %v4462 = vadd.f32 %v4361, %v4461
  %v4463 = vpop.f32.mrf.mxu0
  %v4464 = vadd.f32 %v4363, %v4463
  %4465 = vmatprep.mubr.bf16.mxu0 %v3562
  %4466 = vmatmul.mubr.bf16.gmra.mxu0 %v441
  %v4467 = vpop.f32.mrf.mxu0
  %v4468 = vadd.f32 %v4367, %v4467
  %v4469 = vpop.f32.mrf.mxu0
  %v4470 = vadd.f32 %v4369, %v4469
  %v4471 = vpop.f32.mrf.mxu0
  %v4472 = vadd.f32 %v4371, %v4471
  %v4473 = vpop.f32.mrf.mxu0
  %v4474 = vadd.f32 %v4373, %v4473
  %4475 = vmatprep.mubr.bf16.mxu0 %v3565
  %4476 = vmatmul.mubr.bf16.gmra.mxu0 %v447
  %v4477 = vpop.f32.mrf.mxu0
  %v4478 = vadd.f32 %v4377, %v4477
  %v4479 = vpop.f32.mrf.mxu0
  %v4480 = vadd.f32 %v4379, %v4479
  %v4481 = vpop.f32.mrf.mxu0
  %v4482 = vadd.f32 %v4381, %v4481
  %v4483 = vpop.f32.mrf.mxu0
  %v4484 = vadd.f32 %v4383, %v4483
  %4485 = vmatprep.mubr.bf16.mxu0 %v3568
  %4486 = vmatmul.mubr.bf16.gmra.mxu0 %v453
  %v4487 = vpop.f32.mrf.mxu0
  %v4488 = vadd.f32 %v4387, %v4487
  %v4489 = vpop.f32.mrf.mxu0
  %v4490 = vadd.f32 %v4389, %v4489
  %v4491 = vpop.f32.mrf.mxu0
  %v4492 = vadd.f32 %v4391, %v4491
  %v4493 = vpop.f32.mrf.mxu0
  %v4494 = vadd.f32 %v4393, %v4493
  %4495 = vmatprep.mubr.bf16.mxu0 %v3571
  %4496 = vmatmul.mubr.bf16.gmra.mxu0 %v459
  %v4497 = vpop.f32.mrf.mxu0
  %v4498 = vadd.f32 %v4397, %v4497
  %v4499 = vpop.f32.mrf.mxu0
  %v4500 = vadd.f32 %v4399, %v4499
  %v4501 = vpop.f32.mrf.mxu0
  %v4502 = vadd.f32 %v4401, %v4501
  %v4503 = vpop.f32.mrf.mxu0
  %v4504 = vadd.f32 %v4403, %v4503
  %4505 = vmatprep.mubr.bf16.mxu0 %v3574
  %4506 = vmatmul.mubr.bf16.gmra.mxu0 %v465
  %v4507 = vpop.f32.mrf.mxu0
  %v4508 = vadd.f32 %v4407, %v4507
  %v4509 = vpop.f32.mrf.mxu0
  %v4510 = vadd.f32 %v4409, %v4509
  %v4511 = vpop.f32.mrf.mxu0
  %v4512 = vadd.f32 %v4411, %v4511
  %v4513 = vpop.f32.mrf.mxu0
  %v4514 = vadd.f32 %v4413, %v4513
  %4515 = vmatprep.mubr.bf16.mxu0 %v3577
  %4516 = vmatmul.mubr.bf16.gmra.mxu0 %v471
  %v4517 = vpop.f32.mrf.mxu0
  %v4518 = vadd.f32 %v4417, %v4517
  %v4519 = vpop.f32.mrf.mxu0
  %v4520 = vadd.f32 %v4419, %v4519
  %v4521 = vpop.f32.mrf.mxu0
  %v4522 = vpop.f32.mrf.mxu0
  %4523 = vdwg.mxu0
  %4524 = vmatprep.subr.bf16.mxu0 %v2628
  %4525 = vmatpush1.bf16.msra.mxu0 %v2627
  %4526 = vmatprep.subr.bf16.mxu0 %v2616
  %4527 = vmatpush1.bf16.msra.mxu0 %v2615
  %4528 = vmatprep.subr.bf16.mxu0 %v2604
  %4529 = vmatpush1.bf16.msra.mxu0 %v2603
  %4530 = vmatprep.subr.bf16.mxu0 %v2592
  %4531 = vmatpush1.bf16.msra.mxu0 %v2591
  %4532 = vmatprep.subr.bf16.mxu0 %v2580
  %4533 = vmatpush1.bf16.msra.mxu0 %v2579
  %4534 = vmatprep.subr.bf16.mxu0 %v2568
  %4535 = vmatpush1.bf16.msra.mxu0 %v2567
  %4536 = vmatprep.subr.bf16.mxu0 %v2556
  %4537 = vmatpush1.bf16.msra.mxu0 %v2555
  %4538 = vmatprep.subr.bf16.mxu0 %v2544
  %4539 = vmatpush1.bf16.msra.mxu0 %v2543
  %4540 = vmatprep.subr.bf16.mxu0 %v2724
  %4541 = vmatpush2.bf16.msra.mxu0 %v2723
  %4542 = vmatprep.subr.bf16.mxu0 %v2712
  %4543 = vmatpush2.bf16.msra.mxu0 %v2711
  %4544 = vmatprep.subr.bf16.mxu0 %v2700
  %4545 = vmatpush2.bf16.msra.mxu0 %v2699
  %4546 = vmatprep.subr.bf16.mxu0 %v2688
  %4547 = vmatpush2.bf16.msra.mxu0 %v2687
  %4548 = vmatprep.subr.bf16.mxu0 %v2676
  %4549 = vmatpush2.bf16.msra.mxu0 %v2675
  %4550 = vmatprep.subr.bf16.mxu0 %v2664
  %4551 = vmatpush2.bf16.msra.mxu0 %v2663
  %4552 = vmatprep.subr.bf16.mxu0 %v2652
  %4553 = vmatpush2.bf16.msra.mxu0 %v2651
  %4554 = vmatprep.subr.bf16.mxu0 %v2640
  %4555 = vmatpush2.bf16.msra.mxu0 %v2639
  %4556 = vmatprep.mubr.bf16.mxu0 %v432
  %4557 = vmatmul.mubr.bf16.gmra.mxu0 %v431
  %v4558 = vpop.f32.mrf.mxu0
  %v4559 = vadd.f32 0.0, %v4558
  %v4560 = vpop.f32.mrf.mxu0
  %v4561 = vadd.f32 0.0, %v4560
  %v4562 = vpop.f32.mrf.mxu0
  %v4563 = vadd.f32 0.0, %v4562
  %v4564 = vpop.f32.mrf.mxu0
  %v4565 = vadd.f32 0.0, %v4564
  %4566 = vmatprep.mubr.bf16.mxu0 %v438
  %4567 = vmatmul.mubr.bf16.gmra.mxu0 %v437
  %v4568 = vpop.f32.mrf.mxu0
  %v4569 = vadd.f32 0.0, %v4568
  %v4570 = vpop.f32.mrf.mxu0
  %v4571 = vadd.f32 0.0, %v4570
  %v4572 = vpop.f32.mrf.mxu0
  %v4573 = vadd.f32 0.0, %v4572
  %v4574 = vpop.f32.mrf.mxu0
  %v4575 = vadd.f32 0.0, %v4574
  %4576 = vmatprep.mubr.bf16.mxu0 %v444
  %4577 = vmatmul.mubr.bf16.gmra.mxu0 %v443
  %v4578 = vpop.f32.mrf.mxu0
  %v4579 = vadd.f32 0.0, %v4578
  %v4580 = vpop.f32.mrf.mxu0
  %v4581 = vadd.f32 0.0, %v4580
  %v4582 = vpop.f32.mrf.mxu0
  %v4583 = vadd.f32 0.0, %v4582
  %v4584 = vpop.f32.mrf.mxu0
  %v4585 = vadd.f32 0.0, %v4584
  %4586 = vmatprep.mubr.bf16.mxu0 %v450
  %4587 = vmatmul.mubr.bf16.gmra.mxu0 %v449
  %v4588 = vpop.f32.mrf.mxu0
  %v4589 = vadd.f32 0.0, %v4588
  %v4590 = vpop.f32.mrf.mxu0
  %v4591 = vadd.f32 0.0, %v4590
  %v4592 = vpop.f32.mrf.mxu0
  %v4593 = vadd.f32 0.0, %v4592
  %v4594 = vpop.f32.mrf.mxu0
  %v4595 = vadd.f32 0.0, %v4594
  %4596 = vmatprep.mubr.bf16.mxu0 %v456
  %4597 = vmatmul.mubr.bf16.gmra.mxu0 %v455
  %v4598 = vpop.f32.mrf.mxu0
  %v4599 = vadd.f32 0.0, %v4598
  %v4600 = vpop.f32.mrf.mxu0
  %v4601 = vadd.f32 0.0, %v4600
  %v4602 = vpop.f32.mrf.mxu0
  %v4603 = vadd.f32 0.0, %v4602
  %v4604 = vpop.f32.mrf.mxu0
  %v4605 = vadd.f32 0.0, %v4604
  %4606 = vmatprep.mubr.bf16.mxu0 %v462
  %4607 = vmatmul.mubr.bf16.gmra.mxu0 %v461
  %v4608 = vpop.f32.mrf.mxu0
  %v4609 = vadd.f32 0.0, %v4608
  %v4610 = vpop.f32.mrf.mxu0
  %v4611 = vadd.f32 0.0, %v4610
  %v4612 = vpop.f32.mrf.mxu0
  %v4613 = vadd.f32 0.0, %v4612
  %v4614 = vpop.f32.mrf.mxu0
  %v4615 = vadd.f32 0.0, %v4614
  %4616 = vmatprep.mubr.bf16.mxu0 %v468
  %4617 = vmatmul.mubr.bf16.gmra.mxu0 %v467
  %v4618 = vpop.f32.mrf.mxu0
  %v4619 = vadd.f32 0.0, %v4618
  %v4620 = vpop.f32.mrf.mxu0
  %v4621 = vadd.f32 0.0, %v4620
  %v4622 = vpop.f32.mrf.mxu0
  %v4623 = vpop.f32.mrf.mxu0
  %4624 = vdwg.mxu0
  %4625 = vmatprep.subr.bf16.mxu0 %v2820
  %4626 = vmatpush1.bf16.msra.mxu0 %v2819
  %4627 = vmatprep.subr.bf16.mxu0 %v2808
  %4628 = vmatpush1.bf16.msra.mxu0 %v2807
  %4629 = vmatprep.subr.bf16.mxu0 %v2796
  %4630 = vmatpush1.bf16.msra.mxu0 %v2795
  %4631 = vmatprep.subr.bf16.mxu0 %v2784
  %4632 = vmatpush1.bf16.msra.mxu0 %v2783
  %4633 = vmatprep.subr.bf16.mxu0 %v2772
  %4634 = vmatpush1.bf16.msra.mxu0 %v2771
  %4635 = vmatprep.subr.bf16.mxu0 %v2760
  %4636 = vmatpush1.bf16.msra.mxu0 %v2759
  %4637 = vmatprep.subr.bf16.mxu0 %v2748
  %4638 = vmatpush1.bf16.msra.mxu0 %v2747
  %4639 = vmatprep.subr.bf16.mxu0 %v2736
  %4640 = vmatpush1.bf16.msra.mxu0 %v2735
  %4641 = vmatprep.subr.bf16.mxu0 %v2916
  %4642 = vmatpush2.bf16.msra.mxu0 %v2915
  %4643 = vmatprep.subr.bf16.mxu0 %v2904
  %4644 = vmatpush2.bf16.msra.mxu0 %v2903
  %4645 = vmatprep.subr.bf16.mxu0 %v2892
  %4646 = vmatpush2.bf16.msra.mxu0 %v2891
  %4647 = vmatprep.subr.bf16.mxu0 %v2880
  %4648 = vmatpush2.bf16.msra.mxu0 %v2879
  %4649 = vmatprep.subr.bf16.mxu0 %v2868
  %4650 = vmatpush2.bf16.msra.mxu0 %v2867
  %4651 = vmatprep.subr.bf16.mxu0 %v2856
  %4652 = vmatpush2.bf16.msra.mxu0 %v2855
  %4653 = vmatprep.subr.bf16.mxu0 %v2844
  %4654 = vmatpush2.bf16.msra.mxu0 %v2843
  %4655 = vmatprep.subr.bf16.mxu0 %v2832
  %4656 = vmatpush2.bf16.msra.mxu0 %v2831
  %4657 = vmatprep.mubr.bf16.mxu0 %v434
  %4658 = vmatmul.mubr.bf16.gmra.mxu0 %v433
  %v4659 = vpop.f32.mrf.mxu0
  %v4660 = vadd.f32 %v4559, %v4659
  %v4661 = vpop.f32.mrf.mxu0
  %v4662 = vadd.f32 %v4561, %v4661
  %v4663 = vpop.f32.mrf.mxu0
  %v4664 = vadd.f32 %v4563, %v4663
  %v4665 = vpop.f32.mrf.mxu0
  %v4666 = vadd.f32 %v4565, %v4665
  %4667 = vmatprep.mubr.bf16.mxu0 %v440
  %4668 = vmatmul.mubr.bf16.gmra.mxu0 %v439
  %v4669 = vpop.f32.mrf.mxu0
  %v4670 = vadd.f32 %v4569, %v4669
  %v4671 = vpop.f32.mrf.mxu0
  %v4672 = vadd.f32 %v4571, %v4671
  %v4673 = vpop.f32.mrf.mxu0
  %v4674 = vadd.f32 %v4573, %v4673
  %v4675 = vpop.f32.mrf.mxu0
  %v4676 = vadd.f32 %v4575, %v4675
  %4677 = vmatprep.mubr.bf16.mxu0 %v446
  %4678 = vmatmul.mubr.bf16.gmra.mxu0 %v445
  %v4679 = vpop.f32.mrf.mxu0
  %v4680 = vadd.f32 %v4579, %v4679
  %v4681 = vpop.f32.mrf.mxu0
  %v4682 = vadd.f32 %v4581, %v4681
  %v4683 = vpop.f32.mrf.mxu0
  %v4684 = vadd.f32 %v4583, %v4683
  %v4685 = vpop.f32.mrf.mxu0
  %v4686 = vadd.f32 %v4585, %v4685
  %4687 = vmatprep.mubr.bf16.mxu0 %v452
  %4688 = vmatmul.mubr.bf16.gmra.mxu0 %v451
  %v4689 = vpop.f32.mrf.mxu0
  %v4690 = vadd.f32 %v4589, %v4689
  %v4691 = vpop.f32.mrf.mxu0
  %v4692 = vadd.f32 %v4591, %v4691
  %v4693 = vpop.f32.mrf.mxu0
  %v4694 = vadd.f32 %v4593, %v4693
  %v4695 = vpop.f32.mrf.mxu0
  %v4696 = vadd.f32 %v4595, %v4695
  %4697 = vmatprep.mubr.bf16.mxu0 %v458
  %4698 = vmatmul.mubr.bf16.gmra.mxu0 %v457
  %v4699 = vpop.f32.mrf.mxu0
  %v4700 = vadd.f32 %v4599, %v4699
  %v4701 = vpop.f32.mrf.mxu0
  %v4702 = vadd.f32 %v4601, %v4701
  %v4703 = vpop.f32.mrf.mxu0
  %v4704 = vadd.f32 %v4603, %v4703
  %v4705 = vpop.f32.mrf.mxu0
  %v4706 = vadd.f32 %v4605, %v4705
  %4707 = vmatprep.mubr.bf16.mxu0 %v464
  %4708 = vmatmul.mubr.bf16.gmra.mxu0 %v463
  %v4709 = vpop.f32.mrf.mxu0
  %v4710 = vadd.f32 %v4609, %v4709
  %v4711 = vpop.f32.mrf.mxu0
  %v4712 = vadd.f32 %v4611, %v4711
  %v4713 = vpop.f32.mrf.mxu0
  %v4714 = vadd.f32 %v4613, %v4713
  %v4715 = vpop.f32.mrf.mxu0
  %v4716 = vadd.f32 %v4615, %v4715
  %4717 = vmatprep.mubr.bf16.mxu0 %v470
  %4718 = vmatmul.mubr.bf16.gmra.mxu0 %v469
  %v4719 = vpop.f32.mrf.mxu0
  %v4720 = vadd.f32 %v4619, %v4719
  %v4721 = vpop.f32.mrf.mxu0
  %v4722 = vadd.f32 %v4621, %v4721
  %v4723 = vpop.f32.mrf.mxu0
  %v4724 = vpop.f32.mrf.mxu0
  %4725 = vdwg.mxu0
  %4726 = vmatprep.subr.bf16.mxu0 %v3012
  %4727 = vmatpush1.bf16.msra.mxu0 %v3011
  %4728 = vmatprep.subr.bf16.mxu0 %v3000
  %4729 = vmatpush1.bf16.msra.mxu0 %v2999
  %4730 = vmatprep.subr.bf16.mxu0 %v2988
  %4731 = vmatpush1.bf16.msra.mxu0 %v2987
  %4732 = vmatprep.subr.bf16.mxu0 %v2976
  %4733 = vmatpush1.bf16.msra.mxu0 %v2975
  %4734 = vmatprep.subr.bf16.mxu0 %v2964
  %4735 = vmatpush1.bf16.msra.mxu0 %v2963
  %4736 = vmatprep.subr.bf16.mxu0 %v2952
  %4737 = vmatpush1.bf16.msra.mxu0 %v2951
  %4738 = vmatprep.subr.bf16.mxu0 %v2940
  %4739 = vmatpush1.bf16.msra.mxu0 %v2939
  %4740 = vmatprep.subr.bf16.mxu0 %v2928
  %4741 = vmatpush1.bf16.msra.mxu0 %v2927
  %4742 = vmatprep.subr.bf16.mxu0 0
  %4743 = vmatpush2.bf16.msra.mxu0 0
  %4744 = vmatprep.subr.bf16.mxu0 0
  %4745 = vmatpush2.bf16.msra.mxu0 0
  %4746 = vmatprep.subr.bf16.mxu0 0
  %4747 = vmatpush2.bf16.msra.mxu0 0
  %4748 = vmatprep.subr.bf16.mxu0 0
  %4749 = vmatpush2.bf16.msra.mxu0 0
  %4750 = vmatprep.subr.bf16.mxu0 0
  %4751 = vmatpush2.bf16.msra.mxu0 0
  %4752 = vmatprep.subr.bf16.mxu0 %v3601
  %4753 = vmatpush2.bf16.msra.mxu0 %v3598
  %4754 = vmatprep.subr.bf16.mxu0 %v3036
  %4755 = vmatpush2.bf16.msra.mxu0 %v3035
  %4756 = vmatprep.subr.bf16.mxu0 %v3024
  %4757 = vmatpush2.bf16.msra.mxu0 %v3023
  %4758 = vmatprep.mubr.bf16.mxu0 %v3559
  %4759 = vmatmul.mubr.bf16.gmra.mxu0 %v435
  %v4760 = vpop.f32.mrf.mxu0
  %v4761 = vadd.f32 %v4660, %v4760
  %v4762 = vpop.f32.mrf.mxu0
  %v4763 = vadd.f32 %v4662, %v4762
  %v4764 = vpop.f32.mrf.mxu0
  %v4765 = vadd.f32 %v4664, %v4764
  %v4766 = vpop.f32.mrf.mxu0
  %v4767 = vadd.f32 %v4666, %v4766
  %4768 = vmatprep.mubr.bf16.mxu0 %v3562
  %4769 = vmatmul.mubr.bf16.gmra.mxu0 %v441
  %v4770 = vpop.f32.mrf.mxu0
  %v4771 = vadd.f32 %v4670, %v4770
  %v4772 = vpop.f32.mrf.mxu0
  %v4773 = vadd.f32 %v4672, %v4772
  %v4774 = vpop.f32.mrf.mxu0
  %v4775 = vadd.f32 %v4674, %v4774
  %v4776 = vpop.f32.mrf.mxu0
  %v4777 = vadd.f32 %v4676, %v4776
  %4778 = vmatprep.mubr.bf16.mxu0 %v3565
  %4779 = vmatmul.mubr.bf16.gmra.mxu0 %v447
  %v4780 = vpop.f32.mrf.mxu0
  %v4781 = vadd.f32 %v4680, %v4780
  %v4782 = vpop.f32.mrf.mxu0
  %v4783 = vadd.f32 %v4682, %v4782
  %v4784 = vpop.f32.mrf.mxu0
  %v4785 = vadd.f32 %v4684, %v4784
  %v4786 = vpop.f32.mrf.mxu0
  %v4787 = vadd.f32 %v4686, %v4786
  %4788 = vmatprep.mubr.bf16.mxu0 %v3568
  %4789 = vmatmul.mubr.bf16.gmra.mxu0 %v453
  %v4790 = vpop.f32.mrf.mxu0
  %v4791 = vadd.f32 %v4690, %v4790
  %v4792 = vpop.f32.mrf.mxu0
  %v4793 = vadd.f32 %v4692, %v4792
  %v4794 = vpop.f32.mrf.mxu0
  %v4795 = vadd.f32 %v4694, %v4794
  %v4796 = vpop.f32.mrf.mxu0
  %v4797 = vadd.f32 %v4696, %v4796
  %4798 = vmatprep.mubr.bf16.mxu0 %v3571
  %4799 = vmatmul.mubr.bf16.gmra.mxu0 %v459
  %v4800 = vpop.f32.mrf.mxu0
  %v4801 = vadd.f32 %v4700, %v4800
  %v4802 = vpop.f32.mrf.mxu0
  %v4803 = vadd.f32 %v4702, %v4802
  %v4804 = vpop.f32.mrf.mxu0
  %v4805 = vadd.f32 %v4704, %v4804
  %v4806 = vpop.f32.mrf.mxu0
  %v4807 = vadd.f32 %v4706, %v4806
  %4808 = vmatprep.mubr.bf16.mxu0 %v3574
  %4809 = vmatmul.mubr.bf16.gmra.mxu0 %v465
  %v4810 = vpop.f32.mrf.mxu0
  %v4811 = vadd.f32 %v4710, %v4810
  %v4812 = vpop.f32.mrf.mxu0
  %v4813 = vadd.f32 %v4712, %v4812
  %v4814 = vpop.f32.mrf.mxu0
  %v4815 = vadd.f32 %v4714, %v4814
  %v4816 = vpop.f32.mrf.mxu0
  %v4817 = vadd.f32 %v4716, %v4816
  %4818 = vmatprep.mubr.bf16.mxu0 %v3577
  %4819 = vmatmul.mubr.bf16.gmra.mxu0 %v471
  %v4820 = vpop.f32.mrf.mxu0
  %v4821 = vadd.f32 %v4720, %v4820
  %v4822 = vpop.f32.mrf.mxu0
  %v4823 = vadd.f32 %v4722, %v4822
  %v4824 = vpop.f32.mrf.mxu0
  %v4825 = vpop.f32.mrf.mxu0
  %4826 = vdwg.mxu0
  %4827 = vmatprep.subr.bf16.mxu0 %v2630
  %4828 = vmatpush1.bf16.msra.mxu0 %v2629
  %4829 = vmatprep.subr.bf16.mxu0 %v2618
  %4830 = vmatpush1.bf16.msra.mxu0 %v2617
  %4831 = vmatprep.subr.bf16.mxu0 %v2606
  %4832 = vmatpush1.bf16.msra.mxu0 %v2605
  %4833 = vmatprep.subr.bf16.mxu0 %v2594
  %4834 = vmatpush1.bf16.msra.mxu0 %v2593
  %4835 = vmatprep.subr.bf16.mxu0 %v2582
  %4836 = vmatpush1.bf16.msra.mxu0 %v2581
  %4837 = vmatprep.subr.bf16.mxu0 %v2570
  %4838 = vmatpush1.bf16.msra.mxu0 %v2569
  %4839 = vmatprep.subr.bf16.mxu0 %v2558
  %4840 = vmatpush1.bf16.msra.mxu0 %v2557
  %4841 = vmatprep.subr.bf16.mxu0 %v2546
  %4842 = vmatpush1.bf16.msra.mxu0 %v2545
  %4843 = vmatprep.subr.bf16.mxu0 %v2726
  %4844 = vmatpush2.bf16.msra.mxu0 %v2725
  %4845 = vmatprep.subr.bf16.mxu0 %v2714
  %4846 = vmatpush2.bf16.msra.mxu0 %v2713
  %4847 = vmatprep.subr.bf16.mxu0 %v2702
  %4848 = vmatpush2.bf16.msra.mxu0 %v2701
  %4849 = vmatprep.subr.bf16.mxu0 %v2690
  %4850 = vmatpush2.bf16.msra.mxu0 %v2689
  %4851 = vmatprep.subr.bf16.mxu0 %v2678
  %4852 = vmatpush2.bf16.msra.mxu0 %v2677
  %4853 = vmatprep.subr.bf16.mxu0 %v2666
  %4854 = vmatpush2.bf16.msra.mxu0 %v2665
  %4855 = vmatprep.subr.bf16.mxu0 %v2654
  %4856 = vmatpush2.bf16.msra.mxu0 %v2653
  %4857 = vmatprep.subr.bf16.mxu0 %v2642
  %4858 = vmatpush2.bf16.msra.mxu0 %v2641
  %4859 = vmatprep.mubr.bf16.mxu0 %v432
  %4860 = vmatmul.mubr.bf16.gmra.mxu0 %v431
  %v4861 = vpop.f32.mrf.mxu0
  %v4862 = vadd.f32 0.0, %v4861
  %v4863 = vpop.f32.mrf.mxu0
  %v4864 = vadd.f32 0.0, %v4863
  %v4865 = vpop.f32.mrf.mxu0
  %v4866 = vadd.f32 0.0, %v4865
  %v4867 = vpop.f32.mrf.mxu0
  %v4868 = vadd.f32 0.0, %v4867
  %4869 = vmatprep.mubr.bf16.mxu0 %v438
  %4870 = vmatmul.mubr.bf16.gmra.mxu0 %v437
  %v4871 = vpop.f32.mrf.mxu0
  %v4872 = vadd.f32 0.0, %v4871
  %v4873 = vpop.f32.mrf.mxu0
  %v4874 = vadd.f32 0.0, %v4873
  %v4875 = vpop.f32.mrf.mxu0
  %v4876 = vadd.f32 0.0, %v4875
  %v4877 = vpop.f32.mrf.mxu0
  %v4878 = vadd.f32 0.0, %v4877
  %4879 = vmatprep.mubr.bf16.mxu0 %v444
  %4880 = vmatmul.mubr.bf16.gmra.mxu0 %v443
  %v4881 = vpop.f32.mrf.mxu0
  %v4882 = vadd.f32 0.0, %v4881
  %v4883 = vpop.f32.mrf.mxu0
  %v4884 = vadd.f32 0.0, %v4883
  %v4885 = vpop.f32.mrf.mxu0
  %v4886 = vadd.f32 0.0, %v4885
  %v4887 = vpop.f32.mrf.mxu0
  %v4888 = vadd.f32 0.0, %v4887
  %4889 = vmatprep.mubr.bf16.mxu0 %v450
  %4890 = vmatmul.mubr.bf16.gmra.mxu0 %v449
  %v4891 = vpop.f32.mrf.mxu0
  %v4892 = vadd.f32 0.0, %v4891
  %v4893 = vpop.f32.mrf.mxu0
  %v4894 = vadd.f32 0.0, %v4893
  %v4895 = vpop.f32.mrf.mxu0
  %v4896 = vadd.f32 0.0, %v4895
  %v4897 = vpop.f32.mrf.mxu0
  %v4898 = vadd.f32 0.0, %v4897
  %4899 = vmatprep.mubr.bf16.mxu0 %v456
  %4900 = vmatmul.mubr.bf16.gmra.mxu0 %v455
  %v4901 = vpop.f32.mrf.mxu0
  %v4902 = vadd.f32 0.0, %v4901
  %v4903 = vpop.f32.mrf.mxu0
  %v4904 = vadd.f32 0.0, %v4903
  %v4905 = vpop.f32.mrf.mxu0
  %v4906 = vadd.f32 0.0, %v4905
  %v4907 = vpop.f32.mrf.mxu0
  %v4908 = vadd.f32 0.0, %v4907
  %4909 = vmatprep.mubr.bf16.mxu0 %v462
  %4910 = vmatmul.mubr.bf16.gmra.mxu0 %v461
  %v4911 = vpop.f32.mrf.mxu0
  %v4912 = vadd.f32 0.0, %v4911
  %v4913 = vpop.f32.mrf.mxu0
  %v4914 = vadd.f32 0.0, %v4913
  %v4915 = vpop.f32.mrf.mxu0
  %v4916 = vadd.f32 0.0, %v4915
  %v4917 = vpop.f32.mrf.mxu0
  %v4918 = vadd.f32 0.0, %v4917
  %4919 = vmatprep.mubr.bf16.mxu0 %v468
  %4920 = vmatmul.mubr.bf16.gmra.mxu0 %v467
  %v4921 = vpop.f32.mrf.mxu0
  %v4922 = vadd.f32 0.0, %v4921
  %v4923 = vpop.f32.mrf.mxu0
  %v4924 = vadd.f32 0.0, %v4923
  %v4925 = vpop.f32.mrf.mxu0
  %v4926 = vpop.f32.mrf.mxu0
  %4927 = vdwg.mxu0
  %4928 = vmatprep.subr.bf16.mxu0 %v2822
  %4929 = vmatpush1.bf16.msra.mxu0 %v2821
  %4930 = vmatprep.subr.bf16.mxu0 %v2810
  %4931 = vmatpush1.bf16.msra.mxu0 %v2809
  %4932 = vmatprep.subr.bf16.mxu0 %v2798
  %4933 = vmatpush1.bf16.msra.mxu0 %v2797
  %4934 = vmatprep.subr.bf16.mxu0 %v2786
  %4935 = vmatpush1.bf16.msra.mxu0 %v2785
  %4936 = vmatprep.subr.bf16.mxu0 %v2774
  %4937 = vmatpush1.bf16.msra.mxu0 %v2773
  %4938 = vmatprep.subr.bf16.mxu0 %v2762
  %4939 = vmatpush1.bf16.msra.mxu0 %v2761
  %4940 = vmatprep.subr.bf16.mxu0 %v2750
  %4941 = vmatpush1.bf16.msra.mxu0 %v2749
  %4942 = vmatprep.subr.bf16.mxu0 %v2738
  %4943 = vmatpush1.bf16.msra.mxu0 %v2737
  %4944 = vmatprep.subr.bf16.mxu0 %v2918
  %4945 = vmatpush2.bf16.msra.mxu0 %v2917
  %4946 = vmatprep.subr.bf16.mxu0 %v2906
  %4947 = vmatpush2.bf16.msra.mxu0 %v2905
  %4948 = vmatprep.subr.bf16.mxu0 %v2894
  %4949 = vmatpush2.bf16.msra.mxu0 %v2893
  %4950 = vmatprep.subr.bf16.mxu0 %v2882
  %4951 = vmatpush2.bf16.msra.mxu0 %v2881
  %4952 = vmatprep.subr.bf16.mxu0 %v2870
  %4953 = vmatpush2.bf16.msra.mxu0 %v2869
  %4954 = vmatprep.subr.bf16.mxu0 %v2858
  %4955 = vmatpush2.bf16.msra.mxu0 %v2857
  %4956 = vmatprep.subr.bf16.mxu0 %v2846
  %4957 = vmatpush2.bf16.msra.mxu0 %v2845
  %4958 = vmatprep.subr.bf16.mxu0 %v2834
  %4959 = vmatpush2.bf16.msra.mxu0 %v2833
  %4960 = vmatprep.mubr.bf16.mxu0 %v434
  %4961 = vmatmul.mubr.bf16.gmra.mxu0 %v433
  %v4962 = vpop.f32.mrf.mxu0
  %v4963 = vadd.f32 %v4862, %v4962
  %v4964 = vpop.f32.mrf.mxu0
  %v4965 = vadd.f32 %v4864, %v4964
  %v4966 = vpop.f32.mrf.mxu0
  %v4967 = vadd.f32 %v4866, %v4966
  %v4968 = vpop.f32.mrf.mxu0
  %v4969 = vadd.f32 %v4868, %v4968
  %4970 = vmatprep.mubr.bf16.mxu0 %v440
  %4971 = vmatmul.mubr.bf16.gmra.mxu0 %v439
  %v4972 = vpop.f32.mrf.mxu0
  %v4973 = vadd.f32 %v4872, %v4972
  %v4974 = vpop.f32.mrf.mxu0
  %v4975 = vadd.f32 %v4874, %v4974
  %v4976 = vpop.f32.mrf.mxu0
  %v4977 = vadd.f32 %v4876, %v4976
  %v4978 = vpop.f32.mrf.mxu0
  %v4979 = vadd.f32 %v4878, %v4978
  %4980 = vmatprep.mubr.bf16.mxu0 %v446
  %4981 = vmatmul.mubr.bf16.gmra.mxu0 %v445
  %v4982 = vpop.f32.mrf.mxu0
  %v4983 = vadd.f32 %v4882, %v4982
  %v4984 = vpop.f32.mrf.mxu0
  %v4985 = vadd.f32 %v4884, %v4984
  %v4986 = vpop.f32.mrf.mxu0
  %v4987 = vadd.f32 %v4886, %v4986
  %v4988 = vpop.f32.mrf.mxu0
  %v4989 = vadd.f32 %v4888, %v4988
  %4990 = vmatprep.mubr.bf16.mxu0 %v452
  %4991 = vmatmul.mubr.bf16.gmra.mxu0 %v451
  %v4992 = vpop.f32.mrf.mxu0
  %v4993 = vadd.f32 %v4892, %v4992
  %v4994 = vpop.f32.mrf.mxu0
  %v4995 = vadd.f32 %v4894, %v4994
  %v4996 = vpop.f32.mrf.mxu0
  %v4997 = vadd.f32 %v4896, %v4996
  %v4998 = vpop.f32.mrf.mxu0
  %v4999 = vadd.f32 %v4898, %v4998
  %5000 = vmatprep.mubr.bf16.mxu0 %v458
  %5001 = vmatmul.mubr.bf16.gmra.mxu0 %v457
  %v5002 = vpop.f32.mrf.mxu0
  %v5003 = vadd.f32 %v4902, %v5002
  %v5004 = vpop.f32.mrf.mxu0
  %v5005 = vadd.f32 %v4904, %v5004
  %v5006 = vpop.f32.mrf.mxu0
  %v5007 = vadd.f32 %v4906, %v5006
  %v5008 = vpop.f32.mrf.mxu0
  %v5009 = vadd.f32 %v4908, %v5008
  %5010 = vmatprep.mubr.bf16.mxu0 %v464
  %5011 = vmatmul.mubr.bf16.gmra.mxu0 %v463
  %v5012 = vpop.f32.mrf.mxu0
  %v5013 = vadd.f32 %v4912, %v5012
  %v5014 = vpop.f32.mrf.mxu0
  %v5015 = vadd.f32 %v4914, %v5014
  %v5016 = vpop.f32.mrf.mxu0
  %v5017 = vadd.f32 %v4916, %v5016
  %v5018 = vpop.f32.mrf.mxu0
  %v5019 = vadd.f32 %v4918, %v5018
  %5020 = vmatprep.mubr.bf16.mxu0 %v470
  %5021 = vmatmul.mubr.bf16.gmra.mxu0 %v469
  %v5022 = vpop.f32.mrf.mxu0
  %v5023 = vadd.f32 %v4922, %v5022
  %v5024 = vpop.f32.mrf.mxu0
  %v5025 = vadd.f32 %v4924, %v5024
  %v5026 = vpop.f32.mrf.mxu0
  %v5027 = vpop.f32.mrf.mxu0
  %5028 = vdwg.mxu0
  %5029 = vmatprep.subr.bf16.mxu0 %v3014
  %5030 = vmatpush1.bf16.msra.mxu0 %v3013
  %5031 = vmatprep.subr.bf16.mxu0 %v3002
  %5032 = vmatpush1.bf16.msra.mxu0 %v3001
  %5033 = vmatprep.subr.bf16.mxu0 %v2990
  %5034 = vmatpush1.bf16.msra.mxu0 %v2989
  %5035 = vmatprep.subr.bf16.mxu0 %v2978
  %5036 = vmatpush1.bf16.msra.mxu0 %v2977
  %5037 = vmatprep.subr.bf16.mxu0 %v2966
  %5038 = vmatpush1.bf16.msra.mxu0 %v2965
  %5039 = vmatprep.subr.bf16.mxu0 %v2954
  %5040 = vmatpush1.bf16.msra.mxu0 %v2953
  %5041 = vmatprep.subr.bf16.mxu0 %v2942
  %5042 = vmatpush1.bf16.msra.mxu0 %v2941
  %5043 = vmatprep.subr.bf16.mxu0 %v2930
  %5044 = vmatpush1.bf16.msra.mxu0 %v2929
  %5045 = vmatprep.subr.bf16.mxu0 0
  %5046 = vmatpush2.bf16.msra.mxu0 0
  %5047 = vmatprep.subr.bf16.mxu0 0
  %5048 = vmatpush2.bf16.msra.mxu0 0
  %5049 = vmatprep.subr.bf16.mxu0 0
  %5050 = vmatpush2.bf16.msra.mxu0 0
  %5051 = vmatprep.subr.bf16.mxu0 0
  %5052 = vmatpush2.bf16.msra.mxu0 0
  %5053 = vmatprep.subr.bf16.mxu0 0
  %5054 = vmatpush2.bf16.msra.mxu0 0
  %5055 = vmatprep.subr.bf16.mxu0 %v3607
  %5056 = vmatpush2.bf16.msra.mxu0 %v3604
  %5057 = vmatprep.subr.bf16.mxu0 %v3038
  %5058 = vmatpush2.bf16.msra.mxu0 %v3037
  %5059 = vmatprep.subr.bf16.mxu0 %v3026
  %5060 = vmatpush2.bf16.msra.mxu0 %v3025
  %5061 = vmatprep.mubr.bf16.mxu0 %v3559
  %5062 = vmatmul.mubr.bf16.gmra.mxu0 %v435
  %v5063 = vpop.f32.mrf.mxu0
  %v5064 = vadd.f32 %v4963, %v5063
  %v5065 = vpop.f32.mrf.mxu0
  %v5066 = vadd.f32 %v4965, %v5065
  %v5067 = vpop.f32.mrf.mxu0
  %v5068 = vadd.f32 %v4967, %v5067
  %v5069 = vpop.f32.mrf.mxu0
  %v5070 = vadd.f32 %v4969, %v5069
  %5071 = vmatprep.mubr.bf16.mxu0 %v3562
  %5072 = vmatmul.mubr.bf16.gmra.mxu0 %v441
  %v5073 = vpop.f32.mrf.mxu0
  %v5074 = vadd.f32 %v4973, %v5073
  %v5075 = vpop.f32.mrf.mxu0
  %v5076 = vadd.f32 %v4975, %v5075
  %v5077 = vpop.f32.mrf.mxu0
  %v5078 = vadd.f32 %v4977, %v5077
  %v5079 = vpop.f32.mrf.mxu0
  %v5080 = vadd.f32 %v4979, %v5079
  %5081 = vmatprep.mubr.bf16.mxu0 %v3565
  %5082 = vmatmul.mubr.bf16.gmra.mxu0 %v447
  %v5083 = vpop.f32.mrf.mxu0
  %v5084 = vadd.f32 %v4983, %v5083
  %v5085 = vpop.f32.mrf.mxu0
  %v5086 = vadd.f32 %v4985, %v5085
  %v5087 = vpop.f32.mrf.mxu0
  %v5088 = vadd.f32 %v4987, %v5087
  %v5089 = vpop.f32.mrf.mxu0
  %v5090 = vadd.f32 %v4989, %v5089
  %5091 = vmatprep.mubr.bf16.mxu0 %v3568
  %5092 = vmatmul.mubr.bf16.gmra.mxu0 %v453
  %v5093 = vpop.f32.mrf.mxu0
  %v5094 = vadd.f32 %v4993, %v5093
  %v5095 = vpop.f32.mrf.mxu0
  %v5096 = vadd.f32 %v4995, %v5095
  %v5097 = vpop.f32.mrf.mxu0
  %v5098 = vadd.f32 %v4997, %v5097
  %v5099 = vpop.f32.mrf.mxu0
  %v5100 = vadd.f32 %v4999, %v5099
  %5101 = vmatprep.mubr.bf16.mxu0 %v3571
  %5102 = vmatmul.mubr.bf16.gmra.mxu0 %v459
  %v5103 = vpop.f32.mrf.mxu0
  %v5104 = vadd.f32 %v5003, %v5103
  %v5105 = vpop.f32.mrf.mxu0
  %v5106 = vadd.f32 %v5005, %v5105
  %v5107 = vpop.f32.mrf.mxu0
  %v5108 = vadd.f32 %v5007, %v5107
  %v5109 = vpop.f32.mrf.mxu0
  %v5110 = vadd.f32 %v5009, %v5109
  %5111 = vmatprep.mubr.bf16.mxu0 %v3574
  %5112 = vmatmul.mubr.bf16.gmra.mxu0 %v465
  %v5113 = vpop.f32.mrf.mxu0
  %v5114 = vadd.f32 %v5013, %v5113
  %v5115 = vpop.f32.mrf.mxu0
  %v5116 = vadd.f32 %v5015, %v5115
  %v5117 = vpop.f32.mrf.mxu0
  %v5118 = vadd.f32 %v5017, %v5117
  %v5119 = vpop.f32.mrf.mxu0
  %v5120 = vadd.f32 %v5019, %v5119
  %5121 = vmatprep.mubr.bf16.mxu0 %v3577
  %5122 = vmatmul.mubr.bf16.gmra.mxu0 %v471
  %v5123 = vpop.f32.mrf.mxu0
  %v5124 = vadd.f32 %v5023, %v5123
  %v5125 = vpop.f32.mrf.mxu0
  %v5126 = vadd.f32 %v5025, %v5125
  %v5127 = vpop.f32.mrf.mxu0
  %v5128 = vpop.f32.mrf.mxu0
  %5129 = vdwg.mxu0
  %5130 = vmatprep.subr.bf16.mxu0 %v2632
  %5131 = vmatpush1.bf16.msra.mxu0 %v2631
  %5132 = vmatprep.subr.bf16.mxu0 %v2620
  %5133 = vmatpush1.bf16.msra.mxu0 %v2619
  %5134 = vmatprep.subr.bf16.mxu0 %v2608
  %5135 = vmatpush1.bf16.msra.mxu0 %v2607
  %5136 = vmatprep.subr.bf16.mxu0 %v2596
  %5137 = vmatpush1.bf16.msra.mxu0 %v2595
  %5138 = vmatprep.subr.bf16.mxu0 %v2584
  %5139 = vmatpush1.bf16.msra.mxu0 %v2583
  %5140 = vmatprep.subr.bf16.mxu0 %v2572
  %5141 = vmatpush1.bf16.msra.mxu0 %v2571
  %5142 = vmatprep.subr.bf16.mxu0 %v2560
  %5143 = vmatpush1.bf16.msra.mxu0 %v2559
  %5144 = vmatprep.subr.bf16.mxu0 %v2548
  %5145 = vmatpush1.bf16.msra.mxu0 %v2547
  %5146 = vmatprep.subr.bf16.mxu0 %v2728
  %5147 = vmatpush2.bf16.msra.mxu0 %v2727
  %5148 = vmatprep.subr.bf16.mxu0 %v2716
  %5149 = vmatpush2.bf16.msra.mxu0 %v2715
  %5150 = vmatprep.subr.bf16.mxu0 %v2704
  %5151 = vmatpush2.bf16.msra.mxu0 %v2703
  %5152 = vmatprep.subr.bf16.mxu0 %v2692
  %5153 = vmatpush2.bf16.msra.mxu0 %v2691
  %5154 = vmatprep.subr.bf16.mxu0 %v2680
  %5155 = vmatpush2.bf16.msra.mxu0 %v2679
  %5156 = vmatprep.subr.bf16.mxu0 %v2668
  %5157 = vmatpush2.bf16.msra.mxu0 %v2667
  %5158 = vmatprep.subr.bf16.mxu0 %v2656
  %5159 = vmatpush2.bf16.msra.mxu0 %v2655
  %5160 = vmatprep.subr.bf16.mxu0 %v2644
  %5161 = vmatpush2.bf16.msra.mxu0 %v2643
  %5162 = vmatprep.mubr.bf16.mxu0 %v432
  %5163 = vmatmul.mubr.bf16.gmra.mxu0 %v431
  %v5164 = vpop.f32.mrf.mxu0
  %v5165 = vadd.f32 0.0, %v5164
  %v5166 = vpop.f32.mrf.mxu0
  %v5167 = vadd.f32 0.0, %v5166
  %v5168 = vpop.f32.mrf.mxu0
  %v5169 = vadd.f32 0.0, %v5168
  %v5170 = vpop.f32.mrf.mxu0
  %v5171 = vadd.f32 0.0, %v5170
  %5172 = vmatprep.mubr.bf16.mxu0 %v438
  %5173 = vmatmul.mubr.bf16.gmra.mxu0 %v437
  %v5174 = vpop.f32.mrf.mxu0
  %v5175 = vadd.f32 0.0, %v5174
  %v5176 = vpop.f32.mrf.mxu0
  %v5177 = vadd.f32 0.0, %v5176
  %v5178 = vpop.f32.mrf.mxu0
  %v5179 = vadd.f32 0.0, %v5178
  %v5180 = vpop.f32.mrf.mxu0
  %v5181 = vadd.f32 0.0, %v5180
  %5182 = vmatprep.mubr.bf16.mxu0 %v444
  %5183 = vmatmul.mubr.bf16.gmra.mxu0 %v443
  %v5184 = vpop.f32.mrf.mxu0
  %v5185 = vadd.f32 0.0, %v5184
  %v5186 = vpop.f32.mrf.mxu0
  %v5187 = vadd.f32 0.0, %v5186
  %v5188 = vpop.f32.mrf.mxu0
  %v5189 = vadd.f32 0.0, %v5188
  %v5190 = vpop.f32.mrf.mxu0
  %v5191 = vadd.f32 0.0, %v5190
  %5192 = vmatprep.mubr.bf16.mxu0 %v450
  %5193 = vmatmul.mubr.bf16.gmra.mxu0 %v449
  %v5194 = vpop.f32.mrf.mxu0
  %v5195 = vadd.f32 0.0, %v5194
  %v5196 = vpop.f32.mrf.mxu0
  %v5197 = vadd.f32 0.0, %v5196
  %v5198 = vpop.f32.mrf.mxu0
  %v5199 = vadd.f32 0.0, %v5198
  %v5200 = vpop.f32.mrf.mxu0
  %v5201 = vadd.f32 0.0, %v5200
  %5202 = vmatprep.mubr.bf16.mxu0 %v456
  %5203 = vmatmul.mubr.bf16.gmra.mxu0 %v455
  %v5204 = vpop.f32.mrf.mxu0
  %v5205 = vadd.f32 0.0, %v5204
  %v5206 = vpop.f32.mrf.mxu0
  %v5207 = vadd.f32 0.0, %v5206
  %v5208 = vpop.f32.mrf.mxu0
  %v5209 = vadd.f32 0.0, %v5208
  %v5210 = vpop.f32.mrf.mxu0
  %v5211 = vadd.f32 0.0, %v5210
  %5212 = vmatprep.mubr.bf16.mxu0 %v462
  %5213 = vmatmul.mubr.bf16.gmra.mxu0 %v461
  %v5214 = vpop.f32.mrf.mxu0
  %v5215 = vadd.f32 0.0, %v5214
  %v5216 = vpop.f32.mrf.mxu0
  %v5217 = vadd.f32 0.0, %v5216
  %v5218 = vpop.f32.mrf.mxu0
  %v5219 = vadd.f32 0.0, %v5218
  %v5220 = vpop.f32.mrf.mxu0
  %v5221 = vadd.f32 0.0, %v5220
  %5222 = vmatprep.mubr.bf16.mxu0 %v468
  %5223 = vmatmul.mubr.bf16.gmra.mxu0 %v467
  %v5224 = vpop.f32.mrf.mxu0
  %v5225 = vadd.f32 0.0, %v5224
  %v5226 = vpop.f32.mrf.mxu0
  %v5227 = vadd.f32 0.0, %v5226
  %v5228 = vpop.f32.mrf.mxu0
  %v5229 = vpop.f32.mrf.mxu0
  %5230 = vdwg.mxu0
  %5231 = vmatprep.subr.bf16.mxu0 %v2824
  %5232 = vmatpush1.bf16.msra.mxu0 %v2823
  %5233 = vmatprep.subr.bf16.mxu0 %v2812
  %5234 = vmatpush1.bf16.msra.mxu0 %v2811
  %5235 = vmatprep.subr.bf16.mxu0 %v2800
  %5236 = vmatpush1.bf16.msra.mxu0 %v2799
  %5237 = vmatprep.subr.bf16.mxu0 %v2788
  %5238 = vmatpush1.bf16.msra.mxu0 %v2787
  %5239 = vmatprep.subr.bf16.mxu0 %v2776
  %5240 = vmatpush1.bf16.msra.mxu0 %v2775
  %5241 = vmatprep.subr.bf16.mxu0 %v2764
  %5242 = vmatpush1.bf16.msra.mxu0 %v2763
  %5243 = vmatprep.subr.bf16.mxu0 %v2752
  %5244 = vmatpush1.bf16.msra.mxu0 %v2751
  %5245 = vmatprep.subr.bf16.mxu0 %v2740
  %5246 = vmatpush1.bf16.msra.mxu0 %v2739
  %5247 = vmatprep.subr.bf16.mxu0 %v2920
  %5248 = vmatpush2.bf16.msra.mxu0 %v2919
  %5249 = vmatprep.subr.bf16.mxu0 %v2908
  %5250 = vmatpush2.bf16.msra.mxu0 %v2907
  %5251 = vmatprep.subr.bf16.mxu0 %v2896
  %5252 = vmatpush2.bf16.msra.mxu0 %v2895
  %5253 = vmatprep.subr.bf16.mxu0 %v2884
  %5254 = vmatpush2.bf16.msra.mxu0 %v2883
  %5255 = vmatprep.subr.bf16.mxu0 %v2872
  %5256 = vmatpush2.bf16.msra.mxu0 %v2871
  %5257 = vmatprep.subr.bf16.mxu0 %v2860
  %5258 = vmatpush2.bf16.msra.mxu0 %v2859
  %5259 = vmatprep.subr.bf16.mxu0 %v2848
  %5260 = vmatpush2.bf16.msra.mxu0 %v2847
  %5261 = vmatprep.subr.bf16.mxu0 %v2836
  %5262 = vmatpush2.bf16.msra.mxu0 %v2835
  %5263 = vmatprep.mubr.bf16.mxu0 %v434
  %5264 = vmatmul.mubr.bf16.gmra.mxu0 %v433
  %v5265 = vpop.f32.mrf.mxu0
  %v5266 = vadd.f32 %v5165, %v5265
  %v5267 = vpop.f32.mrf.mxu0
  %v5268 = vadd.f32 %v5167, %v5267
  %v5269 = vpop.f32.mrf.mxu0
  %v5270 = vadd.f32 %v5169, %v5269
  %v5271 = vpop.f32.mrf.mxu0
  %v5272 = vadd.f32 %v5171, %v5271
  %5273 = vmatprep.mubr.bf16.mxu0 %v440
  %5274 = vmatmul.mubr.bf16.gmra.mxu0 %v439
  %v5275 = vpop.f32.mrf.mxu0
  %v5276 = vadd.f32 %v5175, %v5275
  %v5277 = vpop.f32.mrf.mxu0
  %v5278 = vadd.f32 %v5177, %v5277
  %v5279 = vpop.f32.mrf.mxu0
  %v5280 = vadd.f32 %v5179, %v5279
  %v5281 = vpop.f32.mrf.mxu0
  %v5282 = vadd.f32 %v5181, %v5281
  %5283 = vmatprep.mubr.bf16.mxu0 %v446
  %5284 = vmatmul.mubr.bf16.gmra.mxu0 %v445
  %v5285 = vpop.f32.mrf.mxu0
  %v5286 = vadd.f32 %v5185, %v5285
  %v5287 = vpop.f32.mrf.mxu0
  %v5288 = vadd.f32 %v5187, %v5287
  %v5289 = vpop.f32.mrf.mxu0
  %v5290 = vadd.f32 %v5189, %v5289
  %v5291 = vpop.f32.mrf.mxu0
  %v5292 = vadd.f32 %v5191, %v5291
  %5293 = vmatprep.mubr.bf16.mxu0 %v452
  %5294 = vmatmul.mubr.bf16.gmra.mxu0 %v451
  %v5295 = vpop.f32.mrf.mxu0
  %v5296 = vadd.f32 %v5195, %v5295
  %v5297 = vpop.f32.mrf.mxu0
  %v5298 = vadd.f32 %v5197, %v5297
  %v5299 = vpop.f32.mrf.mxu0
  %v5300 = vadd.f32 %v5199, %v5299
  %v5301 = vpop.f32.mrf.mxu0
  %v5302 = vadd.f32 %v5201, %v5301
  %5303 = vmatprep.mubr.bf16.mxu0 %v458
  %5304 = vmatmul.mubr.bf16.gmra.mxu0 %v457
  %v5305 = vpop.f32.mrf.mxu0
  %v5306 = vadd.f32 %v5205, %v5305
  %v5307 = vpop.f32.mrf.mxu0
  %v5308 = vadd.f32 %v5207, %v5307
  %v5309 = vpop.f32.mrf.mxu0
  %v5310 = vadd.f32 %v5209, %v5309
  %v5311 = vpop.f32.mrf.mxu0
  %v5312 = vadd.f32 %v5211, %v5311
  %5313 = vmatprep.mubr.bf16.mxu0 %v464
  %5314 = vmatmul.mubr.bf16.gmra.mxu0 %v463
  %v5315 = vpop.f32.mrf.mxu0
  %v5316 = vadd.f32 %v5215, %v5315
  %v5317 = vpop.f32.mrf.mxu0
  %v5318 = vadd.f32 %v5217, %v5317
  %v5319 = vpop.f32.mrf.mxu0
  %v5320 = vadd.f32 %v5219, %v5319
  %v5321 = vpop.f32.mrf.mxu0
  %v5322 = vadd.f32 %v5221, %v5321
  %5323 = vmatprep.mubr.bf16.mxu0 %v470
  %5324 = vmatmul.mubr.bf16.gmra.mxu0 %v469
  %v5325 = vpop.f32.mrf.mxu0
  %v5326 = vadd.f32 %v5225, %v5325
  %v5327 = vpop.f32.mrf.mxu0
  %v5328 = vadd.f32 %v5227, %v5327
  %v5329 = vpop.f32.mrf.mxu0
  %v5330 = vpop.f32.mrf.mxu0
  %5331 = vdwg.mxu0
  %5332 = vmatprep.subr.bf16.mxu0 %v3016
  %5333 = vmatpush1.bf16.msra.mxu0 %v3015
  %5334 = vmatprep.subr.bf16.mxu0 %v3004
  %5335 = vmatpush1.bf16.msra.mxu0 %v3003
  %5336 = vmatprep.subr.bf16.mxu0 %v2992
  %5337 = vmatpush1.bf16.msra.mxu0 %v2991
  %5338 = vmatprep.subr.bf16.mxu0 %v2980
  %5339 = vmatpush1.bf16.msra.mxu0 %v2979
  %5340 = vmatprep.subr.bf16.mxu0 %v2968
  %5341 = vmatpush1.bf16.msra.mxu0 %v2967
  %5342 = vmatprep.subr.bf16.mxu0 %v2956
  %5343 = vmatpush1.bf16.msra.mxu0 %v2955
  %5344 = vmatprep.subr.bf16.mxu0 %v2944
  %5345 = vmatpush1.bf16.msra.mxu0 %v2943
  %5346 = vmatprep.subr.bf16.mxu0 %v2932
  %5347 = vmatpush1.bf16.msra.mxu0 %v2931
  %5348 = vmatprep.subr.bf16.mxu0 0
  %5349 = vmatpush2.bf16.msra.mxu0 0
  %5350 = vmatprep.subr.bf16.mxu0 0
  %5351 = vmatpush2.bf16.msra.mxu0 0
  %5352 = vmatprep.subr.bf16.mxu0 0
  %5353 = vmatpush2.bf16.msra.mxu0 0
  %5354 = vmatprep.subr.bf16.mxu0 0
  %5355 = vmatpush2.bf16.msra.mxu0 0
  %5356 = vmatprep.subr.bf16.mxu0 0
  %5357 = vmatpush2.bf16.msra.mxu0 0
  %5358 = vmatprep.subr.bf16.mxu0 %v3613
  %5359 = vmatpush2.bf16.msra.mxu0 %v3610
  %5360 = vmatprep.subr.bf16.mxu0 %v3040
  %5361 = vmatpush2.bf16.msra.mxu0 %v3039
  %5362 = vmatprep.subr.bf16.mxu0 %v3028
  %5363 = vmatpush2.bf16.msra.mxu0 %v3027
  %5364 = vmatprep.mubr.bf16.mxu0 %v3559
  %5365 = vmatmul.mubr.bf16.gmra.mxu0 %v435
  %v5366 = vpop.f32.mrf.mxu0
  %v5367 = vadd.f32 %v5266, %v5366
  %v5368 = vpop.f32.mrf.mxu0
  %v5369 = vadd.f32 %v5268, %v5368
  %v5370 = vpop.f32.mrf.mxu0
  %v5371 = vadd.f32 %v5270, %v5370
  %v5372 = vpop.f32.mrf.mxu0
  %v5373 = vadd.f32 %v5272, %v5372
  %5374 = vmatprep.mubr.bf16.mxu0 %v3562
  %5375 = vmatmul.mubr.bf16.gmra.mxu0 %v441
  %v5376 = vpop.f32.mrf.mxu0
  %v5377 = vadd.f32 %v5276, %v5376
  %v5378 = vpop.f32.mrf.mxu0
  %v5379 = vadd.f32 %v5278, %v5378
  %v5380 = vpop.f32.mrf.mxu0
  %v5381 = vadd.f32 %v5280, %v5380
  %v5382 = vpop.f32.mrf.mxu0
  %v5383 = vadd.f32 %v5282, %v5382
  %5384 = vmatprep.mubr.bf16.mxu0 %v3565
  %5385 = vmatmul.mubr.bf16.gmra.mxu0 %v447
  %v5386 = vpop.f32.mrf.mxu0
  %v5387 = vadd.f32 %v5286, %v5386
  %v5388 = vpop.f32.mrf.mxu0
  %v5389 = vadd.f32 %v5288, %v5388
  %v5390 = vpop.f32.mrf.mxu0
  %v5391 = vadd.f32 %v5290, %v5390
  %v5392 = vpop.f32.mrf.mxu0
  %v5393 = vadd.f32 %v5292, %v5392
  %5394 = vmatprep.mubr.bf16.mxu0 %v3568
  %5395 = vmatmul.mubr.bf16.gmra.mxu0 %v453
  %v5396 = vpop.f32.mrf.mxu0
  %v5397 = vadd.f32 %v5296, %v5396
  %v5398 = vpop.f32.mrf.mxu0
  %v5399 = vadd.f32 %v5298, %v5398
  %v5400 = vpop.f32.mrf.mxu0
  %v5401 = vadd.f32 %v5300, %v5400
  %v5402 = vpop.f32.mrf.mxu0
  %v5403 = vadd.f32 %v5302, %v5402
  %5404 = vmatprep.mubr.bf16.mxu0 %v3571
  %5405 = vmatmul.mubr.bf16.gmra.mxu0 %v459
  %v5406 = vpop.f32.mrf.mxu0
  %v5407 = vadd.f32 %v5306, %v5406
  %v5408 = vpop.f32.mrf.mxu0
  %v5409 = vadd.f32 %v5308, %v5408
  %v5410 = vpop.f32.mrf.mxu0
  %v5411 = vadd.f32 %v5310, %v5410
  %v5412 = vpop.f32.mrf.mxu0
  %v5413 = vadd.f32 %v5312, %v5412
  %5414 = vmatprep.mubr.bf16.mxu0 %v3574
  %5415 = vmatmul.mubr.bf16.gmra.mxu0 %v465
  %v5416 = vpop.f32.mrf.mxu0
  %v5417 = vadd.f32 %v5316, %v5416
  %v5418 = vpop.f32.mrf.mxu0
  %v5419 = vadd.f32 %v5318, %v5418
  %v5420 = vpop.f32.mrf.mxu0
  %v5421 = vadd.f32 %v5320, %v5420
  %v5422 = vpop.f32.mrf.mxu0
  %v5423 = vadd.f32 %v5322, %v5422
  %5424 = vmatprep.mubr.bf16.mxu0 %v3577
  %5425 = vmatmul.mubr.bf16.gmra.mxu0 %v471
  %v5426 = vpop.f32.mrf.mxu0
  %v5427 = vadd.f32 %v5326, %v5426
  %v5428 = vpop.f32.mrf.mxu0
  %v5429 = vadd.f32 %v5328, %v5428
  %v5430 = vpop.f32.mrf.mxu0
  %v5431 = vpop.f32.mrf.mxu0
  %5432 = vdwg.mxu0
  %v5433 = vmax.f32 %v3852, %v4157
  %v5434 = vmax.f32 %v3854, %v4458
  %v5435 = vmax.f32 %v4155, %v4460
  %v5436 = vmax.f32 %v3856, %v4161
  %v5437 = vmax.f32 %v3858, %v4462
  %v5438 = vmax.f32 %v4159, %v4464
  %v5439 = vmax.f32 %v3862, %v4167
  %v5440 = vmax.f32 %v3864, %v4468
  %v5441 = vmax.f32 %v4165, %v4470
  %v5442 = vmax.f32 %v3866, %v4171
  %v5443 = vmax.f32 %v3868, %v4472
  %v5444 = vmax.f32 %v4169, %v4474
  %v5445 = vmax.f32 %v3872, %v4177
  %v5446 = vmax.f32 %v3874, %v4478
  %v5447 = vmax.f32 %v4175, %v4480
  %v5448 = vmax.f32 %v3876, %v4181
  %v5449 = vmax.f32 %v3878, %v4482
  %v5450 = vmax.f32 %v4179, %v4484
  %v5451 = vmax.f32 %v3882, %v4187
  %v5452 = vmax.f32 %v3884, %v4488
  %v5453 = vmax.f32 %v4185, %v4490
  %v5454 = vmax.f32 %v3886, %v4191
  %v5455 = vmax.f32 %v3888, %v4492
  %v5456 = vmax.f32 %v4189, %v4494
  %v5457 = vmax.f32 %v3892, %v4197
  %v5458 = vmax.f32 %v3894, %v4498
  %v5459 = vmax.f32 %v4195, %v4500
  %v5460 = vmax.f32 %v3896, %v4201
  %v5461 = vmax.f32 %v3898, %v4502
  %v5462 = vmax.f32 %v4199, %v4504
  %v5463 = vmax.f32 %v3902, %v4207
  %v5464 = vmax.f32 %v3904, %v4508
  %v5465 = vmax.f32 %v4205, %v4510
  %v5466 = vmax.f32 %v3906, %v4211
  %v5467 = vmax.f32 %v3908, %v4512
  %v5468 = vmax.f32 %v4209, %v4514
  %v5469 = vmax.f32 %v3912, %v4217
  %v5470 = vmax.f32 %v3914, %v4518
  %v5471 = vmax.f32 %v4215, %v4520
  %v5472 = vmax.f32 %v4761, %v5066
  %v5473 = vmax.f32 %v4763, %v5367
  %v5474 = vmax.f32 %v5064, %v5369
  %v5475 = vmax.f32 %v4765, %v5070
  %v5476 = vmax.f32 %v4767, %v5371
  %v5477 = vmax.f32 %v5068, %v5373
  %v5478 = vmax.f32 %v4771, %v5076
  %v5479 = vmax.f32 %v4773, %v5377
  %v5480 = vmax.f32 %v5074, %v5379
  %v5481 = vmax.f32 %v4775, %v5080
  %v5482 = vmax.f32 %v4777, %v5381
  %v5483 = vmax.f32 %v5078, %v5383
  %v5484 = vmax.f32 %v4781, %v5086
  %v5485 = vmax.f32 %v4783, %v5387
  %v5486 = vmax.f32 %v5084, %v5389
  %v5487 = vmax.f32 %v4785, %v5090
  %v5488 = vmax.f32 %v4787, %v5391
  %v5489 = vmax.f32 %v5088, %v5393
  %v5490 = vmax.f32 %v4791, %v5096
  %v5491 = vmax.f32 %v4793, %v5397
  %v5492 = vmax.f32 %v5094, %v5399
  %v5493 = vmax.f32 %v4795, %v5100
  %v5494 = vmax.f32 %v4797, %v5401
  %v5495 = vmax.f32 %v5098, %v5403
  %v5496 = vmax.f32 %v4801, %v5106
  %v5497 = vmax.f32 %v4803, %v5407
  %v5498 = vmax.f32 %v5104, %v5409
  %v5499 = vmax.f32 %v4805, %v5110
  %v5500 = vmax.f32 %v4807, %v5411
  %v5501 = vmax.f32 %v5108, %v5413
  %v5502 = vmax.f32 %v4811, %v5116
  %v5503 = vmax.f32 %v4813, %v5417
  %v5504 = vmax.f32 %v5114, %v5419
  %v5505 = vmax.f32 %v4815, %v5120
  %v5506 = vmax.f32 %v4817, %v5421
  %v5507 = vmax.f32 %v5118, %v5423
  %v5508 = vmax.f32 %v4821, %v5126
  %v5509 = vmax.f32 %v4823, %v5427
  %v5510 = vmax.f32 %v5124, %v5429
  %v5511 = vmax.f32 %v5433, %v5472
  %v5512 = vmax.f32 %v5434, %v5473
  %v5513 = vmax.f32 %v5435, %v5474
  %v5514 = vmax.f32 %v5436, %v5475
  %v5515 = vmax.f32 %v5437, %v5476
  %v5516 = vmax.f32 %v5438, %v5477
  %v5517 = vmax.f32 %v5439, %v5478
  %v5518 = vmax.f32 %v5440, %v5479
  %v5519 = vmax.f32 %v5441, %v5480
  %v5520 = vmax.f32 %v5442, %v5481
  %v5521 = vmax.f32 %v5443, %v5482
  %v5522 = vmax.f32 %v5444, %v5483
  %v5523 = vmax.f32 %v5445, %v5484
  %v5524 = vmax.f32 %v5446, %v5485
  %v5525 = vmax.f32 %v5447, %v5486
  %v5526 = vmax.f32 %v5448, %v5487
  %v5527 = vmax.f32 %v5449, %v5488
  %v5528 = vmax.f32 %v5450, %v5489
  %v5529 = vmax.f32 %v5451, %v5490
  %v5530 = vmax.f32 %v5452, %v5491
  %v5531 = vmax.f32 %v5453, %v5492
  %v5532 = vmax.f32 %v5454, %v5493
  %v5533 = vmax.f32 %v5455, %v5494
  %v5534 = vmax.f32 %v5456, %v5495
  %v5535 = vmax.f32 %v5457, %v5496
  %v5536 = vmax.f32 %v5458, %v5497
  %v5537 = vmax.f32 %v5459, %v5498
  %v5538 = vmax.f32 %v5460, %v5499
  %v5539 = vmax.f32 %v5461, %v5500
  %v5540 = vmax.f32 %v5462, %v5501
  %v5541 = vmax.f32 %v5463, %v5502
  %v5542 = vmax.f32 %v5464, %v5503
  %v5543 = vmax.f32 %v5465, %v5504
  %v5544 = vmax.f32 %v5466, %v5505
  %v5545 = vmax.f32 %v5467, %v5506
  %v5546 = vmax.f32 %v5468, %v5507
  %v5547 = vmax.f32 %v5469, %v5508
  %v5548 = vmax.f32 %v5470, %v5509
  %v5549 = vmax.f32 %v5471, %v5510
  %v5550 = vld [vmem:[%s2] sm:$0x7]
  %v5552 = vlaneseq
  %v5553 = vshrl.u32 %v5552, 7
  %v5554 = vsub.s32 0, %v5553
  %v5555 = vrot.slane %v5550, %v5554
  %v5556 = vlaneseq
  %v5557 = vshrl.u32 %v5556, 7
  %v5558 = vsub.s32 1, %v5557
  %v5559 = vrot.slane %v5550, %v5558
  %v5560 = vlaneseq
  %v5561 = vshrl.u32 %v5560, 7
  %v5562 = vsub.s32 2, %v5561
  %v5563 = vrot.slane %v5550, %v5562
  %v5567 = vadd.f32 %v5511, %v5555
  %v5568 = vadd.f32 %v5512, %v5559
  %v5569 = vadd.f32 %v5513, %v5563
  %v5570 = vadd.f32 %v5514, %v5555
  %v5571 = vadd.f32 %v5515, %v5559
  %v5572 = vadd.f32 %v5516, %v5563
  %v5573 = vadd.f32 %v5517, %v5555
  %v5574 = vadd.f32 %v5518, %v5559
  %v5575 = vadd.f32 %v5519, %v5563
  %v5576 = vadd.f32 %v5520, %v5555
  %v5577 = vadd.f32 %v5521, %v5559
  %v5578 = vadd.f32 %v5522, %v5563
  %v5579 = vadd.f32 %v5523, %v5555
  %v5580 = vadd.f32 %v5524, %v5559
  %v5581 = vadd.f32 %v5525, %v5563
  %v5582 = vadd.f32 %v5526, %v5555
  %v5583 = vadd.f32 %v5527, %v5559
  %v5584 = vadd.f32 %v5528, %v5563
  %v5585 = vadd.f32 %v5529, %v5555
  %v5586 = vadd.f32 %v5530, %v5559
  %v5587 = vadd.f32 %v5531, %v5563
  %v5588 = vadd.f32 %v5532, %v5555
  %v5589 = vadd.f32 %v5533, %v5559
  %v5590 = vadd.f32 %v5534, %v5563
  %v5591 = vadd.f32 %v5535, %v5555
  %v5592 = vadd.f32 %v5536, %v5559
  %v5593 = vadd.f32 %v5537, %v5563
  %v5594 = vadd.f32 %v5538, %v5555
  %v5595 = vadd.f32 %v5539, %v5559
  %v5596 = vadd.f32 %v5540, %v5563
  %v5597 = vadd.f32 %v5541, %v5555
  %v5598 = vadd.f32 %v5542, %v5559
  %v5599 = vadd.f32 %v5543, %v5563
  %v5600 = vadd.f32 %v5544, %v5555
  %v5601 = vadd.f32 %v5545, %v5559
  %v5602 = vadd.f32 %v5546, %v5563
  %v5603 = vadd.f32 %v5547, %v5555
  %v5604 = vadd.f32 %v5548, %v5559
  %v5605 = vadd.f32 %v5549, %v5563
  %v5606 = vmax.f32 %v5567, 0.0
  %v5607 = vmax.f32 %v5568, 0.0
  %v5608 = vmax.f32 %v5569, 0.0
  %v5609 = vmax.f32 %v5570, 0.0
  %v5610 = vmax.f32 %v5571, 0.0
  %v5611 = vmax.f32 %v5572, 0.0
  %v5612 = vmax.f32 %v5573, 0.0
  %v5613 = vmax.f32 %v5574, 0.0
  %v5614 = vmax.f32 %v5575, 0.0
  %v5615 = vmax.f32 %v5576, 0.0
  %v5616 = vmax.f32 %v5577, 0.0
  %v5617 = vmax.f32 %v5578, 0.0
  %v5618 = vmax.f32 %v5579, 0.0
  %v5619 = vmax.f32 %v5580, 0.0
  %v5620 = vmax.f32 %v5581, 0.0
  %v5621 = vmax.f32 %v5582, 0.0
  %v5622 = vmax.f32 %v5583, 0.0
  %v5623 = vmax.f32 %v5584, 0.0
  %v5624 = vmax.f32 %v5585, 0.0
  %v5625 = vmax.f32 %v5586, 0.0
  %v5626 = vmax.f32 %v5587, 0.0
  %v5627 = vmax.f32 %v5588, 0.0
  %v5628 = vmax.f32 %v5589, 0.0
  %v5629 = vmax.f32 %v5590, 0.0
  %v5630 = vmax.f32 %v5591, 0.0
  %v5631 = vmax.f32 %v5592, 0.0
  %v5632 = vmax.f32 %v5593, 0.0
  %v5633 = vmax.f32 %v5594, 0.0
  %v5634 = vmax.f32 %v5595, 0.0
  %v5635 = vmax.f32 %v5596, 0.0
  %v5636 = vmax.f32 %v5597, 0.0
  %v5637 = vmax.f32 %v5598, 0.0
  %v5638 = vmax.f32 %v5599, 0.0
  %v5639 = vmax.f32 %v5600, 0.0
  %v5640 = vmax.f32 %v5601, 0.0
  %v5641 = vmax.f32 %v5602, 0.0
  %v5642 = vmax.f32 %v5603, 0.0
  %v5643 = vmax.f32 %v5604, 0.0
  %v5644 = vmax.f32 %v5605, 0.0
  %v5645 = vpack.c.bf16 %v5609, %v5606
  %v5646 = vpack.c.bf16 %v5610, %v5607
  %v5647 = vpack.c.bf16 %v5611, %v5608
  %v5648 = vpack.c.bf16 %v5615, %v5612
  %v5649 = vpack.c.bf16 %v5616, %v5613
  %v5650 = vpack.c.bf16 %v5617, %v5614
  %v5651 = vpack.c.bf16 %v5621, %v5618
  %v5652 = vpack.c.bf16 %v5622, %v5619
  %v5653 = vpack.c.bf16 %v5623, %v5620
  %v5654 = vpack.c.bf16 %v5627, %v5624
  %v5655 = vpack.c.bf16 %v5628, %v5625
  %v5656 = vpack.c.bf16 %v5629, %v5626
  %v5657 = vpack.c.bf16 %v5633, %v5630
  %v5658 = vpack.c.bf16 %v5634, %v5631
  %v5659 = vpack.c.bf16 %v5635, %v5632
  %v5660 = vpack.c.bf16 %v5639, %v5636
  %v5661 = vpack.c.bf16 %v5640, %v5637
  %v5662 = vpack.c.bf16 %v5641, %v5638
  %v5663 = vpack.c.bf16 %v5642, %v5642
  %v5664 = vpack.c.bf16 %v5643, %v5643
  %v5665 = vpack.c.bf16 %v5644, %v5644
  %v5687 = vunpack.c.l.b16 %v5645
  %v5688 = vunpack.c.l.b16 %v5646
  %v5689 = vunpack.c.l.b16 %v5647
  %v5690 = vunpack.c.h.b16 %v5645
  %v5691 = vunpack.c.h.b16 %v5646
  %v5692 = vunpack.c.h.b16 %v5647
  %v5693 = vunpack.c.l.b16 %v5648
  %v5694 = vunpack.c.l.b16 %v5649
  %v5695 = vunpack.c.l.b16 %v5650
  %v5696 = vunpack.c.h.b16 %v5648
  %v5697 = vunpack.c.h.b16 %v5649
  %v5698 = vunpack.c.h.b16 %v5650
  %v5699 = vunpack.c.l.b16 %v5651
  %v5700 = vunpack.c.l.b16 %v5652
  %v5701 = vunpack.c.l.b16 %v5653
  %v5702 = vunpack.c.h.b16 %v5651
  %v5703 = vunpack.c.h.b16 %v5652
  %v5704 = vunpack.c.h.b16 %v5653
  %v5705 = vunpack.c.l.b16 %v5654
  %v5706 = vunpack.c.l.b16 %v5655
  %v5707 = vunpack.c.l.b16 %v5656
  %v5708 = vunpack.c.h.b16 %v5654
  %v5709 = vunpack.c.h.b16 %v5655
  %v5710 = vunpack.c.h.b16 %v5656
  %v5711 = vunpack.c.l.b16 %v5657
  %v5712 = vunpack.c.l.b16 %v5658
  %v5713 = vunpack.c.l.b16 %v5659
  %v5714 = vunpack.c.h.b16 %v5657
  %v5715 = vunpack.c.h.b16 %v5658
  %v5716 = vunpack.c.h.b16 %v5659
  %v5717 = vunpack.c.l.b16 %v5660
  %v5718 = vunpack.c.l.b16 %v5661
  %v5719 = vunpack.c.l.b16 %v5662
  %v5720 = vunpack.c.h.b16 %v5660
  %v5721 = vunpack.c.h.b16 %v5661
  %v5722 = vunpack.c.h.b16 %v5662
  %v5723 = vunpack.c.l.b16 %v5663
  %v5724 = vunpack.c.l.b16 %v5664
  %v5725 = vunpack.c.l.b16 %v5665
  %v5726 = vpack.c.b16 %v5688, %v5687
  %v5727 = vpack.c.b16 %v5689, %v5689
  %v5728 = vpack.c.b16 %v5691, %v5690
  %v5729 = vpack.c.b16 %v5692, %v5692
  %v5730 = vpack.c.b16 %v5694, %v5693
  %v5731 = vpack.c.b16 %v5695, %v5695
  %v5732 = vpack.c.b16 %v5697, %v5696
  %v5733 = vpack.c.b16 %v5698, %v5698
  %v5734 = vpack.c.b16 %v5700, %v5699
  %v5735 = vpack.c.b16 %v5701, %v5701
  %v5736 = vpack.c.b16 %v5703, %v5702
  %v5737 = vpack.c.b16 %v5704, %v5704
  %v5738 = vpack.c.b16 %v5706, %v5705
  %v5739 = vpack.c.b16 %v5707, %v5707
  %v5740 = vpack.c.b16 %v5709, %v5708
  %v5741 = vpack.c.b16 %v5710, %v5710
  %v5742 = vpack.c.b16 %v5712, %v5711
  %v5743 = vpack.c.b16 %v5713, %v5713
  %v5744 = vpack.c.b16 %v5715, %v5714
  %v5745 = vpack.c.b16 %v5716, %v5716
  %v5746 = vpack.c.b16 %v5718, %v5717
  %v5747 = vpack.c.b16 %v5719, %v5719
  %v5748 = vpack.c.b16 %v5721, %v5720
  %v5749 = vpack.c.b16 %v5722, %v5722
  %v5750 = vpack.c.b16 %v5724, %v5723
  %v5751 = vpack.c.b16 %v5725, %v5725
  %5778 = vst [vmem:[%s4] sm:$0xff] %v5726
  %vm5779 = vcmask 125952
  %5780 = vst.msk [vmem:[%s4 + $0x8] sm:$0xf] %vm5779, %v5727
  %5781 = vst [vmem:[%s4 + $0xc] sm:$0xff] %v5728
  %5782 = vst.msk [vmem:[%s4 + $0x14] sm:$0xf] %vm5779, %v5729
  %5783 = vst [vmem:[%s4 + $0x18] sm:$0xff] %v5730
  %5784 = vst.msk [vmem:[%s4 + $0x20] sm:$0xf] %vm5779, %v5731
  %5785 = vst [vmem:[%s4 + $0x24] sm:$0xff] %v5732
  %5786 = vst.msk [vmem:[%s4 + $0x2c] sm:$0xf] %vm5779, %v5733
  %5787 = vst [vmem:[%s4 + $0x30] sm:$0xff] %v5734
  %5788 = vst.msk [vmem:[%s4 + $0x38] sm:$0xf] %vm5779, %v5735
  %5789 = vst [vmem:[%s4 + $0x3c] sm:$0xff] %v5736
  %5790 = vst.msk [vmem:[%s4 + $0x44] sm:$0xf] %vm5779, %v5737
  %5791 = vst [vmem:[%s4 + $0x48] sm:$0xff] %v5738
  %5792 = vst.msk [vmem:[%s4 + $0x50] sm:$0xf] %vm5779, %v5739
  %5793 = vst [vmem:[%s4 + $0x54] sm:$0xff] %v5740
  %5794 = vst.msk [vmem:[%s4 + $0x5c] sm:$0xf] %vm5779, %v5741
  %5795 = vst [vmem:[%s4 + $0x60] sm:$0xff] %v5742
  %5796 = vst.msk [vmem:[%s4 + $0x68] sm:$0xf] %vm5779, %v5743
  %5797 = vst [vmem:[%s4 + $0x6c] sm:$0xff] %v5744
  %5798 = vst.msk [vmem:[%s4 + $0x74] sm:$0xf] %vm5779, %v5745
  %5799 = vst [vmem:[%s4 + $0x78] sm:$0xff] %v5746
  %5800 = vst.msk [vmem:[%s4 + $0x80] sm:$0xf] %vm5779, %v5747
  %5801 = vst [vmem:[%s4 + $0x84] sm:$0xff] %v5748
  %5802 = vst.msk [vmem:[%s4 + $0x8c] sm:$0xf] %vm5779, %v5749
  %5803 = vst [vmem:[%s4 + $0x90] sm:$0xff] %v5750
  %5804 = vst.msk [vmem:[%s4 + $0x98] sm:$0xf] %vm5779, %v5751
  %v5805 = vld [vmem:[%s3] sm:$0xff]
  %v5806 = vld [vmem:[%s3 + $0x8] sm:$0xff]
  %v5807 = vld [vmem:[%s3 + $0x10] sm:$0x1]
  %vm5808 = vcmask 850944
  %v5810 = vsel %vm5808, %v5805, 0
  %v5813 = vsel %vm5808, %v5806, 0
  %v5816 = vsel %vm5808, %v5807, 0
  %5818 = vmatprep.subr.mxu0 0.0
  %5819 = vmatpush1.msra.mxu0 0.0
  %5820 = vmatprep.subr.mxu0 0.0
  %5821 = vmatpush1.msra.mxu0 0.0
  %5822 = vmatprep.subr.mxu0 0.0
  %5823 = vmatpush1.msra.mxu0 0.0
  %5824 = vmatprep.subr.mxu0 %v5643
  %5825 = vmatpush1.msra.mxu0 %v5642
  %5826 = vmatprep.subr.mxu0 %v5640
  %5827 = vmatpush1.msra.mxu0 %v5639
  %5828 = vmatprep.subr.mxu0 %v5637
  %5829 = vmatpush1.msra.mxu0 %v5636
  %5830 = vmatprep.subr.mxu0 %v5634
  %5831 = vmatpush1.msra.mxu0 %v5633
  %5832 = vmatprep.subr.mxu0 %v5631
  %5833 = vmatpush1.msra.mxu0 %v5630
  %5834 = vmatprep.subr.mxu0 %v5628
  %5835 = vmatpush1.msra.mxu0 %v5627
  %5836 = vmatprep.subr.mxu0 %v5625
  %5837 = vmatpush1.msra.mxu0 %v5624
  %5838 = vmatprep.subr.mxu0 %v5622
  %5839 = vmatpush1.msra.mxu0 %v5621
  %5840 = vmatprep.subr.mxu0 %v5619
  %5841 = vmatpush1.msra.mxu0 %v5618
  %5842 = vmatprep.subr.mxu0 %v5616
  %5843 = vmatpush1.msra.mxu0 %v5615
  %5844 = vmatprep.subr.mxu0 %v5613
  %5845 = vmatpush1.msra.mxu0 %v5612
  %5846 = vmatprep.subr.mxu0 %v5610
  %5847 = vmatpush1.msra.mxu0 %v5609
  %5848 = vmatprep.subr.mxu0 %v5607
  %5849 = vmatpush1.msra.mxu0 %v5606
  %5850 = vmatprep.subr.mxu0 0.0
  %5851 = vmatpush2.msra.mxu0 0.0
  %5852 = vmatprep.subr.mxu0 0.0
  %5853 = vmatpush2.msra.mxu0 0.0
  %5854 = vmatprep.subr.mxu0 0.0
  %5855 = vmatpush2.msra.mxu0 0.0
  %5856 = vmatprep.subr.mxu0 0.0
  %5857 = vmatpush2.msra.mxu0 0.0
  %5858 = vmatprep.subr.mxu0 0.0
  %5859 = vmatpush2.msra.mxu0 0.0
  %5860 = vmatprep.subr.mxu0 0.0
  %5861 = vmatpush2.msra.mxu0 0.0
  %5862 = vmatprep.subr.mxu0 0.0
  %5863 = vmatpush2.msra.mxu0 0.0
  %5864 = vmatprep.subr.mxu0 0.0
  %5865 = vmatpush2.msra.mxu0 0.0
  %5866 = vmatprep.subr.mxu0 0.0
  %5867 = vmatpush2.msra.mxu0 0.0
  %5868 = vmatprep.subr.mxu0 0.0
  %5869 = vmatpush2.msra.mxu0 0.0
  %5870 = vmatprep.subr.mxu0 0.0
  %5871 = vmatpush2.msra.mxu0 0.0
  %5872 = vmatprep.subr.mxu0 0.0
  %5873 = vmatpush2.msra.mxu0 0.0
  %5874 = vmatprep.subr.mxu0 0.0
  %5875 = vmatpush2.msra.mxu0 0.0
  %5876 = vmatprep.subr.mxu0 0.0
  %5877 = vmatpush2.msra.mxu0 0.0
  %5878 = vmatprep.subr.mxu0 0.0
  %5879 = vmatpush2.msra.mxu0 0.0
  %5880 = vmatprep.subr.mxu0 0.0
  %5881 = vmatpush2.msra.mxu0 0.0
  %5882 = vmatprep.mubr.f32.mxu0 0.0
  %5883 = vmatmul.mubr.f32.gmra.mxu0 %v5810
  %v5884 = vpop.f32.mrf.mxu0
  %v5885 = vadd.f32 0.0, %v5884
  %v5886 = vpop.f32.mrf.mxu0
  %v5887 = vadd.f32 0.0, %v5886
  %5888 = vmatprep.mubr.f32.mxu0 0.0
  %5889 = vmatmul.mubr.f32.gmra.mxu0 %v5813
  %v5890 = vpop.f32.mrf.mxu0
  %v5891 = vadd.f32 0.0, %v5890
  %v5892 = vpop.f32.mrf.mxu0
  %v5893 = vadd.f32 0.0, %v5892
  %5894 = vmatprep.mubr.f32.mxu0 0.0
  %5895 = vmatmul.mubr.f32.gmra.mxu0 %v5816
  %v5896 = vpop.f32.mrf.mxu0
  %v5897 = vadd.f32 0.0, %v5896
  %v5898 = vpop.f32.mrf.mxu0
  %v5899 = vadd.f32 0.0, %v5898
  %5900 = vdwg.mxu0
  %5901 = vmatprep.subr.mxu0 0.0
  %5902 = vmatpush1.msra.mxu0 0.0
  %5903 = vmatprep.subr.mxu0 0.0
  %5904 = vmatpush1.msra.mxu0 0.0
  %5905 = vmatprep.subr.mxu0 0.0
  %5906 = vmatpush1.msra.mxu0 0.0
  %5907 = vmatprep.subr.mxu0 0.0
  %5908 = vmatpush1.msra.mxu0 %v5644
  %5909 = vmatprep.subr.mxu0 0.0
  %5910 = vmatpush1.msra.mxu0 %v5641
  %5911 = vmatprep.subr.mxu0 0.0
  %5912 = vmatpush1.msra.mxu0 %v5638
  %5913 = vmatprep.subr.mxu0 0.0
  %5914 = vmatpush1.msra.mxu0 %v5635
  %5915 = vmatprep.subr.mxu0 0.0
  %5916 = vmatpush1.msra.mxu0 %v5632
  %5917 = vmatprep.subr.mxu0 0.0
  %5918 = vmatpush1.msra.mxu0 %v5629
  %5919 = vmatprep.subr.mxu0 0.0
  %5920 = vmatpush1.msra.mxu0 %v5626
  %5921 = vmatprep.subr.mxu0 0.0
  %5922 = vmatpush1.msra.mxu0 %v5623
  %5923 = vmatprep.subr.mxu0 0.0
  %5924 = vmatpush1.msra.mxu0 %v5620
  %5925 = vmatprep.subr.mxu0 0.0
  %5926 = vmatpush1.msra.mxu0 %v5617
  %5927 = vmatprep.subr.mxu0 0.0
  %5928 = vmatpush1.msra.mxu0 %v5614
  %5929 = vmatprep.subr.mxu0 0.0
  %5930 = vmatpush1.msra.mxu0 %v5611
  %5931 = vmatprep.subr.mxu0 0.0
  %5932 = vmatpush1.msra.mxu0 %v5608
  %5933 = vmatprep.subr.mxu0 0.0
  %5934 = vmatpush2.msra.mxu0 0.0
  %5935 = vmatprep.subr.mxu0 0.0
  %5936 = vmatpush2.msra.mxu0 0.0
  %5937 = vmatprep.subr.mxu0 0.0
  %5938 = vmatpush2.msra.mxu0 0.0
  %5939 = vmatprep.subr.mxu0 0.0
  %5940 = vmatpush2.msra.mxu0 0.0
  %5941 = vmatprep.subr.mxu0 0.0
  %5942 = vmatpush2.msra.mxu0 0.0
  %5943 = vmatprep.subr.mxu0 0.0
  %5944 = vmatpush2.msra.mxu0 0.0
  %5945 = vmatprep.subr.mxu0 0.0
  %5946 = vmatpush2.msra.mxu0 0.0
  %5947 = vmatprep.subr.mxu0 0.0
  %5948 = vmatpush2.msra.mxu0 0.0
  %5949 = vmatprep.subr.mxu0 0.0
  %5950 = vmatpush2.msra.mxu0 0.0
  %5951 = vmatprep.subr.mxu0 0.0
  %5952 = vmatpush2.msra.mxu0 0.0
  %5953 = vmatprep.subr.mxu0 0.0
  %5954 = vmatpush2.msra.mxu0 0.0
  %5955 = vmatprep.subr.mxu0 0.0
  %5956 = vmatpush2.msra.mxu0 0.0
  %5957 = vmatprep.subr.mxu0 0.0
  %5958 = vmatpush2.msra.mxu0 0.0
  %5959 = vmatprep.subr.mxu0 0.0
  %5960 = vmatpush2.msra.mxu0 0.0
  %5961 = vmatprep.subr.mxu0 0.0
  %5962 = vmatpush2.msra.mxu0 0.0
  %5963 = vmatprep.subr.mxu0 0.0
  %5964 = vmatpush2.msra.mxu0 0.0
  %5965 = vmatprep.mubr.f32.mxu0 0.0
  %5966 = vmatmul.mubr.f32.gmra.mxu0 %v5810
  %v5967 = vpop.f32.mrf.mxu0
  %v5968 = vadd.f32 0.0, %v5967
  %v5969 = vpop.f32.mrf.mxu0
  %5970 = vmatprep.mubr.f32.mxu0 0.0
  %5971 = vmatmul.mubr.f32.gmra.mxu0 %v5813
  %v5972 = vpop.f32.mrf.mxu0
  %v5973 = vadd.f32 0.0, %v5972
  %v5974 = vpop.f32.mrf.mxu0
  %5975 = vmatprep.mubr.f32.mxu0 0.0
  %5976 = vmatmul.mubr.f32.gmra.mxu0 %v5816
  %v5977 = vpop.f32.mrf.mxu0
  %v5978 = vadd.f32 0.0, %v5977
  %v5979 = vpop.f32.mrf.mxu0
  %5980 = vdwg.mxu0
  %5981 = vst [vmem:[%s5] sm:$0xff] %v5885
  %5982 = vst [vmem:[%s5 + $0x8] sm:$0xff] %v5887
  %vm5983 = vcmask 130048
  %5984 = vst.msk [vmem:[%s5 + $0x10] sm:$0xff] %vm5983, %v5968
  %5985 = vst [vmem:[%s5 + $0x18] sm:$0xff] %v5891
  %5986 = vst [vmem:[%s5 + $0x20] sm:$0xff] %v5893
  %5987 = vst.msk [vmem:[%s5 + $0x28] sm:$0xff] %vm5983, %v5973
  %5988 = vst [vmem:[%s5 + $0x30] sm:$0x1] %v5897
  %5989 = vst [vmem:[%s5 + $0x38] sm:$0x1] %v5899
  %vm5990 = vcmask 122880
  %5991 = vst.msk [vmem:[%s5 + $0x40] sm:$0x1] %vm5990, %v5978
  %v5992 = vmul.f32 %v5606, %v5606
  %v5993 = vmul.f32 %v5607, %v5607
  %v5994 = vmul.f32 %v5608, %v5608
  %v5995 = vmul.f32 %v5609, %v5609
  %v5996 = vmul.f32 %v5610, %v5610
  %v5997 = vmul.f32 %v5611, %v5611
  %v5998 = vmul.f32 %v5612, %v5612
  %v5999 = vmul.f32 %v5613, %v5613
  %v6000 = vmul.f32 %v5614, %v5614
  %v6001 = vmul.f32 %v5615, %v5615
  %v6002 = vmul.f32 %v5616, %v5616
  %v6003 = vmul.f32 %v5617, %v5617
  %v6004 = vmul.f32 %v5618, %v5618
  %v6005 = vmul.f32 %v5619, %v5619
  %v6006 = vmul.f32 %v5620, %v5620
  %v6007 = vmul.f32 %v5621, %v5621
  %v6008 = vmul.f32 %v5622, %v5622
  %v6009 = vmul.f32 %v5623, %v5623
  %v6010 = vmul.f32 %v5624, %v5624
  %v6011 = vmul.f32 %v5625, %v5625
  %v6012 = vmul.f32 %v5626, %v5626
  %v6013 = vmul.f32 %v5627, %v5627
  %v6014 = vmul.f32 %v5628, %v5628
  %v6015 = vmul.f32 %v5629, %v5629
  %v6016 = vmul.f32 %v5630, %v5630
  %v6017 = vmul.f32 %v5631, %v5631
  %v6018 = vmul.f32 %v5632, %v5632
  %v6019 = vmul.f32 %v5633, %v5633
  %v6020 = vmul.f32 %v5634, %v5634
  %v6021 = vmul.f32 %v5635, %v5635
  %v6022 = vmul.f32 %v5636, %v5636
  %v6023 = vmul.f32 %v5637, %v5637
  %v6024 = vmul.f32 %v5638, %v5638
  %v6025 = vmul.f32 %v5639, %v5639
  %v6026 = vmul.f32 %v5640, %v5640
  %v6027 = vmul.f32 %v5641, %v5641
  %v6028 = vmul.f32 %v5642, %v5642
  %v6029 = vmul.f32 %v5643, %v5643
  %v6030 = vmul.f32 %v5644, %v5644
  %6031 = vmatprep.subr.mxu0 0.0
  %6032 = vmatpush1.msra.mxu0 0.0
  %6033 = vmatprep.subr.mxu0 0.0
  %6034 = vmatpush1.msra.mxu0 0.0
  %6035 = vmatprep.subr.mxu0 0.0
  %6036 = vmatpush1.msra.mxu0 0.0
  %6037 = vmatprep.subr.mxu0 %v6029
  %6038 = vmatpush1.msra.mxu0 %v6028
  %6039 = vmatprep.subr.mxu0 %v6026
  %6040 = vmatpush1.msra.mxu0 %v6025
  %6041 = vmatprep.subr.mxu0 %v6023
  %6042 = vmatpush1.msra.mxu0 %v6022
  %6043 = vmatprep.subr.mxu0 %v6020
  %6044 = vmatpush1.msra.mxu0 %v6019
  %6045 = vmatprep.subr.mxu0 %v6017
  %6046 = vmatpush1.msra.mxu0 %v6016
  %6047 = vmatprep.subr.mxu0 %v6014
  %6048 = vmatpush1.msra.mxu0 %v6013
  %6049 = vmatprep.subr.mxu0 %v6011
  %6050 = vmatpush1.msra.mxu0 %v6010
  %6051 = vmatprep.subr.mxu0 %v6008
  %6052 = vmatpush1.msra.mxu0 %v6007
  %6053 = vmatprep.subr.mxu0 %v6005
  %6054 = vmatpush1.msra.mxu0 %v6004
  %6055 = vmatprep.subr.mxu0 %v6002
  %6056 = vmatpush1.msra.mxu0 %v6001
  %6057 = vmatprep.subr.mxu0 %v5999
  %6058 = vmatpush1.msra.mxu0 %v5998
  %6059 = vmatprep.subr.mxu0 %v5996
  %6060 = vmatpush1.msra.mxu0 %v5995
  %6061 = vmatprep.subr.mxu0 %v5993
  %6062 = vmatpush1.msra.mxu0 %v5992
  %6063 = vmatprep.subr.mxu0 0.0
  %6064 = vmatpush2.msra.mxu0 0.0
  %6065 = vmatprep.subr.mxu0 0.0
  %6066 = vmatpush2.msra.mxu0 0.0
  %6067 = vmatprep.subr.mxu0 0.0
  %6068 = vmatpush2.msra.mxu0 0.0
  %6069 = vmatprep.subr.mxu0 0.0
  %6070 = vmatpush2.msra.mxu0 0.0
  %6071 = vmatprep.subr.mxu0 0.0
  %6072 = vmatpush2.msra.mxu0 0.0
  %6073 = vmatprep.subr.mxu0 0.0
  %6074 = vmatpush2.msra.mxu0 0.0
  %6075 = vmatprep.subr.mxu0 0.0
  %6076 = vmatpush2.msra.mxu0 0.0
  %6077 = vmatprep.subr.mxu0 0.0
  %6078 = vmatpush2.msra.mxu0 0.0
  %6079 = vmatprep.subr.mxu0 0.0
  %6080 = vmatpush2.msra.mxu0 0.0
  %6081 = vmatprep.subr.mxu0 0.0
  %6082 = vmatpush2.msra.mxu0 0.0
  %6083 = vmatprep.subr.mxu0 0.0
  %6084 = vmatpush2.msra.mxu0 0.0
  %6085 = vmatprep.subr.mxu0 0.0
  %6086 = vmatpush2.msra.mxu0 0.0
  %6087 = vmatprep.subr.mxu0 0.0
  %6088 = vmatpush2.msra.mxu0 0.0
  %6089 = vmatprep.subr.mxu0 0.0
  %6090 = vmatpush2.msra.mxu0 0.0
  %6091 = vmatprep.subr.mxu0 0.0
  %6092 = vmatpush2.msra.mxu0 0.0
  %6093 = vmatprep.subr.mxu0 0.0
  %6094 = vmatpush2.msra.mxu0 0.0
  %6095 = vmatprep.mubr.f32.mxu0 0.0
  %6096 = vmatmul.mubr.f32.gmra.mxu0 %v5810
  %v6097 = vpop.f32.mrf.mxu0
  %v6098 = vadd.f32 0.0, %v6097
  %v6099 = vpop.f32.mrf.mxu0
  %v6100 = vadd.f32 0.0, %v6099
  %6101 = vmatprep.mubr.f32.mxu0 0.0
  %6102 = vmatmul.mubr.f32.gmra.mxu0 %v5813
  %v6103 = vpop.f32.mrf.mxu0
  %v6104 = vadd.f32 0.0, %v6103
  %v6105 = vpop.f32.mrf.mxu0
  %v6106 = vadd.f32 0.0, %v6105
  %6107 = vmatprep.mubr.f32.mxu0 0.0
  %6108 = vmatmul.mubr.f32.gmra.mxu0 %v5816
  %v6109 = vpop.f32.mrf.mxu0
  %v6110 = vadd.f32 0.0, %v6109
  %v6111 = vpop.f32.mrf.mxu0
  %v6112 = vadd.f32 0.0, %v6111
  %6113 = vdwg.mxu0
  %6114 = vmatprep.subr.mxu0 0.0
  %6115 = vmatpush1.msra.mxu0 0.0
  %6116 = vmatprep.subr.mxu0 0.0
  %6117 = vmatpush1.msra.mxu0 0.0
  %6118 = vmatprep.subr.mxu0 0.0
  %6119 = vmatpush1.msra.mxu0 0.0
  %6120 = vmatprep.subr.mxu0 0.0
  %6121 = vmatpush1.msra.mxu0 %v6030
  %6122 = vmatprep.subr.mxu0 0.0
  %6123 = vmatpush1.msra.mxu0 %v6027
  %6124 = vmatprep.subr.mxu0 0.0
  %6125 = vmatpush1.msra.mxu0 %v6024
  %6126 = vmatprep.subr.mxu0 0.0
  %6127 = vmatpush1.msra.mxu0 %v6021
  %6128 = vmatprep.subr.mxu0 0.0
  %6129 = vmatpush1.msra.mxu0 %v6018
  %6130 = vmatprep.subr.mxu0 0.0
  %6131 = vmatpush1.msra.mxu0 %v6015
  %6132 = vmatprep.subr.mxu0 0.0
  %6133 = vmatpush1.msra.mxu0 %v6012
  %6134 = vmatprep.subr.mxu0 0.0
  %6135 = vmatpush1.msra.mxu0 %v6009
  %6136 = vmatprep.subr.mxu0 0.0
  %6137 = vmatpush1.msra.mxu0 %v6006
  %6138 = vmatprep.subr.mxu0 0.0
  %6139 = vmatpush1.msra.mxu0 %v6003
  %6140 = vmatprep.subr.mxu0 0.0
  %6141 = vmatpush1.msra.mxu0 %v6000
  %6142 = vmatprep.subr.mxu0 0.0
  %6143 = vmatpush1.msra.mxu0 %v5997
  %6144 = vmatprep.subr.mxu0 0.0
  %6145 = vmatpush1.msra.mxu0 %v5994
  %6146 = vmatprep.subr.mxu0 0.0
  %6147 = vmatpush2.msra.mxu0 0.0
  %6148 = vmatprep.subr.mxu0 0.0
  %6149 = vmatpush2.msra.mxu0 0.0
  %6150 = vmatprep.subr.mxu0 0.0
  %6151 = vmatpush2.msra.mxu0 0.0
  %6152 = vmatprep.subr.mxu0 0.0
  %6153 = vmatpush2.msra.mxu0 0.0
  %6154 = vmatprep.subr.mxu0 0.0
  %6155 = vmatpush2.msra.mxu0 0.0
  %6156 = vmatprep.subr.mxu0 0.0
  %6157 = vmatpush2.msra.mxu0 0.0
  %6158 = vmatprep.subr.mxu0 0.0
  %6159 = vmatpush2.msra.mxu0 0.0
  %6160 = vmatprep.subr.mxu0 0.0
  %6161 = vmatpush2.msra.mxu0 0.0
  %6162 = vmatprep.subr.mxu0 0.0
  %6163 = vmatpush2.msra.mxu0 0.0
  %6164 = vmatprep.subr.mxu0 0.0
  %6165 = vmatpush2.msra.mxu0 0.0
  %6166 = vmatprep.subr.mxu0 0.0
  %6167 = vmatpush2.msra.mxu0 0.0
  %6168 = vmatprep.subr.mxu0 0.0
  %6169 = vmatpush2.msra.mxu0 0.0
  %6170 = vmatprep.subr.mxu0 0.0
  %6171 = vmatpush2.msra.mxu0 0.0
  %6172 = vmatprep.subr.mxu0 0.0
  %6173 = vmatpush2.msra.mxu0 0.0
  %6174 = vmatprep.subr.mxu0 0.0
  %6175 = vmatpush2.msra.mxu0 0.0
  %6176 = vmatprep.subr.mxu0 0.0
  %6177 = vmatpush2.msra.mxu0 0.0
  %6178 = vmatprep.mubr.f32.mxu0 0.0
  %6179 = vmatmul.mubr.f32.gmra.mxu0 %v5810
  %v6180 = vpop.f32.mrf.mxu0
  %v6181 = vadd.f32 0.0, %v6180
  %v6182 = vpop.f32.mrf.mxu0
  %6183 = vmatprep.mubr.f32.mxu0 0.0
  %6184 = vmatmul.mubr.f32.gmra.mxu0 %v5813
  %v6185 = vpop.f32.mrf.mxu0
  %v6186 = vadd.f32 0.0, %v6185
  %v6187 = vpop.f32.mrf.mxu0
  %6188 = vmatprep.mubr.f32.mxu0 0.0
  %6189 = vmatmul.mubr.f32.gmra.mxu0 %v5816
  %v6190 = vpop.f32.mrf.mxu0
  %v6191 = vadd.f32 0.0, %v6190
  %v6192 = vpop.f32.mrf.mxu0
  %6193 = vdwg.mxu0
  %6194 = vst [vmem:[%s6] sm:$0xff] %v6098
  %6195 = vst [vmem:[%s6 + $0x8] sm:$0xff] %v6100
  %6196 = vst.msk [vmem:[%s6 + $0x10] sm:$0xff] %vm5983, %v6181
  %6197 = vst [vmem:[%s6 + $0x18] sm:$0xff] %v6104
  %6198 = vst [vmem:[%s6 + $0x20] sm:$0xff] %v6106
  %6199 = vst.msk [vmem:[%s6 + $0x28] sm:$0xff] %vm5983, %v6186
  %6200 = vst [vmem:[%s6 + $0x30] sm:$0x1] %v6110
  %6201 = vst [vmem:[%s6 + $0x38] sm:$0x1] %v6112
  %6202 = vst.msk [vmem:[%s6 + $0x40] sm:$0x1] %vm5990, %v6191
  // Predicated region
  $region18: #{neural_net_forward.2} parent=0 // pred_check
    _
  $region19: #{neural_net_forward.2} parent=0 // pred_check_branch
    %6204 = sbr.rel (0) target = $region21
  $region20: #{neural_net_forward.2} parent=0 // pred_region
    _
  $region21: #{neural_net_forward.2} parent=0 // pred_fallthru
    _
  // Predicated region
  $region22: #{neural_net_forward.2} parent=0 // pred_check
    _
  $region23: #{neural_net_forward.2} parent=0 // pred_check_branch
    %6206 = sbr.rel (0) target = $region25
  $region24: #{neural_net_forward.2} parent=0 // pred_region
    _
  $region25: #{neural_net_forward.2} parent=0 // pred_fallthru
    _
  // Predicated region
  $region26: #{neural_net_forward.2} parent=0 // pred_check
    _
  $region27: #{neural_net_forward.2} parent=0 // pred_check_branch
    %6208 = sbr.rel (0) target = $region29
  $region28: #{neural_net_forward.2} parent=0 // pred_region
    _
  $region29: #{neural_net_forward.2} parent=0 // pred_fallthru
    _
  // Predicated region
  $region30: #{neural_net_forward.2} parent=0 // pred_check
    _
  $region31: #{neural_net_forward.2} parent=0 // pred_check_branch
    %6210 = sbr.rel (0) target = $region33
  $region32: #{neural_net_forward.2} parent=0 // pred_region
    _
  $region33: #{neural_net_forward.2} parent=0 // pred_fallthru
    _
  // Predicated region
  $region34: #{neural_net_forward.2} parent=0 // pred_check
    _
  $region35: #{neural_net_forward.2} parent=0 // pred_check_branch
    %6212 = sbr.rel (0) target = $region37
  $region36: #{neural_net_forward.2} parent=0 // pred_region
    _
  $region37: #{neural_net_forward.2} parent=0 // pred_fallthru
    _
  // Predicated region
  $region38: #{neural_net_forward.2} parent=0 // pred_check
    _
  $region39: #{neural_net_forward.2} parent=0 // pred_check_branch
    %6214 = sbr.rel (0) target = $region41
  $region40: #{neural_net_forward.2} parent=0 // pred_region
    _
  $region41: #{neural_net_forward.2} parent=0 // pred_fallthru
    _

// kernel: neural_net_forward.3
$region0: #{neural_net_forward.3}
  #allocation0 [shape = 'u32[]', space=smem, size = 0x4, offset = 0x4, fixed_abs, tag = 'smem constant byte address 0x4 - core index']
  #allocation1 [shape = 'u32[144,128]{1,0:T(1,128)}', space=vmem, size = 0x12000, scoped, tag = 'internal scratch']
  %s0 = inlined_call_operand.vmem [shape: bf16[4,7072], index: 0, kind: input, shape index: {}]
  %s1 = inlined_call_operand.vmem [shape: bf16[7072,32], index: 1, kind: input, shape index: {}]
  %s2 = inlined_call_operand.vmem [shape: f32[1,32], index: 2, kind: input, shape index: {}]
  %s3 = inlined_call_operand.vmem [shape: f32[32,8], index: 3, kind: input, shape index: {}]
  %s4 = inlined_call_operand.vmem [shape: f32[1,8], index: 4, kind: input, shape index: {}]
  %s5 = inlined_call_operand.vmem [shape: f32[4,8], index: 5, kind: output, shape index: {}]
  %s6 = sld [smem:[#allocation0]]
  $region30: #{neural_net_forward.3} parent=0
    _
  %s8 = ssub.s32 1, %s6
  %s9 = scalar_select 0, %s8, %s6
  // Predicated region
  $region2: #{neural_net_forward.3} parent=0 // pred_check
    _
  $region3: #{neural_net_forward.3} parent=0 // pred_check_branch
    %11 = sbr.rel (0) target = $region5
  $region4: #{neural_net_forward.3} parent=0 // pred_region
    _
  $region5: #{neural_net_forward.3} parent=0 // pred_fallthru
    _
  // Predicated region
  $region6: #{neural_net_forward.3} parent=0 // pred_check
    _
  $region7: #{neural_net_forward.3} parent=0 // pred_check_branch
    %13 = sbr.rel (0) target = $region9
  $region8: #{neural_net_forward.3} parent=0 // pred_region
    _
  $region9: #{neural_net_forward.3} parent=0 // pred_fallthru
    _
  // Predicated region
  $region10: #{neural_net_forward.3} parent=0 // pred_check
    _
  $region11: #{neural_net_forward.3} parent=0 // pred_check_branch
    %15 = sbr.rel (0) target = $region13
  $region12: #{neural_net_forward.3} parent=0 // pred_region
    _
  $region13: #{neural_net_forward.3} parent=0 // pred_fallthru
    _
  // Predicated region
  $region14: #{neural_net_forward.3} parent=0 // pred_check
    _
  $region15: #{neural_net_forward.3} parent=0 // pred_check_branch
    %17 = sbr.rel (0) target = $region17
  $region16: #{neural_net_forward.3} parent=0 // pred_region
    _
  $region17: #{neural_net_forward.3} parent=0 // pred_fallthru
    _
  // Predicated region
  $region18: #{neural_net_forward.3} parent=0 // pred_check
    _
  $region19: #{neural_net_forward.3} parent=0 // pred_check_branch
    %19 = sbr.rel (0) target = $region21
  $region20: #{neural_net_forward.3} parent=0 // pred_region
    _
  $region21: #{neural_net_forward.3} parent=0 // pred_fallthru
    _
  %v21 = vld [vmem:[%s0] sm:$0xff]
  %v22 = vld [vmem:[%s0 + $0x8] sm:$0xff]
  %v23 = vld [vmem:[%s0 + $0x10] sm:$0xff]
  %v24 = vld [vmem:[%s0 + $0x18] sm:$0xff]
  %v25 = vld [vmem:[%s0 + $0x20] sm:$0xff]
  %v26 = vld [vmem:[%s0 + $0x28] sm:$0xff]
  %v27 = vld [vmem:[%s0 + $0x30] sm:$0xff]
  %v28 = vld [vmem:[%s0 + $0x38] sm:$0xff]
  %v29 = vld [vmem:[%s0 + $0x40] sm:$0xff]
  %v30 = vld [vmem:[%s0 + $0x48] sm:$0xff]
  %v31 = vld [vmem:[%s0 + $0x50] sm:$0xff]
  %v32 = vld [vmem:[%s0 + $0x58] sm:$0xff]
  %v33 = vld [vmem:[%s0 + $0x60] sm:$0xff]
  %v34 = vld [vmem:[%s0 + $0x68] sm:$0xff]
  %v35 = vld [vmem:[%s1] sm:$0xf]
  %v36 = vld [vmem:[%s1 + $0x4] sm:$0xf]
  %v37 = vld [vmem:[%s1 + $0x8] sm:$0xf]
  %v38 = vld [vmem:[%s1 + $0xc] sm:$0xf]
  %v39 = vld [vmem:[%s1 + $0x10] sm:$0xf]
  %v40 = vld [vmem:[%s1 + $0x14] sm:$0xf]
  %v41 = vld [vmem:[%s1 + $0x18] sm:$0xf]
  %v42 = vld [vmem:[%s1 + $0x1c] sm:$0xf]
  %v43 = vld [vmem:[%s1 + $0x20] sm:$0xf]
  %v44 = vld [vmem:[%s1 + $0x24] sm:$0xf]
  %v45 = vld [vmem:[%s1 + $0x28] sm:$0xf]
  %v46 = vld [vmem:[%s1 + $0x2c] sm:$0xf]
  %v47 = vld [vmem:[%s1 + $0x30] sm:$0xf]
  %v48 = vld [vmem:[%s1 + $0x34] sm:$0xf]
  %v49 = vld [vmem:[%s1 + $0x38] sm:$0xf]
  %v50 = vld [vmem:[%s1 + $0x3c] sm:$0xf]
  %v51 = vld [vmem:[%s1 + $0x40] sm:$0xf]
  %v52 = vld [vmem:[%s1 + $0x44] sm:$0xf]
  %v53 = vld [vmem:[%s1 + $0x48] sm:$0xf]
  %v54 = vld [vmem:[%s1 + $0x4c] sm:$0xf]
  %v55 = vld [vmem:[%s1 + $0x50] sm:$0xf]
  %v56 = vld [vmem:[%s1 + $0x54] sm:$0xf]
  %v57 = vld [vmem:[%s1 + $0x58] sm:$0xf]
  %v58 = vld [vmem:[%s1 + $0x5c] sm:$0xf]
  %v59 = vld [vmem:[%s1 + $0x60] sm:$0xf]
  %v60 = vld [vmem:[%s1 + $0x64] sm:$0xf]
  %v61 = vld [vmem:[%s1 + $0x68] sm:$0xf]
  %v62 = vld [vmem:[%s1 + $0x6c] sm:$0xf]
  %v63 = vld [vmem:[%s1 + $0x70] sm:$0xf]
  %v64 = vld [vmem:[%s1 + $0x74] sm:$0xf]
  %v65 = vld [vmem:[%s1 + $0x78] sm:$0xf]
  %v66 = vld [vmem:[%s1 + $0x7c] sm:$0xf]
  %v67 = vld [vmem:[%s1 + $0x80] sm:$0xf]
  %v68 = vld [vmem:[%s1 + $0x84] sm:$0xf]
  %v69 = vld [vmem:[%s1 + $0x88] sm:$0xf]
  %v70 = vld [vmem:[%s1 + $0x8c] sm:$0xf]
  %v71 = vld [vmem:[%s1 + $0x90] sm:$0xf]
  %v72 = vld [vmem:[%s1 + $0x94] sm:$0xf]
  %v73 = vld [vmem:[%s1 + $0x98] sm:$0xf]
  %v74 = vld [vmem:[%s1 + $0x9c] sm:$0xf]
  %v75 = vld [vmem:[%s1 + $0xa0] sm:$0xf]
  %v76 = vld [vmem:[%s1 + $0xa4] sm:$0xf]
  %v77 = vld [vmem:[%s1 + $0xa8] sm:$0xf]
  %v78 = vld [vmem:[%s1 + $0xac] sm:$0xf]
  %v79 = vld [vmem:[%s1 + $0xb0] sm:$0xf]
  %v80 = vld [vmem:[%s1 + $0xb4] sm:$0xf]
  %v81 = vld [vmem:[%s1 + $0xb8] sm:$0xf]
  %v82 = vld [vmem:[%s1 + $0xbc] sm:$0xf]
  %v83 = vld [vmem:[%s1 + $0xc0] sm:$0xf]
  %v84 = vld [vmem:[%s1 + $0xc4] sm:$0xf]
  %v85 = vld [vmem:[%s1 + $0xc8] sm:$0xf]
  %v86 = vld [vmem:[%s1 + $0xcc] sm:$0xf]
  %v87 = vld [vmem:[%s1 + $0xd0] sm:$0xf]
  %v88 = vld [vmem:[%s1 + $0xd4] sm:$0xf]
  %v89 = vld [vmem:[%s1 + $0xd8] sm:$0xf]
  %v90 = vld [vmem:[%s1 + $0xdc] sm:$0xf]
  %v91 = vld [vmem:[%s1 + $0xe0] sm:$0xf]
  %v92 = vld [vmem:[%s1 + $0xe4] sm:$0xf]
  %v93 = vld [vmem:[%s1 + $0xe8] sm:$0xf]
  %v94 = vld [vmem:[%s1 + $0xec] sm:$0xf]
  %v95 = vld [vmem:[%s1 + $0xf0] sm:$0xf]
  %v96 = vld [vmem:[%s1 + $0xf4] sm:$0xf]
  %v97 = vld [vmem:[%s1 + $0xf8] sm:$0xf]
  %v98 = vld [vmem:[%s1 + $0xfc] sm:$0xf]
  %v99 = vld [vmem:[%s1 + $0x100] sm:$0xf]
  %v100 = vld [vmem:[%s1 + $0x104] sm:$0xf]
  %v101 = vld [vmem:[%s1 + $0x108] sm:$0xf]
  %v102 = vld [vmem:[%s1 + $0x10c] sm:$0xf]
  %v103 = vld [vmem:[%s1 + $0x110] sm:$0xf]
  %v104 = vld [vmem:[%s1 + $0x114] sm:$0xf]
  %v105 = vld [vmem:[%s1 + $0x118] sm:$0xf]
  %v106 = vld [vmem:[%s1 + $0x11c] sm:$0xf]
  %v107 = vld [vmem:[%s1 + $0x120] sm:$0xf]
  %v108 = vld [vmem:[%s1 + $0x124] sm:$0xf]
  %v109 = vld [vmem:[%s1 + $0x128] sm:$0xf]
  %v110 = vld [vmem:[%s1 + $0x12c] sm:$0xf]
  %v111 = vld [vmem:[%s1 + $0x130] sm:$0xf]
  %v112 = vld [vmem:[%s1 + $0x134] sm:$0xf]
  %v113 = vld [vmem:[%s1 + $0x138] sm:$0xf]
  %v114 = vld [vmem:[%s1 + $0x13c] sm:$0xf]
  %v115 = vld [vmem:[%s1 + $0x140] sm:$0xf]
  %v116 = vld [vmem:[%s1 + $0x144] sm:$0xf]
  %v117 = vld [vmem:[%s1 + $0x148] sm:$0xf]
  %v118 = vld [vmem:[%s1 + $0x14c] sm:$0xf]
  %v119 = vld [vmem:[%s1 + $0x150] sm:$0xf]
  %v120 = vld [vmem:[%s1 + $0x154] sm:$0xf]
  %v121 = vld [vmem:[%s1 + $0x158] sm:$0xf]
  %v122 = vld [vmem:[%s1 + $0x15c] sm:$0xf]
  %v123 = vld [vmem:[%s1 + $0x160] sm:$0xf]
  %v124 = vld [vmem:[%s1 + $0x164] sm:$0xf]
  %v125 = vld [vmem:[%s1 + $0x168] sm:$0xf]
  %v126 = vld [vmem:[%s1 + $0x16c] sm:$0xf]
  %v127 = vld [vmem:[%s1 + $0x170] sm:$0xf]
  %v128 = vld [vmem:[%s1 + $0x174] sm:$0xf]
  %v129 = vld [vmem:[%s1 + $0x178] sm:$0xf]
  %v130 = vld [vmem:[%s1 + $0x17c] sm:$0xf]
  %v131 = vld [vmem:[%s1 + $0x180] sm:$0xf]
  %v132 = vld [vmem:[%s1 + $0x184] sm:$0xf]
  %v133 = vld [vmem:[%s1 + $0x188] sm:$0xf]
  %v134 = vld [vmem:[%s1 + $0x18c] sm:$0xf]
  %v135 = vld [vmem:[%s1 + $0x190] sm:$0xf]
  %v136 = vld [vmem:[%s1 + $0x194] sm:$0xf]
  %v137 = vld [vmem:[%s1 + $0x198] sm:$0xf]
  %v138 = vld [vmem:[%s1 + $0x19c] sm:$0xf]
  %v139 = vld [vmem:[%s1 + $0x1a0] sm:$0xf]
  %v140 = vld [vmem:[%s1 + $0x1a4] sm:$0xf]
  %v141 = vld [vmem:[%s1 + $0x1a8] sm:$0xf]
  %v142 = vld [vmem:[%s1 + $0x1ac] sm:$0xf]
  %v143 = vld [vmem:[%s1 + $0x1b0] sm:$0xf]
  %v144 = vld [vmem:[%s1 + $0x1b4] sm:$0xf]
  %v145 = vld [vmem:[%s1 + $0x1b8] sm:$0xf]
  %v146 = vld [vmem:[%s1 + $0x1bc] sm:$0xf]
  %v147 = vld [vmem:[%s1 + $0x1c0] sm:$0xf]
  %v148 = vld [vmem:[%s1 + $0x1c4] sm:$0xf]
  %v149 = vld [vmem:[%s1 + $0x1c8] sm:$0xf]
  %v150 = vld [vmem:[%s1 + $0x1cc] sm:$0xf]
  %v151 = vld [vmem:[%s1 + $0x1d0] sm:$0xf]
  %v152 = vld [vmem:[%s1 + $0x1d4] sm:$0xf]
  %v153 = vld [vmem:[%s1 + $0x1d8] sm:$0xf]
  %v154 = vld [vmem:[%s1 + $0x1dc] sm:$0xf]
  %v155 = vld [vmem:[%s1 + $0x1e0] sm:$0xf]
  %v156 = vld [vmem:[%s1 + $0x1e4] sm:$0xf]
  %v157 = vld [vmem:[%s1 + $0x1e8] sm:$0xf]
  %v158 = vld [vmem:[%s1 + $0x1ec] sm:$0xf]
  %v159 = vld [vmem:[%s1 + $0x1f0] sm:$0xf]
  %v160 = vld [vmem:[%s1 + $0x1f4] sm:$0xf]
  %v161 = vld [vmem:[%s1 + $0x1f8] sm:$0xf]
  %v162 = vld [vmem:[%s1 + $0x1fc] sm:$0xf]
  %v163 = vld [vmem:[%s1 + $0x200] sm:$0xf]
  %v164 = vld [vmem:[%s1 + $0x204] sm:$0xf]
  %v165 = vld [vmem:[%s1 + $0x208] sm:$0xf]
  %v166 = vld [vmem:[%s1 + $0x20c] sm:$0xf]
  %v167 = vld [vmem:[%s1 + $0x210] sm:$0xf]
  %v168 = vld [vmem:[%s1 + $0x214] sm:$0xf]
  %v169 = vld [vmem:[%s1 + $0x218] sm:$0xf]
  %v170 = vld [vmem:[%s1 + $0x21c] sm:$0xf]
  %v171 = vld [vmem:[%s1 + $0x220] sm:$0xf]
  %v172 = vld [vmem:[%s1 + $0x224] sm:$0xf]
  %v173 = vld [vmem:[%s1 + $0x228] sm:$0xf]
  %v174 = vld [vmem:[%s1 + $0x22c] sm:$0xf]
  %v175 = vld [vmem:[%s1 + $0x230] sm:$0xf]
  %v176 = vld [vmem:[%s1 + $0x234] sm:$0xf]
  %v177 = vld [vmem:[%s1 + $0x238] sm:$0xf]
  %v178 = vld [vmem:[%s1 + $0x23c] sm:$0xf]
  %v179 = vld [vmem:[%s1 + $0x240] sm:$0xf]
  %v180 = vld [vmem:[%s1 + $0x244] sm:$0xf]
  %v181 = vld [vmem:[%s1 + $0x248] sm:$0xf]
  %v182 = vld [vmem:[%s1 + $0x24c] sm:$0xf]
  %v183 = vld [vmem:[%s1 + $0x250] sm:$0xf]
  %v184 = vld [vmem:[%s1 + $0x254] sm:$0xf]
  %v185 = vld [vmem:[%s1 + $0x258] sm:$0xf]
  %v186 = vld [vmem:[%s1 + $0x25c] sm:$0xf]
  %v187 = vld [vmem:[%s1 + $0x260] sm:$0xf]
  %v188 = vld [vmem:[%s1 + $0x264] sm:$0xf]
  %v189 = vld [vmem:[%s1 + $0x268] sm:$0xf]
  %v190 = vld [vmem:[%s1 + $0x26c] sm:$0xf]
  %v191 = vld [vmem:[%s1 + $0x270] sm:$0xf]
  %v192 = vld [vmem:[%s1 + $0x274] sm:$0xf]
  %v193 = vld [vmem:[%s1 + $0x278] sm:$0xf]
  %v194 = vld [vmem:[%s1 + $0x27c] sm:$0xf]
  %v195 = vld [vmem:[%s1 + $0x280] sm:$0xf]
  %v196 = vld [vmem:[%s1 + $0x284] sm:$0xf]
  %v197 = vld [vmem:[%s1 + $0x288] sm:$0xf]
  %v198 = vld [vmem:[%s1 + $0x28c] sm:$0xf]
  %v199 = vld [vmem:[%s1 + $0x290] sm:$0xf]
  %v200 = vld [vmem:[%s1 + $0x294] sm:$0xf]
  %v201 = vld [vmem:[%s1 + $0x298] sm:$0xf]
  %v202 = vld [vmem:[%s1 + $0x29c] sm:$0xf]
  %v203 = vld [vmem:[%s1 + $0x2a0] sm:$0xf]
  %v204 = vld [vmem:[%s1 + $0x2a4] sm:$0xf]
  %v205 = vld [vmem:[%s1 + $0x2a8] sm:$0xf]
  %v206 = vld [vmem:[%s1 + $0x2ac] sm:$0xf]
  %v207 = vld [vmem:[%s1 + $0x2b0] sm:$0xf]
  %v208 = vld [vmem:[%s1 + $0x2b4] sm:$0xf]
  %v209 = vld [vmem:[%s1 + $0x2b8] sm:$0xf]
  %v210 = vld [vmem:[%s1 + $0x2bc] sm:$0xf]
  %v211 = vld [vmem:[%s1 + $0x2c0] sm:$0xf]
  %v212 = vld [vmem:[%s1 + $0x2c4] sm:$0xf]
  %v213 = vld [vmem:[%s1 + $0x2c8] sm:$0xf]
  %v214 = vld [vmem:[%s1 + $0x2cc] sm:$0xf]
  %v215 = vld [vmem:[%s1 + $0x2d0] sm:$0xf]
  %v216 = vld [vmem:[%s1 + $0x2d4] sm:$0xf]
  %v217 = vld [vmem:[%s1 + $0x2d8] sm:$0xf]
  %v218 = vld [vmem:[%s1 + $0x2dc] sm:$0xf]
  %v219 = vld [vmem:[%s1 + $0x2e0] sm:$0xf]
  %v220 = vld [vmem:[%s1 + $0x2e4] sm:$0xf]
  %v221 = vld [vmem:[%s1 + $0x2e8] sm:$0xf]
  %v222 = vld [vmem:[%s1 + $0x2ec] sm:$0xf]
  %v223 = vld [vmem:[%s1 + $0x2f0] sm:$0xf]
  %v224 = vld [vmem:[%s1 + $0x2f4] sm:$0xf]
  %v225 = vld [vmem:[%s1 + $0x2f8] sm:$0xf]
  %v226 = vld [vmem:[%s1 + $0x2fc] sm:$0xf]
  %v227 = vld [vmem:[%s1 + $0x300] sm:$0xf]
  %v228 = vld [vmem:[%s1 + $0x304] sm:$0xf]
  %v229 = vld [vmem:[%s1 + $0x308] sm:$0xf]
  %v230 = vld [vmem:[%s1 + $0x30c] sm:$0xf]
  %v231 = vld [vmem:[%s1 + $0x310] sm:$0xf]
  %v232 = vld [vmem:[%s1 + $0x314] sm:$0xf]
  %v233 = vld [vmem:[%s1 + $0x318] sm:$0xf]
  %v234 = vld [vmem:[%s1 + $0x31c] sm:$0xf]
  %v235 = vld [vmem:[%s1 + $0x320] sm:$0xf]
  %v236 = vld [vmem:[%s1 + $0x324] sm:$0xf]
  %v237 = vld [vmem:[%s1 + $0x328] sm:$0xf]
  %v238 = vld [vmem:[%s1 + $0x32c] sm:$0xf]
  %v239 = vld [vmem:[%s1 + $0x330] sm:$0xf]
  %v240 = vld [vmem:[%s1 + $0x334] sm:$0xf]
  %v241 = vld [vmem:[%s1 + $0x338] sm:$0xf]
  %v242 = vld [vmem:[%s1 + $0x33c] sm:$0xf]
  %v243 = vld [vmem:[%s1 + $0x340] sm:$0xf]
  %v244 = vld [vmem:[%s1 + $0x344] sm:$0xf]
  %v245 = vld [vmem:[%s1 + $0x348] sm:$0xf]
  %v246 = vld [vmem:[%s1 + $0x34c] sm:$0xf]
  %v247 = vld [vmem:[%s1 + $0x350] sm:$0xf]
  %v248 = vld [vmem:[%s1 + $0x354] sm:$0xf]
  %v249 = vld [vmem:[%s1 + $0x358] sm:$0xf]
  %v250 = vld [vmem:[%s1 + $0x35c] sm:$0xf]
  %v251 = vld [vmem:[%s1 + $0x360] sm:$0xf]
  %v252 = vld [vmem:[%s1 + $0x364] sm:$0xf]
  %v253 = vld [vmem:[%s1 + $0x368] sm:$0xf]
  %v254 = vld [vmem:[%s1 + $0x36c] sm:$0xf]
  %v255 = vld [vmem:[%s1 + $0x370] sm:$0xf]
  %v256 = vld [vmem:[%s1 + $0x374] sm:$0xf]
  %v257 = vld [vmem:[%s1 + $0x378] sm:$0xf]
  %v258 = vld [vmem:[%s1 + $0x37c] sm:$0xf]
  %v259 = vld [vmem:[%s1 + $0x380] sm:$0xf]
  %v260 = vld [vmem:[%s1 + $0x384] sm:$0xf]
  %v261 = vld [vmem:[%s1 + $0x388] sm:$0xf]
  %v262 = vld [vmem:[%s1 + $0x38c] sm:$0xf]
  %v263 = vld [vmem:[%s1 + $0x390] sm:$0xf]
  %v264 = vld [vmem:[%s1 + $0x394] sm:$0xf]
  %v265 = vld [vmem:[%s1 + $0x398] sm:$0xf]
  %v266 = vld [vmem:[%s1 + $0x39c] sm:$0xf]
  %v267 = vld [vmem:[%s1 + $0x3a0] sm:$0xf]
  %v268 = vld [vmem:[%s1 + $0x3a4] sm:$0xf]
  %v269 = vld [vmem:[%s1 + $0x3a8] sm:$0xf]
  %v270 = vld [vmem:[%s1 + $0x3ac] sm:$0xf]
  %v271 = vld [vmem:[%s1 + $0x3b0] sm:$0xf]
  %v272 = vld [vmem:[%s1 + $0x3b4] sm:$0xf]
  %v273 = vld [vmem:[%s1 + $0x3b8] sm:$0xf]
  %v274 = vld [vmem:[%s1 + $0x3bc] sm:$0xf]
  %v275 = vld [vmem:[%s1 + $0x3c0] sm:$0xf]
  %v276 = vld [vmem:[%s1 + $0x3c4] sm:$0xf]
  %v277 = vld [vmem:[%s1 + $0x3c8] sm:$0xf]
  %v278 = vld [vmem:[%s1 + $0x3cc] sm:$0xf]
  %v279 = vld [vmem:[%s1 + $0x3d0] sm:$0xf]
  %v280 = vld [vmem:[%s1 + $0x3d4] sm:$0xf]
  %v281 = vld [vmem:[%s1 + $0x3d8] sm:$0xf]
  %v282 = vld [vmem:[%s1 + $0x3dc] sm:$0xf]
  %v283 = vld [vmem:[%s1 + $0x3e0] sm:$0xf]
  %v284 = vld [vmem:[%s1 + $0x3e4] sm:$0xf]
  %v285 = vld [vmem:[%s1 + $0x3e8] sm:$0xf]
  %v286 = vld [vmem:[%s1 + $0x3ec] sm:$0xf]
  %v287 = vld [vmem:[%s1 + $0x3f0] sm:$0xf]
  %v288 = vld [vmem:[%s1 + $0x3f4] sm:$0xf]
  %v289 = vld [vmem:[%s1 + $0x3f8] sm:$0xf]
  %v290 = vld [vmem:[%s1 + $0x3fc] sm:$0xf]
  %v291 = vld [vmem:[%s1 + $0x400] sm:$0xf]
  %v292 = vld [vmem:[%s1 + $0x404] sm:$0xf]
  %v293 = vld [vmem:[%s1 + $0x408] sm:$0xf]
  %v294 = vld [vmem:[%s1 + $0x40c] sm:$0xf]
  %v295 = vld [vmem:[%s1 + $0x410] sm:$0xf]
  %v296 = vld [vmem:[%s1 + $0x414] sm:$0xf]
  %v297 = vld [vmem:[%s1 + $0x418] sm:$0xf]
  %v298 = vld [vmem:[%s1 + $0x41c] sm:$0xf]
  %v299 = vld [vmem:[%s1 + $0x420] sm:$0xf]
  %v300 = vld [vmem:[%s1 + $0x424] sm:$0xf]
  %v301 = vld [vmem:[%s1 + $0x428] sm:$0xf]
  %v302 = vld [vmem:[%s1 + $0x42c] sm:$0xf]
  %v303 = vld [vmem:[%s1 + $0x430] sm:$0xf]
  %v304 = vld [vmem:[%s1 + $0x434] sm:$0xf]
  %v305 = vld [vmem:[%s1 + $0x438] sm:$0xf]
  %v306 = vld [vmem:[%s1 + $0x43c] sm:$0xf]
  %v307 = vld [vmem:[%s1 + $0x440] sm:$0xf]
  %v308 = vld [vmem:[%s1 + $0x444] sm:$0xf]
  %v309 = vld [vmem:[%s1 + $0x448] sm:$0xf]
  %v310 = vld [vmem:[%s1 + $0x44c] sm:$0xf]
  %v311 = vld [vmem:[%s1 + $0x450] sm:$0xf]
  %v312 = vld [vmem:[%s1 + $0x454] sm:$0xf]
  %v313 = vld [vmem:[%s1 + $0x458] sm:$0xf]
  %v314 = vld [vmem:[%s1 + $0x45c] sm:$0xf]
  %v315 = vld [vmem:[%s1 + $0x460] sm:$0xf]
  %v316 = vld [vmem:[%s1 + $0x464] sm:$0xf]
  %v317 = vld [vmem:[%s1 + $0x468] sm:$0xf]
  %v318 = vld [vmem:[%s1 + $0x46c] sm:$0xf]
  %v319 = vld [vmem:[%s1 + $0x470] sm:$0xf]
  %v320 = vld [vmem:[%s1 + $0x474] sm:$0xf]
  %v321 = vld [vmem:[%s1 + $0x478] sm:$0xf]
  %v322 = vld [vmem:[%s1 + $0x47c] sm:$0xf]
  %v323 = vld [vmem:[%s1 + $0x480] sm:$0xf]
  %v324 = vld [vmem:[%s1 + $0x484] sm:$0xf]
  %v325 = vld [vmem:[%s1 + $0x488] sm:$0xf]
  %v326 = vld [vmem:[%s1 + $0x48c] sm:$0xf]
  %v327 = vld [vmem:[%s1 + $0x490] sm:$0xf]
  %v328 = vld [vmem:[%s1 + $0x494] sm:$0xf]
  %v329 = vld [vmem:[%s1 + $0x498] sm:$0xf]
  %v330 = vld [vmem:[%s1 + $0x49c] sm:$0xf]
  %v331 = vld [vmem:[%s1 + $0x4a0] sm:$0xf]
  %v332 = vld [vmem:[%s1 + $0x4a4] sm:$0xf]
  %v333 = vld [vmem:[%s1 + $0x4a8] sm:$0xf]
  %v334 = vld [vmem:[%s1 + $0x4ac] sm:$0xf]
  %v335 = vld [vmem:[%s1 + $0x4b0] sm:$0xf]
  %v336 = vld [vmem:[%s1 + $0x4b4] sm:$0xf]
  %v337 = vld [vmem:[%s1 + $0x4b8] sm:$0xf]
  %v338 = vld [vmem:[%s1 + $0x4bc] sm:$0xf]
  %v339 = vld [vmem:[%s1 + $0x4c0] sm:$0xf]
  %v340 = vld [vmem:[%s1 + $0x4c4] sm:$0xf]
  %v341 = vld [vmem:[%s1 + $0x4c8] sm:$0xf]
  %v342 = vld [vmem:[%s1 + $0x4cc] sm:$0xf]
  %v343 = vld [vmem:[%s1 + $0x4d0] sm:$0xf]
  %v344 = vld [vmem:[%s1 + $0x4d4] sm:$0xf]
  %v345 = vld [vmem:[%s1 + $0x4d8] sm:$0xf]
  %v346 = vld [vmem:[%s1 + $0x4dc] sm:$0xf]
  %v347 = vld [vmem:[%s1 + $0x4e0] sm:$0xf]
  %v348 = vld [vmem:[%s1 + $0x4e4] sm:$0xf]
  %v349 = vld [vmem:[%s1 + $0x4e8] sm:$0xf]
  %v350 = vld [vmem:[%s1 + $0x4ec] sm:$0xf]
  %v351 = vld [vmem:[%s1 + $0x4f0] sm:$0xf]
  %v352 = vld [vmem:[%s1 + $0x4f4] sm:$0xf]
  %v353 = vld [vmem:[%s1 + $0x4f8] sm:$0xf]
  %v354 = vld [vmem:[%s1 + $0x4fc] sm:$0xf]
  %v355 = vld [vmem:[%s1 + $0x500] sm:$0xf]
  %v356 = vld [vmem:[%s1 + $0x504] sm:$0xf]
  %v357 = vld [vmem:[%s1 + $0x508] sm:$0xf]
  %v358 = vld [vmem:[%s1 + $0x50c] sm:$0xf]
  %v359 = vld [vmem:[%s1 + $0x510] sm:$0xf]
  %v360 = vld [vmem:[%s1 + $0x514] sm:$0xf]
  %v361 = vld [vmem:[%s1 + $0x518] sm:$0xf]
  %v362 = vld [vmem:[%s1 + $0x51c] sm:$0xf]
  %v363 = vld [vmem:[%s1 + $0x520] sm:$0xf]
  %v364 = vld [vmem:[%s1 + $0x524] sm:$0xf]
  %v365 = vld [vmem:[%s1 + $0x528] sm:$0xf]
  %v366 = vld [vmem:[%s1 + $0x52c] sm:$0xf]
  %v367 = vld [vmem:[%s1 + $0x530] sm:$0xf]
  %v368 = vld [vmem:[%s1 + $0x534] sm:$0xf]
  %v369 = vld [vmem:[%s1 + $0x538] sm:$0xf]
  %v370 = vld [vmem:[%s1 + $0x53c] sm:$0xf]
  %v371 = vld [vmem:[%s1 + $0x540] sm:$0xf]
  %v372 = vld [vmem:[%s1 + $0x544] sm:$0xf]
  %v373 = vld [vmem:[%s1 + $0x548] sm:$0xf]
  %v374 = vld [vmem:[%s1 + $0x54c] sm:$0xf]
  %v375 = vld [vmem:[%s1 + $0x550] sm:$0xf]
  %v376 = vld [vmem:[%s1 + $0x554] sm:$0xf]
  %v377 = vld [vmem:[%s1 + $0x558] sm:$0xf]
  %v378 = vld [vmem:[%s1 + $0x55c] sm:$0xf]
  %v379 = vld [vmem:[%s1 + $0x560] sm:$0xf]
  %v380 = vld [vmem:[%s1 + $0x564] sm:$0xf]
  %v381 = vld [vmem:[%s1 + $0x568] sm:$0xf]
  %v382 = vld [vmem:[%s1 + $0x56c] sm:$0xf]
  %v383 = vld [vmem:[%s1 + $0x570] sm:$0xf]
  %v384 = vld [vmem:[%s1 + $0x574] sm:$0xf]
  %v385 = vld [vmem:[%s1 + $0x578] sm:$0xf]
  %v386 = vld [vmem:[%s1 + $0x57c] sm:$0xf]
  %v387 = vld [vmem:[%s1 + $0x580] sm:$0xf]
  %v388 = vld [vmem:[%s1 + $0x584] sm:$0xf]
  %v389 = vld [vmem:[%s1 + $0x588] sm:$0xf]
  %v390 = vld [vmem:[%s1 + $0x58c] sm:$0xf]
  %v391 = vld [vmem:[%s1 + $0x590] sm:$0xf]
  %v392 = vld [vmem:[%s1 + $0x594] sm:$0xf]
  %v393 = vld [vmem:[%s1 + $0x598] sm:$0xf]
  %v394 = vld [vmem:[%s1 + $0x59c] sm:$0xf]
  %v395 = vld [vmem:[%s1 + $0x5a0] sm:$0xf]
  %v396 = vld [vmem:[%s1 + $0x5a4] sm:$0xf]
  %v397 = vld [vmem:[%s1 + $0x5a8] sm:$0xf]
  %v398 = vld [vmem:[%s1 + $0x5ac] sm:$0xf]
  %v399 = vld [vmem:[%s1 + $0x5b0] sm:$0xf]
  %v400 = vld [vmem:[%s1 + $0x5b4] sm:$0xf]
  %v401 = vld [vmem:[%s1 + $0x5b8] sm:$0xf]
  %v402 = vld [vmem:[%s1 + $0x5bc] sm:$0xf]
  %v403 = vld [vmem:[%s1 + $0x5c0] sm:$0xf]
  %v404 = vld [vmem:[%s1 + $0x5c4] sm:$0xf]
  %v405 = vld [vmem:[%s1 + $0x5c8] sm:$0xf]
  %v406 = vld [vmem:[%s1 + $0x5cc] sm:$0xf]
  %v407 = vld [vmem:[%s1 + $0x5d0] sm:$0xf]
  %v408 = vld [vmem:[%s1 + $0x5d4] sm:$0xf]
  %v409 = vld [vmem:[%s1 + $0x5d8] sm:$0xf]
  %v410 = vld [vmem:[%s1 + $0x5dc] sm:$0xf]
  %v411 = vld [vmem:[%s1 + $0x5e0] sm:$0xf]
  %v412 = vld [vmem:[%s1 + $0x5e4] sm:$0xf]
  %v413 = vld [vmem:[%s1 + $0x5e8] sm:$0xf]
  %v414 = vld [vmem:[%s1 + $0x5ec] sm:$0xf]
  %v415 = vld [vmem:[%s1 + $0x5f0] sm:$0xf]
  %v416 = vld [vmem:[%s1 + $0x5f4] sm:$0xf]
  %v417 = vld [vmem:[%s1 + $0x5f8] sm:$0xf]
  %v418 = vld [vmem:[%s1 + $0x5fc] sm:$0xf]
  %v419 = vld [vmem:[%s1 + $0x600] sm:$0xf]
  %v420 = vld [vmem:[%s1 + $0x604] sm:$0xf]
  %v421 = vld [vmem:[%s1 + $0x608] sm:$0xf]
  %v422 = vld [vmem:[%s1 + $0x60c] sm:$0xf]
  %v423 = vld [vmem:[%s1 + $0x610] sm:$0xf]
  %v424 = vld [vmem:[%s1 + $0x614] sm:$0xf]
  %v425 = vld [vmem:[%s1 + $0x618] sm:$0xf]
  %v426 = vld [vmem:[%s1 + $0x61c] sm:$0xf]
  %v427 = vld [vmem:[%s1 + $0x620] sm:$0xf]
  %v428 = vld [vmem:[%s1 + $0x624] sm:$0xf]
  %v429 = vld [vmem:[%s1 + $0x628] sm:$0xf]
  %v430 = vld [vmem:[%s1 + $0x62c] sm:$0xf]
  %v431 = vld [vmem:[%s1 + $0x630] sm:$0xf]
  %v432 = vld [vmem:[%s1 + $0x634] sm:$0xf]
  %v433 = vld [vmem:[%s1 + $0x638] sm:$0xf]
  %v434 = vld [vmem:[%s1 + $0x63c] sm:$0xf]
  %v435 = vld [vmem:[%s1 + $0x640] sm:$0xf]
  %v436 = vld [vmem:[%s1 + $0x644] sm:$0xf]
  %v437 = vld [vmem:[%s1 + $0x648] sm:$0xf]
  %v438 = vld [vmem:[%s1 + $0x64c] sm:$0xf]
  %v439 = vld [vmem:[%s1 + $0x650] sm:$0xf]
  %v440 = vld [vmem:[%s1 + $0x654] sm:$0xf]
  %v441 = vld [vmem:[%s1 + $0x658] sm:$0xf]
  %v442 = vld [vmem:[%s1 + $0x65c] sm:$0xf]
  %v443 = vld [vmem:[%s1 + $0x660] sm:$0xf]
  %v444 = vld [vmem:[%s1 + $0x664] sm:$0xf]
  %v445 = vld [vmem:[%s1 + $0x668] sm:$0xf]
  %v446 = vld [vmem:[%s1 + $0x66c] sm:$0xf]
  %v447 = vld [vmem:[%s1 + $0x670] sm:$0xf]
  %v448 = vld [vmem:[%s1 + $0x674] sm:$0xf]
  %v449 = vld [vmem:[%s1 + $0x678] sm:$0xf]
  %v450 = vld [vmem:[%s1 + $0x67c] sm:$0xf]
  %v451 = vld [vmem:[%s1 + $0x680] sm:$0xf]
  %v452 = vld [vmem:[%s1 + $0x684] sm:$0xf]
  %v453 = vld [vmem:[%s1 + $0x688] sm:$0xf]
  %v454 = vld [vmem:[%s1 + $0x68c] sm:$0xf]
  %v455 = vld [vmem:[%s1 + $0x690] sm:$0xf]
  %v456 = vld [vmem:[%s1 + $0x694] sm:$0xf]
  %v457 = vld [vmem:[%s1 + $0x698] sm:$0xf]
  %v458 = vld [vmem:[%s1 + $0x69c] sm:$0xf]
  %v459 = vld [vmem:[%s1 + $0x6a0] sm:$0xf]
  %v460 = vld [vmem:[%s1 + $0x6a4] sm:$0xf]
  %v461 = vld [vmem:[%s1 + $0x6a8] sm:$0xf]
  %v462 = vld [vmem:[%s1 + $0x6ac] sm:$0xf]
  %v463 = vld [vmem:[%s1 + $0x6b0] sm:$0xf]
  %v464 = vld [vmem:[%s1 + $0x6b4] sm:$0xf]
  %v465 = vld [vmem:[%s1 + $0x6b8] sm:$0xf]
  %v466 = vld [vmem:[%s1 + $0x6bc] sm:$0xf]
  %v467 = vld [vmem:[%s1 + $0x6c0] sm:$0xf]
  %v468 = vld [vmem:[%s1 + $0x6c4] sm:$0xf]
  %v469 = vld [vmem:[%s1 + $0x6c8] sm:$0xf]
  %v470 = vld [vmem:[%s1 + $0x6cc] sm:$0xf]
  %v471 = vld [vmem:[%s1 + $0x6d0] sm:$0xf]
  %v472 = vld [vmem:[%s1 + $0x6d4] sm:$0xf]
  %v473 = vld [vmem:[%s1 + $0x6d8] sm:$0xf]
  %v474 = vld [vmem:[%s1 + $0x6dc] sm:$0xf]
  %v475 = vld [vmem:[%s1 + $0x6e0] sm:$0xf]
  %v476 = vld [vmem:[%s1 + $0x6e4] sm:$0xf]
  %v477 = vld [vmem:[%s1 + $0x6e8] sm:$0xf]
  %v478 = vld [vmem:[%s1 + $0x6ec] sm:$0xf]
  %v479 = vld [vmem:[%s1 + $0x6f0] sm:$0xf]
  %v480 = vld [vmem:[%s1 + $0x6f4] sm:$0xf]
  %v481 = vld [vmem:[%s1 + $0x6f8] sm:$0xf]
  %v482 = vld [vmem:[%s1 + $0x6fc] sm:$0xf]
  %v483 = vld [vmem:[%s1 + $0x700] sm:$0xf]
  %v484 = vld [vmem:[%s1 + $0x704] sm:$0xf]
  %v485 = vld [vmem:[%s1 + $0x708] sm:$0xf]
  %v486 = vld [vmem:[%s1 + $0x70c] sm:$0xf]
  %v487 = vld [vmem:[%s1 + $0x710] sm:$0xf]
  %v488 = vld [vmem:[%s1 + $0x714] sm:$0xf]
  %v489 = vld [vmem:[%s1 + $0x718] sm:$0xf]
  %v490 = vld [vmem:[%s1 + $0x71c] sm:$0xf]
  %v491 = vld [vmem:[%s1 + $0x720] sm:$0xf]
  %v492 = vld [vmem:[%s1 + $0x724] sm:$0xf]
  %v493 = vld [vmem:[%s1 + $0x728] sm:$0xf]
  %v494 = vld [vmem:[%s1 + $0x72c] sm:$0xf]
  %v495 = vld [vmem:[%s1 + $0x730] sm:$0xf]
  %v496 = vld [vmem:[%s1 + $0x734] sm:$0xf]
  %v497 = vld [vmem:[%s1 + $0x738] sm:$0xf]
  %v498 = vld [vmem:[%s1 + $0x73c] sm:$0xf]
  %v499 = vld [vmem:[%s1 + $0x740] sm:$0xf]
  %v500 = vld [vmem:[%s1 + $0x744] sm:$0xf]
  %v501 = vld [vmem:[%s1 + $0x748] sm:$0xf]
  %v502 = vld [vmem:[%s1 + $0x74c] sm:$0xf]
  %v503 = vld [vmem:[%s1 + $0x750] sm:$0xf]
  %v504 = vld [vmem:[%s1 + $0x754] sm:$0xf]
  %v505 = vld [vmem:[%s1 + $0x758] sm:$0xf]
  %v506 = vld [vmem:[%s1 + $0x75c] sm:$0xf]
  %v507 = vld [vmem:[%s1 + $0x760] sm:$0xf]
  %v508 = vld [vmem:[%s1 + $0x764] sm:$0xf]
  %v509 = vld [vmem:[%s1 + $0x768] sm:$0xf]
  %v510 = vld [vmem:[%s1 + $0x76c] sm:$0xf]
  %v511 = vld [vmem:[%s1 + $0x770] sm:$0xf]
  %v512 = vld [vmem:[%s1 + $0x774] sm:$0xf]
  %v513 = vld [vmem:[%s1 + $0x778] sm:$0xf]
  %v514 = vld [vmem:[%s1 + $0x77c] sm:$0xf]
  %v515 = vld [vmem:[%s1 + $0x780] sm:$0xf]
  %v516 = vld [vmem:[%s1 + $0x784] sm:$0xf]
  %v517 = vld [vmem:[%s1 + $0x788] sm:$0xf]
  %v518 = vld [vmem:[%s1 + $0x78c] sm:$0xf]
  %v519 = vld [vmem:[%s1 + $0x790] sm:$0xf]
  %v520 = vld [vmem:[%s1 + $0x794] sm:$0xf]
  %v521 = vld [vmem:[%s1 + $0x798] sm:$0xf]
  %v522 = vld [vmem:[%s1 + $0x79c] sm:$0xf]
  %v523 = vld [vmem:[%s1 + $0x7a0] sm:$0xf]
  %v524 = vld [vmem:[%s1 + $0x7a4] sm:$0xf]
  %v525 = vld [vmem:[%s1 + $0x7a8] sm:$0xf]
  %v526 = vld [vmem:[%s1 + $0x7ac] sm:$0xf]
  %v527 = vld [vmem:[%s1 + $0x7b0] sm:$0xf]
  %v528 = vld [vmem:[%s1 + $0x7b4] sm:$0xf]
  %v529 = vld [vmem:[%s1 + $0x7b8] sm:$0xf]
  %v530 = vld [vmem:[%s1 + $0x7bc] sm:$0xf]
  %v531 = vld [vmem:[%s1 + $0x7c0] sm:$0xf]
  %v532 = vld [vmem:[%s1 + $0x7c4] sm:$0xf]
  %v533 = vld [vmem:[%s1 + $0x7c8] sm:$0xf]
  %v534 = vld [vmem:[%s1 + $0x7cc] sm:$0xf]
  %v535 = vld [vmem:[%s1 + $0x7d0] sm:$0xf]
  %v536 = vld [vmem:[%s1 + $0x7d4] sm:$0xf]
  %v537 = vld [vmem:[%s1 + $0x7d8] sm:$0xf]
  %v538 = vld [vmem:[%s1 + $0x7dc] sm:$0xf]
  %v539 = vld [vmem:[%s1 + $0x7e0] sm:$0xf]
  %v540 = vld [vmem:[%s1 + $0x7e4] sm:$0xf]
  %v541 = vld [vmem:[%s1 + $0x7e8] sm:$0xf]
  %v542 = vld [vmem:[%s1 + $0x7ec] sm:$0xf]
  %v543 = vld [vmem:[%s1 + $0x7f0] sm:$0xf]
  %v544 = vld [vmem:[%s1 + $0x7f4] sm:$0xf]
  %v545 = vld [vmem:[%s1 + $0x7f8] sm:$0xf]
  %v546 = vld [vmem:[%s1 + $0x7fc] sm:$0xf]
  %v547 = vld [vmem:[%s1 + $0x800] sm:$0xf]
  %v548 = vld [vmem:[%s1 + $0x804] sm:$0xf]
  %v549 = vld [vmem:[%s1 + $0x808] sm:$0xf]
  %v550 = vld [vmem:[%s1 + $0x80c] sm:$0xf]
  %v551 = vld [vmem:[%s1 + $0x810] sm:$0xf]
  %v552 = vld [vmem:[%s1 + $0x814] sm:$0xf]
  %v553 = vld [vmem:[%s1 + $0x818] sm:$0xf]
  %v554 = vld [vmem:[%s1 + $0x81c] sm:$0xf]
  %v555 = vld [vmem:[%s1 + $0x820] sm:$0xf]
  %v556 = vld [vmem:[%s1 + $0x824] sm:$0xf]
  %v557 = vld [vmem:[%s1 + $0x828] sm:$0xf]
  %v558 = vld [vmem:[%s1 + $0x82c] sm:$0xf]
  %v559 = vld [vmem:[%s1 + $0x830] sm:$0xf]
  %v560 = vld [vmem:[%s1 + $0x834] sm:$0xf]
  %v561 = vld [vmem:[%s1 + $0x838] sm:$0xf]
  %v562 = vld [vmem:[%s1 + $0x83c] sm:$0xf]
  %v563 = vld [vmem:[%s1 + $0x840] sm:$0xf]
  %v564 = vld [vmem:[%s1 + $0x844] sm:$0xf]
  %v565 = vld [vmem:[%s1 + $0x848] sm:$0xf]
  %v566 = vld [vmem:[%s1 + $0x84c] sm:$0xf]
  %v567 = vld [vmem:[%s1 + $0x850] sm:$0xf]
  %v568 = vld [vmem:[%s1 + $0x854] sm:$0xf]
  %v569 = vld [vmem:[%s1 + $0x858] sm:$0xf]
  %v570 = vld [vmem:[%s1 + $0x85c] sm:$0xf]
  %v571 = vld [vmem:[%s1 + $0x860] sm:$0xf]
  %v572 = vld [vmem:[%s1 + $0x864] sm:$0xf]
  %v573 = vld [vmem:[%s1 + $0x868] sm:$0xf]
  %v574 = vld [vmem:[%s1 + $0x86c] sm:$0xf]
  %v575 = vld [vmem:[%s1 + $0x870] sm:$0xf]
  %v576 = vld [vmem:[%s1 + $0x874] sm:$0xf]
  %v577 = vld [vmem:[%s1 + $0x878] sm:$0xf]
  %v578 = vld [vmem:[%s1 + $0x87c] sm:$0xf]
  %v579 = vld [vmem:[%s1 + $0x880] sm:$0xf]
  %v580 = vld [vmem:[%s1 + $0x884] sm:$0xf]
  %v581 = vld [vmem:[%s1 + $0x888] sm:$0xf]
  %v582 = vld [vmem:[%s1 + $0x88c] sm:$0xf]
  %v583 = vld [vmem:[%s1 + $0x890] sm:$0xf]
  %v584 = vld [vmem:[%s1 + $0x894] sm:$0xf]
  %v585 = vld [vmem:[%s1 + $0x898] sm:$0xf]
  %v586 = vld [vmem:[%s1 + $0x89c] sm:$0xf]
  %v587 = vld [vmem:[%s1 + $0x8a0] sm:$0xf]
  %v588 = vld [vmem:[%s1 + $0x8a4] sm:$0xf]
  %v589 = vld [vmem:[%s1 + $0x8a8] sm:$0xf]
  %v590 = vld [vmem:[%s1 + $0x8ac] sm:$0xf]
  %v591 = vld [vmem:[%s1 + $0x8b0] sm:$0xf]
  %v592 = vld [vmem:[%s1 + $0x8b4] sm:$0xf]
  %v593 = vld [vmem:[%s1 + $0x8b8] sm:$0xf]
  %v594 = vld [vmem:[%s1 + $0x8bc] sm:$0xf]
  %v595 = vld [vmem:[%s1 + $0x8c0] sm:$0xf]
  %v596 = vld [vmem:[%s1 + $0x8c4] sm:$0xf]
  %v597 = vld [vmem:[%s1 + $0x8c8] sm:$0xf]
  %v598 = vld [vmem:[%s1 + $0x8cc] sm:$0xf]
  %v599 = vld [vmem:[%s1 + $0x8d0] sm:$0xf]
  %v600 = vld [vmem:[%s1 + $0x8d4] sm:$0xf]
  %v601 = vld [vmem:[%s1 + $0x8d8] sm:$0xf]
  %v602 = vld [vmem:[%s1 + $0x8dc] sm:$0xf]
  %v603 = vld [vmem:[%s1 + $0x8e0] sm:$0xf]
  %v604 = vld [vmem:[%s1 + $0x8e4] sm:$0xf]
  %v605 = vld [vmem:[%s1 + $0x8e8] sm:$0xf]
  %v606 = vld [vmem:[%s1 + $0x8ec] sm:$0xf]
  %v607 = vld [vmem:[%s1 + $0x8f0] sm:$0xf]
  %v608 = vld [vmem:[%s1 + $0x8f4] sm:$0xf]
  %v609 = vld [vmem:[%s1 + $0x8f8] sm:$0xf]
  %v610 = vld [vmem:[%s1 + $0x8fc] sm:$0xf]
  %v611 = vld [vmem:[%s1 + $0x900] sm:$0xf]
  %v612 = vld [vmem:[%s1 + $0x904] sm:$0xf]
  %v613 = vld [vmem:[%s1 + $0x908] sm:$0xf]
  %v614 = vld [vmem:[%s1 + $0x90c] sm:$0xf]
  %v615 = vld [vmem:[%s1 + $0x910] sm:$0xf]
  %v616 = vld [vmem:[%s1 + $0x914] sm:$0xf]
  %v617 = vld [vmem:[%s1 + $0x918] sm:$0xf]
  %v618 = vld [vmem:[%s1 + $0x91c] sm:$0xf]
  %v619 = vld [vmem:[%s1 + $0x920] sm:$0xf]
  %v620 = vld [vmem:[%s1 + $0x924] sm:$0xf]
  %v621 = vld [vmem:[%s1 + $0x928] sm:$0xf]
  %v622 = vld [vmem:[%s1 + $0x92c] sm:$0xf]
  %v623 = vld [vmem:[%s1 + $0x930] sm:$0xf]
  %v624 = vld [vmem:[%s1 + $0x934] sm:$0xf]
  %v625 = vld [vmem:[%s1 + $0x938] sm:$0xf]
  %v626 = vld [vmem:[%s1 + $0x93c] sm:$0xf]
  %v627 = vld [vmem:[%s1 + $0x940] sm:$0xf]
  %v628 = vld [vmem:[%s1 + $0x944] sm:$0xf]
  %v629 = vld [vmem:[%s1 + $0x948] sm:$0xf]
  %v630 = vld [vmem:[%s1 + $0x94c] sm:$0xf]
  %v631 = vld [vmem:[%s1 + $0x950] sm:$0xf]
  %v632 = vld [vmem:[%s1 + $0x954] sm:$0xf]
  %v633 = vld [vmem:[%s1 + $0x958] sm:$0xf]
  %v634 = vld [vmem:[%s1 + $0x95c] sm:$0xf]
  %v635 = vld [vmem:[%s1 + $0x960] sm:$0xf]
  %v636 = vld [vmem:[%s1 + $0x964] sm:$0xf]
  %v637 = vld [vmem:[%s1 + $0x968] sm:$0xf]
  %v638 = vld [vmem:[%s1 + $0x96c] sm:$0xf]
  %v639 = vld [vmem:[%s1 + $0x970] sm:$0xf]
  %v640 = vld [vmem:[%s1 + $0x974] sm:$0xf]
  %v641 = vld [vmem:[%s1 + $0x978] sm:$0xf]
  %v642 = vld [vmem:[%s1 + $0x97c] sm:$0xf]
  %v643 = vld [vmem:[%s1 + $0x980] sm:$0xf]
  %v644 = vld [vmem:[%s1 + $0x984] sm:$0xf]
  %v645 = vld [vmem:[%s1 + $0x988] sm:$0xf]
  %v646 = vld [vmem:[%s1 + $0x98c] sm:$0xf]
  %v647 = vld [vmem:[%s1 + $0x990] sm:$0xf]
  %v648 = vld [vmem:[%s1 + $0x994] sm:$0xf]
  %v649 = vld [vmem:[%s1 + $0x998] sm:$0xf]
  %v650 = vld [vmem:[%s1 + $0x99c] sm:$0xf]
  %v651 = vld [vmem:[%s1 + $0x9a0] sm:$0xf]
  %v652 = vld [vmem:[%s1 + $0x9a4] sm:$0xf]
  %v653 = vld [vmem:[%s1 + $0x9a8] sm:$0xf]
  %v654 = vld [vmem:[%s1 + $0x9ac] sm:$0xf]
  %v655 = vld [vmem:[%s1 + $0x9b0] sm:$0xf]
  %v656 = vld [vmem:[%s1 + $0x9b4] sm:$0xf]
  %v657 = vld [vmem:[%s1 + $0x9b8] sm:$0xf]
  %v658 = vld [vmem:[%s1 + $0x9bc] sm:$0xf]
  %v659 = vld [vmem:[%s1 + $0x9c0] sm:$0xf]
  %v660 = vld [vmem:[%s1 + $0x9c4] sm:$0xf]
  %v661 = vld [vmem:[%s1 + $0x9c8] sm:$0xf]
  %v662 = vld [vmem:[%s1 + $0x9cc] sm:$0xf]
  %v663 = vld [vmem:[%s1 + $0x9d0] sm:$0xf]
  %v664 = vld [vmem:[%s1 + $0x9d4] sm:$0xf]
  %v665 = vld [vmem:[%s1 + $0x9d8] sm:$0xf]
  %v666 = vld [vmem:[%s1 + $0x9dc] sm:$0xf]
  %v667 = vld [vmem:[%s1 + $0x9e0] sm:$0xf]
  %v668 = vld [vmem:[%s1 + $0x9e4] sm:$0xf]
  %v669 = vld [vmem:[%s1 + $0x9e8] sm:$0xf]
  %v670 = vld [vmem:[%s1 + $0x9ec] sm:$0xf]
  %v671 = vld [vmem:[%s1 + $0x9f0] sm:$0xf]
  %v672 = vld [vmem:[%s1 + $0x9f4] sm:$0xf]
  %v673 = vld [vmem:[%s1 + $0x9f8] sm:$0xf]
  %v674 = vld [vmem:[%s1 + $0x9fc] sm:$0xf]
  %v675 = vld [vmem:[%s1 + $0xa00] sm:$0xf]
  %v676 = vld [vmem:[%s1 + $0xa04] sm:$0xf]
  %v677 = vld [vmem:[%s1 + $0xa08] sm:$0xf]
  %v678 = vld [vmem:[%s1 + $0xa0c] sm:$0xf]
  %v679 = vld [vmem:[%s1 + $0xa10] sm:$0xf]
  %v680 = vld [vmem:[%s1 + $0xa14] sm:$0xf]
  %v681 = vld [vmem:[%s1 + $0xa18] sm:$0xf]
  %v682 = vld [vmem:[%s1 + $0xa1c] sm:$0xf]
  %v683 = vld [vmem:[%s1 + $0xa20] sm:$0xf]
  %v684 = vld [vmem:[%s1 + $0xa24] sm:$0xf]
  %v685 = vld [vmem:[%s1 + $0xa28] sm:$0xf]
  %v686 = vld [vmem:[%s1 + $0xa2c] sm:$0xf]
  %v687 = vld [vmem:[%s1 + $0xa30] sm:$0xf]
  %v688 = vld [vmem:[%s1 + $0xa34] sm:$0xf]
  %v689 = vld [vmem:[%s1 + $0xa38] sm:$0xf]
  %v690 = vld [vmem:[%s1 + $0xa3c] sm:$0xf]
  %v691 = vld [vmem:[%s1 + $0xa40] sm:$0xf]
  %v692 = vld [vmem:[%s1 + $0xa44] sm:$0xf]
  %v693 = vld [vmem:[%s1 + $0xa48] sm:$0xf]
  %v694 = vld [vmem:[%s1 + $0xa4c] sm:$0xf]
  %v695 = vld [vmem:[%s1 + $0xa50] sm:$0xf]
  %v696 = vld [vmem:[%s1 + $0xa54] sm:$0xf]
  %v697 = vld [vmem:[%s1 + $0xa58] sm:$0xf]
  %v698 = vld [vmem:[%s1 + $0xa5c] sm:$0xf]
  %v699 = vld [vmem:[%s1 + $0xa60] sm:$0xf]
  %v700 = vld [vmem:[%s1 + $0xa64] sm:$0xf]
  %v701 = vld [vmem:[%s1 + $0xa68] sm:$0xf]
  %v702 = vld [vmem:[%s1 + $0xa6c] sm:$0xf]
  %v703 = vld [vmem:[%s1 + $0xa70] sm:$0xf]
  %v704 = vld [vmem:[%s1 + $0xa74] sm:$0xf]
  %v705 = vld [vmem:[%s1 + $0xa78] sm:$0xf]
  %v706 = vld [vmem:[%s1 + $0xa7c] sm:$0xf]
  %v707 = vld [vmem:[%s1 + $0xa80] sm:$0xf]
  %v708 = vld [vmem:[%s1 + $0xa84] sm:$0xf]
  %v709 = vld [vmem:[%s1 + $0xa88] sm:$0xf]
  %v710 = vld [vmem:[%s1 + $0xa8c] sm:$0xf]
  %v711 = vld [vmem:[%s1 + $0xa90] sm:$0xf]
  %v712 = vld [vmem:[%s1 + $0xa94] sm:$0xf]
  %v713 = vld [vmem:[%s1 + $0xa98] sm:$0xf]
  %v714 = vld [vmem:[%s1 + $0xa9c] sm:$0xf]
  %v715 = vld [vmem:[%s1 + $0xaa0] sm:$0xf]
  %v716 = vld [vmem:[%s1 + $0xaa4] sm:$0xf]
  %v717 = vld [vmem:[%s1 + $0xaa8] sm:$0xf]
  %v718 = vld [vmem:[%s1 + $0xaac] sm:$0xf]
  %v719 = vld [vmem:[%s1 + $0xab0] sm:$0xf]
  %v720 = vld [vmem:[%s1 + $0xab4] sm:$0xf]
  %v721 = vld [vmem:[%s1 + $0xab8] sm:$0xf]
  %v722 = vld [vmem:[%s1 + $0xabc] sm:$0xf]
  %v723 = vld [vmem:[%s1 + $0xac0] sm:$0xf]
  %v724 = vld [vmem:[%s1 + $0xac4] sm:$0xf]
  %v725 = vld [vmem:[%s1 + $0xac8] sm:$0xf]
  %v726 = vld [vmem:[%s1 + $0xacc] sm:$0xf]
  %v727 = vld [vmem:[%s1 + $0xad0] sm:$0xf]
  %v728 = vld [vmem:[%s1 + $0xad4] sm:$0xf]
  %v729 = vld [vmem:[%s1 + $0xad8] sm:$0xf]
  %v730 = vld [vmem:[%s1 + $0xadc] sm:$0xf]
  %v731 = vld [vmem:[%s1 + $0xae0] sm:$0xf]
  %v732 = vld [vmem:[%s1 + $0xae4] sm:$0xf]
  %v733 = vld [vmem:[%s1 + $0xae8] sm:$0xf]
  %v734 = vld [vmem:[%s1 + $0xaec] sm:$0xf]
  %v735 = vld [vmem:[%s1 + $0xaf0] sm:$0xf]
  %v736 = vld [vmem:[%s1 + $0xaf4] sm:$0xf]
  %v737 = vld [vmem:[%s1 + $0xaf8] sm:$0xf]
  %v738 = vld [vmem:[%s1 + $0xafc] sm:$0xf]
  %v739 = vld [vmem:[%s1 + $0xb00] sm:$0xf]
  %v740 = vld [vmem:[%s1 + $0xb04] sm:$0xf]
  %v741 = vld [vmem:[%s1 + $0xb08] sm:$0xf]
  %v742 = vld [vmem:[%s1 + $0xb0c] sm:$0xf]
  %v743 = vld [vmem:[%s1 + $0xb10] sm:$0xf]
  %v744 = vld [vmem:[%s1 + $0xb14] sm:$0xf]
  %v745 = vld [vmem:[%s1 + $0xb18] sm:$0xf]
  %v746 = vld [vmem:[%s1 + $0xb1c] sm:$0xf]
  %v747 = vld [vmem:[%s1 + $0xb20] sm:$0xf]
  %v748 = vld [vmem:[%s1 + $0xb24] sm:$0xf]
  %v749 = vld [vmem:[%s1 + $0xb28] sm:$0xf]
  %v750 = vld [vmem:[%s1 + $0xb2c] sm:$0xf]
  %v751 = vld [vmem:[%s1 + $0xb30] sm:$0xf]
  %v752 = vld [vmem:[%s1 + $0xb34] sm:$0xf]
  %v753 = vld [vmem:[%s1 + $0xb38] sm:$0xf]
  %v754 = vld [vmem:[%s1 + $0xb3c] sm:$0xf]
  %v755 = vld [vmem:[%s1 + $0xb40] sm:$0xf]
  %v756 = vld [vmem:[%s1 + $0xb44] sm:$0xf]
  %v757 = vld [vmem:[%s1 + $0xb48] sm:$0xf]
  %v758 = vld [vmem:[%s1 + $0xb4c] sm:$0xf]
  %v759 = vld [vmem:[%s1 + $0xb50] sm:$0xf]
  %v760 = vld [vmem:[%s1 + $0xb54] sm:$0xf]
  %v761 = vld [vmem:[%s1 + $0xb58] sm:$0xf]
  %v762 = vld [vmem:[%s1 + $0xb5c] sm:$0xf]
  %v763 = vld [vmem:[%s1 + $0xb60] sm:$0xf]
  %v764 = vld [vmem:[%s1 + $0xb64] sm:$0xf]
  %v765 = vld [vmem:[%s1 + $0xb68] sm:$0xf]
  %v766 = vld [vmem:[%s1 + $0xb6c] sm:$0xf]
  %v767 = vld [vmem:[%s1 + $0xb70] sm:$0xf]
  %v768 = vld [vmem:[%s1 + $0xb74] sm:$0xf]
  %v769 = vld [vmem:[%s1 + $0xb78] sm:$0xf]
  %v770 = vld [vmem:[%s1 + $0xb7c] sm:$0xf]
  %v771 = vld [vmem:[%s1 + $0xb80] sm:$0xf]
  %v772 = vld [vmem:[%s1 + $0xb84] sm:$0xf]
  %v773 = vld [vmem:[%s1 + $0xb88] sm:$0xf]
  %v774 = vld [vmem:[%s1 + $0xb8c] sm:$0xf]
  %v775 = vld [vmem:[%s1 + $0xb90] sm:$0xf]
  %v776 = vld [vmem:[%s1 + $0xb94] sm:$0xf]
  %v777 = vld [vmem:[%s1 + $0xb98] sm:$0xf]
  %v778 = vld [vmem:[%s1 + $0xb9c] sm:$0xf]
  %v779 = vld [vmem:[%s1 + $0xba0] sm:$0xf]
  %v780 = vld [vmem:[%s1 + $0xba4] sm:$0xf]
  %v781 = vld [vmem:[%s1 + $0xba8] sm:$0xf]
  %v782 = vld [vmem:[%s1 + $0xbac] sm:$0xf]
  %v783 = vld [vmem:[%s1 + $0xbb0] sm:$0xf]
  %v784 = vld [vmem:[%s1 + $0xbb4] sm:$0xf]
  %v785 = vld [vmem:[%s1 + $0xbb8] sm:$0xf]
  %v786 = vld [vmem:[%s1 + $0xbbc] sm:$0xf]
  %v787 = vld [vmem:[%s1 + $0xbc0] sm:$0xf]
  %v788 = vld [vmem:[%s1 + $0xbc4] sm:$0xf]
  %v789 = vld [vmem:[%s1 + $0xbc8] sm:$0xf]
  %v790 = vld [vmem:[%s1 + $0xbcc] sm:$0xf]
  %v791 = vld [vmem:[%s1 + $0xbd0] sm:$0xf]
  %v792 = vld [vmem:[%s1 + $0xbd4] sm:$0xf]
  %v793 = vld [vmem:[%s1 + $0xbd8] sm:$0xf]
  %v794 = vld [vmem:[%s1 + $0xbdc] sm:$0xf]
  %v795 = vld [vmem:[%s1 + $0xbe0] sm:$0xf]
  %v796 = vld [vmem:[%s1 + $0xbe4] sm:$0xf]
  %v797 = vld [vmem:[%s1 + $0xbe8] sm:$0xf]
  %v798 = vld [vmem:[%s1 + $0xbec] sm:$0xf]
  %v799 = vld [vmem:[%s1 + $0xbf0] sm:$0xf]
  %v800 = vld [vmem:[%s1 + $0xbf4] sm:$0xf]
  %v801 = vld [vmem:[%s1 + $0xbf8] sm:$0xf]
  %v802 = vld [vmem:[%s1 + $0xbfc] sm:$0xf]
  %v803 = vld [vmem:[%s1 + $0xc00] sm:$0xf]
  %v804 = vld [vmem:[%s1 + $0xc04] sm:$0xf]
  %v805 = vld [vmem:[%s1 + $0xc08] sm:$0xf]
  %v806 = vld [vmem:[%s1 + $0xc0c] sm:$0xf]
  %v807 = vld [vmem:[%s1 + $0xc10] sm:$0xf]
  %v808 = vld [vmem:[%s1 + $0xc14] sm:$0xf]
  %v809 = vld [vmem:[%s1 + $0xc18] sm:$0xf]
  %v810 = vld [vmem:[%s1 + $0xc1c] sm:$0xf]
  %v811 = vld [vmem:[%s1 + $0xc20] sm:$0xf]
  %v812 = vld [vmem:[%s1 + $0xc24] sm:$0xf]
  %v813 = vld [vmem:[%s1 + $0xc28] sm:$0xf]
  %v814 = vld [vmem:[%s1 + $0xc2c] sm:$0xf]
  %v815 = vld [vmem:[%s1 + $0xc30] sm:$0xf]
  %v816 = vld [vmem:[%s1 + $0xc34] sm:$0xf]
  %v817 = vld [vmem:[%s1 + $0xc38] sm:$0xf]
  %v818 = vld [vmem:[%s1 + $0xc3c] sm:$0xf]
  %v819 = vld [vmem:[%s1 + $0xc40] sm:$0xf]
  %v820 = vld [vmem:[%s1 + $0xc44] sm:$0xf]
  %v821 = vld [vmem:[%s1 + $0xc48] sm:$0xf]
  %v822 = vld [vmem:[%s1 + $0xc4c] sm:$0xf]
  %v823 = vld [vmem:[%s1 + $0xc50] sm:$0xf]
  %v824 = vld [vmem:[%s1 + $0xc54] sm:$0xf]
  %v825 = vld [vmem:[%s1 + $0xc58] sm:$0xf]
  %v826 = vld [vmem:[%s1 + $0xc5c] sm:$0xf]
  %v827 = vld [vmem:[%s1 + $0xc60] sm:$0xf]
  %v828 = vld [vmem:[%s1 + $0xc64] sm:$0xf]
  %v829 = vld [vmem:[%s1 + $0xc68] sm:$0xf]
  %v830 = vld [vmem:[%s1 + $0xc6c] sm:$0xf]
  %v831 = vld [vmem:[%s1 + $0xc70] sm:$0xf]
  %v832 = vld [vmem:[%s1 + $0xc74] sm:$0xf]
  %v833 = vld [vmem:[%s1 + $0xc78] sm:$0xf]
  %v834 = vld [vmem:[%s1 + $0xc7c] sm:$0xf]
  %v835 = vld [vmem:[%s1 + $0xc80] sm:$0xf]
  %v836 = vld [vmem:[%s1 + $0xc84] sm:$0xf]
  %v837 = vld [vmem:[%s1 + $0xc88] sm:$0xf]
  %v838 = vld [vmem:[%s1 + $0xc8c] sm:$0xf]
  %v839 = vld [vmem:[%s1 + $0xc90] sm:$0xf]
  %v840 = vld [vmem:[%s1 + $0xc94] sm:$0xf]
  %v841 = vld [vmem:[%s1 + $0xc98] sm:$0xf]
  %v842 = vld [vmem:[%s1 + $0xc9c] sm:$0xf]
  %v843 = vld [vmem:[%s1 + $0xca0] sm:$0xf]
  %v844 = vld [vmem:[%s1 + $0xca4] sm:$0xf]
  %v845 = vld [vmem:[%s1 + $0xca8] sm:$0xf]
  %v846 = vld [vmem:[%s1 + $0xcac] sm:$0xf]
  %v847 = vld [vmem:[%s1 + $0xcb0] sm:$0xf]
  %v848 = vld [vmem:[%s1 + $0xcb4] sm:$0xf]
  %v849 = vld [vmem:[%s1 + $0xcb8] sm:$0xf]
  %v850 = vld [vmem:[%s1 + $0xcbc] sm:$0xf]
  %v851 = vld [vmem:[%s1 + $0xcc0] sm:$0xf]
  %v852 = vld [vmem:[%s1 + $0xcc4] sm:$0xf]
  %v853 = vld [vmem:[%s1 + $0xcc8] sm:$0xf]
  %v854 = vld [vmem:[%s1 + $0xccc] sm:$0xf]
  %v855 = vld [vmem:[%s1 + $0xcd0] sm:$0xf]
  %v856 = vld [vmem:[%s1 + $0xcd4] sm:$0xf]
  %v857 = vld [vmem:[%s1 + $0xcd8] sm:$0xf]
  %v858 = vld [vmem:[%s1 + $0xcdc] sm:$0xf]
  %v859 = vld [vmem:[%s1 + $0xce0] sm:$0xf]
  %v860 = vld [vmem:[%s1 + $0xce4] sm:$0xf]
  %v861 = vld [vmem:[%s1 + $0xce8] sm:$0xf]
  %v862 = vld [vmem:[%s1 + $0xcec] sm:$0xf]
  %v863 = vld [vmem:[%s1 + $0xcf0] sm:$0xf]
  %v864 = vld [vmem:[%s1 + $0xcf4] sm:$0xf]
  %v865 = vld [vmem:[%s1 + $0xcf8] sm:$0xf]
  %v866 = vld [vmem:[%s1 + $0xcfc] sm:$0xf]
  %v867 = vld [vmem:[%s1 + $0xd00] sm:$0xf]
  %v868 = vld [vmem:[%s1 + $0xd04] sm:$0xf]
  %v869 = vld [vmem:[%s1 + $0xd08] sm:$0xf]
  %v870 = vld [vmem:[%s1 + $0xd0c] sm:$0xf]
  %v871 = vld [vmem:[%s1 + $0xd10] sm:$0xf]
  %v872 = vld [vmem:[%s1 + $0xd14] sm:$0xf]
  %v873 = vld [vmem:[%s1 + $0xd18] sm:$0xf]
  %v874 = vld [vmem:[%s1 + $0xd1c] sm:$0xf]
  %v875 = vld [vmem:[%s1 + $0xd20] sm:$0xf]
  %v876 = vld [vmem:[%s1 + $0xd24] sm:$0xf]
  %v877 = vld [vmem:[%s1 + $0xd28] sm:$0xf]
  %v878 = vld [vmem:[%s1 + $0xd2c] sm:$0xf]
  %v879 = vld [vmem:[%s1 + $0xd30] sm:$0xf]
  %v880 = vld [vmem:[%s1 + $0xd34] sm:$0xf]
  %v881 = vld [vmem:[%s1 + $0xd38] sm:$0xf]
  %v882 = vld [vmem:[%s1 + $0xd3c] sm:$0xf]
  %v883 = vld [vmem:[%s1 + $0xd40] sm:$0xf]
  %v884 = vld [vmem:[%s1 + $0xd44] sm:$0xf]
  %v885 = vld [vmem:[%s1 + $0xd48] sm:$0xf]
  %v886 = vld [vmem:[%s1 + $0xd4c] sm:$0xf]
  %v887 = vld [vmem:[%s1 + $0xd50] sm:$0xf]
  %v888 = vld [vmem:[%s1 + $0xd54] sm:$0xf]
  %v889 = vld [vmem:[%s1 + $0xd58] sm:$0xf]
  %v890 = vld [vmem:[%s1 + $0xd5c] sm:$0xf]
  %v891 = vld [vmem:[%s1 + $0xd60] sm:$0xf]
  %v892 = vld [vmem:[%s1 + $0xd64] sm:$0xf]
  %v893 = vld [vmem:[%s1 + $0xd68] sm:$0xf]
  %v894 = vld [vmem:[%s1 + $0xd6c] sm:$0xf]
  %v895 = vld [vmem:[%s1 + $0xd70] sm:$0xf]
  %v896 = vld [vmem:[%s1 + $0xd74] sm:$0xf]
  %v897 = vld [vmem:[%s1 + $0xd78] sm:$0xf]
  %v898 = vld [vmem:[%s1 + $0xd7c] sm:$0xf]
  %v899 = vld [vmem:[%s1 + $0xd80] sm:$0xf]
  %v900 = vld [vmem:[%s1 + $0xd84] sm:$0xf]
  %v901 = vld [vmem:[%s1 + $0xd88] sm:$0xf]
  %v902 = vld [vmem:[%s1 + $0xd8c] sm:$0xf]
  %v903 = vld [vmem:[%s1 + $0xd90] sm:$0xf]
  %v904 = vld [vmem:[%s1 + $0xd94] sm:$0xf]
  %v905 = vld [vmem:[%s1 + $0xd98] sm:$0xf]
  %v906 = vld [vmem:[%s1 + $0xd9c] sm:$0xf]
  %v907 = vld [vmem:[%s1 + $0xda0] sm:$0xf]
  %v908 = vld [vmem:[%s1 + $0xda4] sm:$0xf]
  %v909 = vld [vmem:[%s1 + $0xda8] sm:$0xf]
  %v910 = vld [vmem:[%s1 + $0xdac] sm:$0xf]
  %v911 = vld [vmem:[%s1 + $0xdb0] sm:$0xf]
  %v912 = vld [vmem:[%s1 + $0xdb4] sm:$0xf]
  %v913 = vld [vmem:[%s1 + $0xdb8] sm:$0xf]
  %v914 = vld [vmem:[%s1 + $0xdbc] sm:$0xf]
  %v915 = vld [vmem:[%s1 + $0xdc0] sm:$0xf]
  %v916 = vld [vmem:[%s1 + $0xdc4] sm:$0xf]
  %v917 = vld [vmem:[%s1 + $0xdc8] sm:$0xf]
  %v918 = vld [vmem:[%s1 + $0xdcc] sm:$0xf]
  %v919 = vld [vmem:[%s2] sm:$0x1]
  %v921 = vlaneseq
  %v922 = vshrl.u32 %v921, 7
  %v923 = vsub.s32 0, %v922
  %v924 = vrot.slane %v919, %v923
  %v940 = vcombine.high %v21, %v21
  %v942 = vunpack.c.l.s4 1983009808
  %v943 = vunpack.c.0.s8 %v942
  %v944 = vlaneseq
  %v945 = vshrl.u32 %v944, 7
  %v946 = vsub.s32 %v943, %v945
  %v947 = vrot.slane %v21, %v946
  %v949 = vunpack.c.l.s4 1983009808
  %v950 = vunpack.c.0.s8 %v949
  %v951 = vlaneseq
  %v952 = vshrl.u32 %v951, 7
  %v953 = vsub.s32 %v950, %v952
  %v954 = vrot.slane %v940, %v953
  %v955 = vcombine.high %v947, %v947
  %v956 = vcombine.high %v954, %v954
  %v957 = vcombine.high %v22, %v22
  %v959 = vunpack.c.l.s4 1983009808
  %v960 = vunpack.c.0.s8 %v959
  %v961 = vlaneseq
  %v962 = vshrl.u32 %v961, 7
  %v963 = vsub.s32 %v960, %v962
  %v964 = vrot.slane %v22, %v963
  %v966 = vunpack.c.l.s4 1983009808
  %v967 = vunpack.c.0.s8 %v966
  %v968 = vlaneseq
  %v969 = vshrl.u32 %v968, 7
  %v970 = vsub.s32 %v967, %v969
  %v971 = vrot.slane %v957, %v970
  %v972 = vcombine.high %v964, %v964
  %v973 = vcombine.high %v971, %v971
  %v974 = vcombine.high %v23, %v23
  %v976 = vunpack.c.l.s4 1983009808
  %v977 = vunpack.c.0.s8 %v976
  %v978 = vlaneseq
  %v979 = vshrl.u32 %v978, 7
  %v980 = vsub.s32 %v977, %v979
  %v981 = vrot.slane %v23, %v980
  %v983 = vunpack.c.l.s4 1983009808
  %v984 = vunpack.c.0.s8 %v983
  %v985 = vlaneseq
  %v986 = vshrl.u32 %v985, 7
  %v987 = vsub.s32 %v984, %v986
  %v988 = vrot.slane %v974, %v987
  %v989 = vcombine.high %v981, %v981
  %v990 = vcombine.high %v988, %v988
  %v991 = vcombine.high %v24, %v24
  %v993 = vunpack.c.l.s4 1983009808
  %v994 = vunpack.c.0.s8 %v993
  %v995 = vlaneseq
  %v996 = vshrl.u32 %v995, 7
  %v997 = vsub.s32 %v994, %v996
  %v998 = vrot.slane %v24, %v997
  %v1000 = vunpack.c.l.s4 1983009808
  %v1001 = vunpack.c.0.s8 %v1000
  %v1002 = vlaneseq
  %v1003 = vshrl.u32 %v1002, 7
  %v1004 = vsub.s32 %v1001, %v1003
  %v1005 = vrot.slane %v991, %v1004
  %v1006 = vcombine.high %v998, %v998
  %v1007 = vcombine.high %v1005, %v1005
  %v1008 = vcombine.high %v25, %v25
  %v1010 = vunpack.c.l.s4 1983009808
  %v1011 = vunpack.c.0.s8 %v1010
  %v1012 = vlaneseq
  %v1013 = vshrl.u32 %v1012, 7
  %v1014 = vsub.s32 %v1011, %v1013
  %v1015 = vrot.slane %v25, %v1014
  %v1017 = vunpack.c.l.s4 1983009808
  %v1018 = vunpack.c.0.s8 %v1017
  %v1019 = vlaneseq
  %v1020 = vshrl.u32 %v1019, 7
  %v1021 = vsub.s32 %v1018, %v1020
  %v1022 = vrot.slane %v1008, %v1021
  %v1023 = vcombine.high %v1015, %v1015
  %v1024 = vcombine.high %v1022, %v1022
  %v1025 = vcombine.high %v26, %v26
  %v1027 = vunpack.c.l.s4 1983009808
  %v1028 = vunpack.c.0.s8 %v1027
  %v1029 = vlaneseq
  %v1030 = vshrl.u32 %v1029, 7
  %v1031 = vsub.s32 %v1028, %v1030
  %v1032 = vrot.slane %v26, %v1031
  %v1034 = vunpack.c.l.s4 1983009808
  %v1035 = vunpack.c.0.s8 %v1034
  %v1036 = vlaneseq
  %v1037 = vshrl.u32 %v1036, 7
  %v1038 = vsub.s32 %v1035, %v1037
  %v1039 = vrot.slane %v1025, %v1038
  %v1040 = vcombine.high %v1032, %v1032
  %v1041 = vcombine.high %v1039, %v1039
  %v1042 = vcombine.high %v27, %v27
  %v1044 = vunpack.c.l.s4 1983009808
  %v1045 = vunpack.c.0.s8 %v1044
  %v1046 = vlaneseq
  %v1047 = vshrl.u32 %v1046, 7
  %v1048 = vsub.s32 %v1045, %v1047
  %v1049 = vrot.slane %v27, %v1048
  %v1051 = vunpack.c.l.s4 1983009808
  %v1052 = vunpack.c.0.s8 %v1051
  %v1053 = vlaneseq
  %v1054 = vshrl.u32 %v1053, 7
  %v1055 = vsub.s32 %v1052, %v1054
  %v1056 = vrot.slane %v1042, %v1055
  %v1057 = vcombine.high %v1049, %v1049
  %v1058 = vcombine.high %v1056, %v1056
  %v1059 = vcombine.high %v28, %v28
  %v1061 = vunpack.c.l.s4 1983009808
  %v1062 = vunpack.c.0.s8 %v1061
  %v1063 = vlaneseq
  %v1064 = vshrl.u32 %v1063, 7
  %v1065 = vsub.s32 %v1062, %v1064
  %v1066 = vrot.slane %v28, %v1065
  %v1068 = vunpack.c.l.s4 1983009808
  %v1069 = vunpack.c.0.s8 %v1068
  %v1070 = vlaneseq
  %v1071 = vshrl.u32 %v1070, 7
  %v1072 = vsub.s32 %v1069, %v1071
  %v1073 = vrot.slane %v1059, %v1072
  %v1074 = vcombine.high %v1066, %v1066
  %v1075 = vcombine.high %v1073, %v1073
  %v1076 = vcombine.high %v29, %v29
  %v1078 = vunpack.c.l.s4 1983009808
  %v1079 = vunpack.c.0.s8 %v1078
  %v1080 = vlaneseq
  %v1081 = vshrl.u32 %v1080, 7
  %v1082 = vsub.s32 %v1079, %v1081
  %v1083 = vrot.slane %v29, %v1082
  %v1085 = vunpack.c.l.s4 1983009808
  %v1086 = vunpack.c.0.s8 %v1085
  %v1087 = vlaneseq
  %v1088 = vshrl.u32 %v1087, 7
  %v1089 = vsub.s32 %v1086, %v1088
  %v1090 = vrot.slane %v1076, %v1089
  %v1091 = vcombine.high %v1083, %v1083
  %v1092 = vcombine.high %v1090, %v1090
  %v1093 = vcombine.high %v30, %v30
  %v1095 = vunpack.c.l.s4 1983009808
  %v1096 = vunpack.c.0.s8 %v1095
  %v1097 = vlaneseq
  %v1098 = vshrl.u32 %v1097, 7
  %v1099 = vsub.s32 %v1096, %v1098
  %v1100 = vrot.slane %v30, %v1099
  %v1102 = vunpack.c.l.s4 1983009808
  %v1103 = vunpack.c.0.s8 %v1102
  %v1104 = vlaneseq
  %v1105 = vshrl.u32 %v1104, 7
  %v1106 = vsub.s32 %v1103, %v1105
  %v1107 = vrot.slane %v1093, %v1106
  %v1108 = vcombine.high %v1100, %v1100
  %v1109 = vcombine.high %v1107, %v1107
  %v1110 = vcombine.high %v31, %v31
  %v1112 = vunpack.c.l.s4 1983009808
  %v1113 = vunpack.c.0.s8 %v1112
  %v1114 = vlaneseq
  %v1115 = vshrl.u32 %v1114, 7
  %v1116 = vsub.s32 %v1113, %v1115
  %v1117 = vrot.slane %v31, %v1116
  %v1119 = vunpack.c.l.s4 1983009808
  %v1120 = vunpack.c.0.s8 %v1119
  %v1121 = vlaneseq
  %v1122 = vshrl.u32 %v1121, 7
  %v1123 = vsub.s32 %v1120, %v1122
  %v1124 = vrot.slane %v1110, %v1123
  %v1125 = vcombine.high %v1117, %v1117
  %v1126 = vcombine.high %v1124, %v1124
  %v1127 = vcombine.high %v32, %v32
  %v1129 = vunpack.c.l.s4 1983009808
  %v1130 = vunpack.c.0.s8 %v1129
  %v1131 = vlaneseq
  %v1132 = vshrl.u32 %v1131, 7
  %v1133 = vsub.s32 %v1130, %v1132
  %v1134 = vrot.slane %v32, %v1133
  %v1136 = vunpack.c.l.s4 1983009808
  %v1137 = vunpack.c.0.s8 %v1136
  %v1138 = vlaneseq
  %v1139 = vshrl.u32 %v1138, 7
  %v1140 = vsub.s32 %v1137, %v1139
  %v1141 = vrot.slane %v1127, %v1140
  %v1142 = vcombine.high %v1134, %v1134
  %v1143 = vcombine.high %v1141, %v1141
  %v1144 = vcombine.high %v33, %v33
  %v1146 = vunpack.c.l.s4 1983009808
  %v1147 = vunpack.c.0.s8 %v1146
  %v1148 = vlaneseq
  %v1149 = vshrl.u32 %v1148, 7
  %v1150 = vsub.s32 %v1147, %v1149
  %v1151 = vrot.slane %v33, %v1150
  %v1153 = vunpack.c.l.s4 1983009808
  %v1154 = vunpack.c.0.s8 %v1153
  %v1155 = vlaneseq
  %v1156 = vshrl.u32 %v1155, 7
  %v1157 = vsub.s32 %v1154, %v1156
  %v1158 = vrot.slane %v1144, %v1157
  %v1159 = vcombine.high %v1151, %v1151
  %v1160 = vcombine.high %v1158, %v1158
  %v1161 = vcombine.high %v34, %v34
  %v1163 = vunpack.c.l.s4 1983009808
  %v1164 = vunpack.c.0.s8 %v1163
  %v1165 = vlaneseq
  %v1166 = vshrl.u32 %v1165, 7
  %v1167 = vsub.s32 %v1164, %v1166
  %v1168 = vrot.slane %v34, %v1167
  %v1170 = vunpack.c.l.s4 1983009808
  %v1171 = vunpack.c.0.s8 %v1170
  %v1172 = vlaneseq
  %v1173 = vshrl.u32 %v1172, 7
  %v1174 = vsub.s32 %v1171, %v1173
  %v1175 = vrot.slane %v1161, %v1174
  %v1176 = vcombine.high %v1168, %v1168
  %v1177 = vcombine.high %v1175, %v1175
  %v2117 = vunpack.c.l.b16 %v35
  %v2118 = vunpack.c.l.b16 %v36
  %v2119 = vunpack.c.l.b16 %v37
  %v2120 = vunpack.c.l.b16 %v38
  %v2121 = vunpack.c.l.b16 %v39
  %v2122 = vunpack.c.l.b16 %v40
  %v2123 = vunpack.c.l.b16 %v41
  %v2124 = vunpack.c.l.b16 %v42
  %v2125 = vunpack.c.l.b16 %v43
  %v2126 = vunpack.c.l.b16 %v44
  %v2127 = vunpack.c.l.b16 %v45
  %v2128 = vunpack.c.l.b16 %v46
  %v2129 = vunpack.c.l.b16 %v47
  %v2130 = vunpack.c.l.b16 %v48
  %v2131 = vunpack.c.l.b16 %v49
  %v2132 = vunpack.c.l.b16 %v50
  %v2133 = vunpack.c.l.b16 %v51
  %v2134 = vunpack.c.l.b16 %v52
  %v2135 = vunpack.c.l.b16 %v53
  %v2136 = vunpack.c.l.b16 %v54
  %v2137 = vunpack.c.l.b16 %v55
  %v2138 = vunpack.c.l.b16 %v56
  %v2139 = vunpack.c.l.b16 %v57
  %v2140 = vunpack.c.l.b16 %v58
  %v2141 = vunpack.c.l.b16 %v59
  %v2142 = vunpack.c.l.b16 %v60
  %v2143 = vunpack.c.l.b16 %v61
  %v2144 = vunpack.c.l.b16 %v62
  %v2145 = vunpack.c.l.b16 %v63
  %v2146 = vunpack.c.l.b16 %v64
  %v2147 = vunpack.c.l.b16 %v65
  %v2148 = vunpack.c.l.b16 %v66
  %v2149 = vunpack.c.l.b16 %v67
  %v2150 = vunpack.c.l.b16 %v68
  %v2151 = vunpack.c.l.b16 %v69
  %v2152 = vunpack.c.l.b16 %v70
  %v2153 = vunpack.c.l.b16 %v71
  %v2154 = vunpack.c.l.b16 %v72
  %v2155 = vunpack.c.l.b16 %v73
  %v2156 = vunpack.c.l.b16 %v74
  %v2157 = vunpack.c.l.b16 %v75
  %v2158 = vunpack.c.l.b16 %v76
  %v2159 = vunpack.c.l.b16 %v77
  %v2160 = vunpack.c.l.b16 %v78
  %v2161 = vunpack.c.l.b16 %v79
  %v2162 = vunpack.c.l.b16 %v80
  %v2163 = vunpack.c.l.b16 %v81
  %v2164 = vunpack.c.l.b16 %v82
  %v2165 = vunpack.c.l.b16 %v83
  %v2166 = vunpack.c.l.b16 %v84
  %v2167 = vunpack.c.l.b16 %v85
  %v2168 = vunpack.c.l.b16 %v86
  %v2169 = vunpack.c.l.b16 %v87
  %v2170 = vunpack.c.l.b16 %v88
  %v2171 = vunpack.c.l.b16 %v89
  %v2172 = vunpack.c.l.b16 %v90
  %v2173 = vunpack.c.l.b16 %v91
  %v2174 = vunpack.c.l.b16 %v92
  %v2175 = vunpack.c.l.b16 %v93
  %v2176 = vunpack.c.l.b16 %v94
  %v2177 = vunpack.c.l.b16 %v95
  %v2178 = vunpack.c.l.b16 %v96
  %v2179 = vunpack.c.l.b16 %v97
  %v2180 = vunpack.c.l.b16 %v98
  %v2181 = vunpack.c.l.b16 %v99
  %v2182 = vunpack.c.l.b16 %v100
  %v2183 = vunpack.c.l.b16 %v101
  %v2184 = vunpack.c.l.b16 %v102
  %v2185 = vunpack.c.l.b16 %v103
  %v2186 = vunpack.c.l.b16 %v104
  %v2187 = vunpack.c.l.b16 %v105
  %v2188 = vunpack.c.l.b16 %v106
  %v2189 = vunpack.c.l.b16 %v107
  %v2190 = vunpack.c.l.b16 %v108
  %v2191 = vunpack.c.l.b16 %v109
  %v2192 = vunpack.c.l.b16 %v110
  %v2193 = vunpack.c.l.b16 %v111
  %v2194 = vunpack.c.l.b16 %v112
  %v2195 = vunpack.c.l.b16 %v113
  %v2196 = vunpack.c.l.b16 %v114
  %v2197 = vunpack.c.l.b16 %v115
  %v2198 = vunpack.c.l.b16 %v116
  %v2199 = vunpack.c.l.b16 %v117
  %v2200 = vunpack.c.l.b16 %v118
  %v2201 = vunpack.c.l.b16 %v119
  %v2202 = vunpack.c.l.b16 %v120
  %v2203 = vunpack.c.l.b16 %v121
  %v2204 = vunpack.c.l.b16 %v122
  %v2205 = vunpack.c.l.b16 %v123
  %v2206 = vunpack.c.l.b16 %v124
  %v2207 = vunpack.c.l.b16 %v125
  %v2208 = vunpack.c.l.b16 %v126
  %v2209 = vunpack.c.l.b16 %v127
  %v2210 = vunpack.c.l.b16 %v128
  %v2211 = vunpack.c.l.b16 %v129
  %v2212 = vunpack.c.l.b16 %v130
  %v2213 = vunpack.c.l.b16 %v131
  %v2214 = vunpack.c.l.b16 %v132
  %v2215 = vunpack.c.l.b16 %v133
  %v2216 = vunpack.c.l.b16 %v134
  %v2217 = vunpack.c.l.b16 %v135
  %v2218 = vunpack.c.l.b16 %v136
  %v2219 = vunpack.c.l.b16 %v137
  %v2220 = vunpack.c.l.b16 %v138
  %v2221 = vunpack.c.l.b16 %v139
  %v2222 = vunpack.c.l.b16 %v140
  %v2223 = vunpack.c.l.b16 %v141
  %v2224 = vunpack.c.l.b16 %v142
  %v2225 = vunpack.c.l.b16 %v143
  %v2226 = vunpack.c.l.b16 %v144
  %v2227 = vunpack.c.l.b16 %v145
  %v2228 = vunpack.c.l.b16 %v146
  %v2229 = vunpack.c.l.b16 %v147
  %v2230 = vunpack.c.l.b16 %v148
  %v2231 = vunpack.c.l.b16 %v149
  %v2232 = vunpack.c.l.b16 %v150
  %v2233 = vunpack.c.l.b16 %v151
  %v2234 = vunpack.c.l.b16 %v152
  %v2235 = vunpack.c.l.b16 %v153
  %v2236 = vunpack.c.l.b16 %v154
  %v2237 = vunpack.c.l.b16 %v155
  %v2238 = vunpack.c.l.b16 %v156
  %v2239 = vunpack.c.l.b16 %v157
  %v2240 = vunpack.c.l.b16 %v158
  %v2241 = vunpack.c.l.b16 %v159
  %v2242 = vunpack.c.l.b16 %v160
  %v2243 = vunpack.c.l.b16 %v161
  %v2244 = vunpack.c.l.b16 %v162
  %v2245 = vunpack.c.l.b16 %v163
  %v2246 = vunpack.c.l.b16 %v164
  %v2247 = vunpack.c.l.b16 %v165
  %v2248 = vunpack.c.l.b16 %v166
  %v2249 = vunpack.c.l.b16 %v167
  %v2250 = vunpack.c.l.b16 %v168
  %v2251 = vunpack.c.l.b16 %v169
  %v2252 = vunpack.c.l.b16 %v170
  %v2253 = vunpack.c.l.b16 %v171
  %v2254 = vunpack.c.l.b16 %v172
  %v2255 = vunpack.c.l.b16 %v173
  %v2256 = vunpack.c.l.b16 %v174
  %v2257 = vunpack.c.l.b16 %v175
  %v2258 = vunpack.c.l.b16 %v176
  %v2259 = vunpack.c.l.b16 %v177
  %v2260 = vunpack.c.l.b16 %v178
  %v2261 = vunpack.c.l.b16 %v179
  %v2262 = vunpack.c.l.b16 %v180
  %v2263 = vunpack.c.l.b16 %v181
  %v2264 = vunpack.c.l.b16 %v182
  %v2265 = vunpack.c.l.b16 %v183
  %v2266 = vunpack.c.l.b16 %v184
  %v2267 = vunpack.c.l.b16 %v185
  %v2268 = vunpack.c.l.b16 %v186
  %v2269 = vunpack.c.l.b16 %v187
  %v2270 = vunpack.c.l.b16 %v188
  %v2271 = vunpack.c.l.b16 %v189
  %v2272 = vunpack.c.l.b16 %v190
  %v2273 = vunpack.c.l.b16 %v191
  %v2274 = vunpack.c.l.b16 %v192
  %v2275 = vunpack.c.l.b16 %v193
  %v2276 = vunpack.c.l.b16 %v194
  %v2277 = vunpack.c.l.b16 %v195
  %v2278 = vunpack.c.l.b16 %v196
  %v2279 = vunpack.c.l.b16 %v197
  %v2280 = vunpack.c.l.b16 %v198
  %v2281 = vunpack.c.l.b16 %v199
  %v2282 = vunpack.c.l.b16 %v200
  %v2283 = vunpack.c.l.b16 %v201
  %v2284 = vunpack.c.l.b16 %v202
  %v2285 = vunpack.c.l.b16 %v203
  %v2286 = vunpack.c.l.b16 %v204
  %v2287 = vunpack.c.l.b16 %v205
  %v2288 = vunpack.c.l.b16 %v206
  %v2289 = vunpack.c.l.b16 %v207
  %v2290 = vunpack.c.l.b16 %v208
  %v2291 = vunpack.c.l.b16 %v209
  %v2292 = vunpack.c.l.b16 %v210
  %v2293 = vunpack.c.l.b16 %v211
  %v2294 = vunpack.c.l.b16 %v212
  %v2295 = vunpack.c.l.b16 %v213
  %v2296 = vunpack.c.l.b16 %v214
  %v2297 = vunpack.c.l.b16 %v215
  %v2298 = vunpack.c.l.b16 %v216
  %v2299 = vunpack.c.l.b16 %v217
  %v2300 = vunpack.c.l.b16 %v218
  %v2301 = vunpack.c.l.b16 %v219
  %v2302 = vunpack.c.l.b16 %v220
  %v2303 = vunpack.c.l.b16 %v221
  %v2304 = vunpack.c.l.b16 %v222
  %v2305 = vunpack.c.l.b16 %v223
  %v2306 = vunpack.c.l.b16 %v224
  %v2307 = vunpack.c.l.b16 %v225
  %v2308 = vunpack.c.l.b16 %v226
  %v2309 = vunpack.c.l.b16 %v227
  %v2310 = vunpack.c.l.b16 %v228
  %v2311 = vunpack.c.l.b16 %v229
  %v2312 = vunpack.c.l.b16 %v230
  %v2313 = vunpack.c.l.b16 %v231
  %v2314 = vunpack.c.l.b16 %v232
  %v2315 = vunpack.c.l.b16 %v233
  %v2316 = vunpack.c.l.b16 %v234
  %v2317 = vunpack.c.l.b16 %v235
  %v2318 = vunpack.c.l.b16 %v236
  %v2319 = vunpack.c.l.b16 %v237
  %v2320 = vunpack.c.l.b16 %v238
  %v2321 = vunpack.c.l.b16 %v239
  %v2322 = vunpack.c.l.b16 %v240
  %v2323 = vunpack.c.l.b16 %v241
  %v2324 = vunpack.c.l.b16 %v242
  %v2325 = vunpack.c.l.b16 %v243
  %v2326 = vunpack.c.l.b16 %v244
  %v2327 = vunpack.c.l.b16 %v245
  %v2328 = vunpack.c.l.b16 %v246
  %v2329 = vunpack.c.l.b16 %v247
  %v2330 = vunpack.c.l.b16 %v248
  %v2331 = vunpack.c.l.b16 %v249
  %v2332 = vunpack.c.l.b16 %v250
  %v2333 = vunpack.c.l.b16 %v251
  %v2334 = vunpack.c.l.b16 %v252
  %v2335 = vunpack.c.l.b16 %v253
  %v2336 = vunpack.c.l.b16 %v254
  %v2337 = vunpack.c.l.b16 %v255
  %v2338 = vunpack.c.l.b16 %v256
  %v2339 = vunpack.c.l.b16 %v257
  %v2340 = vunpack.c.l.b16 %v258
  %v2341 = vunpack.c.l.b16 %v259
  %v2342 = vunpack.c.l.b16 %v260
  %v2343 = vunpack.c.l.b16 %v261
  %v2344 = vunpack.c.l.b16 %v262
  %v2345 = vunpack.c.l.b16 %v263
  %v2346 = vunpack.c.l.b16 %v264
  %v2347 = vunpack.c.l.b16 %v265
  %v2348 = vunpack.c.l.b16 %v266
  %v2349 = vunpack.c.l.b16 %v267
  %v2350 = vunpack.c.l.b16 %v268
  %v2351 = vunpack.c.l.b16 %v269
  %v2352 = vunpack.c.l.b16 %v270
  %v2353 = vunpack.c.l.b16 %v271
  %v2354 = vunpack.c.l.b16 %v272
  %v2355 = vunpack.c.l.b16 %v273
  %v2356 = vunpack.c.l.b16 %v274
  %v2357 = vunpack.c.l.b16 %v275
  %v2358 = vunpack.c.l.b16 %v276
  %v2359 = vunpack.c.l.b16 %v277
  %v2360 = vunpack.c.l.b16 %v278
  %v2361 = vunpack.c.l.b16 %v279
  %v2362 = vunpack.c.l.b16 %v280
  %v2363 = vunpack.c.l.b16 %v281
  %v2364 = vunpack.c.l.b16 %v282
  %v2365 = vunpack.c.l.b16 %v283
  %v2366 = vunpack.c.l.b16 %v284
  %v2367 = vunpack.c.l.b16 %v285
  %v2368 = vunpack.c.l.b16 %v286
  %v2369 = vunpack.c.l.b16 %v287
  %v2370 = vunpack.c.l.b16 %v288
  %v2371 = vunpack.c.l.b16 %v289
  %v2372 = vunpack.c.l.b16 %v290
  %v2373 = vunpack.c.l.b16 %v291
  %v2374 = vunpack.c.l.b16 %v292
  %v2375 = vunpack.c.l.b16 %v293
  %v2376 = vunpack.c.l.b16 %v294
  %v2377 = vunpack.c.l.b16 %v295
  %v2378 = vunpack.c.l.b16 %v296
  %v2379 = vunpack.c.l.b16 %v297
  %v2380 = vunpack.c.l.b16 %v298
  %v2381 = vunpack.c.l.b16 %v299
  %v2382 = vunpack.c.l.b16 %v300
  %v2383 = vunpack.c.l.b16 %v301
  %v2384 = vunpack.c.l.b16 %v302
  %v2385 = vunpack.c.l.b16 %v303
  %v2386 = vunpack.c.l.b16 %v304
  %v2387 = vunpack.c.l.b16 %v305
  %v2388 = vunpack.c.l.b16 %v306
  %v2389 = vunpack.c.l.b16 %v307
  %v2390 = vunpack.c.l.b16 %v308
  %v2391 = vunpack.c.l.b16 %v309
  %v2392 = vunpack.c.l.b16 %v310
  %v2393 = vunpack.c.l.b16 %v311
  %v2394 = vunpack.c.l.b16 %v312
  %v2395 = vunpack.c.l.b16 %v313
  %v2396 = vunpack.c.l.b16 %v314
  %v2397 = vunpack.c.l.b16 %v315
  %v2398 = vunpack.c.l.b16 %v316
  %v2399 = vunpack.c.l.b16 %v317
  %v2400 = vunpack.c.l.b16 %v318
  %v2401 = vunpack.c.l.b16 %v319
  %v2402 = vunpack.c.l.b16 %v320
  %v2403 = vunpack.c.l.b16 %v321
  %v2404 = vunpack.c.l.b16 %v322
  %v2405 = vunpack.c.l.b16 %v323
  %v2406 = vunpack.c.l.b16 %v324
  %v2407 = vunpack.c.l.b16 %v325
  %v2408 = vunpack.c.l.b16 %v326
  %v2409 = vunpack.c.l.b16 %v327
  %v2410 = vunpack.c.l.b16 %v328
  %v2411 = vunpack.c.l.b16 %v329
  %v2412 = vunpack.c.l.b16 %v330
  %v2413 = vunpack.c.l.b16 %v331
  %v2414 = vunpack.c.l.b16 %v332
  %v2415 = vunpack.c.l.b16 %v333
  %v2416 = vunpack.c.l.b16 %v334
  %v2417 = vunpack.c.l.b16 %v335
  %v2418 = vunpack.c.l.b16 %v336
  %v2419 = vunpack.c.l.b16 %v337
  %v2420 = vunpack.c.l.b16 %v338
  %v2421 = vunpack.c.l.b16 %v339
  %v2422 = vunpack.c.l.b16 %v340
  %v2423 = vunpack.c.l.b16 %v341
  %v2424 = vunpack.c.l.b16 %v342
  %v2425 = vunpack.c.l.b16 %v343
  %v2426 = vunpack.c.l.b16 %v344
  %v2427 = vunpack.c.l.b16 %v345
  %v2428 = vunpack.c.l.b16 %v346
  %v2429 = vunpack.c.l.b16 %v347
  %v2430 = vunpack.c.l.b16 %v348
  %v2431 = vunpack.c.l.b16 %v349
  %v2432 = vunpack.c.l.b16 %v350
  %v2433 = vunpack.c.l.b16 %v351
  %v2434 = vunpack.c.l.b16 %v352
  %v2435 = vunpack.c.l.b16 %v353
  %v2436 = vunpack.c.l.b16 %v354
  %v2437 = vunpack.c.l.b16 %v355
  %v2438 = vunpack.c.l.b16 %v356
  %v2439 = vunpack.c.l.b16 %v357
  %v2440 = vunpack.c.l.b16 %v358
  %v2441 = vunpack.c.l.b16 %v359
  %v2442 = vunpack.c.l.b16 %v360
  %v2443 = vunpack.c.l.b16 %v361
  %v2444 = vunpack.c.l.b16 %v362
  %v2445 = vunpack.c.l.b16 %v363
  %v2446 = vunpack.c.l.b16 %v364
  %v2447 = vunpack.c.l.b16 %v365
  %v2448 = vunpack.c.l.b16 %v366
  %v2449 = vunpack.c.l.b16 %v367
  %v2450 = vunpack.c.l.b16 %v368
  %v2451 = vunpack.c.l.b16 %v369
  %v2452 = vunpack.c.l.b16 %v370
  %v2453 = vunpack.c.l.b16 %v371
  %v2454 = vunpack.c.l.b16 %v372
  %v2455 = vunpack.c.l.b16 %v373
  %v2456 = vunpack.c.l.b16 %v374
  %v2457 = vunpack.c.l.b16 %v375
  %v2458 = vunpack.c.l.b16 %v376
  %v2459 = vunpack.c.l.b16 %v377
  %v2460 = vunpack.c.l.b16 %v378
  %v2461 = vunpack.c.l.b16 %v379
  %v2462 = vunpack.c.l.b16 %v380
  %v2463 = vunpack.c.l.b16 %v381
  %v2464 = vunpack.c.l.b16 %v382
  %v2465 = vunpack.c.l.b16 %v383
  %v2466 = vunpack.c.l.b16 %v384
  %v2467 = vunpack.c.l.b16 %v385
  %v2468 = vunpack.c.l.b16 %v386
  %v2469 = vunpack.c.l.b16 %v387
  %v2470 = vunpack.c.l.b16 %v388
  %v2471 = vunpack.c.l.b16 %v389
  %v2472 = vunpack.c.l.b16 %v390
  %v2473 = vunpack.c.l.b16 %v391
  %v2474 = vunpack.c.l.b16 %v392
  %v2475 = vunpack.c.l.b16 %v393
  %v2476 = vunpack.c.l.b16 %v394
  %v2477 = vunpack.c.l.b16 %v395
  %v2478 = vunpack.c.l.b16 %v396
  %v2479 = vunpack.c.l.b16 %v397
  %v2480 = vunpack.c.l.b16 %v398
  %v2481 = vunpack.c.l.b16 %v399
  %v2482 = vunpack.c.l.b16 %v400
  %v2483 = vunpack.c.l.b16 %v401
  %v2484 = vunpack.c.l.b16 %v402
  %v2485 = vunpack.c.l.b16 %v403
  %v2486 = vunpack.c.l.b16 %v404
  %v2487 = vunpack.c.l.b16 %v405
  %v2488 = vunpack.c.l.b16 %v406
  %v2489 = vunpack.c.l.b16 %v407
  %v2490 = vunpack.c.l.b16 %v408
  %v2491 = vunpack.c.l.b16 %v409
  %v2492 = vunpack.c.l.b16 %v410
  %v2493 = vunpack.c.l.b16 %v411
  %v2494 = vunpack.c.l.b16 %v412
  %v2495 = vunpack.c.l.b16 %v413
  %v2496 = vunpack.c.l.b16 %v414
  %v2497 = vunpack.c.l.b16 %v415
  %v2498 = vunpack.c.l.b16 %v416
  %v2499 = vunpack.c.l.b16 %v417
  %v2500 = vunpack.c.l.b16 %v418
  %v2501 = vunpack.c.l.b16 %v419
  %v2502 = vunpack.c.l.b16 %v420
  %v2503 = vunpack.c.l.b16 %v421
  %v2504 = vunpack.c.l.b16 %v422
  %v2505 = vunpack.c.l.b16 %v423
  %v2506 = vunpack.c.l.b16 %v424
  %v2507 = vunpack.c.l.b16 %v425
  %v2508 = vunpack.c.l.b16 %v426
  %v2509 = vunpack.c.l.b16 %v427
  %v2510 = vunpack.c.l.b16 %v428
  %v2511 = vunpack.c.l.b16 %v429
  %v2512 = vunpack.c.l.b16 %v430
  %v2513 = vunpack.c.l.b16 %v431
  %v2514 = vunpack.c.l.b16 %v432
  %v2515 = vunpack.c.l.b16 %v433
  %v2516 = vunpack.c.l.b16 %v434
  %v2517 = vunpack.c.l.b16 %v435
  %v2518 = vunpack.c.l.b16 %v436
  %v2519 = vunpack.c.l.b16 %v437
  %v2520 = vunpack.c.l.b16 %v438
  %v2521 = vunpack.c.l.b16 %v439
  %v2522 = vunpack.c.l.b16 %v440
  %v2523 = vunpack.c.l.b16 %v441
  %v2524 = vunpack.c.l.b16 %v442
  %v2525 = vunpack.c.l.b16 %v443
  %v2526 = vunpack.c.l.b16 %v444
  %v2527 = vunpack.c.l.b16 %v445
  %v2528 = vunpack.c.l.b16 %v446
  %v2529 = vunpack.c.l.b16 %v447
  %v2530 = vunpack.c.l.b16 %v448
  %v2531 = vunpack.c.l.b16 %v449
  %v2532 = vunpack.c.l.b16 %v450
  %v2533 = vunpack.c.l.b16 %v451
  %v2534 = vunpack.c.l.b16 %v452
  %v2535 = vunpack.c.l.b16 %v453
  %v2536 = vunpack.c.l.b16 %v454
  %v2537 = vunpack.c.l.b16 %v455
  %v2538 = vunpack.c.l.b16 %v456
  %v2539 = vunpack.c.l.b16 %v457
  %v2540 = vunpack.c.l.b16 %v458
  %v2541 = vunpack.c.l.b16 %v459
  %v2542 = vunpack.c.l.b16 %v460
  %v2543 = vunpack.c.l.b16 %v461
  %v2544 = vunpack.c.l.b16 %v462
  %v2545 = vunpack.c.l.b16 %v463
  %v2546 = vunpack.c.l.b16 %v464
  %v2547 = vunpack.c.l.b16 %v465
  %v2548 = vunpack.c.l.b16 %v466
  %v2549 = vunpack.c.l.b16 %v467
  %v2550 = vunpack.c.l.b16 %v468
  %v2551 = vunpack.c.l.b16 %v469
  %v2552 = vunpack.c.l.b16 %v470
  %v2553 = vunpack.c.l.b16 %v471
  %v2554 = vunpack.c.l.b16 %v472
  %v2555 = vunpack.c.l.b16 %v473
  %v2556 = vunpack.c.l.b16 %v474
  %v2557 = vunpack.c.l.b16 %v475
  %v2558 = vunpack.c.l.b16 %v476
  %v2559 = vunpack.c.l.b16 %v477
  %v2560 = vunpack.c.l.b16 %v478
  %v2561 = vunpack.c.l.b16 %v479
  %v2562 = vunpack.c.l.b16 %v480
  %v2563 = vunpack.c.l.b16 %v481
  %v2564 = vunpack.c.l.b16 %v482
  %v2565 = vunpack.c.l.b16 %v483
  %v2566 = vunpack.c.l.b16 %v484
  %v2567 = vunpack.c.l.b16 %v485
  %v2568 = vunpack.c.l.b16 %v486
  %v2569 = vunpack.c.l.b16 %v487
  %v2570 = vunpack.c.l.b16 %v488
  %v2571 = vunpack.c.l.b16 %v489
  %v2572 = vunpack.c.l.b16 %v490
  %v2573 = vunpack.c.l.b16 %v491
  %v2574 = vunpack.c.l.b16 %v492
  %v2575 = vunpack.c.l.b16 %v493
  %v2576 = vunpack.c.l.b16 %v494
  %v2577 = vunpack.c.l.b16 %v495
  %v2578 = vunpack.c.l.b16 %v496
  %v2579 = vunpack.c.l.b16 %v497
  %v2580 = vunpack.c.l.b16 %v498
  %v2581 = vunpack.c.l.b16 %v499
  %v2582 = vunpack.c.l.b16 %v500
  %v2583 = vunpack.c.l.b16 %v501
  %v2584 = vunpack.c.l.b16 %v502
  %v2585 = vunpack.c.l.b16 %v503
  %v2586 = vunpack.c.l.b16 %v504
  %v2587 = vunpack.c.l.b16 %v505
  %v2588 = vunpack.c.l.b16 %v506
  %v2589 = vunpack.c.l.b16 %v507
  %v2590 = vunpack.c.l.b16 %v508
  %v2591 = vunpack.c.l.b16 %v509
  %v2592 = vunpack.c.l.b16 %v510
  %v2593 = vunpack.c.l.b16 %v511
  %v2594 = vunpack.c.l.b16 %v512
  %v2595 = vunpack.c.l.b16 %v513
  %v2596 = vunpack.c.l.b16 %v514
  %v2597 = vunpack.c.l.b16 %v515
  %v2598 = vunpack.c.l.b16 %v516
  %v2599 = vunpack.c.l.b16 %v517
  %v2600 = vunpack.c.l.b16 %v518
  %v2601 = vunpack.c.l.b16 %v519
  %v2602 = vunpack.c.l.b16 %v520
  %v2603 = vunpack.c.l.b16 %v521
  %v2604 = vunpack.c.l.b16 %v522
  %v2605 = vunpack.c.l.b16 %v523
  %v2606 = vunpack.c.l.b16 %v524
  %v2607 = vunpack.c.l.b16 %v525
  %v2608 = vunpack.c.l.b16 %v526
  %v2609 = vunpack.c.l.b16 %v527
  %v2610 = vunpack.c.l.b16 %v528
  %v2611 = vunpack.c.l.b16 %v529
  %v2612 = vunpack.c.l.b16 %v530
  %v2613 = vunpack.c.l.b16 %v531
  %v2614 = vunpack.c.l.b16 %v532
  %v2615 = vunpack.c.l.b16 %v533
  %v2616 = vunpack.c.l.b16 %v534
  %v2617 = vunpack.c.l.b16 %v535
  %v2618 = vunpack.c.l.b16 %v536
  %v2619 = vunpack.c.l.b16 %v537
  %v2620 = vunpack.c.l.b16 %v538
  %v2621 = vunpack.c.l.b16 %v539
  %v2622 = vunpack.c.l.b16 %v540
  %v2623 = vunpack.c.l.b16 %v541
  %v2624 = vunpack.c.l.b16 %v542
  %v2625 = vunpack.c.l.b16 %v543
  %v2626 = vunpack.c.l.b16 %v544
  %v2627 = vunpack.c.l.b16 %v545
  %v2628 = vunpack.c.l.b16 %v546
  %v2629 = vunpack.c.l.b16 %v547
  %v2630 = vunpack.c.l.b16 %v548
  %v2631 = vunpack.c.l.b16 %v549
  %v2632 = vunpack.c.l.b16 %v550
  %v2633 = vunpack.c.l.b16 %v551
  %v2634 = vunpack.c.l.b16 %v552
  %v2635 = vunpack.c.l.b16 %v553
  %v2636 = vunpack.c.l.b16 %v554
  %v2637 = vunpack.c.l.b16 %v555
  %v2638 = vunpack.c.l.b16 %v556
  %v2639 = vunpack.c.l.b16 %v557
  %v2640 = vunpack.c.l.b16 %v558
  %v2641 = vunpack.c.l.b16 %v559
  %v2642 = vunpack.c.l.b16 %v560
  %v2643 = vunpack.c.l.b16 %v561
  %v2644 = vunpack.c.l.b16 %v562
  %v2645 = vunpack.c.l.b16 %v563
  %v2646 = vunpack.c.l.b16 %v564
  %v2647 = vunpack.c.l.b16 %v565
  %v2648 = vunpack.c.l.b16 %v566
  %v2649 = vunpack.c.l.b16 %v567
  %v2650 = vunpack.c.l.b16 %v568
  %v2651 = vunpack.c.l.b16 %v569
  %v2652 = vunpack.c.l.b16 %v570
  %v2653 = vunpack.c.l.b16 %v571
  %v2654 = vunpack.c.l.b16 %v572
  %v2655 = vunpack.c.l.b16 %v573
  %v2656 = vunpack.c.l.b16 %v574
  %v2657 = vunpack.c.l.b16 %v575
  %v2658 = vunpack.c.l.b16 %v576
  %v2659 = vunpack.c.l.b16 %v577
  %v2660 = vunpack.c.l.b16 %v578
  %v2661 = vunpack.c.l.b16 %v579
  %v2662 = vunpack.c.l.b16 %v580
  %v2663 = vunpack.c.l.b16 %v581
  %v2664 = vunpack.c.l.b16 %v582
  %v2665 = vunpack.c.l.b16 %v583
  %v2666 = vunpack.c.l.b16 %v584
  %v2667 = vunpack.c.l.b16 %v585
  %v2668 = vunpack.c.l.b16 %v586
  %v2669 = vunpack.c.l.b16 %v587
  %v2670 = vunpack.c.l.b16 %v588
  %v2671 = vunpack.c.l.b16 %v589
  %v2672 = vunpack.c.l.b16 %v590
  %v2673 = vunpack.c.l.b16 %v591
  %v2674 = vunpack.c.l.b16 %v592
  %v2675 = vunpack.c.l.b16 %v593
  %v2676 = vunpack.c.l.b16 %v594
  %v2677 = vunpack.c.l.b16 %v595
  %v2678 = vunpack.c.l.b16 %v596
  %v2679 = vunpack.c.l.b16 %v597
  %v2680 = vunpack.c.l.b16 %v598
  %v2681 = vunpack.c.l.b16 %v599
  %v2682 = vunpack.c.l.b16 %v600
  %v2683 = vunpack.c.l.b16 %v601
  %v2684 = vunpack.c.l.b16 %v602
  %v2685 = vunpack.c.l.b16 %v603
  %v2686 = vunpack.c.l.b16 %v604
  %v2687 = vunpack.c.l.b16 %v605
  %v2688 = vunpack.c.l.b16 %v606
  %v2689 = vunpack.c.l.b16 %v607
  %v2690 = vunpack.c.l.b16 %v608
  %v2691 = vunpack.c.l.b16 %v609
  %v2692 = vunpack.c.l.b16 %v610
  %v2693 = vunpack.c.l.b16 %v611
  %v2694 = vunpack.c.l.b16 %v612
  %v2695 = vunpack.c.l.b16 %v613
  %v2696 = vunpack.c.l.b16 %v614
  %v2697 = vunpack.c.l.b16 %v615
  %v2698 = vunpack.c.l.b16 %v616
  %v2699 = vunpack.c.l.b16 %v617
  %v2700 = vunpack.c.l.b16 %v618
  %v2701 = vunpack.c.l.b16 %v619
  %v2702 = vunpack.c.l.b16 %v620
  %v2703 = vunpack.c.l.b16 %v621
  %v2704 = vunpack.c.l.b16 %v622
  %v2705 = vunpack.c.l.b16 %v623
  %v2706 = vunpack.c.l.b16 %v624
  %v2707 = vunpack.c.l.b16 %v625
  %v2708 = vunpack.c.l.b16 %v626
  %v2709 = vunpack.c.l.b16 %v627
  %v2710 = vunpack.c.l.b16 %v628
  %v2711 = vunpack.c.l.b16 %v629
  %v2712 = vunpack.c.l.b16 %v630
  %v2713 = vunpack.c.l.b16 %v631
  %v2714 = vunpack.c.l.b16 %v632
  %v2715 = vunpack.c.l.b16 %v633
  %v2716 = vunpack.c.l.b16 %v634
  %v2717 = vunpack.c.l.b16 %v635
  %v2718 = vunpack.c.l.b16 %v636
  %v2719 = vunpack.c.l.b16 %v637
  %v2720 = vunpack.c.l.b16 %v638
  %v2721 = vunpack.c.l.b16 %v639
  %v2722 = vunpack.c.l.b16 %v640
  %v2723 = vunpack.c.l.b16 %v641
  %v2724 = vunpack.c.l.b16 %v642
  %v2725 = vunpack.c.l.b16 %v643
  %v2726 = vunpack.c.l.b16 %v644
  %v2727 = vunpack.c.l.b16 %v645
  %v2728 = vunpack.c.l.b16 %v646
  %v2729 = vunpack.c.l.b16 %v647
  %v2730 = vunpack.c.l.b16 %v648
  %v2731 = vunpack.c.l.b16 %v649
  %v2732 = vunpack.c.l.b16 %v650
  %v2733 = vunpack.c.l.b16 %v651
  %v2734 = vunpack.c.l.b16 %v652
  %v2735 = vunpack.c.l.b16 %v653
  %v2736 = vunpack.c.l.b16 %v654
  %v2737 = vunpack.c.l.b16 %v655
  %v2738 = vunpack.c.l.b16 %v656
  %v2739 = vunpack.c.l.b16 %v657
  %v2740 = vunpack.c.l.b16 %v658
  %v2741 = vunpack.c.l.b16 %v659
  %v2742 = vunpack.c.l.b16 %v660
  %v2743 = vunpack.c.l.b16 %v661
  %v2744 = vunpack.c.l.b16 %v662
  %v2745 = vunpack.c.l.b16 %v663
  %v2746 = vunpack.c.l.b16 %v664
  %v2747 = vunpack.c.l.b16 %v665
  %v2748 = vunpack.c.l.b16 %v666
  %v2749 = vunpack.c.l.b16 %v667
  %v2750 = vunpack.c.l.b16 %v668
  %v2751 = vunpack.c.l.b16 %v669
  %v2752 = vunpack.c.l.b16 %v670
  %v2753 = vunpack.c.l.b16 %v671
  %v2754 = vunpack.c.l.b16 %v672
  %v2755 = vunpack.c.l.b16 %v673
  %v2756 = vunpack.c.l.b16 %v674
  %v2757 = vunpack.c.l.b16 %v675
  %v2758 = vunpack.c.l.b16 %v676
  %v2759 = vunpack.c.l.b16 %v677
  %v2760 = vunpack.c.l.b16 %v678
  %v2761 = vunpack.c.l.b16 %v679
  %v2762 = vunpack.c.l.b16 %v680
  %v2763 = vunpack.c.l.b16 %v681
  %v2764 = vunpack.c.l.b16 %v682
  %v2765 = vunpack.c.l.b16 %v683
  %v2766 = vunpack.c.l.b16 %v684
  %v2767 = vunpack.c.l.b16 %v685
  %v2768 = vunpack.c.l.b16 %v686
  %v2769 = vunpack.c.l.b16 %v687
  %v2770 = vunpack.c.l.b16 %v688
  %v2771 = vunpack.c.l.b16 %v689
  %v2772 = vunpack.c.l.b16 %v690
  %v2773 = vunpack.c.l.b16 %v691
  %v2774 = vunpack.c.l.b16 %v692
  %v2775 = vunpack.c.l.b16 %v693
  %v2776 = vunpack.c.l.b16 %v694
  %v2777 = vunpack.c.l.b16 %v695
  %v2778 = vunpack.c.l.b16 %v696
  %v2779 = vunpack.c.l.b16 %v697
  %v2780 = vunpack.c.l.b16 %v698
  %v2781 = vunpack.c.l.b16 %v699
  %v2782 = vunpack.c.l.b16 %v700
  %v2783 = vunpack.c.l.b16 %v701
  %v2784 = vunpack.c.l.b16 %v702
  %v2785 = vunpack.c.l.b16 %v703
  %v2786 = vunpack.c.l.b16 %v704
  %v2787 = vunpack.c.l.b16 %v705
  %v2788 = vunpack.c.l.b16 %v706
  %v2789 = vunpack.c.l.b16 %v707
  %v2790 = vunpack.c.l.b16 %v708
  %v2791 = vunpack.c.l.b16 %v709
  %v2792 = vunpack.c.l.b16 %v710
  %v2793 = vunpack.c.l.b16 %v711
  %v2794 = vunpack.c.l.b16 %v712
  %v2795 = vunpack.c.l.b16 %v713
  %v2796 = vunpack.c.l.b16 %v714
  %v2797 = vunpack.c.l.b16 %v715
  %v2798 = vunpack.c.l.b16 %v716
  %v2799 = vunpack.c.l.b16 %v717
  %v2800 = vunpack.c.l.b16 %v718
  %v2801 = vunpack.c.l.b16 %v719
  %v2802 = vunpack.c.l.b16 %v720
  %v2803 = vunpack.c.l.b16 %v721
  %v2804 = vunpack.c.l.b16 %v722
  %v2805 = vunpack.c.l.b16 %v723
  %v2806 = vunpack.c.l.b16 %v724
  %v2807 = vunpack.c.l.b16 %v725
  %v2808 = vunpack.c.l.b16 %v726
  %v2809 = vunpack.c.l.b16 %v727
  %v2810 = vunpack.c.l.b16 %v728
  %v2811 = vunpack.c.l.b16 %v729
  %v2812 = vunpack.c.l.b16 %v730
  %v2813 = vunpack.c.l.b16 %v731
  %v2814 = vunpack.c.l.b16 %v732
  %v2815 = vunpack.c.l.b16 %v733
  %v2816 = vunpack.c.l.b16 %v734
  %v2817 = vunpack.c.l.b16 %v735
  %v2818 = vunpack.c.l.b16 %v736
  %v2819 = vunpack.c.l.b16 %v737
  %v2820 = vunpack.c.l.b16 %v738
  %v2821 = vunpack.c.l.b16 %v739
  %v2822 = vunpack.c.l.b16 %v740
  %v2823 = vunpack.c.l.b16 %v741
  %v2824 = vunpack.c.l.b16 %v742
  %v2825 = vunpack.c.l.b16 %v743
  %v2826 = vunpack.c.l.b16 %v744
  %v2827 = vunpack.c.l.b16 %v745
  %v2828 = vunpack.c.l.b16 %v746
  %v2829 = vunpack.c.l.b16 %v747
  %v2830 = vunpack.c.l.b16 %v748
  %v2831 = vunpack.c.l.b16 %v749
  %v2832 = vunpack.c.l.b16 %v750
  %v2833 = vunpack.c.l.b16 %v751
  %v2834 = vunpack.c.l.b16 %v752
  %v2835 = vunpack.c.l.b16 %v753
  %v2836 = vunpack.c.l.b16 %v754
  %v2837 = vunpack.c.l.b16 %v755
  %v2838 = vunpack.c.l.b16 %v756
  %v2839 = vunpack.c.l.b16 %v757
  %v2840 = vunpack.c.l.b16 %v758
  %v2841 = vunpack.c.l.b16 %v759
  %v2842 = vunpack.c.l.b16 %v760
  %v2843 = vunpack.c.l.b16 %v761
  %v2844 = vunpack.c.l.b16 %v762
  %v2845 = vunpack.c.l.b16 %v763
  %v2846 = vunpack.c.l.b16 %v764
  %v2847 = vunpack.c.l.b16 %v765
  %v2848 = vunpack.c.l.b16 %v766
  %v2849 = vunpack.c.l.b16 %v767
  %v2850 = vunpack.c.l.b16 %v768
  %v2851 = vunpack.c.l.b16 %v769
  %v2852 = vunpack.c.l.b16 %v770
  %v2853 = vunpack.c.l.b16 %v771
  %v2854 = vunpack.c.l.b16 %v772
  %v2855 = vunpack.c.l.b16 %v773
  %v2856 = vunpack.c.l.b16 %v774
  %v2857 = vunpack.c.l.b16 %v775
  %v2858 = vunpack.c.l.b16 %v776
  %v2859 = vunpack.c.l.b16 %v777
  %v2860 = vunpack.c.l.b16 %v778
  %v2861 = vunpack.c.l.b16 %v779
  %v2862 = vunpack.c.l.b16 %v780
  %v2863 = vunpack.c.l.b16 %v781
  %v2864 = vunpack.c.l.b16 %v782
  %v2865 = vunpack.c.l.b16 %v783
  %v2866 = vunpack.c.l.b16 %v784
  %v2867 = vunpack.c.l.b16 %v785
  %v2868 = vunpack.c.l.b16 %v786
  %v2869 = vunpack.c.l.b16 %v787
  %v2870 = vunpack.c.l.b16 %v788
  %v2871 = vunpack.c.l.b16 %v789
  %v2872 = vunpack.c.l.b16 %v790
  %v2873 = vunpack.c.l.b16 %v791
  %v2874 = vunpack.c.l.b16 %v792
  %v2875 = vunpack.c.l.b16 %v793
  %v2876 = vunpack.c.l.b16 %v794
  %v2877 = vunpack.c.l.b16 %v795
  %v2878 = vunpack.c.l.b16 %v796
  %v2879 = vunpack.c.l.b16 %v797
  %v2880 = vunpack.c.l.b16 %v798
  %v2881 = vunpack.c.l.b16 %v799
  %v2882 = vunpack.c.l.b16 %v800
  %v2883 = vunpack.c.l.b16 %v801
  %v2884 = vunpack.c.l.b16 %v802
  %v2885 = vunpack.c.l.b16 %v803
  %v2886 = vunpack.c.l.b16 %v804
  %v2887 = vunpack.c.l.b16 %v805
  %v2888 = vunpack.c.l.b16 %v806
  %v2889 = vunpack.c.l.b16 %v807
  %v2890 = vunpack.c.l.b16 %v808
  %v2891 = vunpack.c.l.b16 %v809
  %v2892 = vunpack.c.l.b16 %v810
  %v2893 = vunpack.c.l.b16 %v811
  %v2894 = vunpack.c.l.b16 %v812
  %v2895 = vunpack.c.l.b16 %v813
  %v2896 = vunpack.c.l.b16 %v814
  %v2897 = vunpack.c.l.b16 %v815
  %v2898 = vunpack.c.l.b16 %v816
  %v2899 = vunpack.c.l.b16 %v817
  %v2900 = vunpack.c.l.b16 %v818
  %v2901 = vunpack.c.l.b16 %v819
  %v2902 = vunpack.c.l.b16 %v820
  %v2903 = vunpack.c.l.b16 %v821
  %v2904 = vunpack.c.l.b16 %v822
  %v2905 = vunpack.c.l.b16 %v823
  %v2906 = vunpack.c.l.b16 %v824
  %v2907 = vunpack.c.l.b16 %v825
  %v2908 = vunpack.c.l.b16 %v826
  %v2909 = vunpack.c.l.b16 %v827
  %v2910 = vunpack.c.l.b16 %v828
  %v2911 = vunpack.c.l.b16 %v829
  %v2912 = vunpack.c.l.b16 %v830
  %v2913 = vunpack.c.l.b16 %v831
  %v2914 = vunpack.c.l.b16 %v832
  %v2915 = vunpack.c.l.b16 %v833
  %v2916 = vunpack.c.l.b16 %v834
  %v2917 = vunpack.c.l.b16 %v835
  %v2918 = vunpack.c.l.b16 %v836
  %v2919 = vunpack.c.l.b16 %v837
  %v2920 = vunpack.c.l.b16 %v838
  %v2921 = vunpack.c.l.b16 %v839
  %v2922 = vunpack.c.l.b16 %v840
  %v2923 = vunpack.c.l.b16 %v841
  %v2924 = vunpack.c.l.b16 %v842
  %v2925 = vunpack.c.l.b16 %v843
  %v2926 = vunpack.c.l.b16 %v844
  %v2927 = vunpack.c.l.b16 %v845
  %v2928 = vunpack.c.l.b16 %v846
  %v2929 = vunpack.c.l.b16 %v847
  %v2930 = vunpack.c.l.b16 %v848
  %v2931 = vunpack.c.l.b16 %v849
  %v2932 = vunpack.c.l.b16 %v850
  %v2933 = vunpack.c.l.b16 %v851
  %v2934 = vunpack.c.l.b16 %v852
  %v2935 = vunpack.c.l.b16 %v853
  %v2936 = vunpack.c.l.b16 %v854
  %v2937 = vunpack.c.l.b16 %v855
  %v2938 = vunpack.c.l.b16 %v856
  %v2939 = vunpack.c.l.b16 %v857
  %v2940 = vunpack.c.l.b16 %v858
  %v2941 = vunpack.c.l.b16 %v859
  %v2942 = vunpack.c.l.b16 %v860
  %v2943 = vunpack.c.l.b16 %v861
  %v2944 = vunpack.c.l.b16 %v862
  %v2945 = vunpack.c.l.b16 %v863
  %v2946 = vunpack.c.l.b16 %v864
  %v2947 = vunpack.c.l.b16 %v865
  %v2948 = vunpack.c.l.b16 %v866
  %v2949 = vunpack.c.l.b16 %v867
  %v2950 = vunpack.c.l.b16 %v868
  %v2951 = vunpack.c.l.b16 %v869
  %v2952 = vunpack.c.l.b16 %v870
  %v2953 = vunpack.c.l.b16 %v871
  %v2954 = vunpack.c.l.b16 %v872
  %v2955 = vunpack.c.l.b16 %v873
  %v2956 = vunpack.c.l.b16 %v874
  %v2957 = vunpack.c.l.b16 %v875
  %v2958 = vunpack.c.l.b16 %v876
  %v2959 = vunpack.c.l.b16 %v877
  %v2960 = vunpack.c.l.b16 %v878
  %v2961 = vunpack.c.l.b16 %v879
  %v2962 = vunpack.c.l.b16 %v880
  %v2963 = vunpack.c.l.b16 %v881
  %v2964 = vunpack.c.l.b16 %v882
  %v2965 = vunpack.c.l.b16 %v883
  %v2966 = vunpack.c.l.b16 %v884
  %v2967 = vunpack.c.l.b16 %v885
  %v2968 = vunpack.c.l.b16 %v886
  %v2969 = vunpack.c.l.b16 %v887
  %v2970 = vunpack.c.l.b16 %v888
  %v2971 = vunpack.c.l.b16 %v889
  %v2972 = vunpack.c.l.b16 %v890
  %v2973 = vunpack.c.l.b16 %v891
  %v2974 = vunpack.c.l.b16 %v892
  %v2975 = vunpack.c.l.b16 %v893
  %v2976 = vunpack.c.l.b16 %v894
  %v2977 = vunpack.c.l.b16 %v895
  %v2978 = vunpack.c.l.b16 %v896
  %v2979 = vunpack.c.l.b16 %v897
  %v2980 = vunpack.c.l.b16 %v898
  %v2981 = vunpack.c.l.b16 %v899
  %v2982 = vunpack.c.l.b16 %v900
  %v2983 = vunpack.c.l.b16 %v901
  %v2984 = vunpack.c.l.b16 %v902
  %v2985 = vunpack.c.l.b16 %v903
  %v2986 = vunpack.c.l.b16 %v904
  %v2987 = vunpack.c.l.b16 %v905
  %v2988 = vunpack.c.l.b16 %v906
  %v2989 = vunpack.c.l.b16 %v907
  %v2990 = vunpack.c.l.b16 %v908
  %v2991 = vunpack.c.l.b16 %v909
  %v2992 = vunpack.c.l.b16 %v910
  %v2993 = vunpack.c.l.b16 %v911
  %v2994 = vunpack.c.l.b16 %v912
  %v2995 = vunpack.c.l.b16 %v913
  %v2996 = vunpack.c.l.b16 %v914
  %v2997 = vunpack.c.l.b16 %v915
  %v2998 = vunpack.c.l.b16 %v916
  %v2999 = vunpack.c.l.b16 %v917
  %v3000 = vunpack.c.l.b16 %v918
  %v3001 = vpack.c.b16 %v2118, %v2117
  %v3002 = vpack.c.b16 %v2120, %v2119
  %v3003 = vpack.c.b16 %v2122, %v2121
  %v3004 = vpack.c.b16 %v2124, %v2123
  %v3005 = vpack.c.b16 %v2126, %v2125
  %v3006 = vpack.c.b16 %v2128, %v2127
  %v3007 = vpack.c.b16 %v2130, %v2129
  %v3008 = vpack.c.b16 %v2132, %v2131
  %v3009 = vpack.c.b16 %v2134, %v2133
  %v3010 = vpack.c.b16 %v2136, %v2135
  %v3011 = vpack.c.b16 %v2138, %v2137
  %v3012 = vpack.c.b16 %v2140, %v2139
  %v3013 = vpack.c.b16 %v2142, %v2141
  %v3014 = vpack.c.b16 %v2144, %v2143
  %v3015 = vpack.c.b16 %v2146, %v2145
  %v3016 = vpack.c.b16 %v2148, %v2147
  %v3017 = vpack.c.b16 %v2150, %v2149
  %v3018 = vpack.c.b16 %v2152, %v2151
  %v3019 = vpack.c.b16 %v2154, %v2153
  %v3020 = vpack.c.b16 %v2156, %v2155
  %v3021 = vpack.c.b16 %v2158, %v2157
  %v3022 = vpack.c.b16 %v2160, %v2159
  %v3023 = vpack.c.b16 %v2162, %v2161
  %v3024 = vpack.c.b16 %v2164, %v2163
  %v3025 = vpack.c.b16 %v2166, %v2165
  %v3026 = vpack.c.b16 %v2168, %v2167
  %v3027 = vpack.c.b16 %v2170, %v2169
  %v3028 = vpack.c.b16 %v2172, %v2171
  %v3029 = vpack.c.b16 %v2174, %v2173
  %v3030 = vpack.c.b16 %v2176, %v2175
  %v3031 = vpack.c.b16 %v2178, %v2177
  %v3032 = vpack.c.b16 %v2180, %v2179
  %v3033 = vpack.c.b16 %v2182, %v2181
  %v3034 = vpack.c.b16 %v2184, %v2183
  %v3035 = vpack.c.b16 %v2186, %v2185
  %v3036 = vpack.c.b16 %v2188, %v2187
  %v3037 = vpack.c.b16 %v2190, %v2189
  %v3038 = vpack.c.b16 %v2192, %v2191
  %v3039 = vpack.c.b16 %v2194, %v2193
  %v3040 = vpack.c.b16 %v2196, %v2195
  %v3041 = vpack.c.b16 %v2198, %v2197
  %v3042 = vpack.c.b16 %v2200, %v2199
  %v3043 = vpack.c.b16 %v2202, %v2201
  %v3044 = vpack.c.b16 %v2204, %v2203
  %v3045 = vpack.c.b16 %v2206, %v2205
  %v3046 = vpack.c.b16 %v2208, %v2207
  %v3047 = vpack.c.b16 %v2210, %v2209
  %v3048 = vpack.c.b16 %v2212, %v2211
  %v3049 = vpack.c.b16 %v2214, %v2213
  %v3050 = vpack.c.b16 %v2216, %v2215
  %v3051 = vpack.c.b16 %v2218, %v2217
  %v3052 = vpack.c.b16 %v2220, %v2219
  %v3053 = vpack.c.b16 %v2222, %v2221
  %v3054 = vpack.c.b16 %v2224, %v2223
  %v3055 = vpack.c.b16 %v2226, %v2225
  %v3056 = vpack.c.b16 %v2228, %v2227
  %v3057 = vpack.c.b16 %v2230, %v2229
  %v3058 = vpack.c.b16 %v2232, %v2231
  %v3059 = vpack.c.b16 %v2234, %v2233
  %v3060 = vpack.c.b16 %v2236, %v2235
  %v3061 = vpack.c.b16 %v2238, %v2237
  %v3062 = vpack.c.b16 %v2240, %v2239
  %v3063 = vpack.c.b16 %v2242, %v2241
  %v3064 = vpack.c.b16 %v2244, %v2243
  %v3065 = vpack.c.b16 %v2246, %v2245
  %v3066 = vpack.c.b16 %v2248, %v2247
  %v3067 = vpack.c.b16 %v2250, %v2249
  %v3068 = vpack.c.b16 %v2252, %v2251
  %v3069 = vpack.c.b16 %v2254, %v2253
  %v3070 = vpack.c.b16 %v2256, %v2255
  %v3071 = vpack.c.b16 %v2258, %v2257
  %v3072 = vpack.c.b16 %v2260, %v2259
  %v3073 = vpack.c.b16 %v2262, %v2261
  %v3074 = vpack.c.b16 %v2264, %v2263
  %v3075 = vpack.c.b16 %v2266, %v2265
  %v3076 = vpack.c.b16 %v2268, %v2267
  %v3077 = vpack.c.b16 %v2270, %v2269
  %v3078 = vpack.c.b16 %v2272, %v2271
  %v3079 = vpack.c.b16 %v2274, %v2273
  %v3080 = vpack.c.b16 %v2276, %v2275
  %v3081 = vpack.c.b16 %v2278, %v2277
  %v3082 = vpack.c.b16 %v2280, %v2279
  %v3083 = vpack.c.b16 %v2282, %v2281
  %v3084 = vpack.c.b16 %v2284, %v2283
  %v3085 = vpack.c.b16 %v2286, %v2285
  %v3086 = vpack.c.b16 %v2288, %v2287
  %v3087 = vpack.c.b16 %v2290, %v2289
  %v3088 = vpack.c.b16 %v2292, %v2291
  %v3089 = vpack.c.b16 %v2294, %v2293
  %v3090 = vpack.c.b16 %v2296, %v2295
  %v3091 = vpack.c.b16 %v2298, %v2297
  %v3092 = vpack.c.b16 %v2300, %v2299
  %v3093 = vpack.c.b16 %v2302, %v2301
  %v3094 = vpack.c.b16 %v2304, %v2303
  %v3095 = vpack.c.b16 %v2306, %v2305
  %v3096 = vpack.c.b16 %v2308, %v2307
  %v3097 = vpack.c.b16 %v2310, %v2309
  %v3098 = vpack.c.b16 %v2312, %v2311
  %v3099 = vpack.c.b16 %v2314, %v2313
  %v3100 = vpack.c.b16 %v2316, %v2315
  %v3101 = vpack.c.b16 %v2318, %v2317
  %v3102 = vpack.c.b16 %v2320, %v2319
  %v3103 = vpack.c.b16 %v2322, %v2321
  %v3104 = vpack.c.b16 %v2324, %v2323
  %v3105 = vpack.c.b16 %v2326, %v2325
  %v3106 = vpack.c.b16 %v2328, %v2327
  %v3107 = vpack.c.b16 %v2330, %v2329
  %v3108 = vpack.c.b16 %v2332, %v2331
  %v3109 = vpack.c.b16 %v2334, %v2333
  %v3110 = vpack.c.b16 %v2336, %v2335
  %v3111 = vpack.c.b16 %v2338, %v2337
  %v3112 = vpack.c.b16 %v2340, %v2339
  %v3113 = vpack.c.b16 %v2342, %v2341
  %v3114 = vpack.c.b16 %v2344, %v2343
  %v3115 = vpack.c.b16 %v2346, %v2345
  %v3116 = vpack.c.b16 %v2348, %v2347
  %v3117 = vpack.c.b16 %v2350, %v2349
  %v3118 = vpack.c.b16 %v2352, %v2351
  %v3119 = vpack.c.b16 %v2354, %v2353
  %v3120 = vpack.c.b16 %v2356, %v2355
  %v3121 = vpack.c.b16 %v2358, %v2357
  %v3122 = vpack.c.b16 %v2360, %v2359
  %v3123 = vpack.c.b16 %v2362, %v2361
  %v3124 = vpack.c.b16 %v2364, %v2363
  %v3125 = vpack.c.b16 %v2366, %v2365
  %v3126 = vpack.c.b16 %v2368, %v2367
  %v3127 = vpack.c.b16 %v2370, %v2369
  %v3128 = vpack.c.b16 %v2372, %v2371
  %v3129 = vpack.c.b16 %v2374, %v2373
  %v3130 = vpack.c.b16 %v2376, %v2375
  %v3131 = vpack.c.b16 %v2378, %v2377
  %v3132 = vpack.c.b16 %v2380, %v2379
  %v3133 = vpack.c.b16 %v2382, %v2381
  %v3134 = vpack.c.b16 %v2384, %v2383
  %v3135 = vpack.c.b16 %v2386, %v2385
  %v3136 = vpack.c.b16 %v2388, %v2387
  %v3137 = vpack.c.b16 %v2390, %v2389
  %v3138 = vpack.c.b16 %v2392, %v2391
  %v3139 = vpack.c.b16 %v2394, %v2393
  %v3140 = vpack.c.b16 %v2396, %v2395
  %v3141 = vpack.c.b16 %v2398, %v2397
  %v3142 = vpack.c.b16 %v2400, %v2399
  %v3143 = vpack.c.b16 %v2402, %v2401
  %v3144 = vpack.c.b16 %v2404, %v2403
  %v3145 = vpack.c.b16 %v2406, %v2405
  %v3146 = vpack.c.b16 %v2408, %v2407
  %v3147 = vpack.c.b16 %v2410, %v2409
  %v3148 = vpack.c.b16 %v2412, %v2411
  %v3149 = vpack.c.b16 %v2414, %v2413
  %v3150 = vpack.c.b16 %v2416, %v2415
  %v3151 = vpack.c.b16 %v2418, %v2417
  %v3152 = vpack.c.b16 %v2420, %v2419
  %v3153 = vpack.c.b16 %v2422, %v2421
  %v3154 = vpack.c.b16 %v2424, %v2423
  %v3155 = vpack.c.b16 %v2426, %v2425
  %v3156 = vpack.c.b16 %v2428, %v2427
  %v3157 = vpack.c.b16 %v2430, %v2429
  %v3158 = vpack.c.b16 %v2432, %v2431
  %v3159 = vpack.c.b16 %v2434, %v2433
  %v3160 = vpack.c.b16 %v2436, %v2435
  %v3161 = vpack.c.b16 %v2438, %v2437
  %v3162 = vpack.c.b16 %v2440, %v2439
  %v3163 = vpack.c.b16 %v2442, %v2441
  %v3164 = vpack.c.b16 %v2444, %v2443
  %v3165 = vpack.c.b16 %v2446, %v2445
  %v3166 = vpack.c.b16 %v2448, %v2447
  %v3167 = vpack.c.b16 %v2450, %v2449
  %v3168 = vpack.c.b16 %v2452, %v2451
  %v3169 = vpack.c.b16 %v2454, %v2453
  %v3170 = vpack.c.b16 %v2456, %v2455
  %v3171 = vpack.c.b16 %v2458, %v2457
  %v3172 = vpack.c.b16 %v2460, %v2459
  %v3173 = vpack.c.b16 %v2462, %v2461
  %v3174 = vpack.c.b16 %v2464, %v2463
  %v3175 = vpack.c.b16 %v2466, %v2465
  %v3176 = vpack.c.b16 %v2468, %v2467
  %v3177 = vpack.c.b16 %v2470, %v2469
  %v3178 = vpack.c.b16 %v2472, %v2471
  %v3179 = vpack.c.b16 %v2474, %v2473
  %v3180 = vpack.c.b16 %v2476, %v2475
  %v3181 = vpack.c.b16 %v2478, %v2477
  %v3182 = vpack.c.b16 %v2480, %v2479
  %v3183 = vpack.c.b16 %v2482, %v2481
  %v3184 = vpack.c.b16 %v2484, %v2483
  %v3185 = vpack.c.b16 %v2486, %v2485
  %v3186 = vpack.c.b16 %v2488, %v2487
  %v3187 = vpack.c.b16 %v2490, %v2489
  %v3188 = vpack.c.b16 %v2492, %v2491
  %v3189 = vpack.c.b16 %v2494, %v2493
  %v3190 = vpack.c.b16 %v2496, %v2495
  %v3191 = vpack.c.b16 %v2498, %v2497
  %v3192 = vpack.c.b16 %v2500, %v2499
  %v3193 = vpack.c.b16 %v2502, %v2501
  %v3194 = vpack.c.b16 %v2504, %v2503
  %v3195 = vpack.c.b16 %v2506, %v2505
  %v3196 = vpack.c.b16 %v2508, %v2507
  %v3197 = vpack.c.b16 %v2510, %v2509
  %v3198 = vpack.c.b16 %v2512, %v2511
  %v3199 = vpack.c.b16 %v2514, %v2513
  %v3200 = vpack.c.b16 %v2516, %v2515
  %v3201 = vpack.c.b16 %v2518, %v2517
  %v3202 = vpack.c.b16 %v2520, %v2519
  %v3203 = vpack.c.b16 %v2522, %v2521
  %v3204 = vpack.c.b16 %v2524, %v2523
  %v3205 = vpack.c.b16 %v2526, %v2525
  %v3206 = vpack.c.b16 %v2528, %v2527
  %v3207 = vpack.c.b16 %v2530, %v2529
  %v3208 = vpack.c.b16 %v2532, %v2531
  %v3209 = vpack.c.b16 %v2534, %v2533
  %v3210 = vpack.c.b16 %v2536, %v2535
  %v3211 = vpack.c.b16 %v2538, %v2537
  %v3212 = vpack.c.b16 %v2540, %v2539
  %v3213 = vpack.c.b16 %v2542, %v2541
  %v3214 = vpack.c.b16 %v2544, %v2543
  %v3215 = vpack.c.b16 %v2546, %v2545
  %v3216 = vpack.c.b16 %v2548, %v2547
  %v3217 = vpack.c.b16 %v2550, %v2549
  %v3218 = vpack.c.b16 %v2552, %v2551
  %v3219 = vpack.c.b16 %v2554, %v2553
  %v3220 = vpack.c.b16 %v2556, %v2555
  %v3221 = vpack.c.b16 %v2558, %v2557
  %v3222 = vpack.c.b16 %v2560, %v2559
  %v3223 = vpack.c.b16 %v2562, %v2561
  %v3224 = vpack.c.b16 %v2564, %v2563
  %v3225 = vpack.c.b16 %v2566, %v2565
  %v3226 = vpack.c.b16 %v2568, %v2567
  %v3227 = vpack.c.b16 %v2570, %v2569
  %v3228 = vpack.c.b16 %v2572, %v2571
  %v3229 = vpack.c.b16 %v2574, %v2573
  %v3230 = vpack.c.b16 %v2576, %v2575
  %v3231 = vpack.c.b16 %v2578, %v2577
  %v3232 = vpack.c.b16 %v2580, %v2579
  %v3233 = vpack.c.b16 %v2582, %v2581
  %v3234 = vpack.c.b16 %v2584, %v2583
  %v3235 = vpack.c.b16 %v2586, %v2585
  %v3236 = vpack.c.b16 %v2588, %v2587
  %v3237 = vpack.c.b16 %v2590, %v2589
  %v3238 = vpack.c.b16 %v2592, %v2591
  %v3239 = vpack.c.b16 %v2594, %v2593
  %v3240 = vpack.c.b16 %v2596, %v2595
  %v3241 = vpack.c.b16 %v2598, %v2597
  %v3242 = vpack.c.b16 %v2600, %v2599
  %v3243 = vpack.c.b16 %v2602, %v2601
  %v3244 = vpack.c.b16 %v2604, %v2603
  %v3245 = vpack.c.b16 %v2606, %v2605
  %v3246 = vpack.c.b16 %v2608, %v2607
  %v3247 = vpack.c.b16 %v2610, %v2609
  %v3248 = vpack.c.b16 %v2612, %v2611
  %v3249 = vpack.c.b16 %v2614, %v2613
  %v3250 = vpack.c.b16 %v2616, %v2615
  %v3251 = vpack.c.b16 %v2618, %v2617
  %v3252 = vpack.c.b16 %v2620, %v2619
  %v3253 = vpack.c.b16 %v2622, %v2621
  %v3254 = vpack.c.b16 %v2624, %v2623
  %v3255 = vpack.c.b16 %v2626, %v2625
  %v3256 = vpack.c.b16 %v2628, %v2627
  %v3257 = vpack.c.b16 %v2630, %v2629
  %v3258 = vpack.c.b16 %v2632, %v2631
  %v3259 = vpack.c.b16 %v2634, %v2633
  %v3260 = vpack.c.b16 %v2636, %v2635
  %v3261 = vpack.c.b16 %v2638, %v2637
  %v3262 = vpack.c.b16 %v2640, %v2639
  %v3263 = vpack.c.b16 %v2642, %v2641
  %v3264 = vpack.c.b16 %v2644, %v2643
  %v3265 = vpack.c.b16 %v2646, %v2645
  %v3266 = vpack.c.b16 %v2648, %v2647
  %v3267 = vpack.c.b16 %v2650, %v2649
  %v3268 = vpack.c.b16 %v2652, %v2651
  %v3269 = vpack.c.b16 %v2654, %v2653
  %v3270 = vpack.c.b16 %v2656, %v2655
  %v3271 = vpack.c.b16 %v2658, %v2657
  %v3272 = vpack.c.b16 %v2660, %v2659
  %v3273 = vpack.c.b16 %v2662, %v2661
  %v3274 = vpack.c.b16 %v2664, %v2663
  %v3275 = vpack.c.b16 %v2666, %v2665
  %v3276 = vpack.c.b16 %v2668, %v2667
  %v3277 = vpack.c.b16 %v2670, %v2669
  %v3278 = vpack.c.b16 %v2672, %v2671
  %v3279 = vpack.c.b16 %v2674, %v2673
  %v3280 = vpack.c.b16 %v2676, %v2675
  %v3281 = vpack.c.b16 %v2678, %v2677
  %v3282 = vpack.c.b16 %v2680, %v2679
  %v3283 = vpack.c.b16 %v2682, %v2681
  %v3284 = vpack.c.b16 %v2684, %v2683
  %v3285 = vpack.c.b16 %v2686, %v2685
  %v3286 = vpack.c.b16 %v2688, %v2687
  %v3287 = vpack.c.b16 %v2690, %v2689
  %v3288 = vpack.c.b16 %v2692, %v2691
  %v3289 = vpack.c.b16 %v2694, %v2693
  %v3290 = vpack.c.b16 %v2696, %v2695
  %v3291 = vpack.c.b16 %v2698, %v2697
  %v3292 = vpack.c.b16 %v2700, %v2699
  %v3293 = vpack.c.b16 %v2702, %v2701
  %v3294 = vpack.c.b16 %v2704, %v2703
  %v3295 = vpack.c.b16 %v2706, %v2705
  %v3296 = vpack.c.b16 %v2708, %v2707
  %v3297 = vpack.c.b16 %v2710, %v2709
  %v3298 = vpack.c.b16 %v2712, %v2711
  %v3299 = vpack.c.b16 %v2714, %v2713
  %v3300 = vpack.c.b16 %v2716, %v2715
  %v3301 = vpack.c.b16 %v2718, %v2717
  %v3302 = vpack.c.b16 %v2720, %v2719
  %v3303 = vpack.c.b16 %v2722, %v2721
  %v3304 = vpack.c.b16 %v2724, %v2723
  %v3305 = vpack.c.b16 %v2726, %v2725
  %v3306 = vpack.c.b16 %v2728, %v2727
  %v3307 = vpack.c.b16 %v2730, %v2729
  %v3308 = vpack.c.b16 %v2732, %v2731
  %v3309 = vpack.c.b16 %v2734, %v2733
  %v3310 = vpack.c.b16 %v2736, %v2735
  %v3311 = vpack.c.b16 %v2738, %v2737
  %v3312 = vpack.c.b16 %v2740, %v2739
  %v3313 = vpack.c.b16 %v2742, %v2741
  %v3314 = vpack.c.b16 %v2744, %v2743
  %v3315 = vpack.c.b16 %v2746, %v2745
  %v3316 = vpack.c.b16 %v2748, %v2747
  %v3317 = vpack.c.b16 %v2750, %v2749
  %v3318 = vpack.c.b16 %v2752, %v2751
  %v3319 = vpack.c.b16 %v2754, %v2753
  %v3320 = vpack.c.b16 %v2756, %v2755
  %v3321 = vpack.c.b16 %v2758, %v2757
  %v3322 = vpack.c.b16 %v2760, %v2759
  %v3323 = vpack.c.b16 %v2762, %v2761
  %v3324 = vpack.c.b16 %v2764, %v2763
  %v3325 = vpack.c.b16 %v2766, %v2765
  %v3326 = vpack.c.b16 %v2768, %v2767
  %v3327 = vpack.c.b16 %v2770, %v2769
  %v3328 = vpack.c.b16 %v2772, %v2771
  %v3329 = vpack.c.b16 %v2774, %v2773
  %v3330 = vpack.c.b16 %v2776, %v2775
  %v3331 = vpack.c.b16 %v2778, %v2777
  %v3332 = vpack.c.b16 %v2780, %v2779
  %v3333 = vpack.c.b16 %v2782, %v2781
  %v3334 = vpack.c.b16 %v2784, %v2783
  %v3335 = vpack.c.b16 %v2786, %v2785
  %v3336 = vpack.c.b16 %v2788, %v2787
  %v3337 = vpack.c.b16 %v2790, %v2789
  %v3338 = vpack.c.b16 %v2792, %v2791
  %v3339 = vpack.c.b16 %v2794, %v2793
  %v3340 = vpack.c.b16 %v2796, %v2795
  %v3341 = vpack.c.b16 %v2798, %v2797
  %v3342 = vpack.c.b16 %v2800, %v2799
  %v3343 = vpack.c.b16 %v2802, %v2801
  %v3344 = vpack.c.b16 %v2804, %v2803
  %v3345 = vpack.c.b16 %v2806, %v2805
  %v3346 = vpack.c.b16 %v2808, %v2807
  %v3347 = vpack.c.b16 %v2810, %v2809
  %v3348 = vpack.c.b16 %v2812, %v2811
  %v3349 = vpack.c.b16 %v2814, %v2813
  %v3350 = vpack.c.b16 %v2816, %v2815
  %v3351 = vpack.c.b16 %v2818, %v2817
  %v3352 = vpack.c.b16 %v2820, %v2819
  %v3353 = vpack.c.b16 %v2822, %v2821
  %v3354 = vpack.c.b16 %v2824, %v2823
  %v3355 = vpack.c.b16 %v2826, %v2825
  %v3356 = vpack.c.b16 %v2828, %v2827
  %v3357 = vpack.c.b16 %v2830, %v2829
  %v3358 = vpack.c.b16 %v2832, %v2831
  %v3359 = vpack.c.b16 %v2834, %v2833
  %v3360 = vpack.c.b16 %v2836, %v2835
  %v3361 = vpack.c.b16 %v2838, %v2837
  %v3362 = vpack.c.b16 %v2840, %v2839
  %v3363 = vpack.c.b16 %v2842, %v2841
  %v3364 = vpack.c.b16 %v2844, %v2843
  %v3365 = vpack.c.b16 %v2846, %v2845
  %v3366 = vpack.c.b16 %v2848, %v2847
  %v3367 = vpack.c.b16 %v2850, %v2849
  %v3368 = vpack.c.b16 %v2852, %v2851
  %v3369 = vpack.c.b16 %v2854, %v2853
  %v3370 = vpack.c.b16 %v2856, %v2855
  %v3371 = vpack.c.b16 %v2858, %v2857
  %v3372 = vpack.c.b16 %v2860, %v2859
  %v3373 = vpack.c.b16 %v2862, %v2861
  %v3374 = vpack.c.b16 %v2864, %v2863
  %v3375 = vpack.c.b16 %v2866, %v2865
  %v3376 = vpack.c.b16 %v2868, %v2867
  %v3377 = vpack.c.b16 %v2870, %v2869
  %v3378 = vpack.c.b16 %v2872, %v2871
  %v3379 = vpack.c.b16 %v2874, %v2873
  %v3380 = vpack.c.b16 %v2876, %v2875
  %v3381 = vpack.c.b16 %v2878, %v2877
  %v3382 = vpack.c.b16 %v2880, %v2879
  %v3383 = vpack.c.b16 %v2882, %v2881
  %v3384 = vpack.c.b16 %v2884, %v2883
  %v3385 = vpack.c.b16 %v2886, %v2885
  %v3386 = vpack.c.b16 %v2888, %v2887
  %v3387 = vpack.c.b16 %v2890, %v2889
  %v3388 = vpack.c.b16 %v2892, %v2891
  %v3389 = vpack.c.b16 %v2894, %v2893
  %v3390 = vpack.c.b16 %v2896, %v2895
  %v3391 = vpack.c.b16 %v2898, %v2897
  %v3392 = vpack.c.b16 %v2900, %v2899
  %v3393 = vpack.c.b16 %v2902, %v2901
  %v3394 = vpack.c.b16 %v2904, %v2903
  %v3395 = vpack.c.b16 %v2906, %v2905
  %v3396 = vpack.c.b16 %v2908, %v2907
  %v3397 = vpack.c.b16 %v2910, %v2909
  %v3398 = vpack.c.b16 %v2912, %v2911
  %v3399 = vpack.c.b16 %v2914, %v2913
  %v3400 = vpack.c.b16 %v2916, %v2915
  %v3401 = vpack.c.b16 %v2918, %v2917
  %v3402 = vpack.c.b16 %v2920, %v2919
  %v3403 = vpack.c.b16 %v2922, %v2921
  %v3404 = vpack.c.b16 %v2924, %v2923
  %v3405 = vpack.c.b16 %v2926, %v2925
  %v3406 = vpack.c.b16 %v2928, %v2927
  %v3407 = vpack.c.b16 %v2930, %v2929
  %v3408 = vpack.c.b16 %v2932, %v2931
  %v3409 = vpack.c.b16 %v2934, %v2933
  %v3410 = vpack.c.b16 %v2936, %v2935
  %v3411 = vpack.c.b16 %v2938, %v2937
  %v3412 = vpack.c.b16 %v2940, %v2939
  %v3413 = vpack.c.b16 %v2942, %v2941
  %v3414 = vpack.c.b16 %v2944, %v2943
  %v3415 = vpack.c.b16 %v2946, %v2945
  %v3416 = vpack.c.b16 %v2948, %v2947
  %v3417 = vpack.c.b16 %v2950, %v2949
  %v3418 = vpack.c.b16 %v2952, %v2951
  %v3419 = vpack.c.b16 %v2954, %v2953
  %v3420 = vpack.c.b16 %v2956, %v2955
  %v3421 = vpack.c.b16 %v2958, %v2957
  %v3422 = vpack.c.b16 %v2960, %v2959
  %v3423 = vpack.c.b16 %v2962, %v2961
  %v3424 = vpack.c.b16 %v2964, %v2963
  %v3425 = vpack.c.b16 %v2966, %v2965
  %v3426 = vpack.c.b16 %v2968, %v2967
  %v3427 = vpack.c.b16 %v2970, %v2969
  %v3428 = vpack.c.b16 %v2972, %v2971
  %v3429 = vpack.c.b16 %v2974, %v2973
  %v3430 = vpack.c.b16 %v2976, %v2975
  %v3431 = vpack.c.b16 %v2978, %v2977
  %v3432 = vpack.c.b16 %v2980, %v2979
  %v3433 = vpack.c.b16 %v2982, %v2981
  %v3434 = vpack.c.b16 %v2984, %v2983
  %v3435 = vpack.c.b16 %v2986, %v2985
  %v3436 = vpack.c.b16 %v2988, %v2987
  %v3437 = vpack.c.b16 %v2990, %v2989
  %v3438 = vpack.c.b16 %v2992, %v2991
  %v3439 = vpack.c.b16 %v2994, %v2993
  %v3440 = vpack.c.b16 %v2996, %v2995
  %v3441 = vpack.c.b16 %v2998, %v2997
  %v3442 = vpack.c.b16 %v3000, %v2999
  %vm3885 = vcmask 261120
  %v3887 = vsel %vm3885, %v1177, 0
  %3889 = vmatprep.subr.bf16.mxu0 0
  %3890 = vmatpush1.bf16.msra.mxu0 %v3008
  %3891 = vmatprep.subr.bf16.mxu0 0
  %3892 = vmatpush1.bf16.msra.mxu0 %v3007
  %3893 = vmatprep.subr.bf16.mxu0 0
  %3894 = vmatpush1.bf16.msra.mxu0 %v3006
  %3895 = vmatprep.subr.bf16.mxu0 0
  %3896 = vmatpush1.bf16.msra.mxu0 %v3005
  %3897 = vmatprep.subr.bf16.mxu0 0
  %3898 = vmatpush1.bf16.msra.mxu0 %v3004
  %3899 = vmatprep.subr.bf16.mxu0 0
  %3900 = vmatpush1.bf16.msra.mxu0 %v3003
  %3901 = vmatprep.subr.bf16.mxu0 0
  %3902 = vmatpush1.bf16.msra.mxu0 %v3002
  %3903 = vmatprep.subr.bf16.mxu0 0
  %3904 = vmatpush1.bf16.msra.mxu0 %v3001
  %3905 = vmatprep.subr.bf16.mxu0 0
  %3906 = vmatpush2.bf16.msra.mxu0 %v3016
  %3907 = vmatprep.subr.bf16.mxu0 0
  %3908 = vmatpush2.bf16.msra.mxu0 %v3015
  %3909 = vmatprep.subr.bf16.mxu0 0
  %3910 = vmatpush2.bf16.msra.mxu0 %v3014
  %3911 = vmatprep.subr.bf16.mxu0 0
  %3912 = vmatpush2.bf16.msra.mxu0 %v3013
  %3913 = vmatprep.subr.bf16.mxu0 0
  %3914 = vmatpush2.bf16.msra.mxu0 %v3012
  %3915 = vmatprep.subr.bf16.mxu0 0
  %3916 = vmatpush2.bf16.msra.mxu0 %v3011
  %3917 = vmatprep.subr.bf16.mxu0 0
  %3918 = vmatpush2.bf16.msra.mxu0 %v3010
  %3919 = vmatprep.subr.bf16.mxu0 0
  %3920 = vmatpush2.bf16.msra.mxu0 %v3009
  %3921 = vmatprep.mubr.bf16.mxu0 %v955
  %3922 = vmatmul.mubr.bf16.gmra.mxu0 %v947
  %v3923 = vpop.f32.mrf.mxu0
  %v3924 = vadd.f32 %v924, %v3923
  %v3925 = vpop.f32.mrf.mxu0
  %v3926 = vpop.f32.mrf.mxu0
  %v3927 = vpop.f32.mrf.mxu0
  %3928 = vdwg.mxu0
  %3929 = vmatprep.subr.bf16.mxu0 0
  %3930 = vmatpush1.bf16.msra.mxu0 %v3024
  %3931 = vmatprep.subr.bf16.mxu0 0
  %3932 = vmatpush1.bf16.msra.mxu0 %v3023
  %3933 = vmatprep.subr.bf16.mxu0 0
  %3934 = vmatpush1.bf16.msra.mxu0 %v3022
  %3935 = vmatprep.subr.bf16.mxu0 0
  %3936 = vmatpush1.bf16.msra.mxu0 %v3021
  %3937 = vmatprep.subr.bf16.mxu0 0
  %3938 = vmatpush1.bf16.msra.mxu0 %v3020
  %3939 = vmatprep.subr.bf16.mxu0 0
  %3940 = vmatpush1.bf16.msra.mxu0 %v3019
  %3941 = vmatprep.subr.bf16.mxu0 0
  %3942 = vmatpush1.bf16.msra.mxu0 %v3018
  %3943 = vmatprep.subr.bf16.mxu0 0
  %3944 = vmatpush1.bf16.msra.mxu0 %v3017
  %3945 = vmatprep.subr.bf16.mxu0 0
  %3946 = vmatpush2.bf16.msra.mxu0 %v3032
  %3947 = vmatprep.subr.bf16.mxu0 0
  %3948 = vmatpush2.bf16.msra.mxu0 %v3031
  %3949 = vmatprep.subr.bf16.mxu0 0
  %3950 = vmatpush2.bf16.msra.mxu0 %v3030
  %3951 = vmatprep.subr.bf16.mxu0 0
  %3952 = vmatpush2.bf16.msra.mxu0 %v3029
  %3953 = vmatprep.subr.bf16.mxu0 0
  %3954 = vmatpush2.bf16.msra.mxu0 %v3028
  %3955 = vmatprep.subr.bf16.mxu0 0
  %3956 = vmatpush2.bf16.msra.mxu0 %v3027
  %3957 = vmatprep.subr.bf16.mxu0 0
  %3958 = vmatpush2.bf16.msra.mxu0 %v3026
  %3959 = vmatprep.subr.bf16.mxu0 0
  %3960 = vmatpush2.bf16.msra.mxu0 %v3025
  %3961 = vmatprep.mubr.bf16.mxu0 %v956
  %3962 = vmatmul.mubr.bf16.gmra.mxu0 %v954
  %v3963 = vpop.f32.mrf.mxu0
  %v3964 = vadd.f32 %v3924, %v3963
  %v3965 = vpop.f32.mrf.mxu0
  %v3966 = vpop.f32.mrf.mxu0
  %v3967 = vpop.f32.mrf.mxu0
  %3968 = vdwg.mxu0
  %3969 = vmatprep.subr.bf16.mxu0 0
  %3970 = vmatpush1.bf16.msra.mxu0 %v3040
  %3971 = vmatprep.subr.bf16.mxu0 0
  %3972 = vmatpush1.bf16.msra.mxu0 %v3039
  %3973 = vmatprep.subr.bf16.mxu0 0
  %3974 = vmatpush1.bf16.msra.mxu0 %v3038
  %3975 = vmatprep.subr.bf16.mxu0 0
  %3976 = vmatpush1.bf16.msra.mxu0 %v3037
  %3977 = vmatprep.subr.bf16.mxu0 0
  %3978 = vmatpush1.bf16.msra.mxu0 %v3036
  %3979 = vmatprep.subr.bf16.mxu0 0
  %3980 = vmatpush1.bf16.msra.mxu0 %v3035
  %3981 = vmatprep.subr.bf16.mxu0 0
  %3982 = vmatpush1.bf16.msra.mxu0 %v3034
  %3983 = vmatprep.subr.bf16.mxu0 0
  %3984 = vmatpush1.bf16.msra.mxu0 %v3033
  %3985 = vmatprep.subr.bf16.mxu0 0
  %3986 = vmatpush2.bf16.msra.mxu0 %v3048
  %3987 = vmatprep.subr.bf16.mxu0 0
  %3988 = vmatpush2.bf16.msra.mxu0 %v3047
  %3989 = vmatprep.subr.bf16.mxu0 0
  %3990 = vmatpush2.bf16.msra.mxu0 %v3046
  %3991 = vmatprep.subr.bf16.mxu0 0
  %3992 = vmatpush2.bf16.msra.mxu0 %v3045
  %3993 = vmatprep.subr.bf16.mxu0 0
  %3994 = vmatpush2.bf16.msra.mxu0 %v3044
  %3995 = vmatprep.subr.bf16.mxu0 0
  %3996 = vmatpush2.bf16.msra.mxu0 %v3043
  %3997 = vmatprep.subr.bf16.mxu0 0
  %3998 = vmatpush2.bf16.msra.mxu0 %v3042
  %3999 = vmatprep.subr.bf16.mxu0 0
  %4000 = vmatpush2.bf16.msra.mxu0 %v3041
  %4001 = vmatprep.mubr.bf16.mxu0 %v972
  %4002 = vmatmul.mubr.bf16.gmra.mxu0 %v964
  %v4003 = vpop.f32.mrf.mxu0
  %v4004 = vadd.f32 %v3964, %v4003
  %v4005 = vpop.f32.mrf.mxu0
  %v4006 = vpop.f32.mrf.mxu0
  %v4007 = vpop.f32.mrf.mxu0
  %4008 = vdwg.mxu0
  %4009 = vmatprep.subr.bf16.mxu0 0
  %4010 = vmatpush1.bf16.msra.mxu0 %v3056
  %4011 = vmatprep.subr.bf16.mxu0 0
  %4012 = vmatpush1.bf16.msra.mxu0 %v3055
  %4013 = vmatprep.subr.bf16.mxu0 0
  %4014 = vmatpush1.bf16.msra.mxu0 %v3054
  %4015 = vmatprep.subr.bf16.mxu0 0
  %4016 = vmatpush1.bf16.msra.mxu0 %v3053
  %4017 = vmatprep.subr.bf16.mxu0 0
  %4018 = vmatpush1.bf16.msra.mxu0 %v3052
  %4019 = vmatprep.subr.bf16.mxu0 0
  %4020 = vmatpush1.bf16.msra.mxu0 %v3051
  %4021 = vmatprep.subr.bf16.mxu0 0
  %4022 = vmatpush1.bf16.msra.mxu0 %v3050
  %4023 = vmatprep.subr.bf16.mxu0 0
  %4024 = vmatpush1.bf16.msra.mxu0 %v3049
  %4025 = vmatprep.subr.bf16.mxu0 0
  %4026 = vmatpush2.bf16.msra.mxu0 %v3064
  %4027 = vmatprep.subr.bf16.mxu0 0
  %4028 = vmatpush2.bf16.msra.mxu0 %v3063
  %4029 = vmatprep.subr.bf16.mxu0 0
  %4030 = vmatpush2.bf16.msra.mxu0 %v3062
  %4031 = vmatprep.subr.bf16.mxu0 0
  %4032 = vmatpush2.bf16.msra.mxu0 %v3061
  %4033 = vmatprep.subr.bf16.mxu0 0
  %4034 = vmatpush2.bf16.msra.mxu0 %v3060
  %4035 = vmatprep.subr.bf16.mxu0 0
  %4036 = vmatpush2.bf16.msra.mxu0 %v3059
  %4037 = vmatprep.subr.bf16.mxu0 0
  %4038 = vmatpush2.bf16.msra.mxu0 %v3058
  %4039 = vmatprep.subr.bf16.mxu0 0
  %4040 = vmatpush2.bf16.msra.mxu0 %v3057
  %4041 = vmatprep.mubr.bf16.mxu0 %v973
  %4042 = vmatmul.mubr.bf16.gmra.mxu0 %v971
  %v4043 = vpop.f32.mrf.mxu0
  %v4044 = vadd.f32 %v4004, %v4043
  %v4045 = vpop.f32.mrf.mxu0
  %v4046 = vpop.f32.mrf.mxu0
  %v4047 = vpop.f32.mrf.mxu0
  %4048 = vdwg.mxu0
  %4049 = vmatprep.subr.bf16.mxu0 0
  %4050 = vmatpush1.bf16.msra.mxu0 %v3072
  %4051 = vmatprep.subr.bf16.mxu0 0
  %4052 = vmatpush1.bf16.msra.mxu0 %v3071
  %4053 = vmatprep.subr.bf16.mxu0 0
  %4054 = vmatpush1.bf16.msra.mxu0 %v3070
  %4055 = vmatprep.subr.bf16.mxu0 0
  %4056 = vmatpush1.bf16.msra.mxu0 %v3069
  %4057 = vmatprep.subr.bf16.mxu0 0
  %4058 = vmatpush1.bf16.msra.mxu0 %v3068
  %4059 = vmatprep.subr.bf16.mxu0 0
  %4060 = vmatpush1.bf16.msra.mxu0 %v3067
  %4061 = vmatprep.subr.bf16.mxu0 0
  %4062 = vmatpush1.bf16.msra.mxu0 %v3066
  %4063 = vmatprep.subr.bf16.mxu0 0
  %4064 = vmatpush1.bf16.msra.mxu0 %v3065
  %4065 = vmatprep.subr.bf16.mxu0 0
  %4066 = vmatpush2.bf16.msra.mxu0 %v3080
  %4067 = vmatprep.subr.bf16.mxu0 0
  %4068 = vmatpush2.bf16.msra.mxu0 %v3079
  %4069 = vmatprep.subr.bf16.mxu0 0
  %4070 = vmatpush2.bf16.msra.mxu0 %v3078
  %4071 = vmatprep.subr.bf16.mxu0 0
  %4072 = vmatpush2.bf16.msra.mxu0 %v3077
  %4073 = vmatprep.subr.bf16.mxu0 0
  %4074 = vmatpush2.bf16.msra.mxu0 %v3076
  %4075 = vmatprep.subr.bf16.mxu0 0
  %4076 = vmatpush2.bf16.msra.mxu0 %v3075
  %4077 = vmatprep.subr.bf16.mxu0 0
  %4078 = vmatpush2.bf16.msra.mxu0 %v3074
  %4079 = vmatprep.subr.bf16.mxu0 0
  %4080 = vmatpush2.bf16.msra.mxu0 %v3073
  %4081 = vmatprep.mubr.bf16.mxu0 %v989
  %4082 = vmatmul.mubr.bf16.gmra.mxu0 %v981
  %v4083 = vpop.f32.mrf.mxu0
  %v4084 = vadd.f32 %v4044, %v4083
  %v4085 = vpop.f32.mrf.mxu0
  %v4086 = vpop.f32.mrf.mxu0
  %v4087 = vpop.f32.mrf.mxu0
  %4088 = vdwg.mxu0
  %4089 = vmatprep.subr.bf16.mxu0 0
  %4090 = vmatpush1.bf16.msra.mxu0 %v3088
  %4091 = vmatprep.subr.bf16.mxu0 0
  %4092 = vmatpush1.bf16.msra.mxu0 %v3087
  %4093 = vmatprep.subr.bf16.mxu0 0
  %4094 = vmatpush1.bf16.msra.mxu0 %v3086
  %4095 = vmatprep.subr.bf16.mxu0 0
  %4096 = vmatpush1.bf16.msra.mxu0 %v3085
  %4097 = vmatprep.subr.bf16.mxu0 0
  %4098 = vmatpush1.bf16.msra.mxu0 %v3084
  %4099 = vmatprep.subr.bf16.mxu0 0
  %4100 = vmatpush1.bf16.msra.mxu0 %v3083
  %4101 = vmatprep.subr.bf16.mxu0 0
  %4102 = vmatpush1.bf16.msra.mxu0 %v3082
  %4103 = vmatprep.subr.bf16.mxu0 0
  %4104 = vmatpush1.bf16.msra.mxu0 %v3081
  %4105 = vmatprep.subr.bf16.mxu0 0
  %4106 = vmatpush2.bf16.msra.mxu0 %v3096
  %4107 = vmatprep.subr.bf16.mxu0 0
  %4108 = vmatpush2.bf16.msra.mxu0 %v3095
  %4109 = vmatprep.subr.bf16.mxu0 0
  %4110 = vmatpush2.bf16.msra.mxu0 %v3094
  %4111 = vmatprep.subr.bf16.mxu0 0
  %4112 = vmatpush2.bf16.msra.mxu0 %v3093
  %4113 = vmatprep.subr.bf16.mxu0 0
  %4114 = vmatpush2.bf16.msra.mxu0 %v3092
  %4115 = vmatprep.subr.bf16.mxu0 0
  %4116 = vmatpush2.bf16.msra.mxu0 %v3091
  %4117 = vmatprep.subr.bf16.mxu0 0
  %4118 = vmatpush2.bf16.msra.mxu0 %v3090
  %4119 = vmatprep.subr.bf16.mxu0 0
  %4120 = vmatpush2.bf16.msra.mxu0 %v3089
  %4121 = vmatprep.mubr.bf16.mxu0 %v990
  %4122 = vmatmul.mubr.bf16.gmra.mxu0 %v988
  %v4123 = vpop.f32.mrf.mxu0
  %v4124 = vadd.f32 %v4084, %v4123
  %v4125 = vpop.f32.mrf.mxu0
  %v4126 = vpop.f32.mrf.mxu0
  %v4127 = vpop.f32.mrf.mxu0
  %4128 = vdwg.mxu0
  %4129 = vmatprep.subr.bf16.mxu0 0
  %4130 = vmatpush1.bf16.msra.mxu0 %v3104
  %4131 = vmatprep.subr.bf16.mxu0 0
  %4132 = vmatpush1.bf16.msra.mxu0 %v3103
  %4133 = vmatprep.subr.bf16.mxu0 0
  %4134 = vmatpush1.bf16.msra.mxu0 %v3102
  %4135 = vmatprep.subr.bf16.mxu0 0
  %4136 = vmatpush1.bf16.msra.mxu0 %v3101
  %4137 = vmatprep.subr.bf16.mxu0 0
  %4138 = vmatpush1.bf16.msra.mxu0 %v3100
  %4139 = vmatprep.subr.bf16.mxu0 0
  %4140 = vmatpush1.bf16.msra.mxu0 %v3099
  %4141 = vmatprep.subr.bf16.mxu0 0
  %4142 = vmatpush1.bf16.msra.mxu0 %v3098
  %4143 = vmatprep.subr.bf16.mxu0 0
  %4144 = vmatpush1.bf16.msra.mxu0 %v3097
  %4145 = vmatprep.subr.bf16.mxu0 0
  %4146 = vmatpush2.bf16.msra.mxu0 %v3112
  %4147 = vmatprep.subr.bf16.mxu0 0
  %4148 = vmatpush2.bf16.msra.mxu0 %v3111
  %4149 = vmatprep.subr.bf16.mxu0 0
  %4150 = vmatpush2.bf16.msra.mxu0 %v3110
  %4151 = vmatprep.subr.bf16.mxu0 0
  %4152 = vmatpush2.bf16.msra.mxu0 %v3109
  %4153 = vmatprep.subr.bf16.mxu0 0
  %4154 = vmatpush2.bf16.msra.mxu0 %v3108
  %4155 = vmatprep.subr.bf16.mxu0 0
  %4156 = vmatpush2.bf16.msra.mxu0 %v3107
  %4157 = vmatprep.subr.bf16.mxu0 0
  %4158 = vmatpush2.bf16.msra.mxu0 %v3106
  %4159 = vmatprep.subr.bf16.mxu0 0
  %4160 = vmatpush2.bf16.msra.mxu0 %v3105
  %4161 = vmatprep.mubr.bf16.mxu0 %v1006
  %4162 = vmatmul.mubr.bf16.gmra.mxu0 %v998
  %v4163 = vpop.f32.mrf.mxu0
  %v4164 = vadd.f32 %v4124, %v4163
  %v4165 = vpop.f32.mrf.mxu0
  %v4166 = vpop.f32.mrf.mxu0
  %v4167 = vpop.f32.mrf.mxu0
  %4168 = vdwg.mxu0
  %4169 = vmatprep.subr.bf16.mxu0 0
  %4170 = vmatpush1.bf16.msra.mxu0 %v3120
  %4171 = vmatprep.subr.bf16.mxu0 0
  %4172 = vmatpush1.bf16.msra.mxu0 %v3119
  %4173 = vmatprep.subr.bf16.mxu0 0
  %4174 = vmatpush1.bf16.msra.mxu0 %v3118
  %4175 = vmatprep.subr.bf16.mxu0 0
  %4176 = vmatpush1.bf16.msra.mxu0 %v3117
  %4177 = vmatprep.subr.bf16.mxu0 0
  %4178 = vmatpush1.bf16.msra.mxu0 %v3116
  %4179 = vmatprep.subr.bf16.mxu0 0
  %4180 = vmatpush1.bf16.msra.mxu0 %v3115
  %4181 = vmatprep.subr.bf16.mxu0 0
  %4182 = vmatpush1.bf16.msra.mxu0 %v3114
  %4183 = vmatprep.subr.bf16.mxu0 0
  %4184 = vmatpush1.bf16.msra.mxu0 %v3113
  %4185 = vmatprep.subr.bf16.mxu0 0
  %4186 = vmatpush2.bf16.msra.mxu0 %v3128
  %4187 = vmatprep.subr.bf16.mxu0 0
  %4188 = vmatpush2.bf16.msra.mxu0 %v3127
  %4189 = vmatprep.subr.bf16.mxu0 0
  %4190 = vmatpush2.bf16.msra.mxu0 %v3126
  %4191 = vmatprep.subr.bf16.mxu0 0
  %4192 = vmatpush2.bf16.msra.mxu0 %v3125
  %4193 = vmatprep.subr.bf16.mxu0 0
  %4194 = vmatpush2.bf16.msra.mxu0 %v3124
  %4195 = vmatprep.subr.bf16.mxu0 0
  %4196 = vmatpush2.bf16.msra.mxu0 %v3123
  %4197 = vmatprep.subr.bf16.mxu0 0
  %4198 = vmatpush2.bf16.msra.mxu0 %v3122
  %4199 = vmatprep.subr.bf16.mxu0 0
  %4200 = vmatpush2.bf16.msra.mxu0 %v3121
  %4201 = vmatprep.mubr.bf16.mxu0 %v1007
  %4202 = vmatmul.mubr.bf16.gmra.mxu0 %v1005
  %v4203 = vpop.f32.mrf.mxu0
  %v4204 = vadd.f32 %v4164, %v4203
  %v4205 = vpop.f32.mrf.mxu0
  %v4206 = vpop.f32.mrf.mxu0
  %v4207 = vpop.f32.mrf.mxu0
  %4208 = vdwg.mxu0
  %4209 = vmatprep.subr.bf16.mxu0 0
  %4210 = vmatpush1.bf16.msra.mxu0 %v3136
  %4211 = vmatprep.subr.bf16.mxu0 0
  %4212 = vmatpush1.bf16.msra.mxu0 %v3135
  %4213 = vmatprep.subr.bf16.mxu0 0
  %4214 = vmatpush1.bf16.msra.mxu0 %v3134
  %4215 = vmatprep.subr.bf16.mxu0 0
  %4216 = vmatpush1.bf16.msra.mxu0 %v3133
  %4217 = vmatprep.subr.bf16.mxu0 0
  %4218 = vmatpush1.bf16.msra.mxu0 %v3132
  %4219 = vmatprep.subr.bf16.mxu0 0
  %4220 = vmatpush1.bf16.msra.mxu0 %v3131
  %4221 = vmatprep.subr.bf16.mxu0 0
  %4222 = vmatpush1.bf16.msra.mxu0 %v3130
  %4223 = vmatprep.subr.bf16.mxu0 0
  %4224 = vmatpush1.bf16.msra.mxu0 %v3129
  %4225 = vmatprep.subr.bf16.mxu0 0
  %4226 = vmatpush2.bf16.msra.mxu0 %v3144
  %4227 = vmatprep.subr.bf16.mxu0 0
  %4228 = vmatpush2.bf16.msra.mxu0 %v3143
  %4229 = vmatprep.subr.bf16.mxu0 0
  %4230 = vmatpush2.bf16.msra.mxu0 %v3142
  %4231 = vmatprep.subr.bf16.mxu0 0
  %4232 = vmatpush2.bf16.msra.mxu0 %v3141
  %4233 = vmatprep.subr.bf16.mxu0 0
  %4234 = vmatpush2.bf16.msra.mxu0 %v3140
  %4235 = vmatprep.subr.bf16.mxu0 0
  %4236 = vmatpush2.bf16.msra.mxu0 %v3139
  %4237 = vmatprep.subr.bf16.mxu0 0
  %4238 = vmatpush2.bf16.msra.mxu0 %v3138
  %4239 = vmatprep.subr.bf16.mxu0 0
  %4240 = vmatpush2.bf16.msra.mxu0 %v3137
  %4241 = vmatprep.mubr.bf16.mxu0 %v1023
  %4242 = vmatmul.mubr.bf16.gmra.mxu0 %v1015
  %v4243 = vpop.f32.mrf.mxu0
  %v4244 = vadd.f32 %v4204, %v4243
  %v4245 = vpop.f32.mrf.mxu0
  %v4246 = vpop.f32.mrf.mxu0
  %v4247 = vpop.f32.mrf.mxu0
  %4248 = vdwg.mxu0
  %4249 = vmatprep.subr.bf16.mxu0 0
  %4250 = vmatpush1.bf16.msra.mxu0 %v3152
  %4251 = vmatprep.subr.bf16.mxu0 0
  %4252 = vmatpush1.bf16.msra.mxu0 %v3151
  %4253 = vmatprep.subr.bf16.mxu0 0
  %4254 = vmatpush1.bf16.msra.mxu0 %v3150
  %4255 = vmatprep.subr.bf16.mxu0 0
  %4256 = vmatpush1.bf16.msra.mxu0 %v3149
  %4257 = vmatprep.subr.bf16.mxu0 0
  %4258 = vmatpush1.bf16.msra.mxu0 %v3148
  %4259 = vmatprep.subr.bf16.mxu0 0
  %4260 = vmatpush1.bf16.msra.mxu0 %v3147
  %4261 = vmatprep.subr.bf16.mxu0 0
  %4262 = vmatpush1.bf16.msra.mxu0 %v3146
  %4263 = vmatprep.subr.bf16.mxu0 0
  %4264 = vmatpush1.bf16.msra.mxu0 %v3145
  %4265 = vmatprep.subr.bf16.mxu0 0
  %4266 = vmatpush2.bf16.msra.mxu0 %v3160
  %4267 = vmatprep.subr.bf16.mxu0 0
  %4268 = vmatpush2.bf16.msra.mxu0 %v3159
  %4269 = vmatprep.subr.bf16.mxu0 0
  %4270 = vmatpush2.bf16.msra.mxu0 %v3158
  %4271 = vmatprep.subr.bf16.mxu0 0
  %4272 = vmatpush2.bf16.msra.mxu0 %v3157
  %4273 = vmatprep.subr.bf16.mxu0 0
  %4274 = vmatpush2.bf16.msra.mxu0 %v3156
  %4275 = vmatprep.subr.bf16.mxu0 0
  %4276 = vmatpush2.bf16.msra.mxu0 %v3155
  %4277 = vmatprep.subr.bf16.mxu0 0
  %4278 = vmatpush2.bf16.msra.mxu0 %v3154
  %4279 = vmatprep.subr.bf16.mxu0 0
  %4280 = vmatpush2.bf16.msra.mxu0 %v3153
  %4281 = vmatprep.mubr.bf16.mxu0 %v1024
  %4282 = vmatmul.mubr.bf16.gmra.mxu0 %v1022
  %v4283 = vpop.f32.mrf.mxu0
  %v4284 = vadd.f32 %v4244, %v4283
  %v4285 = vpop.f32.mrf.mxu0
  %v4286 = vpop.f32.mrf.mxu0
  %v4287 = vpop.f32.mrf.mxu0
  %4288 = vdwg.mxu0
  %4289 = vmatprep.subr.bf16.mxu0 0
  %4290 = vmatpush1.bf16.msra.mxu0 %v3168
  %4291 = vmatprep.subr.bf16.mxu0 0
  %4292 = vmatpush1.bf16.msra.mxu0 %v3167
  %4293 = vmatprep.subr.bf16.mxu0 0
  %4294 = vmatpush1.bf16.msra.mxu0 %v3166
  %4295 = vmatprep.subr.bf16.mxu0 0
  %4296 = vmatpush1.bf16.msra.mxu0 %v3165
  %4297 = vmatprep.subr.bf16.mxu0 0
  %4298 = vmatpush1.bf16.msra.mxu0 %v3164
  %4299 = vmatprep.subr.bf16.mxu0 0
  %4300 = vmatpush1.bf16.msra.mxu0 %v3163
  %4301 = vmatprep.subr.bf16.mxu0 0
  %4302 = vmatpush1.bf16.msra.mxu0 %v3162
  %4303 = vmatprep.subr.bf16.mxu0 0
  %4304 = vmatpush1.bf16.msra.mxu0 %v3161
  %4305 = vmatprep.subr.bf16.mxu0 0
  %4306 = vmatpush2.bf16.msra.mxu0 %v3176
  %4307 = vmatprep.subr.bf16.mxu0 0
  %4308 = vmatpush2.bf16.msra.mxu0 %v3175
  %4309 = vmatprep.subr.bf16.mxu0 0
  %4310 = vmatpush2.bf16.msra.mxu0 %v3174
  %4311 = vmatprep.subr.bf16.mxu0 0
  %4312 = vmatpush2.bf16.msra.mxu0 %v3173
  %4313 = vmatprep.subr.bf16.mxu0 0
  %4314 = vmatpush2.bf16.msra.mxu0 %v3172
  %4315 = vmatprep.subr.bf16.mxu0 0
  %4316 = vmatpush2.bf16.msra.mxu0 %v3171
  %4317 = vmatprep.subr.bf16.mxu0 0
  %4318 = vmatpush2.bf16.msra.mxu0 %v3170
  %4319 = vmatprep.subr.bf16.mxu0 0
  %4320 = vmatpush2.bf16.msra.mxu0 %v3169
  %4321 = vmatprep.mubr.bf16.mxu0 %v1040
  %4322 = vmatmul.mubr.bf16.gmra.mxu0 %v1032
  %v4323 = vpop.f32.mrf.mxu0
  %v4324 = vadd.f32 %v4284, %v4323
  %v4325 = vpop.f32.mrf.mxu0
  %v4326 = vpop.f32.mrf.mxu0
  %v4327 = vpop.f32.mrf.mxu0
  %4328 = vdwg.mxu0
  %4329 = vmatprep.subr.bf16.mxu0 0
  %4330 = vmatpush1.bf16.msra.mxu0 %v3184
  %4331 = vmatprep.subr.bf16.mxu0 0
  %4332 = vmatpush1.bf16.msra.mxu0 %v3183
  %4333 = vmatprep.subr.bf16.mxu0 0
  %4334 = vmatpush1.bf16.msra.mxu0 %v3182
  %4335 = vmatprep.subr.bf16.mxu0 0
  %4336 = vmatpush1.bf16.msra.mxu0 %v3181
  %4337 = vmatprep.subr.bf16.mxu0 0
  %4338 = vmatpush1.bf16.msra.mxu0 %v3180
  %4339 = vmatprep.subr.bf16.mxu0 0
  %4340 = vmatpush1.bf16.msra.mxu0 %v3179
  %4341 = vmatprep.subr.bf16.mxu0 0
  %4342 = vmatpush1.bf16.msra.mxu0 %v3178
  %4343 = vmatprep.subr.bf16.mxu0 0
  %4344 = vmatpush1.bf16.msra.mxu0 %v3177
  %4345 = vmatprep.subr.bf16.mxu0 0
  %4346 = vmatpush2.bf16.msra.mxu0 %v3192
  %4347 = vmatprep.subr.bf16.mxu0 0
  %4348 = vmatpush2.bf16.msra.mxu0 %v3191
  %4349 = vmatprep.subr.bf16.mxu0 0
  %4350 = vmatpush2.bf16.msra.mxu0 %v3190
  %4351 = vmatprep.subr.bf16.mxu0 0
  %4352 = vmatpush2.bf16.msra.mxu0 %v3189
  %4353 = vmatprep.subr.bf16.mxu0 0
  %4354 = vmatpush2.bf16.msra.mxu0 %v3188
  %4355 = vmatprep.subr.bf16.mxu0 0
  %4356 = vmatpush2.bf16.msra.mxu0 %v3187
  %4357 = vmatprep.subr.bf16.mxu0 0
  %4358 = vmatpush2.bf16.msra.mxu0 %v3186
  %4359 = vmatprep.subr.bf16.mxu0 0
  %4360 = vmatpush2.bf16.msra.mxu0 %v3185
  %4361 = vmatprep.mubr.bf16.mxu0 %v1041
  %4362 = vmatmul.mubr.bf16.gmra.mxu0 %v1039
  %v4363 = vpop.f32.mrf.mxu0
  %v4364 = vadd.f32 %v4324, %v4363
  %v4365 = vpop.f32.mrf.mxu0
  %v4366 = vpop.f32.mrf.mxu0
  %v4367 = vpop.f32.mrf.mxu0
  %4368 = vdwg.mxu0
  %4369 = vmatprep.subr.bf16.mxu0 0
  %4370 = vmatpush1.bf16.msra.mxu0 %v3200
  %4371 = vmatprep.subr.bf16.mxu0 0
  %4372 = vmatpush1.bf16.msra.mxu0 %v3199
  %4373 = vmatprep.subr.bf16.mxu0 0
  %4374 = vmatpush1.bf16.msra.mxu0 %v3198
  %4375 = vmatprep.subr.bf16.mxu0 0
  %4376 = vmatpush1.bf16.msra.mxu0 %v3197
  %4377 = vmatprep.subr.bf16.mxu0 0
  %4378 = vmatpush1.bf16.msra.mxu0 %v3196
  %4379 = vmatprep.subr.bf16.mxu0 0
  %4380 = vmatpush1.bf16.msra.mxu0 %v3195
  %4381 = vmatprep.subr.bf16.mxu0 0
  %4382 = vmatpush1.bf16.msra.mxu0 %v3194
  %4383 = vmatprep.subr.bf16.mxu0 0
  %4384 = vmatpush1.bf16.msra.mxu0 %v3193
  %4385 = vmatprep.subr.bf16.mxu0 0
  %4386 = vmatpush2.bf16.msra.mxu0 %v3208
  %4387 = vmatprep.subr.bf16.mxu0 0
  %4388 = vmatpush2.bf16.msra.mxu0 %v3207
  %4389 = vmatprep.subr.bf16.mxu0 0
  %4390 = vmatpush2.bf16.msra.mxu0 %v3206
  %4391 = vmatprep.subr.bf16.mxu0 0
  %4392 = vmatpush2.bf16.msra.mxu0 %v3205
  %4393 = vmatprep.subr.bf16.mxu0 0
  %4394 = vmatpush2.bf16.msra.mxu0 %v3204
  %4395 = vmatprep.subr.bf16.mxu0 0
  %4396 = vmatpush2.bf16.msra.mxu0 %v3203
  %4397 = vmatprep.subr.bf16.mxu0 0
  %4398 = vmatpush2.bf16.msra.mxu0 %v3202
  %4399 = vmatprep.subr.bf16.mxu0 0
  %4400 = vmatpush2.bf16.msra.mxu0 %v3201
  %4401 = vmatprep.mubr.bf16.mxu0 %v1057
  %4402 = vmatmul.mubr.bf16.gmra.mxu0 %v1049
  %v4403 = vpop.f32.mrf.mxu0
  %v4404 = vadd.f32 %v4364, %v4403
  %v4405 = vpop.f32.mrf.mxu0
  %v4406 = vpop.f32.mrf.mxu0
  %v4407 = vpop.f32.mrf.mxu0
  %4408 = vdwg.mxu0
  %4409 = vmatprep.subr.bf16.mxu0 0
  %4410 = vmatpush1.bf16.msra.mxu0 %v3216
  %4411 = vmatprep.subr.bf16.mxu0 0
  %4412 = vmatpush1.bf16.msra.mxu0 %v3215
  %4413 = vmatprep.subr.bf16.mxu0 0
  %4414 = vmatpush1.bf16.msra.mxu0 %v3214
  %4415 = vmatprep.subr.bf16.mxu0 0
  %4416 = vmatpush1.bf16.msra.mxu0 %v3213
  %4417 = vmatprep.subr.bf16.mxu0 0
  %4418 = vmatpush1.bf16.msra.mxu0 %v3212
  %4419 = vmatprep.subr.bf16.mxu0 0
  %4420 = vmatpush1.bf16.msra.mxu0 %v3211
  %4421 = vmatprep.subr.bf16.mxu0 0
  %4422 = vmatpush1.bf16.msra.mxu0 %v3210
  %4423 = vmatprep.subr.bf16.mxu0 0
  %4424 = vmatpush1.bf16.msra.mxu0 %v3209
  %4425 = vmatprep.subr.bf16.mxu0 0
  %4426 = vmatpush2.bf16.msra.mxu0 %v3224
  %4427 = vmatprep.subr.bf16.mxu0 0
  %4428 = vmatpush2.bf16.msra.mxu0 %v3223
  %4429 = vmatprep.subr.bf16.mxu0 0
  %4430 = vmatpush2.bf16.msra.mxu0 %v3222
  %4431 = vmatprep.subr.bf16.mxu0 0
  %4432 = vmatpush2.bf16.msra.mxu0 %v3221
  %4433 = vmatprep.subr.bf16.mxu0 0
  %4434 = vmatpush2.bf16.msra.mxu0 %v3220
  %4435 = vmatprep.subr.bf16.mxu0 0
  %4436 = vmatpush2.bf16.msra.mxu0 %v3219
  %4437 = vmatprep.subr.bf16.mxu0 0
  %4438 = vmatpush2.bf16.msra.mxu0 %v3218
  %4439 = vmatprep.subr.bf16.mxu0 0
  %4440 = vmatpush2.bf16.msra.mxu0 %v3217
  %4441 = vmatprep.mubr.bf16.mxu0 %v1058
  %4442 = vmatmul.mubr.bf16.gmra.mxu0 %v1056
  %v4443 = vpop.f32.mrf.mxu0
  %v4444 = vadd.f32 %v4404, %v4443
  %v4445 = vpop.f32.mrf.mxu0
  %v4446 = vpop.f32.mrf.mxu0
  %v4447 = vpop.f32.mrf.mxu0
  %4448 = vdwg.mxu0
  %4449 = vmatprep.subr.bf16.mxu0 0
  %4450 = vmatpush1.bf16.msra.mxu0 %v3232
  %4451 = vmatprep.subr.bf16.mxu0 0
  %4452 = vmatpush1.bf16.msra.mxu0 %v3231
  %4453 = vmatprep.subr.bf16.mxu0 0
  %4454 = vmatpush1.bf16.msra.mxu0 %v3230
  %4455 = vmatprep.subr.bf16.mxu0 0
  %4456 = vmatpush1.bf16.msra.mxu0 %v3229
  %4457 = vmatprep.subr.bf16.mxu0 0
  %4458 = vmatpush1.bf16.msra.mxu0 %v3228
  %4459 = vmatprep.subr.bf16.mxu0 0
  %4460 = vmatpush1.bf16.msra.mxu0 %v3227
  %4461 = vmatprep.subr.bf16.mxu0 0
  %4462 = vmatpush1.bf16.msra.mxu0 %v3226
  %4463 = vmatprep.subr.bf16.mxu0 0
  %4464 = vmatpush1.bf16.msra.mxu0 %v3225
  %4465 = vmatprep.subr.bf16.mxu0 0
  %4466 = vmatpush2.bf16.msra.mxu0 %v3240
  %4467 = vmatprep.subr.bf16.mxu0 0
  %4468 = vmatpush2.bf16.msra.mxu0 %v3239
  %4469 = vmatprep.subr.bf16.mxu0 0
  %4470 = vmatpush2.bf16.msra.mxu0 %v3238
  %4471 = vmatprep.subr.bf16.mxu0 0
  %4472 = vmatpush2.bf16.msra.mxu0 %v3237
  %4473 = vmatprep.subr.bf16.mxu0 0
  %4474 = vmatpush2.bf16.msra.mxu0 %v3236
  %4475 = vmatprep.subr.bf16.mxu0 0
  %4476 = vmatpush2.bf16.msra.mxu0 %v3235
  %4477 = vmatprep.subr.bf16.mxu0 0
  %4478 = vmatpush2.bf16.msra.mxu0 %v3234
  %4479 = vmatprep.subr.bf16.mxu0 0
  %4480 = vmatpush2.bf16.msra.mxu0 %v3233
  %4481 = vmatprep.mubr.bf16.mxu0 %v1074
  %4482 = vmatmul.mubr.bf16.gmra.mxu0 %v1066
  %v4483 = vpop.f32.mrf.mxu0
  %v4484 = vadd.f32 %v4444, %v4483
  %v4485 = vpop.f32.mrf.mxu0
  %v4486 = vpop.f32.mrf.mxu0
  %v4487 = vpop.f32.mrf.mxu0
  %4488 = vdwg.mxu0
  %4489 = vmatprep.subr.bf16.mxu0 0
  %4490 = vmatpush1.bf16.msra.mxu0 %v3248
  %4491 = vmatprep.subr.bf16.mxu0 0
  %4492 = vmatpush1.bf16.msra.mxu0 %v3247
  %4493 = vmatprep.subr.bf16.mxu0 0
  %4494 = vmatpush1.bf16.msra.mxu0 %v3246
  %4495 = vmatprep.subr.bf16.mxu0 0
  %4496 = vmatpush1.bf16.msra.mxu0 %v3245
  %4497 = vmatprep.subr.bf16.mxu0 0
  %4498 = vmatpush1.bf16.msra.mxu0 %v3244
  %4499 = vmatprep.subr.bf16.mxu0 0
  %4500 = vmatpush1.bf16.msra.mxu0 %v3243
  %4501 = vmatprep.subr.bf16.mxu0 0
  %4502 = vmatpush1.bf16.msra.mxu0 %v3242
  %4503 = vmatprep.subr.bf16.mxu0 0
  %4504 = vmatpush1.bf16.msra.mxu0 %v3241
  %4505 = vmatprep.subr.bf16.mxu0 0
  %4506 = vmatpush2.bf16.msra.mxu0 %v3256
  %4507 = vmatprep.subr.bf16.mxu0 0
  %4508 = vmatpush2.bf16.msra.mxu0 %v3255
  %4509 = vmatprep.subr.bf16.mxu0 0
  %4510 = vmatpush2.bf16.msra.mxu0 %v3254
  %4511 = vmatprep.subr.bf16.mxu0 0
  %4512 = vmatpush2.bf16.msra.mxu0 %v3253
  %4513 = vmatprep.subr.bf16.mxu0 0
  %4514 = vmatpush2.bf16.msra.mxu0 %v3252
  %4515 = vmatprep.subr.bf16.mxu0 0
  %4516 = vmatpush2.bf16.msra.mxu0 %v3251
  %4517 = vmatprep.subr.bf16.mxu0 0
  %4518 = vmatpush2.bf16.msra.mxu0 %v3250
  %4519 = vmatprep.subr.bf16.mxu0 0
  %4520 = vmatpush2.bf16.msra.mxu0 %v3249
  %4521 = vmatprep.mubr.bf16.mxu0 %v1075
  %4522 = vmatmul.mubr.bf16.gmra.mxu0 %v1073
  %v4523 = vpop.f32.mrf.mxu0
  %v4524 = vadd.f32 %v4484, %v4523
  %v4525 = vpop.f32.mrf.mxu0
  %v4526 = vpop.f32.mrf.mxu0
  %v4527 = vpop.f32.mrf.mxu0
  %4528 = vdwg.mxu0
  %4529 = vmatprep.subr.bf16.mxu0 0
  %4530 = vmatpush1.bf16.msra.mxu0 %v3264
  %4531 = vmatprep.subr.bf16.mxu0 0
  %4532 = vmatpush1.bf16.msra.mxu0 %v3263
  %4533 = vmatprep.subr.bf16.mxu0 0
  %4534 = vmatpush1.bf16.msra.mxu0 %v3262
  %4535 = vmatprep.subr.bf16.mxu0 0
  %4536 = vmatpush1.bf16.msra.mxu0 %v3261
  %4537 = vmatprep.subr.bf16.mxu0 0
  %4538 = vmatpush1.bf16.msra.mxu0 %v3260
  %4539 = vmatprep.subr.bf16.mxu0 0
  %4540 = vmatpush1.bf16.msra.mxu0 %v3259
  %4541 = vmatprep.subr.bf16.mxu0 0
  %4542 = vmatpush1.bf16.msra.mxu0 %v3258
  %4543 = vmatprep.subr.bf16.mxu0 0
  %4544 = vmatpush1.bf16.msra.mxu0 %v3257
  %4545 = vmatprep.subr.bf16.mxu0 0
  %4546 = vmatpush2.bf16.msra.mxu0 %v3272
  %4547 = vmatprep.subr.bf16.mxu0 0
  %4548 = vmatpush2.bf16.msra.mxu0 %v3271
  %4549 = vmatprep.subr.bf16.mxu0 0
  %4550 = vmatpush2.bf16.msra.mxu0 %v3270
  %4551 = vmatprep.subr.bf16.mxu0 0
  %4552 = vmatpush2.bf16.msra.mxu0 %v3269
  %4553 = vmatprep.subr.bf16.mxu0 0
  %4554 = vmatpush2.bf16.msra.mxu0 %v3268
  %4555 = vmatprep.subr.bf16.mxu0 0
  %4556 = vmatpush2.bf16.msra.mxu0 %v3267
  %4557 = vmatprep.subr.bf16.mxu0 0
  %4558 = vmatpush2.bf16.msra.mxu0 %v3266
  %4559 = vmatprep.subr.bf16.mxu0 0
  %4560 = vmatpush2.bf16.msra.mxu0 %v3265
  %4561 = vmatprep.mubr.bf16.mxu0 %v1091
  %4562 = vmatmul.mubr.bf16.gmra.mxu0 %v1083
  %v4563 = vpop.f32.mrf.mxu0
  %v4564 = vadd.f32 %v4524, %v4563
  %v4565 = vpop.f32.mrf.mxu0
  %v4566 = vpop.f32.mrf.mxu0
  %v4567 = vpop.f32.mrf.mxu0
  %4568 = vdwg.mxu0
  %4569 = vmatprep.subr.bf16.mxu0 0
  %4570 = vmatpush1.bf16.msra.mxu0 %v3280
  %4571 = vmatprep.subr.bf16.mxu0 0
  %4572 = vmatpush1.bf16.msra.mxu0 %v3279
  %4573 = vmatprep.subr.bf16.mxu0 0
  %4574 = vmatpush1.bf16.msra.mxu0 %v3278
  %4575 = vmatprep.subr.bf16.mxu0 0
  %4576 = vmatpush1.bf16.msra.mxu0 %v3277
  %4577 = vmatprep.subr.bf16.mxu0 0
  %4578 = vmatpush1.bf16.msra.mxu0 %v3276
  %4579 = vmatprep.subr.bf16.mxu0 0
  %4580 = vmatpush1.bf16.msra.mxu0 %v3275
  %4581 = vmatprep.subr.bf16.mxu0 0
  %4582 = vmatpush1.bf16.msra.mxu0 %v3274
  %4583 = vmatprep.subr.bf16.mxu0 0
  %4584 = vmatpush1.bf16.msra.mxu0 %v3273
  %4585 = vmatprep.subr.bf16.mxu0 0
  %4586 = vmatpush2.bf16.msra.mxu0 %v3288
  %4587 = vmatprep.subr.bf16.mxu0 0
  %4588 = vmatpush2.bf16.msra.mxu0 %v3287
  %4589 = vmatprep.subr.bf16.mxu0 0
  %4590 = vmatpush2.bf16.msra.mxu0 %v3286
  %4591 = vmatprep.subr.bf16.mxu0 0
  %4592 = vmatpush2.bf16.msra.mxu0 %v3285
  %4593 = vmatprep.subr.bf16.mxu0 0
  %4594 = vmatpush2.bf16.msra.mxu0 %v3284
  %4595 = vmatprep.subr.bf16.mxu0 0
  %4596 = vmatpush2.bf16.msra.mxu0 %v3283
  %4597 = vmatprep.subr.bf16.mxu0 0
  %4598 = vmatpush2.bf16.msra.mxu0 %v3282
  %4599 = vmatprep.subr.bf16.mxu0 0
  %4600 = vmatpush2.bf16.msra.mxu0 %v3281
  %4601 = vmatprep.mubr.bf16.mxu0 %v1092
  %4602 = vmatmul.mubr.bf16.gmra.mxu0 %v1090
  %v4603 = vpop.f32.mrf.mxu0
  %v4604 = vadd.f32 %v4564, %v4603
  %v4605 = vpop.f32.mrf.mxu0
  %v4606 = vpop.f32.mrf.mxu0
  %v4607 = vpop.f32.mrf.mxu0
  %4608 = vdwg.mxu0
  %4609 = vmatprep.subr.bf16.mxu0 0
  %4610 = vmatpush1.bf16.msra.mxu0 %v3296
  %4611 = vmatprep.subr.bf16.mxu0 0
  %4612 = vmatpush1.bf16.msra.mxu0 %v3295
  %4613 = vmatprep.subr.bf16.mxu0 0
  %4614 = vmatpush1.bf16.msra.mxu0 %v3294
  %4615 = vmatprep.subr.bf16.mxu0 0
  %4616 = vmatpush1.bf16.msra.mxu0 %v3293
  %4617 = vmatprep.subr.bf16.mxu0 0
  %4618 = vmatpush1.bf16.msra.mxu0 %v3292
  %4619 = vmatprep.subr.bf16.mxu0 0
  %4620 = vmatpush1.bf16.msra.mxu0 %v3291
  %4621 = vmatprep.subr.bf16.mxu0 0
  %4622 = vmatpush1.bf16.msra.mxu0 %v3290
  %4623 = vmatprep.subr.bf16.mxu0 0
  %4624 = vmatpush1.bf16.msra.mxu0 %v3289
  %4625 = vmatprep.subr.bf16.mxu0 0
  %4626 = vmatpush2.bf16.msra.mxu0 %v3304
  %4627 = vmatprep.subr.bf16.mxu0 0
  %4628 = vmatpush2.bf16.msra.mxu0 %v3303
  %4629 = vmatprep.subr.bf16.mxu0 0
  %4630 = vmatpush2.bf16.msra.mxu0 %v3302
  %4631 = vmatprep.subr.bf16.mxu0 0
  %4632 = vmatpush2.bf16.msra.mxu0 %v3301
  %4633 = vmatprep.subr.bf16.mxu0 0
  %4634 = vmatpush2.bf16.msra.mxu0 %v3300
  %4635 = vmatprep.subr.bf16.mxu0 0
  %4636 = vmatpush2.bf16.msra.mxu0 %v3299
  %4637 = vmatprep.subr.bf16.mxu0 0
  %4638 = vmatpush2.bf16.msra.mxu0 %v3298
  %4639 = vmatprep.subr.bf16.mxu0 0
  %4640 = vmatpush2.bf16.msra.mxu0 %v3297
  %4641 = vmatprep.mubr.bf16.mxu0 %v1108
  %4642 = vmatmul.mubr.bf16.gmra.mxu0 %v1100
  %v4643 = vpop.f32.mrf.mxu0
  %v4644 = vadd.f32 %v4604, %v4643
  %v4645 = vpop.f32.mrf.mxu0
  %v4646 = vpop.f32.mrf.mxu0
  %v4647 = vpop.f32.mrf.mxu0
  %4648 = vdwg.mxu0
  %4649 = vmatprep.subr.bf16.mxu0 0
  %4650 = vmatpush1.bf16.msra.mxu0 %v3312
  %4651 = vmatprep.subr.bf16.mxu0 0
  %4652 = vmatpush1.bf16.msra.mxu0 %v3311
  %4653 = vmatprep.subr.bf16.mxu0 0
  %4654 = vmatpush1.bf16.msra.mxu0 %v3310
  %4655 = vmatprep.subr.bf16.mxu0 0
  %4656 = vmatpush1.bf16.msra.mxu0 %v3309
  %4657 = vmatprep.subr.bf16.mxu0 0
  %4658 = vmatpush1.bf16.msra.mxu0 %v3308
  %4659 = vmatprep.subr.bf16.mxu0 0
  %4660 = vmatpush1.bf16.msra.mxu0 %v3307
  %4661 = vmatprep.subr.bf16.mxu0 0
  %4662 = vmatpush1.bf16.msra.mxu0 %v3306
  %4663 = vmatprep.subr.bf16.mxu0 0
  %4664 = vmatpush1.bf16.msra.mxu0 %v3305
  %4665 = vmatprep.subr.bf16.mxu0 0
  %4666 = vmatpush2.bf16.msra.mxu0 %v3320
  %4667 = vmatprep.subr.bf16.mxu0 0
  %4668 = vmatpush2.bf16.msra.mxu0 %v3319
  %4669 = vmatprep.subr.bf16.mxu0 0
  %4670 = vmatpush2.bf16.msra.mxu0 %v3318
  %4671 = vmatprep.subr.bf16.mxu0 0
  %4672 = vmatpush2.bf16.msra.mxu0 %v3317
  %4673 = vmatprep.subr.bf16.mxu0 0
  %4674 = vmatpush2.bf16.msra.mxu0 %v3316
  %4675 = vmatprep.subr.bf16.mxu0 0
  %4676 = vmatpush2.bf16.msra.mxu0 %v3315
  %4677 = vmatprep.subr.bf16.mxu0 0
  %4678 = vmatpush2.bf16.msra.mxu0 %v3314
  %4679 = vmatprep.subr.bf16.mxu0 0
  %4680 = vmatpush2.bf16.msra.mxu0 %v3313
  %4681 = vmatprep.mubr.bf16.mxu0 %v1109
  %4682 = vmatmul.mubr.bf16.gmra.mxu0 %v1107
  %v4683 = vpop.f32.mrf.mxu0
  %v4684 = vadd.f32 %v4644, %v4683
  %v4685 = vpop.f32.mrf.mxu0
  %v4686 = vpop.f32.mrf.mxu0
  %v4687 = vpop.f32.mrf.mxu0
  %4688 = vdwg.mxu0
  %4689 = vmatprep.subr.bf16.mxu0 0
  %4690 = vmatpush1.bf16.msra.mxu0 %v3328
  %4691 = vmatprep.subr.bf16.mxu0 0
  %4692 = vmatpush1.bf16.msra.mxu0 %v3327
  %4693 = vmatprep.subr.bf16.mxu0 0
  %4694 = vmatpush1.bf16.msra.mxu0 %v3326
  %4695 = vmatprep.subr.bf16.mxu0 0
  %4696 = vmatpush1.bf16.msra.mxu0 %v3325
  %4697 = vmatprep.subr.bf16.mxu0 0
  %4698 = vmatpush1.bf16.msra.mxu0 %v3324
  %4699 = vmatprep.subr.bf16.mxu0 0
  %4700 = vmatpush1.bf16.msra.mxu0 %v3323
  %4701 = vmatprep.subr.bf16.mxu0 0
  %4702 = vmatpush1.bf16.msra.mxu0 %v3322
  %4703 = vmatprep.subr.bf16.mxu0 0
  %4704 = vmatpush1.bf16.msra.mxu0 %v3321
  %4705 = vmatprep.subr.bf16.mxu0 0
  %4706 = vmatpush2.bf16.msra.mxu0 %v3336
  %4707 = vmatprep.subr.bf16.mxu0 0
  %4708 = vmatpush2.bf16.msra.mxu0 %v3335
  %4709 = vmatprep.subr.bf16.mxu0 0
  %4710 = vmatpush2.bf16.msra.mxu0 %v3334
  %4711 = vmatprep.subr.bf16.mxu0 0
  %4712 = vmatpush2.bf16.msra.mxu0 %v3333
  %4713 = vmatprep.subr.bf16.mxu0 0
  %4714 = vmatpush2.bf16.msra.mxu0 %v3332
  %4715 = vmatprep.subr.bf16.mxu0 0
  %4716 = vmatpush2.bf16.msra.mxu0 %v3331
  %4717 = vmatprep.subr.bf16.mxu0 0
  %4718 = vmatpush2.bf16.msra.mxu0 %v3330
  %4719 = vmatprep.subr.bf16.mxu0 0
  %4720 = vmatpush2.bf16.msra.mxu0 %v3329
  %4721 = vmatprep.mubr.bf16.mxu0 %v1125
  %4722 = vmatmul.mubr.bf16.gmra.mxu0 %v1117
  %v4723 = vpop.f32.mrf.mxu0
  %v4724 = vadd.f32 %v4684, %v4723
  %v4725 = vpop.f32.mrf.mxu0
  %v4726 = vpop.f32.mrf.mxu0
  %v4727 = vpop.f32.mrf.mxu0
  %4728 = vdwg.mxu0
  %4729 = vmatprep.subr.bf16.mxu0 0
  %4730 = vmatpush1.bf16.msra.mxu0 %v3344
  %4731 = vmatprep.subr.bf16.mxu0 0
  %4732 = vmatpush1.bf16.msra.mxu0 %v3343
  %4733 = vmatprep.subr.bf16.mxu0 0
  %4734 = vmatpush1.bf16.msra.mxu0 %v3342
  %4735 = vmatprep.subr.bf16.mxu0 0
  %4736 = vmatpush1.bf16.msra.mxu0 %v3341
  %4737 = vmatprep.subr.bf16.mxu0 0
  %4738 = vmatpush1.bf16.msra.mxu0 %v3340
  %4739 = vmatprep.subr.bf16.mxu0 0
  %4740 = vmatpush1.bf16.msra.mxu0 %v3339
  %4741 = vmatprep.subr.bf16.mxu0 0
  %4742 = vmatpush1.bf16.msra.mxu0 %v3338
  %4743 = vmatprep.subr.bf16.mxu0 0
  %4744 = vmatpush1.bf16.msra.mxu0 %v3337
  %4745 = vmatprep.subr.bf16.mxu0 0
  %4746 = vmatpush2.bf16.msra.mxu0 %v3352
  %4747 = vmatprep.subr.bf16.mxu0 0
  %4748 = vmatpush2.bf16.msra.mxu0 %v3351
  %4749 = vmatprep.subr.bf16.mxu0 0
  %4750 = vmatpush2.bf16.msra.mxu0 %v3350
  %4751 = vmatprep.subr.bf16.mxu0 0
  %4752 = vmatpush2.bf16.msra.mxu0 %v3349
  %4753 = vmatprep.subr.bf16.mxu0 0
  %4754 = vmatpush2.bf16.msra.mxu0 %v3348
  %4755 = vmatprep.subr.bf16.mxu0 0
  %4756 = vmatpush2.bf16.msra.mxu0 %v3347
  %4757 = vmatprep.subr.bf16.mxu0 0
  %4758 = vmatpush2.bf16.msra.mxu0 %v3346
  %4759 = vmatprep.subr.bf16.mxu0 0
  %4760 = vmatpush2.bf16.msra.mxu0 %v3345
  %4761 = vmatprep.mubr.bf16.mxu0 %v1126
  %4762 = vmatmul.mubr.bf16.gmra.mxu0 %v1124
  %v4763 = vpop.f32.mrf.mxu0
  %v4764 = vadd.f32 %v4724, %v4763
  %v4765 = vpop.f32.mrf.mxu0
  %v4766 = vpop.f32.mrf.mxu0
  %v4767 = vpop.f32.mrf.mxu0
  %4768 = vdwg.mxu0
  %4769 = vmatprep.subr.bf16.mxu0 0
  %4770 = vmatpush1.bf16.msra.mxu0 %v3360
  %4771 = vmatprep.subr.bf16.mxu0 0
  %4772 = vmatpush1.bf16.msra.mxu0 %v3359
  %4773 = vmatprep.subr.bf16.mxu0 0
  %4774 = vmatpush1.bf16.msra.mxu0 %v3358
  %4775 = vmatprep.subr.bf16.mxu0 0
  %4776 = vmatpush1.bf16.msra.mxu0 %v3357
  %4777 = vmatprep.subr.bf16.mxu0 0
  %4778 = vmatpush1.bf16.msra.mxu0 %v3356
  %4779 = vmatprep.subr.bf16.mxu0 0
  %4780 = vmatpush1.bf16.msra.mxu0 %v3355
  %4781 = vmatprep.subr.bf16.mxu0 0
  %4782 = vmatpush1.bf16.msra.mxu0 %v3354
  %4783 = vmatprep.subr.bf16.mxu0 0
  %4784 = vmatpush1.bf16.msra.mxu0 %v3353
  %4785 = vmatprep.subr.bf16.mxu0 0
  %4786 = vmatpush2.bf16.msra.mxu0 %v3368
  %4787 = vmatprep.subr.bf16.mxu0 0
  %4788 = vmatpush2.bf16.msra.mxu0 %v3367
  %4789 = vmatprep.subr.bf16.mxu0 0
  %4790 = vmatpush2.bf16.msra.mxu0 %v3366
  %4791 = vmatprep.subr.bf16.mxu0 0
  %4792 = vmatpush2.bf16.msra.mxu0 %v3365
  %4793 = vmatprep.subr.bf16.mxu0 0
  %4794 = vmatpush2.bf16.msra.mxu0 %v3364
  %4795 = vmatprep.subr.bf16.mxu0 0
  %4796 = vmatpush2.bf16.msra.mxu0 %v3363
  %4797 = vmatprep.subr.bf16.mxu0 0
  %4798 = vmatpush2.bf16.msra.mxu0 %v3362
  %4799 = vmatprep.subr.bf16.mxu0 0
  %4800 = vmatpush2.bf16.msra.mxu0 %v3361
  %4801 = vmatprep.mubr.bf16.mxu0 %v1142
  %4802 = vmatmul.mubr.bf16.gmra.mxu0 %v1134
  %v4803 = vpop.f32.mrf.mxu0
  %v4804 = vadd.f32 %v4764, %v4803
  %v4805 = vpop.f32.mrf.mxu0
  %v4806 = vpop.f32.mrf.mxu0
  %v4807 = vpop.f32.mrf.mxu0
  %4808 = vdwg.mxu0
  %4809 = vmatprep.subr.bf16.mxu0 0
  %4810 = vmatpush1.bf16.msra.mxu0 %v3376
  %4811 = vmatprep.subr.bf16.mxu0 0
  %4812 = vmatpush1.bf16.msra.mxu0 %v3375
  %4813 = vmatprep.subr.bf16.mxu0 0
  %4814 = vmatpush1.bf16.msra.mxu0 %v3374
  %4815 = vmatprep.subr.bf16.mxu0 0
  %4816 = vmatpush1.bf16.msra.mxu0 %v3373
  %4817 = vmatprep.subr.bf16.mxu0 0
  %4818 = vmatpush1.bf16.msra.mxu0 %v3372
  %4819 = vmatprep.subr.bf16.mxu0 0
  %4820 = vmatpush1.bf16.msra.mxu0 %v3371
  %4821 = vmatprep.subr.bf16.mxu0 0
  %4822 = vmatpush1.bf16.msra.mxu0 %v3370
  %4823 = vmatprep.subr.bf16.mxu0 0
  %4824 = vmatpush1.bf16.msra.mxu0 %v3369
  %4825 = vmatprep.subr.bf16.mxu0 0
  %4826 = vmatpush2.bf16.msra.mxu0 %v3384
  %4827 = vmatprep.subr.bf16.mxu0 0
  %4828 = vmatpush2.bf16.msra.mxu0 %v3383
  %4829 = vmatprep.subr.bf16.mxu0 0
  %4830 = vmatpush2.bf16.msra.mxu0 %v3382
  %4831 = vmatprep.subr.bf16.mxu0 0
  %4832 = vmatpush2.bf16.msra.mxu0 %v3381
  %4833 = vmatprep.subr.bf16.mxu0 0
  %4834 = vmatpush2.bf16.msra.mxu0 %v3380
  %4835 = vmatprep.subr.bf16.mxu0 0
  %4836 = vmatpush2.bf16.msra.mxu0 %v3379
  %4837 = vmatprep.subr.bf16.mxu0 0
  %4838 = vmatpush2.bf16.msra.mxu0 %v3378
  %4839 = vmatprep.subr.bf16.mxu0 0
  %4840 = vmatpush2.bf16.msra.mxu0 %v3377
  %4841 = vmatprep.mubr.bf16.mxu0 %v1143
  %4842 = vmatmul.mubr.bf16.gmra.mxu0 %v1141
  %v4843 = vpop.f32.mrf.mxu0
  %v4844 = vadd.f32 %v4804, %v4843
  %v4845 = vpop.f32.mrf.mxu0
  %v4846 = vpop.f32.mrf.mxu0
  %v4847 = vpop.f32.mrf.mxu0
  %4848 = vdwg.mxu0
  %4849 = vmatprep.subr.bf16.mxu0 0
  %4850 = vmatpush1.bf16.msra.mxu0 %v3392
  %4851 = vmatprep.subr.bf16.mxu0 0
  %4852 = vmatpush1.bf16.msra.mxu0 %v3391
  %4853 = vmatprep.subr.bf16.mxu0 0
  %4854 = vmatpush1.bf16.msra.mxu0 %v3390
  %4855 = vmatprep.subr.bf16.mxu0 0
  %4856 = vmatpush1.bf16.msra.mxu0 %v3389
  %4857 = vmatprep.subr.bf16.mxu0 0
  %4858 = vmatpush1.bf16.msra.mxu0 %v3388
  %4859 = vmatprep.subr.bf16.mxu0 0
  %4860 = vmatpush1.bf16.msra.mxu0 %v3387
  %4861 = vmatprep.subr.bf16.mxu0 0
  %4862 = vmatpush1.bf16.msra.mxu0 %v3386
  %4863 = vmatprep.subr.bf16.mxu0 0
  %4864 = vmatpush1.bf16.msra.mxu0 %v3385
  %4865 = vmatprep.subr.bf16.mxu0 0
  %4866 = vmatpush2.bf16.msra.mxu0 %v3400
  %4867 = vmatprep.subr.bf16.mxu0 0
  %4868 = vmatpush2.bf16.msra.mxu0 %v3399
  %4869 = vmatprep.subr.bf16.mxu0 0
  %4870 = vmatpush2.bf16.msra.mxu0 %v3398
  %4871 = vmatprep.subr.bf16.mxu0 0
  %4872 = vmatpush2.bf16.msra.mxu0 %v3397
  %4873 = vmatprep.subr.bf16.mxu0 0
  %4874 = vmatpush2.bf16.msra.mxu0 %v3396
  %4875 = vmatprep.subr.bf16.mxu0 0
  %4876 = vmatpush2.bf16.msra.mxu0 %v3395
  %4877 = vmatprep.subr.bf16.mxu0 0
  %4878 = vmatpush2.bf16.msra.mxu0 %v3394
  %4879 = vmatprep.subr.bf16.mxu0 0
  %4880 = vmatpush2.bf16.msra.mxu0 %v3393
  %4881 = vmatprep.mubr.bf16.mxu0 %v1159
  %4882 = vmatmul.mubr.bf16.gmra.mxu0 %v1151
  %v4883 = vpop.f32.mrf.mxu0
  %v4884 = vadd.f32 %v4844, %v4883
  %v4885 = vpop.f32.mrf.mxu0
  %v4886 = vpop.f32.mrf.mxu0
  %v4887 = vpop.f32.mrf.mxu0
  %4888 = vdwg.mxu0
  %4889 = vmatprep.subr.bf16.mxu0 0
  %4890 = vmatpush1.bf16.msra.mxu0 %v3408
  %4891 = vmatprep.subr.bf16.mxu0 0
  %4892 = vmatpush1.bf16.msra.mxu0 %v3407
  %4893 = vmatprep.subr.bf16.mxu0 0
  %4894 = vmatpush1.bf16.msra.mxu0 %v3406
  %4895 = vmatprep.subr.bf16.mxu0 0
  %4896 = vmatpush1.bf16.msra.mxu0 %v3405
  %4897 = vmatprep.subr.bf16.mxu0 0
  %4898 = vmatpush1.bf16.msra.mxu0 %v3404
  %4899 = vmatprep.subr.bf16.mxu0 0
  %4900 = vmatpush1.bf16.msra.mxu0 %v3403
  %4901 = vmatprep.subr.bf16.mxu0 0
  %4902 = vmatpush1.bf16.msra.mxu0 %v3402
  %4903 = vmatprep.subr.bf16.mxu0 0
  %4904 = vmatpush1.bf16.msra.mxu0 %v3401
  %4905 = vmatprep.subr.bf16.mxu0 0
  %4906 = vmatpush2.bf16.msra.mxu0 %v3416
  %4907 = vmatprep.subr.bf16.mxu0 0
  %4908 = vmatpush2.bf16.msra.mxu0 %v3415
  %4909 = vmatprep.subr.bf16.mxu0 0
  %4910 = vmatpush2.bf16.msra.mxu0 %v3414
  %4911 = vmatprep.subr.bf16.mxu0 0
  %4912 = vmatpush2.bf16.msra.mxu0 %v3413
  %4913 = vmatprep.subr.bf16.mxu0 0
  %4914 = vmatpush2.bf16.msra.mxu0 %v3412
  %4915 = vmatprep.subr.bf16.mxu0 0
  %4916 = vmatpush2.bf16.msra.mxu0 %v3411
  %4917 = vmatprep.subr.bf16.mxu0 0
  %4918 = vmatpush2.bf16.msra.mxu0 %v3410
  %4919 = vmatprep.subr.bf16.mxu0 0
  %4920 = vmatpush2.bf16.msra.mxu0 %v3409
  %4921 = vmatprep.mubr.bf16.mxu0 %v1160
  %4922 = vmatmul.mubr.bf16.gmra.mxu0 %v1158
  %v4923 = vpop.f32.mrf.mxu0
  %v4924 = vadd.f32 %v4884, %v4923
  %v4925 = vpop.f32.mrf.mxu0
  %v4926 = vpop.f32.mrf.mxu0
  %v4927 = vpop.f32.mrf.mxu0
  %4928 = vdwg.mxu0
  %4929 = vmatprep.subr.bf16.mxu0 0
  %4930 = vmatpush1.bf16.msra.mxu0 %v3424
  %4931 = vmatprep.subr.bf16.mxu0 0
  %4932 = vmatpush1.bf16.msra.mxu0 %v3423
  %4933 = vmatprep.subr.bf16.mxu0 0
  %4934 = vmatpush1.bf16.msra.mxu0 %v3422
  %4935 = vmatprep.subr.bf16.mxu0 0
  %4936 = vmatpush1.bf16.msra.mxu0 %v3421
  %4937 = vmatprep.subr.bf16.mxu0 0
  %4938 = vmatpush1.bf16.msra.mxu0 %v3420
  %4939 = vmatprep.subr.bf16.mxu0 0
  %4940 = vmatpush1.bf16.msra.mxu0 %v3419
  %4941 = vmatprep.subr.bf16.mxu0 0
  %4942 = vmatpush1.bf16.msra.mxu0 %v3418
  %4943 = vmatprep.subr.bf16.mxu0 0
  %4944 = vmatpush1.bf16.msra.mxu0 %v3417
  %4945 = vmatprep.subr.bf16.mxu0 0
  %4946 = vmatpush2.bf16.msra.mxu0 %v3432
  %4947 = vmatprep.subr.bf16.mxu0 0
  %4948 = vmatpush2.bf16.msra.mxu0 %v3431
  %4949 = vmatprep.subr.bf16.mxu0 0
  %4950 = vmatpush2.bf16.msra.mxu0 %v3430
  %4951 = vmatprep.subr.bf16.mxu0 0
  %4952 = vmatpush2.bf16.msra.mxu0 %v3429
  %4953 = vmatprep.subr.bf16.mxu0 0
  %4954 = vmatpush2.bf16.msra.mxu0 %v3428
  %4955 = vmatprep.subr.bf16.mxu0 0
  %4956 = vmatpush2.bf16.msra.mxu0 %v3427
  %4957 = vmatprep.subr.bf16.mxu0 0
  %4958 = vmatpush2.bf16.msra.mxu0 %v3426
  %4959 = vmatprep.subr.bf16.mxu0 0
  %4960 = vmatpush2.bf16.msra.mxu0 %v3425
  %4961 = vmatprep.mubr.bf16.mxu0 %v1176
  %4962 = vmatmul.mubr.bf16.gmra.mxu0 %v1168
  %v4963 = vpop.f32.mrf.mxu0
  %v4964 = vadd.f32 %v4924, %v4963
  %v4965 = vpop.f32.mrf.mxu0
  %v4966 = vpop.f32.mrf.mxu0
  %v4967 = vpop.f32.mrf.mxu0
  %4968 = vdwg.mxu0
  %4969 = vmatprep.subr.bf16.mxu0 0
  %4970 = vmatpush1.bf16.msra.mxu0 %v3440
  %4971 = vmatprep.subr.bf16.mxu0 0
  %4972 = vmatpush1.bf16.msra.mxu0 %v3439
  %4973 = vmatprep.subr.bf16.mxu0 0
  %4974 = vmatpush1.bf16.msra.mxu0 %v3438
  %4975 = vmatprep.subr.bf16.mxu0 0
  %4976 = vmatpush1.bf16.msra.mxu0 %v3437
  %4977 = vmatprep.subr.bf16.mxu0 0
  %4978 = vmatpush1.bf16.msra.mxu0 %v3436
  %4979 = vmatprep.subr.bf16.mxu0 0
  %4980 = vmatpush1.bf16.msra.mxu0 %v3435
  %4981 = vmatprep.subr.bf16.mxu0 0
  %4982 = vmatpush1.bf16.msra.mxu0 %v3434
  %4983 = vmatprep.subr.bf16.mxu0 0
  %4984 = vmatpush1.bf16.msra.mxu0 %v3433
  %4985 = vmatprep.subr.bf16.mxu0 0
  %4986 = vmatpush2.bf16.msra.mxu0 0
  %4987 = vmatprep.subr.bf16.mxu0 0
  %4988 = vmatpush2.bf16.msra.mxu0 0
  %4989 = vmatprep.subr.bf16.mxu0 0
  %4990 = vmatpush2.bf16.msra.mxu0 0
  %4991 = vmatprep.subr.bf16.mxu0 0
  %4992 = vmatpush2.bf16.msra.mxu0 0
  %4993 = vmatprep.subr.bf16.mxu0 0
  %4994 = vmatpush2.bf16.msra.mxu0 0
  %4995 = vmatprep.subr.bf16.mxu0 0
  %4996 = vmatpush2.bf16.msra.mxu0 0
  %4997 = vmatprep.subr.bf16.mxu0 0
  %4998 = vmatpush2.bf16.msra.mxu0 %v3442
  %4999 = vmatprep.subr.bf16.mxu0 0
  %5000 = vmatpush2.bf16.msra.mxu0 %v3441
  %5001 = vmatprep.mubr.bf16.mxu0 %v3887
  %5002 = vmatmul.mubr.bf16.gmra.mxu0 %v1175
  %v5003 = vpop.f32.mrf.mxu0
  %v5004 = vadd.f32 %v4964, %v5003
  %v5005 = vpop.f32.mrf.mxu0
  %v5006 = vpop.f32.mrf.mxu0
  %v5007 = vpop.f32.mrf.mxu0
  %5008 = vdwg.mxu0
  %vm5009 = vcmp.ge.f32.partialorder %v5004, 0.0
  %v5010 = vmul.f32 %v5004, 0.01
  %v5011 = vsel %vm5009, %v5004, %v5010
  %v5012 = vld [vmem:[%s3] sm:$0xff]
  %v5013 = vld [vmem:[%s3 + $0x8] sm:$0xff]
  %v5014 = vld [vmem:[%s3 + $0x10] sm:$0xff]
  %v5015 = vld [vmem:[%s3 + $0x18] sm:$0xff]
  %v5016 = vld [vmem:[%s4] sm:$0x1]
  %v5018 = vlaneseq
  %v5019 = vshrl.u32 %v5018, 7
  %v5020 = vsub.s32 0, %v5019
  %v5021 = vrot.slane %v5016, %v5020
  %v5024 = vsel %vm3885, %v5011, 0
  %5026 = vmatprep.subr.mxu0 0.0
  %5027 = vmatpush1.msra.mxu0 0.0
  %5028 = vmatprep.subr.mxu0 0.0
  %5029 = vmatpush1.msra.mxu0 0.0
  %5030 = vmatprep.subr.mxu0 0.0
  %5031 = vmatpush1.msra.mxu0 0.0
  %5032 = vmatprep.subr.mxu0 0.0
  %5033 = vmatpush1.msra.mxu0 0.0
  %5034 = vmatprep.subr.mxu0 0.0
  %5035 = vmatpush1.msra.mxu0 0.0
  %5036 = vmatprep.subr.mxu0 0.0
  %5037 = vmatpush1.msra.mxu0 0.0
  %5038 = vmatprep.subr.mxu0 0.0
  %5039 = vmatpush1.msra.mxu0 0.0
  %5040 = vmatprep.subr.mxu0 0.0
  %5041 = vmatpush1.msra.mxu0 0.0
  %5042 = vmatprep.subr.mxu0 0.0
  %5043 = vmatpush1.msra.mxu0 0.0
  %5044 = vmatprep.subr.mxu0 0.0
  %5045 = vmatpush1.msra.mxu0 0.0
  %5046 = vmatprep.subr.mxu0 0.0
  %5047 = vmatpush1.msra.mxu0 0.0
  %5048 = vmatprep.subr.mxu0 0.0
  %5049 = vmatpush1.msra.mxu0 0.0
  %5050 = vmatprep.subr.mxu0 0.0
  %5051 = vmatpush1.msra.mxu0 %v5015
  %5052 = vmatprep.subr.mxu0 0.0
  %5053 = vmatpush1.msra.mxu0 %v5014
  %5054 = vmatprep.subr.mxu0 0.0
  %5055 = vmatpush1.msra.mxu0 %v5013
  %5056 = vmatprep.subr.mxu0 0.0
  %5057 = vmatpush1.msra.mxu0 %v5012
  %5058 = vmatprep.subr.mxu0 0.0
  %5059 = vmatpush2.msra.mxu0 0.0
  %5060 = vmatprep.subr.mxu0 0.0
  %5061 = vmatpush2.msra.mxu0 0.0
  %5062 = vmatprep.subr.mxu0 0.0
  %5063 = vmatpush2.msra.mxu0 0.0
  %5064 = vmatprep.subr.mxu0 0.0
  %5065 = vmatpush2.msra.mxu0 0.0
  %5066 = vmatprep.subr.mxu0 0.0
  %5067 = vmatpush2.msra.mxu0 0.0
  %5068 = vmatprep.subr.mxu0 0.0
  %5069 = vmatpush2.msra.mxu0 0.0
  %5070 = vmatprep.subr.mxu0 0.0
  %5071 = vmatpush2.msra.mxu0 0.0
  %5072 = vmatprep.subr.mxu0 0.0
  %5073 = vmatpush2.msra.mxu0 0.0
  %5074 = vmatprep.subr.mxu0 0.0
  %5075 = vmatpush2.msra.mxu0 0.0
  %5076 = vmatprep.subr.mxu0 0.0
  %5077 = vmatpush2.msra.mxu0 0.0
  %5078 = vmatprep.subr.mxu0 0.0
  %5079 = vmatpush2.msra.mxu0 0.0
  %5080 = vmatprep.subr.mxu0 0.0
  %5081 = vmatpush2.msra.mxu0 0.0
  %5082 = vmatprep.subr.mxu0 0.0
  %5083 = vmatpush2.msra.mxu0 0.0
  %5084 = vmatprep.subr.mxu0 0.0
  %5085 = vmatpush2.msra.mxu0 0.0
  %5086 = vmatprep.subr.mxu0 0.0
  %5087 = vmatpush2.msra.mxu0 0.0
  %5088 = vmatprep.subr.mxu0 0.0
  %5089 = vmatpush2.msra.mxu0 0.0
  %5090 = vmatprep.mubr.f32.mxu0 0.0
  %5091 = vmatmul.mubr.f32.gmra.mxu0 %v5024
  %v5092 = vpop.f32.mrf.mxu0
  %v5093 = vadd.f32 %v5021, %v5092
  %v5094 = vpop.f32.mrf.mxu0
  %5095 = vdwg.mxu0
  %vm5096 = vcmask 60416
  %5097 = vst.msk [vmem:[%s5] sm:$0xf] %vm5096, %v5093
  // Predicated region
  $region22: #{neural_net_forward.3} parent=0 // pred_check
    _
  $region23: #{neural_net_forward.3} parent=0 // pred_check_branch
    %5099 = sbr.rel (0) target = $region25
  $region24: #{neural_net_forward.3} parent=0 // pred_region
    _
  $region25: #{neural_net_forward.3} parent=0 // pred_fallthru
    _
  // Predicated region
  $region26: #{neural_net_forward.3} parent=0 // pred_check
    _
  $region27: #{neural_net_forward.3} parent=0 // pred_check_branch
    %5101 = sbr.rel (0) target = $region29
  $region28: #{neural_net_forward.3} parent=0 // pred_region
    _
  $region29: #{neural_net_forward.3} parent=0 // pred_fallthru
    _

</llo_original>
